<compile_context>
chip_gen: v7x
topology: tpu7x:2x2x1
jax: 0.10.0
libtpu: 0.0.40
codegen_flags: <defaults>
</compile_context>

<pallas_src>
import math
import functools

import jax
import jax.numpy as jnp
from jax.experimental import pallas as pl
from jax.experimental.pallas import tpu as pltpu

NEG_INF = -1e30  # additive mask value (large-negative instead of -inf)


# ------------------------- in-kernel helper functions ----------------------- #

def _layernorm(y, g, b):
    # PyTorch LayerNorm, eps = 1e-5 (f32 math)
    mean = jnp.mean(y, axis=-1, keepdims=True)
    var = jnp.mean(jnp.square(y - mean), axis=-1, keepdims=True)
    return (y - mean) * jax.lax.rsqrt(var + 1e-5) * g + b


def _ffn(x, w1, b1, w2, b2):
    # linear2(relu(linear1(x))); weights bf16, accumulate in f32
    h = jnp.dot(x.astype(jnp.bfloat16), w1, preferred_element_type=jnp.float32) + b1
    h = jnp.maximum(h, 0.0)
    return jnp.dot(h.astype(jnp.bfloat16), w2, preferred_element_type=jnp.float32) + b2


def _mha_core(q, k, v, bias, wo, bo, nhead):
    """Multi-head attention on already-projected 2-D activations.

    q:  [Sq, D] f32 queries,  k/v: [Skv, D] f32 keys / values
    bias: additive mask broadcastable to [Sq, Skv] (key-padding and/or causal)
    wo: [D, D] bf16, bo: [1, D] f32 output projection.
    Per-head score matmuls are inherently K=dh; contexts are concatenated and
    projected with a single K=D matmul.
    """
    Sq, D = q.shape
    dh = D // nhead
    qb = (q * (1.0 / math.sqrt(dh))).astype(jnp.bfloat16)   # scale q in f32 first
    kT = k.T.astype(jnp.bfloat16)                            # [D, Skv], one transpose
    vb = v.astype(jnp.bfloat16)

    ctx = []
    for h in range(nhead):                                   # small static unroll
        s = jnp.dot(qb[:, h * dh:(h + 1) * dh], kT[h * dh:(h + 1) * dh, :],
                    preferred_element_type=jnp.float32)      # [Sq, Skv] f32
        s = s + bias                                         # masks applied directly
        s = s - jnp.max(s, axis=-1, keepdims=True)
        p = jnp.exp(s)
        p = p * pl.reciprocal(jnp.sum(p, axis=-1, keepdims=True), approx=True)
        ctx.append(jnp.dot(p.astype(jnp.bfloat16), vb[:, h * dh:(h + 1) * dh],
                           preferred_element_type=jnp.float32))
    ctx_all = jnp.concatenate(ctx, axis=-1).astype(jnp.bfloat16)   # [Sq, D]
    return jnp.dot(ctx_all, wo, preferred_element_type=jnp.float32) + bo


# --------------------- fused encoder+decoder stack kernel ------------------- #

def _transformer_stack_kernel(
        # inputs (batch-sliced or constant)
        x0_ref, bbox_ref, bboxw_ref, bboxb_ref, kpad_ref, y0_ref,
        # encoder per-layer weights (stacked over layers)
        e_wqkv, e_bqkv, e_wo, e_bo, e_ln1g, e_ln1b,
        e_w1, e_b1, e_w2, e_b2, e_ln2g, e_ln2b,
        # decoder per-layer weights (stacked over layers)
        d_swqkv, d_sbqkv, d_swo, d_sbo,
        d_cwq, d_cbq, d_cwkv, d_cbkv, d_cwo, d_cbo,
        d_ln1g, d_ln1b, d_ln2g, d_ln2b, d_ln3g, d_ln3b,
        d_w1, d_b1, d_w2, d_b2,
        # vocab projection
        outw_hbm, outb_ref,
        # output
        o_ref,
        # scratch
        mem_ref, act_ref, causal_ref, outw_vmem, outw_sem,
        *, nhead, num_enc, num_dec):
    l = pl.program_id(1)
    L = num_enc + num_dec
    S, D = mem_ref.shape
    T = act_ref.shape[0]

    # -- step 0 of every batch block: encoder input embedding (+ fused bbox
    #    Linear(4,D)) into the resident VMEM activation; causal additive bias
    #    built ONCE and reused by every decoder layer.
    @pl.when(l == 0)
    def _init():
        proj = (jnp.dot(bbox_ref[...], bboxw_ref[...],
                        preferred_element_type=jnp.float32) + bboxb_ref[...])
        mem_ref[...] = x0_ref[...] + proj
        r = jax.lax.broadcasted_iota(jnp.int32, (T, T), 0)
        c = jax.lax.broadcasted_iota(jnp.int32, (T, T), 1)
        causal_ref[...] = jnp.where(c > r, NEG_INF, 0.0).astype(jnp.float32)

    # -- late prefetch of the vocab projection (HBM -> VMEM staging buffer),
    #    hidden behind the last decoder layer instead of being resident as a
    #    pipelined block for the whole grid.
    @pl.when(l == max(L - 2, 0))
    def _prefetch_outw():
        pltpu.make_async_copy(outw_hbm, outw_vmem, outw_sem).start()

    # ------------------------------ encoder layer --------------------------- #
    @pl.when(l < num_enc)
    def _encoder_layer():
        x = mem_ref[...]                                      # [S, D] f32
        qkv = (jnp.dot(x.astype(jnp.bfloat16), e_wqkv[...],
                       preferred_element_type=jnp.float32) + e_bqkv[...])
        a = _mha_core(qkv[:, :D], qkv[:, D:2 * D], qkv[:, 2 * D:],
                      kpad_ref[...], e_wo[...], e_bo[...], nhead)
        x = _layernorm(x + a, e_ln1g[...], e_ln1b[...])
        f = _ffn(x, e_w1[...], e_b1[...], e_w2[...], e_b2[...])
        x = _layernorm(x + f, e_ln2g[...], e_ln2b[...])
        mem_ref[...] = x

    # ------------------------------ decoder layer --------------------------- #
    @pl.when(l == num_enc)
    def _init_dec():
        act_ref[...] = y0_ref[...]

    @pl.when(l >= num_enc)
    def _decoder_layer():
        y = act_ref[...]                                      # [T, D] f32

        # causal self-attention (fused QKV projection)
        qkv = (jnp.dot(y.astype(jnp.bfloat16), d_swqkv[...],
                       preferred_element_type=jnp.float32) + d_sbqkv[...])
        a = _mha_core(qkv[:, :D], qkv[:, D:2 * D], qkv[:, 2 * D:],
                      causal_ref[...], d_swo[...], d_sbo[...], nhead)
        y = _layernorm(y + a, d_ln1g[...], d_ln1b[...])

        # cross-attention over encoder memory (fused KV projection)
        mem = mem_ref[...]
        q = (jnp.dot(y.astype(jnp.bfloat16), d_cwq[...],
                     preferred_element_type=jnp.float32) + d_cbq[...])
        kv = (jnp.dot(mem.astype(jnp.bfloat16), d_cwkv[...],
                      preferred_element_type=jnp.float32) + d_cbkv[...])
        c = _mha_core(q, kv[:, :D], kv[:, D:],
                      kpad_ref[...], d_cwo[...], d_cbo[...], nhead)
        y = _layernorm(y + c, d_ln2g[...], d_ln2b[...])

        # feed-forward
        f = _ffn(y, d_w1[...], d_b1[...], d_w2[...], d_b2[...])
        y = _layernorm(y + f, d_ln3g[...], d_ln3b[...])

        # carry the activation -- skip the dead store on the final step
        @pl.when(l < L - 1)
        def _carry():
            act_ref[...] = y

        # final step: wait for the vocab-matrix DMA and write lane-dense logits
        @pl.when(l == L - 1)
        def _final():
            pltpu.make_async_copy(outw_hbm, outw_vmem, outw_sem).wait()
            logits = (jnp.dot(y.astype(jnp.bfloat16), outw_vmem[...],
                              preferred_element_type=jnp.float32) + outb_ref[...])
            o_ref[...] = logits


def transformer_stack(x0, bboxes, kpad_add, y0, p, cfg):
    B, S, D = x0.shape
    T = y0.shape[1]
    F = cfg["dff"]
    Le, Ld, H = cfg["num_enc"], cfg["num_dec"], cfg["nhead"]
    L = Le + Ld
    Vp = p["out_w_pad"].shape[1]

    # batch-sliced (squeezed) blocks, constant blocks, and per-layer stacks with
    # clamped layer indices (encoder weights frozen at Le-1 during decoder
    # steps, decoder weights at 0 during encoder steps -> no redundant DMA).
    batched = lambda tail: pl.BlockSpec((None,) + tail,
                                        lambda b, l, _t=len(tail): (b,) + (0,) * _t)
    const = lambda shp: pl.BlockSpec(shp, lambda b, l, _t=len(shp): (0,) * _t)
    enc_l = lambda tail: pl.BlockSpec(
        (None,) + tail,
        lambda b, l, _t=len(tail): (jnp.minimum(l, max(Le - 1, 0)),) + (0,) * _t)
    dec_l = lambda tail: pl.BlockSpec(
        (None,) + tail,
        lambda b, l, _t=len(tail): (jnp.maximum(l - Le, 0),) + (0,) * _t)

    kern = functools.partial(_transformer_stack_kernel,
                             nhead=H, num_enc=Le, num_dec=Ld)

    return pl.pallas_call(
        kern,
        out_shape=jax.ShapeDtypeStruct((B, T, Vp), jnp.float32),
        grid=(B, L),
        in_specs=[
            batched((S, D)),         # x0 = token emb + pe
            batched((S, 4)),         # bboxes
            const((4, D)),           # bbox_w
            const((1, D)),           # bbox_b
            batched((1, S)),         # key-padding additive bias
            batched((T, D)),         # y0 = tgt token emb + pe
            # encoder per-layer weights
            enc_l((D, 3 * D)), enc_l((1, 3 * D)),
            enc_l((D, D)), enc_l((1, D)),
            enc_l((1, D)), enc_l((1, D)),
            enc_l((D, F)), enc_l((1, F)),
            enc_l((F, D)), enc_l((1, D)),
            enc_l((1, D)), enc_l((1, D)),
            # decoder per-layer weights
            dec_l((D, 3 * D)), dec_l((1, 3 * D)),
            dec_l((D, D)), dec_l((1, D)),
            dec_l((D, D)), dec_l((1, D)),
            dec_l((D, 2 * D)), dec_l((1, 2 * D)),
            dec_l((D, D)), dec_l((1, D)),
            dec_l((1, D)), dec_l((1, D)),
            dec_l((1, D)), dec_l((1, D)),
            dec_l((1, D)), dec_l((1, D)),
            dec_l((D, F)), dec_l((1, F)),
            dec_l((F, D)), dec_l((1, D)),
            # vocab projection: matrix stays in HBM (manually DMA'd late)
            pl.BlockSpec(memory_space=pl.ANY),
            const((1, Vp)),
        ],
        out_specs=batched((T, Vp)),
        scratch_shapes=[
            pltpu.VMEM((S, D), jnp.float32),      # encoder activation / memory
            pltpu.VMEM((T, D), jnp.float32),      # decoder activation
            pltpu.VMEM((T, T), jnp.float32),      # causal additive bias
            pltpu.VMEM((D, Vp), jnp.bfloat16),    # vocab matrix staging buffer
            pltpu.SemaphoreType.DMA,              # its DMA semaphore
        ],
        compiler_params=pltpu.CompilerParams(
            dimension_semantics=("parallel", "arbitrary"),
            vmem_limit_bytes=48 * 1024 * 1024,    # explicit (v5e default is ~16 MiB)
        ),
    )(x0, bboxes, p["bbox_w"], p["bbox_b"], kpad_add, y0,
      p["enc_wqkv"], p["enc_bqkv"], p["enc_wo"], p["enc_bo"],
      p["enc_ln1g"], p["enc_ln1b"],
      p["enc_w1"], p["enc_b1"], p["enc_w2"], p["enc_b2"],
      p["enc_ln2g"], p["enc_ln2b"],
      p["dec_s_wqkv"], p["dec_s_bqkv"], p["dec_s_wo"], p["dec_s_bo"],
      p["dec_c_wq"], p["dec_c_bq"], p["dec_c_wkv"], p["dec_c_bkv"],
      p["dec_c_wo"], p["dec_c_bo"],
      p["dec_ln1g"], p["dec_ln1b"], p["dec_ln2g"], p["dec_ln2b"],
      p["dec_ln3g"], p["dec_ln3b"],
      p["dec_w1"], p["dec_b1"], p["dec_w2"], p["dec_b2"],
      p["out_w_pad"], p["out_b_pad"])


# --------------------------------- JAX glue --------------------------------- #

def make_pos_encoding(max_len, d_model):
    position = jnp.arange(max_len, dtype=jnp.float32)[:, None]
    div_term = jnp.exp(jnp.arange(0, d_model, 2, dtype=jnp.float32)
                       * (-(math.log(10000.0) / d_model)))
    pe = jnp.zeros((max_len, 1, d_model), dtype=jnp.float32)
    pe = pe.at[:, 0, 0::2].set(jnp.sin(position * div_term))
    pe = pe.at[:, 0, 1::2].set(jnp.cos(position * div_term))
    return pe


def init_params(key, cfg):
    D, F, V = cfg["d_model"], cfg["dff"], cfg["num_tokens"]
    Le, Ld, H = cfg["num_enc"], cfg["num_dec"], cfg["nhead"]
    assert D % H == 0, "d_model must be divisible by nhead"
    Vp = ((V + 127) // 128) * 128            # pad vocab projection to 128 lanes
    keys = iter(jax.random.split(key, 64))
    bf = jnp.bfloat16

    def nk(shape, scale=0.02, dtype=jnp.float32):
        return (jax.random.normal(next(keys), shape, jnp.float32) * scale).astype(dtype)

    ones = lambda s: jnp.ones(s, jnp.float32)
    zeros = lambda s: jnp.zeros(s, jnp.float32)

    return dict(
        emb=nk((V, D), 1.0),                            # nn.Embedding(num_tokens, d_model)
        bbox_w=nk((4, D)), bbox_b=nk((1, D), 0.01),     # nn.Linear(4, d_model)
        pe=make_pos_encoding(5000, D),
        # encoder layers (stacked over Le) -- matmul weights in bf16
        enc_wqkv=nk((Le, D, 3 * D), dtype=bf), enc_bqkv=nk((Le, 1, 3 * D), 0.01),
        enc_wo=nk((Le, D, D), dtype=bf), enc_bo=nk((Le, 1, D), 0.01),
        enc_ln1g=ones((Le, 1, D)), enc_ln1b=zeros((Le, 1, D)),
        enc_w1=nk((Le, D, F), dtype=bf), enc_b1=nk((Le, 1, F), 0.01),
        enc_w2=nk((Le, F, D), dtype=bf), enc_b2=nk((Le, 1, D), 0.01),
        enc_ln2g=ones((Le, 1, D)), enc_ln2b=zeros((Le, 1, D)),
        # decoder layers (stacked over Ld)
        dec_s_wqkv=nk((Ld, D, 3 * D), dtype=bf), dec_s_bqkv=nk((Ld, 1, 3 * D), 0.01),
        dec_s_wo=nk((Ld, D, D), dtype=bf), dec_s_bo=nk((Ld, 1, D), 0.01),
        dec_c_wq=nk((Ld, D, D), dtype=bf), dec_c_bq=nk((Ld, 1, D), 0.01),
        dec_c_wkv=nk((Ld, D, 2 * D), dtype=bf), dec_c_bkv=nk((Ld, 1, 2 * D), 0.01),
        dec_c_wo=nk((Ld, D, D), dtype=bf), dec_c_bo=nk((Ld, 1, D), 0.01),
        dec_ln1g=ones((Ld, 1, D)), dec_ln1b=zeros((Ld, 1, D)),
        dec_ln2g=ones((Ld, 1, D)), dec_ln2b=zeros((Ld, 1, D)),
        dec_ln3g=ones((Ld, 1, D)), dec_ln3b=zeros((Ld, 1, D)),
        dec_w1=nk((Ld, D, F), dtype=bf), dec_b1=nk((Ld, 1, F), 0.01),
        dec_w2=nk((Ld, F, D), dtype=bf), dec_b2=nk((Ld, 1, D), 0.01),
        # final vocab projection, padded to Vp lanes (sliced back in glue)
        out_w_pad=jnp.pad(nk((D, V)), ((0, 0), (0, Vp - V))).astype(bf),
        out_b_pad=jnp.pad(nk((1, V), 0.01), ((0, 0), (0, Vp - V))),
    )


def transformer_forward(params, src, bboxes, gt, cfg):
    """Matches TransformerModel.forward(src, bboxes, gt, is_training=True) (eval mode)."""
    B, S = src.shape
    V = cfg["num_tokens"]
    pad_id, start_id = cfg["pad_id"], cfg["start_id"]

    # Faithful to the reference pos-encoder quirk: pe[:x.size(0)] with
    # batch_first x indexes the *batch* axis and broadcasts over the sequence.
    pe_b = params["pe"][:B, 0, :]                                   # [B, D]

    # TODO(synk): embedding gather stays in JAX glue (jnp.take); there is no clean
    # tiny-shape Pallas gather -- everything else runs inside the single fused kernel.
    src_tok = jnp.take(params["emb"], src, axis=0)                  # [B, S, D]
    x0 = src_tok + pe_b[:, None, :]

    # key-padding additive bias (True=masked -> NEG_INF), shared by encoder
    # self-attn and decoder cross-attn; [B,1,S] so it broadcasts onto scores.
    kpad_add = jnp.where(src == pad_id, NEG_INF, 0.0).astype(jnp.float32)[:, None, :]

    # target: shift gt right, prepend <start> (is_training=True path)
    T = gt.shape[1]
    tgt = jnp.concatenate(
        [jnp.full((B, 1), start_id, dtype=src.dtype), gt[:, :-1]], axis=1)
    y0 = jnp.take(params["emb"], tgt, axis=0) + pe_b[:, None, :]

    logits_pad = transformer_stack(x0, bboxes, kpad_add, y0, params, cfg)  # [B,T,Vp]
    return logits_pad[:, :, :V]


# ----------------------------------- main ----------------------------------- #

if __name__ == "__main__":
    cfg = dict(num_tokens=50, d_model=32, nhead=4, dff=64,
               num_enc=2, num_dec=2, pad_id=0, start_id=1)
    B, S, T = 2, 8, 8

    key = jax.random.PRNGKey(0)
    kp, k1, k2, k3 = jax.random.split(key, 4)
    params = init_params(kp, cfg)

    src = jax.random.randint(k1, (B, S), 2, cfg["num_tokens"]).astype(jnp.int32)
    src = src.at[:, -2:].set(cfg["pad_id"])     # some <pad> tokens -> exercises padding mask
    bboxes = jax.random.uniform(k2, (B, S, 4), dtype=jnp.float32)
    gt = jax.random.randint(k3, (B, T), 2, cfg["num_tokens"]).astype(jnp.int32)

    fwd = jax.jit(functools.partial(transformer_forward, cfg=cfg))
    out = fwd(params, src, bboxes, gt)
    out = jax.block_until_ready(out)

    assert out.shape == (B, T, cfg["num_tokens"]), out.shape
    assert bool(jnp.all(jnp.isfinite(out)))
    print("KERNEL_OK")
</pallas_src>

<mosaic_0001>
module attributes {stable_mosaic.version = 11 : i64} {
  func.func @_transformer_stack_kernel(%arg0: i32, %arg1: i32, %arg2: memref<1x8x32xf32, #tpu.memory_space<vmem>>, %arg3: memref<1x8x4xf32, #tpu.memory_space<vmem>>, %arg4: memref<4x32xf32, #tpu.memory_space<vmem>>, %arg5: memref<1x32xf32, #tpu.memory_space<vmem>>, %arg6: memref<1x1x8xf32, #tpu.memory_space<vmem>>, %arg7: memref<1x8x32xf32, #tpu.memory_space<vmem>>, %arg8: memref<1x32x96xbf16, #tpu.memory_space<vmem>>, %arg9: memref<1x1x96xf32, #tpu.memory_space<vmem>>, %arg10: memref<1x32x32xbf16, #tpu.memory_space<vmem>>, %arg11: memref<1x1x32xf32, #tpu.memory_space<vmem>>, %arg12: memref<1x1x32xf32, #tpu.memory_space<vmem>>, %arg13: memref<1x1x32xf32, #tpu.memory_space<vmem>>, %arg14: memref<1x32x64xbf16, #tpu.memory_space<vmem>>, %arg15: memref<1x1x64xf32, #tpu.memory_space<vmem>>, %arg16: memref<1x64x32xbf16, #tpu.memory_space<vmem>>, %arg17: memref<1x1x32xf32, #tpu.memory_space<vmem>>, %arg18: memref<1x1x32xf32, #tpu.memory_space<vmem>>, %arg19: memref<1x1x32xf32, #tpu.memory_space<vmem>>, %arg20: memref<1x32x96xbf16, #tpu.memory_space<vmem>>, %arg21: memref<1x1x96xf32, #tpu.memory_space<vmem>>, %arg22: memref<1x32x32xbf16, #tpu.memory_space<vmem>>, %arg23: memref<1x1x32xf32, #tpu.memory_space<vmem>>, %arg24: memref<1x32x32xbf16, #tpu.memory_space<vmem>>, %arg25: memref<1x1x32xf32, #tpu.memory_space<vmem>>, %arg26: memref<1x32x64xbf16, #tpu.memory_space<vmem>>, %arg27: memref<1x1x64xf32, #tpu.memory_space<vmem>>, %arg28: memref<1x32x32xbf16, #tpu.memory_space<vmem>>, %arg29: memref<1x1x32xf32, #tpu.memory_space<vmem>>, %arg30: memref<1x1x32xf32, #tpu.memory_space<vmem>>, %arg31: memref<1x1x32xf32, #tpu.memory_space<vmem>>, %arg32: memref<1x1x32xf32, #tpu.memory_space<vmem>>, %arg33: memref<1x1x32xf32, #tpu.memory_space<vmem>>, %arg34: memref<1x1x32xf32, #tpu.memory_space<vmem>>, %arg35: memref<1x1x32xf32, #tpu.memory_space<vmem>>, %arg36: memref<1x32x64xbf16, #tpu.memory_space<vmem>>, %arg37: memref<1x1x64xf32, #tpu.memory_space<vmem>>, %arg38: memref<1x64x32xbf16, #tpu.memory_space<vmem>>, %arg39: memref<1x1x32xf32, #tpu.memory_space<vmem>>, %arg40: memref<32x128xbf16, #tpu.memory_space<any>>, %arg41: memref<1x128xf32, #tpu.memory_space<vmem>>, %arg42: memref<1x8x128xf32, #tpu.memory_space<vmem>>, %arg43: memref<8x32xf32, #tpu.memory_space<vmem>>, %arg44: memref<8x32xf32, #tpu.memory_space<vmem>>, %arg45: memref<8x8xf32, #tpu.memory_space<vmem>>, %arg46: memref<32x128xbf16, #tpu.memory_space<vmem>>, %arg47: memref<!tpu.dma_semaphore, #tpu.memory_space<semaphore_mem>>) attributes {dimension_semantics = [#tpu.dimension_semantics<parallel>, #tpu.dimension_semantics<arbitrary>], iteration_bounds = array<i64: 2, 4>, scalar_prefetch = 0 : i64, scratch_operands = 5 : i64, tpu.core_type = #tpu.core_type<tc>, window_params = [{transform_indices = @transform_0, window_bounds = array<i64: 1, 8, 32>}, {transform_indices = @transform_1, window_bounds = array<i64: 1, 8, 4>}, {pipeline_mode = #tpu.pipeline_mode<synchronous>, transform_indices = @transform_2, window_bounds = array<i64: 4, 32>}, {pipeline_mode = #tpu.pipeline_mode<synchronous>, transform_indices = @transform_3, window_bounds = array<i64: 1, 32>}, {transform_indices = @transform_4, window_bounds = array<i64: 1, 1, 8>}, {transform_indices = @transform_5, window_bounds = array<i64: 1, 8, 32>}, {transform_indices = @transform_6, window_bounds = array<i64: 1, 32, 96>}, {transform_indices = @transform_7, window_bounds = array<i64: 1, 1, 96>}, {transform_indices = @transform_8, window_bounds = array<i64: 1, 32, 32>}, {transform_indices = @transform_9, window_bounds = array<i64: 1, 1, 32>}, {transform_indices = @transform_10, window_bounds = array<i64: 1, 1, 32>}, {transform_indices = @transform_11, window_bounds = array<i64: 1, 1, 32>}, {transform_indices = @transform_12, window_bounds = array<i64: 1, 32, 64>}, {transform_indices = @transform_13, window_bounds = array<i64: 1, 1, 64>}, {transform_indices = @transform_14, window_bounds = array<i64: 1, 64, 32>}, {transform_indices = @transform_15, window_bounds = array<i64: 1, 1, 32>}, {transform_indices = @transform_16, window_bounds = array<i64: 1, 1, 32>}, {transform_indices = @transform_17, window_bounds = array<i64: 1, 1, 32>}, {transform_indices = @transform_18, window_bounds = array<i64: 1, 32, 96>}, {transform_indices = @transform_19, window_bounds = array<i64: 1, 1, 96>}, {transform_indices = @transform_20, window_bounds = array<i64: 1, 32, 32>}, {transform_indices = @transform_21, window_bounds = array<i64: 1, 1, 32>}, {transform_indices = @transform_22, window_bounds = array<i64: 1, 32, 32>}, {transform_indices = @transform_23, window_bounds = array<i64: 1, 1, 32>}, {transform_indices = @transform_24, window_bounds = array<i64: 1, 32, 64>}, {transform_indices = @transform_25, window_bounds = array<i64: 1, 1, 64>}, {transform_indices = @transform_26, window_bounds = array<i64: 1, 32, 32>}, {transform_indices = @transform_27, window_bounds = array<i64: 1, 1, 32>}, {transform_indices = @transform_28, window_bounds = array<i64: 1, 1, 32>}, {transform_indices = @transform_29, window_bounds = array<i64: 1, 1, 32>}, {transform_indices = @transform_30, window_bounds = array<i64: 1, 1, 32>}, {transform_indices = @transform_31, window_bounds = array<i64: 1, 1, 32>}, {transform_indices = @transform_32, window_bounds = array<i64: 1, 1, 32>}, {transform_indices = @transform_33, window_bounds = array<i64: 1, 1, 32>}, {transform_indices = @transform_34, window_bounds = array<i64: 1, 32, 64>}, {transform_indices = @transform_35, window_bounds = array<i64: 1, 1, 64>}, {transform_indices = @transform_36, window_bounds = array<i64: 1, 64, 32>}, {transform_indices = @transform_37, window_bounds = array<i64: 1, 1, 32>}, {}, {pipeline_mode = #tpu.pipeline_mode<synchronous>, transform_indices = @transform_39, window_bounds = array<i64: 1, 128>}, {transform_indices = @transform_40, window_bounds = array<i64: 1, 8, 128>}]} {
    %c0_i32 = arith.constant 0 : i32
    %0 = arith.cmpi eq, %arg1, %c0_i32 : i32
    %1 = arith.extui %0 : i1 to i32
    %c0_i32_0 = arith.constant 0 : i32
    %2 = arith.cmpi ne, %1, %c0_i32_0 : i32
    scf.if %2 {
      %c0 = arith.constant 0 : index
      %c0_8 = arith.constant 0 : index
      %c0_9 = arith.constant 0 : index
      %15 = vector.load %arg3[%c0, %c0_8, %c0_9] : memref<1x8x4xf32, #tpu.memory_space<vmem>>, vector<1x8x4xf32>
      %16 = vector.shape_cast %15 : vector<1x8x4xf32> to vector<8x4xf32>
      %c0_10 = arith.constant 0 : index
      %c0_11 = arith.constant 0 : index
      %17 = vector.load %arg4[%c0_10, %c0_11] : memref<4x32xf32, #tpu.memory_space<vmem>>, vector<4x32xf32>
      %cst = arith.constant dense<0.000000e+00> : vector<8x32xf32>
      %18 = tpu.matmul %16, %17, %cst {dimension_numbers = #tpu.dot_dimension_numbers<[1], [0], [0], [1], [0, 0, 1, 1], [], []>} : vector<8x4xf32>, vector<4x32xf32>, vector<8x32xf32> -> vector<8x32xf32>
      %c0_12 = arith.constant 0 : index
      %c0_13 = arith.constant 0 : index
      %19 = vector.load %arg5[%c0_12, %c0_13] : memref<1x32xf32, #tpu.memory_space<vmem>>, vector<1x32xf32>
      %20 = vector.broadcast %19 : vector<1x32xf32> to vector<8x32xf32>
      %21 = arith.addf %18, %20 : vector<8x32xf32>
      %c0_14 = arith.constant 0 : index
      %c0_15 = arith.constant 0 : index
      %c0_16 = arith.constant 0 : index
      %22 = vector.load %arg2[%c0_14, %c0_15, %c0_16] : memref<1x8x32xf32, #tpu.memory_space<vmem>>, vector<1x8x32xf32>
      %23 = vector.shape_cast %22 : vector<1x8x32xf32> to vector<8x32xf32>
      %24 = arith.addf %23, %21 : vector<8x32xf32>
      %c0_17 = arith.constant 0 : index
      %c0_18 = arith.constant 0 : index
      %25 = vector.load %arg43[%c0_17, %c0_18] : memref<8x32xf32, #tpu.memory_space<vmem>>, vector<8x32xf32>
      tpu.vector_store %arg43[%c0_17, %c0_18], %24 {strides = array<i32>} : memref<8x32xf32, #tpu.memory_space<vmem>>, vector<8x32xf32>,
      %26 = tpu.iota {dimensions = array<i32: 0>} : vector<8x8xi32>
      %27 = tpu.iota {dimensions = array<i32: 1>} : vector<8x8xi32>
      %28 = arith.cmpi sgt, %27, %26 : vector<8x8xi32>
      %cst_19 = arith.constant -1.000000e+30 : f32
      %cst_20 = arith.constant 0.000000e+00 : f32
      %29 = vector.broadcast %cst_19 : f32 to vector<8x8xf32>
      %30 = vector.broadcast %cst_20 : f32 to vector<8x8xf32>
      %31 = arith.select %28, %29, %30 : vector<8x8xi1>, vector<8x8xf32>
      %c0_21 = arith.constant 0 : index
      %c0_22 = arith.constant 0 : index
      %32 = vector.load %arg45[%c0_21, %c0_22] : memref<8x8xf32, #tpu.memory_space<vmem>>, vector<8x8xf32>
      tpu.vector_store %arg45[%c0_21, %c0_22], %31 {strides = array<i32>} : memref<8x8xf32, #tpu.memory_space<vmem>>, vector<8x8xf32>,
    } else {
    }
    %c2_i32 = arith.constant 2 : i32
    %3 = arith.cmpi eq, %arg1, %c2_i32 : i32
    %4 = arith.extui %3 : i1 to i32
    %c0_i32_1 = arith.constant 0 : i32
    %5 = arith.cmpi ne, %4, %c0_i32_1 : i32
    scf.if %5 {
      tpu.enqueue_dma source(%arg40 : memref<32x128xbf16, #tpu.memory_space<any>>) target(%arg46 : memref<32x128xbf16, #tpu.memory_space<vmem>>) target_semaphore(%arg47 : memref<!tpu.dma_semaphore, #tpu.memory_space<semaphore_mem>>)
    } else {
    }
    %c2_i32_2 = arith.constant 2 : i32
    %6 = arith.cmpi slt, %arg1, %c2_i32_2 : i32
    %7 = arith.extui %6 : i1 to i32
    %c0_i32_3 = arith.constant 0 : i32
    %8 = arith.cmpi ne, %7, %c0_i32_3 : i32
    scf.if %8 {
      %c0 = arith.constant 0 : index
      %c0_8 = arith.constant 0 : index
      %15 = vector.load %arg43[%c0, %c0_8] : memref<8x32xf32, #tpu.memory_space<vmem>>, vector<8x32xf32>
      %16 = arith.truncf %15 : vector<8x32xf32> to vector<8x32xbf16>
      %c0_9 = arith.constant 0 : index
      %c0_10 = arith.constant 0 : index
      %c0_11 = arith.constant 0 : index
      %17 = vector.load %arg8[%c0_9, %c0_10, %c0_11] : memref<1x32x96xbf16, #tpu.memory_space<vmem>>, vector<1x32x96xbf16>
      %18 = vector.shape_cast %17 : vector<1x32x96xbf16> to vector<32x96xbf16>
      %cst = arith.constant dense<0.000000e+00> : vector<8x96xf32>
      %19 = tpu.matmul %16, %18, %cst {dimension_numbers = #tpu.dot_dimension_numbers<[1], [0], [0], [1], [0, 0, 1, 1], [], []>} : vector<8x32xbf16>, vector<32x96xbf16>, vector<8x96xf32> -> vector<8x96xf32>
      %c0_12 = arith.constant 0 : index
      %c0_13 = arith.constant 0 : index
      %c0_14 = arith.constant 0 : index
      %20 = vector.load %arg9[%c0_12, %c0_13, %c0_14] : memref<1x1x96xf32, #tpu.memory_space<vmem>>, vector<1x1x96xf32>
      %21 = vector.shape_cast %20 : vector<1x1x96xf32> to vector<1x96xf32>
      %22 = vector.broadcast %21 : vector<1x96xf32> to vector<8x96xf32>
      %23 = arith.addf %19, %22 : vector<8x96xf32>
      %24 = vector.extract_strided_slice %23 {offsets = [0, 0], sizes = [8, 32], strides = [1, 1]} : vector<8x96xf32> to vector<8x32xf32>
      %25 = vector.extract_strided_slice %23 {offsets = [0, 32], sizes = [8, 32], strides = [1, 1]} : vector<8x96xf32> to vector<8x32xf32>
      %26 = vector.extract_strided_slice %23 {offsets = [0, 64], sizes = [8, 32], strides = [1, 1]} : vector<8x96xf32> to vector<8x32xf32>
      %c0_15 = arith.constant 0 : index
      %c0_16 = arith.constant 0 : index
      %c0_17 = arith.constant 0 : index
      %27 = vector.load %arg6[%c0_15, %c0_16, %c0_17] : memref<1x1x8xf32, #tpu.memory_space<vmem>>, vector<1x1x8xf32>
      %28 = vector.shape_cast %27 : vector<1x1x8xf32> to vector<1x8xf32>
      %c0_18 = arith.constant 0 : index
      %c0_19 = arith.constant 0 : index
      %c0_20 = arith.constant 0 : index
      %29 = vector.load %arg10[%c0_18, %c0_19, %c0_20] : memref<1x32x32xbf16, #tpu.memory_space<vmem>>, vector<1x32x32xbf16>
      %30 = vector.shape_cast %29 : vector<1x32x32xbf16> to vector<32x32xbf16>
      %c0_21 = arith.constant 0 : index
      %c0_22 = arith.constant 0 : index
      %c0_23 = arith.constant 0 : index
      %31 = vector.load %arg11[%c0_21, %c0_22, %c0_23] : memref<1x1x32xf32, #tpu.memory_space<vmem>>, vector<1x1x32xf32>
      %32 = vector.shape_cast %31 : vector<1x1x32xf32> to vector<1x32xf32>
      %cst_24 = arith.constant 0.353553385 : f32
      %33 = vector.broadcast %cst_24 : f32 to vector<8x32xf32>
      %34 = arith.mulf %24, %33 : vector<8x32xf32>
      %35 = arith.truncf %34 : vector<8x32xf32> to vector<8x32xbf16>
      %36 = tpu.transpose %25, [1, 0] : vector<8x32xf32> -> vector<32x8xf32>
      %37 = arith.truncf %36 : vector<32x8xf32> to vector<32x8xbf16>
      %38 = arith.truncf %26 : vector<8x32xf32> to vector<8x32xbf16>
      %39 = vector.extract_strided_slice %35 {offsets = [0, 0], sizes = [8, 8], strides = [1, 1]} : vector<8x32xbf16> to vector<8x8xbf16>
      %40 = vector.extract_strided_slice %37 {offsets = [0, 0], sizes = [8, 8], strides = [1, 1]} : vector<32x8xbf16> to vector<8x8xbf16>
      %cst_25 = arith.constant dense<0.000000e+00> : vector<8x8xf32>
      %41 = tpu.matmul %39, %40, %cst_25 {dimension_numbers = #tpu.dot_dimension_numbers<[1], [0], [0], [1], [0, 0, 1, 1], [], []>} : vector<8x8xbf16>, vector<8x8xbf16>, vector<8x8xf32> -> vector<8x8xf32>
      %42 = vector.broadcast %28 : vector<1x8xf32> to vector<8x8xf32>
      %43 = arith.addf %41, %42 : vector<8x8xf32>
      %cst_26 = arith.constant dense<0xFF800000> : vector<8xf32>
      %44 = vector.multi_reduction <maximumf>, %43, %cst_26 [1] : vector<8x8xf32> to vector<8xf32>
      %45 = vector.shape_cast %44 : vector<8xf32> to vector<8x1xf32>
      %46 = vector.broadcast %45 : vector<8x1xf32> to vector<8x8xf32>
      %47 = arith.subf %43, %46 : vector<8x8xf32>
      %48 = math.exp %47 : vector<8x8xf32>
      %cst_27 = arith.constant dense<0.000000e+00> : vector<8xf32>
      %49 = vector.multi_reduction <add>, %48, %cst_27 [1] : vector<8x8xf32> to vector<8xf32>
      %50 = vector.shape_cast %49 : vector<8xf32> to vector<8x1xf32>
      %51 = tpu.reciprocal %50 {approx = true} : vector<8x1xf32> -> vector<8x1xf32>
      %52 = vector.broadcast %51 : vector<8x1xf32> to vector<8x8xf32>
      %53 = arith.mulf %48, %52 : vector<8x8xf32>
      %54 = arith.truncf %53 : vector<8x8xf32> to vector<8x8xbf16>
      %55 = vector.extract_strided_slice %38 {offsets = [0, 0], sizes = [8, 8], strides = [1, 1]} : vector<8x32xbf16> to vector<8x8xbf16>
      %cst_28 = arith.constant dense<0.000000e+00> : vector<8x8xf32>
      %56 = tpu.matmul %54, %55, %cst_28 {dimension_numbers = #tpu.dot_dimension_numbers<[1], [0], [0], [1], [0, 0, 1, 1], [], []>} : vector<8x8xbf16>, vector<8x8xbf16>, vector<8x8xf32> -> vector<8x8xf32>
      %57 = vector.extract_strided_slice %35 {offsets = [0, 8], sizes = [8, 8], strides = [1, 1]} : vector<8x32xbf16> to vector<8x8xbf16>
      %58 = vector.extract_strided_slice %37 {offsets = [8, 0], sizes = [8, 8], strides = [1, 1]} : vector<32x8xbf16> to vector<8x8xbf16>
      %cst_29 = arith.constant dense<0.000000e+00> : vector<8x8xf32>
      %59 = tpu.matmul %57, %58, %cst_29 {dimension_numbers = #tpu.dot_dimension_numbers<[1], [0], [0], [1], [0, 0, 1, 1], [], []>} : vector<8x8xbf16>, vector<8x8xbf16>, vector<8x8xf32> -> vector<8x8xf32>
      %60 = vector.broadcast %28 : vector<1x8xf32> to vector<8x8xf32>
      %61 = arith.addf %59, %60 : vector<8x8xf32>
      %cst_30 = arith.constant dense<0xFF800000> : vector<8xf32>
      %62 = vector.multi_reduction <maximumf>, %61, %cst_30 [1] : vector<8x8xf32> to vector<8xf32>
      %63 = vector.shape_cast %62 : vector<8xf32> to vector<8x1xf32>
      %64 = vector.broadcast %63 : vector<8x1xf32> to vector<8x8xf32>
      %65 = arith.subf %61, %64 : vector<8x8xf32>
      %66 = math.exp %65 : vector<8x8xf32>
      %cst_31 = arith.constant dense<0.000000e+00> : vector<8xf32>
      %67 = vector.multi_reduction <add>, %66, %cst_31 [1] : vector<8x8xf32> to vector<8xf32>
      %68 = vector.shape_cast %67 : vector<8xf32> to vector<8x1xf32>
      %69 = tpu.reciprocal %68 {approx = true} : vector<8x1xf32> -> vector<8x1xf32>
      %70 = vector.broadcast %69 : vector<8x1xf32> to vector<8x8xf32>
      %71 = arith.mulf %66, %70 : vector<8x8xf32>
      %72 = arith.truncf %71 : vector<8x8xf32> to vector<8x8xbf16>
      %73 = vector.extract_strided_slice %38 {offsets = [0, 8], sizes = [8, 8], strides = [1, 1]} : vector<8x32xbf16> to vector<8x8xbf16>
      %cst_32 = arith.constant dense<0.000000e+00> : vector<8x8xf32>
      %74 = tpu.matmul %72, %73, %cst_32 {dimension_numbers = #tpu.dot_dimension_numbers<[1], [0], [0], [1], [0, 0, 1, 1], [], []>} : vector<8x8xbf16>, vector<8x8xbf16>, vector<8x8xf32> -> vector<8x8xf32>
      %75 = vector.extract_strided_slice %35 {offsets = [0, 16], sizes = [8, 8], strides = [1, 1]} : vector<8x32xbf16> to vector<8x8xbf16>
      %76 = vector.extract_strided_slice %37 {offsets = [16, 0], sizes = [8, 8], strides = [1, 1]} : vector<32x8xbf16> to vector<8x8xbf16>
      %cst_33 = arith.constant dense<0.000000e+00> : vector<8x8xf32>
      %77 = tpu.matmul %75, %76, %cst_33 {dimension_numbers = #tpu.dot_dimension_numbers<[1], [0], [0], [1], [0, 0, 1, 1], [], []>} : vector<8x8xbf16>, vector<8x8xbf16>, vector<8x8xf32> -> vector<8x8xf32>
      %78 = vector.broadcast %28 : vector<1x8xf32> to vector<8x8xf32>
      %79 = arith.addf %77, %78 : vector<8x8xf32>
      %cst_34 = arith.constant dense<0xFF800000> : vector<8xf32>
      %80 = vector.multi_reduction <maximumf>, %79, %cst_34 [1] : vector<8x8xf32> to vector<8xf32>
      %81 = vector.shape_cast %80 : vector<8xf32> to vector<8x1xf32>
      %82 = vector.broadcast %81 : vector<8x1xf32> to vector<8x8xf32>
      %83 = arith.subf %79, %82 : vector<8x8xf32>
      %84 = math.exp %83 : vector<8x8xf32>
      %cst_35 = arith.constant dense<0.000000e+00> : vector<8xf32>
      %85 = vector.multi_reduction <add>, %84, %cst_35 [1] : vector<8x8xf32> to vector<8xf32>
      %86 = vector.shape_cast %85 : vector<8xf32> to vector<8x1xf32>
      %87 = tpu.reciprocal %86 {approx = true} : vector<8x1xf32> -> vector<8x1xf32>
      %88 = vector.broadcast %87 : vector<8x1xf32> to vector<8x8xf32>
      %89 = arith.mulf %84, %88 : vector<8x8xf32>
      %90 = arith.truncf %89 : vector<8x8xf32> to vector<8x8xbf16>
      %91 = vector.extract_strided_slice %38 {offsets = [0, 16], sizes = [8, 8], strides = [1, 1]} : vector<8x32xbf16> to vector<8x8xbf16>
      %cst_36 = arith.constant dense<0.000000e+00> : vector<8x8xf32>
      %92 = tpu.matmul %90, %91, %cst_36 {dimension_numbers = #tpu.dot_dimension_numbers<[1], [0], [0], [1], [0, 0, 1, 1], [], []>} : vector<8x8xbf16>, vector<8x8xbf16>, vector<8x8xf32> -> vector<8x8xf32>
      %93 = vector.extract_strided_slice %35 {offsets = [0, 24], sizes = [8, 8], strides = [1, 1]} : vector<8x32xbf16> to vector<8x8xbf16>
      %94 = vector.extract_strided_slice %37 {offsets = [24, 0], sizes = [8, 8], strides = [1, 1]} : vector<32x8xbf16> to vector<8x8xbf16>
      %cst_37 = arith.constant dense<0.000000e+00> : vector<8x8xf32>
      %95 = tpu.matmul %93, %94, %cst_37 {dimension_numbers = #tpu.dot_dimension_numbers<[1], [0], [0], [1], [0, 0, 1, 1], [], []>} : vector<8x8xbf16>, vector<8x8xbf16>, vector<8x8xf32> -> vector<8x8xf32>
      %96 = vector.broadcast %28 : vector<1x8xf32> to vector<8x8xf32>
      %97 = arith.addf %95, %96 : vector<8x8xf32>
      %cst_38 = arith.constant dense<0xFF800000> : vector<8xf32>
      %98 = vector.multi_reduction <maximumf>, %97, %cst_38 [1] : vector<8x8xf32> to vector<8xf32>
      %99 = vector.shape_cast %98 : vector<8xf32> to vector<8x1xf32>
      %100 = vector.broadcast %99 : vector<8x1xf32> to vector<8x8xf32>
      %101 = arith.subf %97, %100 : vector<8x8xf32>
      %102 = math.exp %101 : vector<8x8xf32>
      %cst_39 = arith.constant dense<0.000000e+00> : vector<8xf32>
      %103 = vector.multi_reduction <add>, %102, %cst_39 [1] : vector<8x8xf32> to vector<8xf32>
      %104 = vector.shape_cast %103 : vector<8xf32> to vector<8x1xf32>
      %105 = tpu.reciprocal %104 {approx = true} : vector<8x1xf32> -> vector<8x1xf32>
      %106 = vector.broadcast %105 : vector<8x1xf32> to vector<8x8xf32>
      %107 = arith.mulf %102, %106 : vector<8x8xf32>
      %108 = arith.truncf %107 : vector<8x8xf32> to vector<8x8xbf16>
      %109 = vector.extract_strided_slice %38 {offsets = [0, 24], sizes = [8, 8], strides = [1, 1]} : vector<8x32xbf16> to vector<8x8xbf16>
      %cst_40 = arith.constant dense<0.000000e+00> : vector<8x8xf32>
      %110 = tpu.matmul %108, %109, %cst_40 {dimension_numbers = #tpu.dot_dimension_numbers<[1], [0], [0], [1], [0, 0, 1, 1], [], []>} : vector<8x8xbf16>, vector<8x8xbf16>, vector<8x8xf32> -> vector<8x8xf32>
      %111 = tpu.concatenate %56, %74, %92, %110 in 1 : vector<8x8xf32>, vector<8x8xf32>, vector<8x8xf32>, vector<8x8xf32> -> vector<8x32xf32>
      %112 = arith.truncf %111 : vector<8x32xf32> to vector<8x32xbf16>
      %cst_41 = arith.constant dense<0.000000e+00> : vector<8x32xf32>
      %113 = tpu.matmul %112, %30, %cst_41 {dimension_numbers = #tpu.dot_dimension_numbers<[1], [0], [0], [1], [0, 0, 1, 1], [], []>} : vector<8x32xbf16>, vector<32x32xbf16>, vector<8x32xf32> -> vector<8x32xf32>
      %114 = vector.broadcast %32 : vector<1x32xf32> to vector<8x32xf32>
      %115 = arith.addf %113, %114 : vector<8x32xf32>
      %116 = arith.addf %15, %115 : vector<8x32xf32>
      %c0_42 = arith.constant 0 : index
      %c0_43 = arith.constant 0 : index
      %c0_44 = arith.constant 0 : index
      %117 = vector.load %arg12[%c0_42, %c0_43, %c0_44] : memref<1x1x32xf32, #tpu.memory_space<vmem>>, vector<1x1x32xf32>
      %118 = vector.shape_cast %117 : vector<1x1x32xf32> to vector<1x32xf32>
      %c0_45 = arith.constant 0 : index
      %c0_46 = arith.constant 0 : index
      %c0_47 = arith.constant 0 : index
      %119 = vector.load %arg13[%c0_45, %c0_46, %c0_47] : memref<1x1x32xf32, #tpu.memory_space<vmem>>, vector<1x1x32xf32>
      %120 = vector.shape_cast %119 : vector<1x1x32xf32> to vector<1x32xf32>
      %cst_48 = arith.constant dense<0.000000e+00> : vector<8xf32>
      %121 = vector.multi_reduction <add>, %116, %cst_48 [1] : vector<8x32xf32> to vector<8xf32>
      %122 = vector.shape_cast %121 : vector<8xf32> to vector<8x1xf32>
      %cst_49 = arith.constant 3.200000e+01 : f32
      %123 = vector.broadcast %cst_49 : f32 to vector<8x1xf32>
      %124 = arith.divf %122, %123 : vector<8x1xf32>
      %125 = vector.broadcast %124 : vector<8x1xf32> to vector<8x32xf32>
      %126 = arith.subf %116, %125 : vector<8x32xf32>
      %127 = arith.mulf %126, %126 : vector<8x32xf32>
      %cst_50 = arith.constant dense<0.000000e+00> : vector<8xf32>
      %128 = vector.multi_reduction <add>, %127, %cst_50 [1] : vector<8x32xf32> to vector<8xf32>
      %129 = vector.shape_cast %128 : vector<8xf32> to vector<8x1xf32>
      %cst_51 = arith.constant 3.200000e+01 : f32
      %130 = vector.broadcast %cst_51 : f32 to vector<8x1xf32>
      %131 = arith.divf %129, %130 : vector<8x1xf32>
      %132 = vector.broadcast %124 : vector<8x1xf32> to vector<8x32xf32>
      %133 = arith.subf %116, %132 : vector<8x32xf32>
      %cst_52 = arith.constant 9.99999974E-6 : f32
      %134 = vector.broadcast %cst_52 : f32 to vector<8x1xf32>
      %135 = arith.addf %131, %134 : vector<8x1xf32>
      %136 = math.rsqrt %135 : vector<8x1xf32>
      %137 = vector.broadcast %136 : vector<8x1xf32> to vector<8x32xf32>
      %138 = arith.mulf %133, %137 : vector<8x32xf32>
      %139 = vector.broadcast %118 : vector<1x32xf32> to vector<8x32xf32>
      %140 = arith.mulf %138, %139 : vector<8x32xf32>
      %141 = vector.broadcast %120 : vector<1x32xf32> to vector<8x32xf32>
      %142 = arith.addf %140, %141 : vector<8x32xf32>
      %c0_53 = arith.constant 0 : index
      %c0_54 = arith.constant 0 : index
      %c0_55 = arith.constant 0 : index
      %143 = vector.load %arg14[%c0_53, %c0_54, %c0_55] : memref<1x32x64xbf16, #tpu.memory_space<vmem>>, vector<1x32x64xbf16>
      %144 = vector.shape_cast %143 : vector<1x32x64xbf16> to vector<32x64xbf16>
      %c0_56 = arith.constant 0 : index
      %c0_57 = arith.constant 0 : index
      %c0_58 = arith.constant 0 : index
      %145 = vector.load %arg15[%c0_56, %c0_57, %c0_58] : memref<1x1x64xf32, #tpu.memory_space<vmem>>, vector<1x1x64xf32>
      %146 = vector.shape_cast %145 : vector<1x1x64xf32> to vector<1x64xf32>
      %c0_59 = arith.constant 0 : index
      %c0_60 = arith.constant 0 : index
      %c0_61 = arith.constant 0 : index
      %147 = vector.load %arg16[%c0_59, %c0_60, %c0_61] : memref<1x64x32xbf16, #tpu.memory_space<vmem>>, vector<1x64x32xbf16>
      %148 = vector.shape_cast %147 : vector<1x64x32xbf16> to vector<64x32xbf16>
      %c0_62 = arith.constant 0 : index
      %c0_63 = arith.constant 0 : index
      %c0_64 = arith.constant 0 : index
      %149 = vector.load %arg17[%c0_62, %c0_63, %c0_64] : memref<1x1x32xf32, #tpu.memory_space<vmem>>, vector<1x1x32xf32>
      %150 = vector.shape_cast %149 : vector<1x1x32xf32> to vector<1x32xf32>
      %151 = arith.truncf %142 : vector<8x32xf32> to vector<8x32xbf16>
      %cst_65 = arith.constant dense<0.000000e+00> : vector<8x64xf32>
      %152 = tpu.matmul %151, %144, %cst_65 {dimension_numbers = #tpu.dot_dimension_numbers<[1], [0], [0], [1], [0, 0, 1, 1], [], []>} : vector<8x32xbf16>, vector<32x64xbf16>, vector<8x64xf32> -> vector<8x64xf32>
      %153 = vector.broadcast %146 : vector<1x64xf32> to vector<8x64xf32>
      %154 = arith.addf %152, %153 : vector<8x64xf32>
      %cst_66 = arith.constant 0.000000e+00 : f32
      %155 = vector.broadcast %cst_66 : f32 to vector<8x64xf32>
      %156 = arith.maximumf %154, %155 : vector<8x64xf32>
      %157 = arith.truncf %156 : vector<8x64xf32> to vector<8x64xbf16>
      %cst_67 = arith.constant dense<0.000000e+00> : vector<8x32xf32>
      %158 = tpu.matmul %157, %148, %cst_67 {dimension_numbers = #tpu.dot_dimension_numbers<[1], [0], [0], [1], [0, 0, 1, 1], [], []>} : vector<8x64xbf16>, vector<64x32xbf16>, vector<8x32xf32> -> vector<8x32xf32>
      %159 = vector.broadcast %150 : vector<1x32xf32> to vector<8x32xf32>
      %160 = arith.addf %158, %159 : vector<8x32xf32>
      %161 = arith.addf %142, %160 : vector<8x32xf32>
      %c0_68 = arith.constant 0 : index
      %c0_69 = arith.constant 0 : index
      %c0_70 = arith.constant 0 : index
      %162 = vector.load %arg18[%c0_68, %c0_69, %c0_70] : memref<1x1x32xf32, #tpu.memory_space<vmem>>, vector<1x1x32xf32>
      %163 = vector.shape_cast %162 : vector<1x1x32xf32> to vector<1x32xf32>
      %c0_71 = arith.constant 0 : index
      %c0_72 = arith.constant 0 : index
      %c0_73 = arith.constant 0 : index
      %164 = vector.load %arg19[%c0_71, %c0_72, %c0_73] : memref<1x1x32xf32, #tpu.memory_space<vmem>>, vector<1x1x32xf32>
      %165 = vector.shape_cast %164 : vector<1x1x32xf32> to vector<1x32xf32>
      %cst_74 = arith.constant dense<0.000000e+00> : vector<8xf32>
      %166 = vector.multi_reduction <add>, %161, %cst_74 [1] : vector<8x32xf32> to vector<8xf32>
      %167 = vector.shape_cast %166 : vector<8xf32> to vector<8x1xf32>
      %cst_75 = arith.constant 3.200000e+01 : f32
      %168 = vector.broadcast %cst_75 : f32 to vector<8x1xf32>
      %169 = arith.divf %167, %168 : vector<8x1xf32>
      %170 = vector.broadcast %169 : vector<8x1xf32> to vector<8x32xf32>
      %171 = arith.subf %161, %170 : vector<8x32xf32>
      %172 = arith.mulf %171, %171 : vector<8x32xf32>
      %cst_76 = arith.constant dense<0.000000e+00> : vector<8xf32>
      %173 = vector.multi_reduction <add>, %172, %cst_76 [1] : vector<8x32xf32> to vector<8xf32>
      %174 = vector.shape_cast %173 : vector<8xf32> to vector<8x1xf32>
      %cst_77 = arith.constant 3.200000e+01 : f32
      %175 = vector.broadcast %cst_77 : f32 to vector<8x1xf32>
      %176 = arith.divf %174, %175 : vector<8x1xf32>
      %177 = vector.broadcast %169 : vector<8x1xf32> to vector<8x32xf32>
      %178 = arith.subf %161, %177 : vector<8x32xf32>
      %cst_78 = arith.constant 9.99999974E-6 : f32
      %179 = vector.broadcast %cst_78 : f32 to vector<8x1xf32>
      %180 = arith.addf %176, %179 : vector<8x1xf32>
      %181 = math.rsqrt %180 : vector<8x1xf32>
      %182 = vector.broadcast %181 : vector<8x1xf32> to vector<8x32xf32>
      %183 = arith.mulf %178, %182 : vector<8x32xf32>
      %184 = vector.broadcast %163 : vector<1x32xf32> to vector<8x32xf32>
      %185 = arith.mulf %183, %184 : vector<8x32xf32>
      %186 = vector.broadcast %165 : vector<1x32xf32> to vector<8x32xf32>
      %187 = arith.addf %185, %186 : vector<8x32xf32>
      %c0_79 = arith.constant 0 : index
      %c0_80 = arith.constant 0 : index
      %188 = vector.load %arg43[%c0_79, %c0_80] : memref<8x32xf32, #tpu.memory_space<vmem>>, vector<8x32xf32>
      tpu.vector_store %arg43[%c0_79, %c0_80], %187 {strides = array<i32>} : memref<8x32xf32, #tpu.memory_space<vmem>>, vector<8x32xf32>,
    } else {
    }
    %c2_i32_4 = arith.constant 2 : i32
    %9 = arith.cmpi eq, %arg1, %c2_i32_4 : i32
    %10 = arith.extui %9 : i1 to i32
    %c0_i32_5 = arith.constant 0 : i32
    %11 = arith.cmpi ne, %10, %c0_i32_5 : i32
    scf.if %11 {
      %c0 = arith.constant 0 : index
      %c0_8 = arith.constant 0 : index
      %c0_9 = arith.constant 0 : index
      %15 = vector.load %arg7[%c0, %c0_8, %c0_9] : memref<1x8x32xf32, #tpu.memory_space<vmem>>, vector<1x8x32xf32>
      %16 = vector.shape_cast %15 : vector<1x8x32xf32> to vector<8x32xf32>
      %c0_10 = arith.constant 0 : index
      %c0_11 = arith.constant 0 : index
      %17 = vector.load %arg44[%c0_10, %c0_11] : memref<8x32xf32, #tpu.memory_space<vmem>>, vector<8x32xf32>
      tpu.vector_store %arg44[%c0_10, %c0_11], %16 {strides = array<i32>} : memref<8x32xf32, #tpu.memory_space<vmem>>, vector<8x32xf32>,
    } else {
    }
    %c2_i32_6 = arith.constant 2 : i32
    %12 = arith.cmpi sge, %arg1, %c2_i32_6 : i32
    %13 = arith.extui %12 : i1 to i32
    %c0_i32_7 = arith.constant 0 : i32
    %14 = arith.cmpi ne, %13, %c0_i32_7 : i32
    scf.if %14 {
      %c0 = arith.constant 0 : index
      %c0_8 = arith.constant 0 : index
      %15 = vector.load %arg44[%c0, %c0_8] : memref<8x32xf32, #tpu.memory_space<vmem>>, vector<8x32xf32>
      %16 = arith.truncf %15 : vector<8x32xf32> to vector<8x32xbf16>
      %c0_9 = arith.constant 0 : index
      %c0_10 = arith.constant 0 : index
      %c0_11 = arith.constant 0 : index
      %17 = vector.load %arg20[%c0_9, %c0_10, %c0_11] : memref<1x32x96xbf16, #tpu.memory_space<vmem>>, vector<1x32x96xbf16>
      %18 = vector.shape_cast %17 : vector<1x32x96xbf16> to vector<32x96xbf16>
      %cst = arith.constant dense<0.000000e+00> : vector<8x96xf32>
      %19 = tpu.matmul %16, %18, %cst {dimension_numbers = #tpu.dot_dimension_numbers<[1], [0], [0], [1], [0, 0, 1, 1], [], []>} : vector<8x32xbf16>, vector<32x96xbf16>, vector<8x96xf32> -> vector<8x96xf32>
      %c0_12 = arith.constant 0 : index
      %c0_13 = arith.constant 0 : index
      %c0_14 = arith.constant 0 : index
      %20 = vector.load %arg21[%c0_12, %c0_13, %c0_14] : memref<1x1x96xf32, #tpu.memory_space<vmem>>, vector<1x1x96xf32>
      %21 = vector.shape_cast %20 : vector<1x1x96xf32> to vector<1x96xf32>
      %22 = vector.broadcast %21 : vector<1x96xf32> to vector<8x96xf32>
      %23 = arith.addf %19, %22 : vector<8x96xf32>
      %24 = vector.extract_strided_slice %23 {offsets = [0, 0], sizes = [8, 32], strides = [1, 1]} : vector<8x96xf32> to vector<8x32xf32>
      %25 = vector.extract_strided_slice %23 {offsets = [0, 32], sizes = [8, 32], strides = [1, 1]} : vector<8x96xf32> to vector<8x32xf32>
      %26 = vector.extract_strided_slice %23 {offsets = [0, 64], sizes = [8, 32], strides = [1, 1]} : vector<8x96xf32> to vector<8x32xf32>
      %c0_15 = arith.constant 0 : index
      %c0_16 = arith.constant 0 : index
      %27 = vector.load %arg45[%c0_15, %c0_16] : memref<8x8xf32, #tpu.memory_space<vmem>>, vector<8x8xf32>
      %c0_17 = arith.constant 0 : index
      %c0_18 = arith.constant 0 : index
      %c0_19 = arith.constant 0 : index
      %28 = vector.load %arg22[%c0_17, %c0_18, %c0_19] : memref<1x32x32xbf16, #tpu.memory_space<vmem>>, vector<1x32x32xbf16>
      %29 = vector.shape_cast %28 : vector<1x32x32xbf16> to vector<32x32xbf16>
      %c0_20 = arith.constant 0 : index
      %c0_21 = arith.constant 0 : index
      %c0_22 = arith.constant 0 : index
      %30 = vector.load %arg23[%c0_20, %c0_21, %c0_22] : memref<1x1x32xf32, #tpu.memory_space<vmem>>, vector<1x1x32xf32>
      %31 = vector.shape_cast %30 : vector<1x1x32xf32> to vector<1x32xf32>
      %cst_23 = arith.constant 0.353553385 : f32
      %32 = vector.broadcast %cst_23 : f32 to vector<8x32xf32>
      %33 = arith.mulf %24, %32 : vector<8x32xf32>
      %34 = arith.truncf %33 : vector<8x32xf32> to vector<8x32xbf16>
      %35 = tpu.transpose %25, [1, 0] : vector<8x32xf32> -> vector<32x8xf32>
      %36 = arith.truncf %35 : vector<32x8xf32> to vector<32x8xbf16>
      %37 = arith.truncf %26 : vector<8x32xf32> to vector<8x32xbf16>
      %38 = vector.extract_strided_slice %34 {offsets = [0, 0], sizes = [8, 8], strides = [1, 1]} : vector<8x32xbf16> to vector<8x8xbf16>
      %39 = vector.extract_strided_slice %36 {offsets = [0, 0], sizes = [8, 8], strides = [1, 1]} : vector<32x8xbf16> to vector<8x8xbf16>
      %cst_24 = arith.constant dense<0.000000e+00> : vector<8x8xf32>
      %40 = tpu.matmul %38, %39, %cst_24 {dimension_numbers = #tpu.dot_dimension_numbers<[1], [0], [0], [1], [0, 0, 1, 1], [], []>} : vector<8x8xbf16>, vector<8x8xbf16>, vector<8x8xf32> -> vector<8x8xf32>
      %41 = arith.addf %40, %27 : vector<8x8xf32>
      %cst_25 = arith.constant dense<0xFF800000> : vector<8xf32>
      %42 = vector.multi_reduction <maximumf>, %41, %cst_25 [1] : vector<8x8xf32> to vector<8xf32>
      %43 = vector.shape_cast %42 : vector<8xf32> to vector<8x1xf32>
      %44 = vector.broadcast %43 : vector<8x1xf32> to vector<8x8xf32>
      %45 = arith.subf %41, %44 : vector<8x8xf32>
      %46 = math.exp %45 : vector<8x8xf32>
      %cst_26 = arith.constant dense<0.000000e+00> : vector<8xf32>
      %47 = vector.multi_reduction <add>, %46, %cst_26 [1] : vector<8x8xf32> to vector<8xf32>
      %48 = vector.shape_cast %47 : vector<8xf32> to vector<8x1xf32>
      %49 = tpu.reciprocal %48 {approx = true} : vector<8x1xf32> -> vector<8x1xf32>
      %50 = vector.broadcast %49 : vector<8x1xf32> to vector<8x8xf32>
      %51 = arith.mulf %46, %50 : vector<8x8xf32>
      %52 = arith.truncf %51 : vector<8x8xf32> to vector<8x8xbf16>
      %53 = vector.extract_strided_slice %37 {offsets = [0, 0], sizes = [8, 8], strides = [1, 1]} : vector<8x32xbf16> to vector<8x8xbf16>
      %cst_27 = arith.constant dense<0.000000e+00> : vector<8x8xf32>
      %54 = tpu.matmul %52, %53, %cst_27 {dimension_numbers = #tpu.dot_dimension_numbers<[1], [0], [0], [1], [0, 0, 1, 1], [], []>} : vector<8x8xbf16>, vector<8x8xbf16>, vector<8x8xf32> -> vector<8x8xf32>
      %55 = vector.extract_strided_slice %34 {offsets = [0, 8], sizes = [8, 8], strides = [1, 1]} : vector<8x32xbf16> to vector<8x8xbf16>
      %56 = vector.extract_strided_slice %36 {offsets = [8, 0], sizes = [8, 8], strides = [1, 1]} : vector<32x8xbf16> to vector<8x8xbf16>
      %cst_28 = arith.constant dense<0.000000e+00> : vector<8x8xf32>
      %57 = tpu.matmul %55, %56, %cst_28 {dimension_numbers = #tpu.dot_dimension_numbers<[1], [0], [0], [1], [0, 0, 1, 1], [], []>} : vector<8x8xbf16>, vector<8x8xbf16>, vector<8x8xf32> -> vector<8x8xf32>
      %58 = arith.addf %57, %27 : vector<8x8xf32>
      %cst_29 = arith.constant dense<0xFF800000> : vector<8xf32>
      %59 = vector.multi_reduction <maximumf>, %58, %cst_29 [1] : vector<8x8xf32> to vector<8xf32>
      %60 = vector.shape_cast %59 : vector<8xf32> to vector<8x1xf32>
      %61 = vector.broadcast %60 : vector<8x1xf32> to vector<8x8xf32>
      %62 = arith.subf %58, %61 : vector<8x8xf32>
      %63 = math.exp %62 : vector<8x8xf32>
      %cst_30 = arith.constant dense<0.000000e+00> : vector<8xf32>
      %64 = vector.multi_reduction <add>, %63, %cst_30 [1] : vector<8x8xf32> to vector<8xf32>
      %65 = vector.shape_cast %64 : vector<8xf32> to vector<8x1xf32>
      %66 = tpu.reciprocal %65 {approx = true} : vector<8x1xf32> -> vector<8x1xf32>
      %67 = vector.broadcast %66 : vector<8x1xf32> to vector<8x8xf32>
      %68 = arith.mulf %63, %67 : vector<8x8xf32>
      %69 = arith.truncf %68 : vector<8x8xf32> to vector<8x8xbf16>
      %70 = vector.extract_strided_slice %37 {offsets = [0, 8], sizes = [8, 8], strides = [1, 1]} : vector<8x32xbf16> to vector<8x8xbf16>
      %cst_31 = arith.constant dense<0.000000e+00> : vector<8x8xf32>
      %71 = tpu.matmul %69, %70, %cst_31 {dimension_numbers = #tpu.dot_dimension_numbers<[1], [0], [0], [1], [0, 0, 1, 1], [], []>} : vector<8x8xbf16>, vector<8x8xbf16>, vector<8x8xf32> -> vector<8x8xf32>
      %72 = vector.extract_strided_slice %34 {offsets = [0, 16], sizes = [8, 8], strides = [1, 1]} : vector<8x32xbf16> to vector<8x8xbf16>
      %73 = vector.extract_strided_slice %36 {offsets = [16, 0], sizes = [8, 8], strides = [1, 1]} : vector<32x8xbf16> to vector<8x8xbf16>
      %cst_32 = arith.constant dense<0.000000e+00> : vector<8x8xf32>
      %74 = tpu.matmul %72, %73, %cst_32 {dimension_numbers = #tpu.dot_dimension_numbers<[1], [0], [0], [1], [0, 0, 1, 1], [], []>} : vector<8x8xbf16>, vector<8x8xbf16>, vector<8x8xf32> -> vector<8x8xf32>
      %75 = arith.addf %74, %27 : vector<8x8xf32>
      %cst_33 = arith.constant dense<0xFF800000> : vector<8xf32>
      %76 = vector.multi_reduction <maximumf>, %75, %cst_33 [1] : vector<8x8xf32> to vector<8xf32>
      %77 = vector.shape_cast %76 : vector<8xf32> to vector<8x1xf32>
      %78 = vector.broadcast %77 : vector<8x1xf32> to vector<8x8xf32>
      %79 = arith.subf %75, %78 : vector<8x8xf32>
      %80 = math.exp %79 : vector<8x8xf32>
      %cst_34 = arith.constant dense<0.000000e+00> : vector<8xf32>
      %81 = vector.multi_reduction <add>, %80, %cst_34 [1] : vector<8x8xf32> to vector<8xf32>
      %82 = vector.shape_cast %81 : vector<8xf32> to vector<8x1xf32>
      %83 = tpu.reciprocal %82 {approx = true} : vector<8x1xf32> -> vector<8x1xf32>
      %84 = vector.broadcast %83 : vector<8x1xf32> to vector<8x8xf32>
      %85 = arith.mulf %80, %84 : vector<8x8xf32>
      %86 = arith.truncf %85 : vector<8x8xf32> to vector<8x8xbf16>
      %87 = vector.extract_strided_slice %37 {offsets = [0, 16], sizes = [8, 8], strides = [1, 1]} : vector<8x32xbf16> to vector<8x8xbf16>
      %cst_35 = arith.constant dense<0.000000e+00> : vector<8x8xf32>
      %88 = tpu.matmul %86, %87, %cst_35 {dimension_numbers = #tpu.dot_dimension_numbers<[1], [0], [0], [1], [0, 0, 1, 1], [], []>} : vector<8x8xbf16>, vector<8x8xbf16>, vector<8x8xf32> -> vector<8x8xf32>
      %89 = vector.extract_strided_slice %34 {offsets = [0, 24], sizes = [8, 8], strides = [1, 1]} : vector<8x32xbf16> to vector<8x8xbf16>
      %90 = vector.extract_strided_slice %36 {offsets = [24, 0], sizes = [8, 8], strides = [1, 1]} : vector<32x8xbf16> to vector<8x8xbf16>
      %cst_36 = arith.constant dense<0.000000e+00> : vector<8x8xf32>
      %91 = tpu.matmul %89, %90, %cst_36 {dimension_numbers = #tpu.dot_dimension_numbers<[1], [0], [0], [1], [0, 0, 1, 1], [], []>} : vector<8x8xbf16>, vector<8x8xbf16>, vector<8x8xf32> -> vector<8x8xf32>
      %92 = arith.addf %91, %27 : vector<8x8xf32>
      %cst_37 = arith.constant dense<0xFF800000> : vector<8xf32>
      %93 = vector.multi_reduction <maximumf>, %92, %cst_37 [1] : vector<8x8xf32> to vector<8xf32>
      %94 = vector.shape_cast %93 : vector<8xf32> to vector<8x1xf32>
      %95 = vector.broadcast %94 : vector<8x1xf32> to vector<8x8xf32>
      %96 = arith.subf %92, %95 : vector<8x8xf32>
      %97 = math.exp %96 : vector<8x8xf32>
      %cst_38 = arith.constant dense<0.000000e+00> : vector<8xf32>
      %98 = vector.multi_reduction <add>, %97, %cst_38 [1] : vector<8x8xf32> to vector<8xf32>
      %99 = vector.shape_cast %98 : vector<8xf32> to vector<8x1xf32>
      %100 = tpu.reciprocal %99 {approx = true} : vector<8x1xf32> -> vector<8x1xf32>
      %101 = vector.broadcast %100 : vector<8x1xf32> to vector<8x8xf32>
      %102 = arith.mulf %97, %101 : vector<8x8xf32>
      %103 = arith.truncf %102 : vector<8x8xf32> to vector<8x8xbf16>
      %104 = vector.extract_strided_slice %37 {offsets = [0, 24], sizes = [8, 8], strides = [1, 1]} : vector<8x32xbf16> to vector<8x8xbf16>
      %cst_39 = arith.constant dense<0.000000e+00> : vector<8x8xf32>
      %105 = tpu.matmul %103, %104, %cst_39 {dimension_numbers = #tpu.dot_dimension_numbers<[1], [0], [0], [1], [0, 0, 1, 1], [], []>} : vector<8x8xbf16>, vector<8x8xbf16>, vector<8x8xf32> -> vector<8x8xf32>
      %106 = tpu.concatenate %54, %71, %88, %105 in 1 : vector<8x8xf32>, vector<8x8xf32>, vector<8x8xf32>, vector<8x8xf32> -> vector<8x32xf32>
      %107 = arith.truncf %106 : vector<8x32xf32> to vector<8x32xbf16>
      %cst_40 = arith.constant dense<0.000000e+00> : vector<8x32xf32>
      %108 = tpu.matmul %107, %29, %cst_40 {dimension_numbers = #tpu.dot_dimension_numbers<[1], [0], [0], [1], [0, 0, 1, 1], [], []>} : vector<8x32xbf16>, vector<32x32xbf16>, vector<8x32xf32> -> vector<8x32xf32>
      %109 = vector.broadcast %31 : vector<1x32xf32> to vector<8x32xf32>
      %110 = arith.addf %108, %109 : vector<8x32xf32>
      %111 = arith.addf %15, %110 : vector<8x32xf32>
      %c0_41 = arith.constant 0 : index
      %c0_42 = arith.constant 0 : index
      %c0_43 = arith.constant 0 : index
      %112 = vector.load %arg30[%c0_41, %c0_42, %c0_43] : memref<1x1x32xf32, #tpu.memory_space<vmem>>, vector<1x1x32xf32>
      %113 = vector.shape_cast %112 : vector<1x1x32xf32> to vector<1x32xf32>
      %c0_44 = arith.constant 0 : index
      %c0_45 = arith.constant 0 : index
      %c0_46 = arith.constant 0 : index
      %114 = vector.load %arg31[%c0_44, %c0_45, %c0_46] : memref<1x1x32xf32, #tpu.memory_space<vmem>>, vector<1x1x32xf32>
      %115 = vector.shape_cast %114 : vector<1x1x32xf32> to vector<1x32xf32>
      %cst_47 = arith.constant dense<0.000000e+00> : vector<8xf32>
      %116 = vector.multi_reduction <add>, %111, %cst_47 [1] : vector<8x32xf32> to vector<8xf32>
      %117 = vector.shape_cast %116 : vector<8xf32> to vector<8x1xf32>
      %cst_48 = arith.constant 3.200000e+01 : f32
      %118 = vector.broadcast %cst_48 : f32 to vector<8x1xf32>
      %119 = arith.divf %117, %118 : vector<8x1xf32>
      %120 = vector.broadcast %119 : vector<8x1xf32> to vector<8x32xf32>
      %121 = arith.subf %111, %120 : vector<8x32xf32>
      %122 = arith.mulf %121, %121 : vector<8x32xf32>
      %cst_49 = arith.constant dense<0.000000e+00> : vector<8xf32>
      %123 = vector.multi_reduction <add>, %122, %cst_49 [1] : vector<8x32xf32> to vector<8xf32>
      %124 = vector.shape_cast %123 : vector<8xf32> to vector<8x1xf32>
      %cst_50 = arith.constant 3.200000e+01 : f32
      %125 = vector.broadcast %cst_50 : f32 to vector<8x1xf32>
      %126 = arith.divf %124, %125 : vector<8x1xf32>
      %127 = vector.broadcast %119 : vector<8x1xf32> to vector<8x32xf32>
      %128 = arith.subf %111, %127 : vector<8x32xf32>
      %cst_51 = arith.constant 9.99999974E-6 : f32
      %129 = vector.broadcast %cst_51 : f32 to vector<8x1xf32>
      %130 = arith.addf %126, %129 : vector<8x1xf32>
      %131 = math.rsqrt %130 : vector<8x1xf32>
      %132 = vector.broadcast %131 : vector<8x1xf32> to vector<8x32xf32>
      %133 = arith.mulf %128, %132 : vector<8x32xf32>
      %134 = vector.broadcast %113 : vector<1x32xf32> to vector<8x32xf32>
      %135 = arith.mulf %133, %134 : vector<8x32xf32>
      %136 = vector.broadcast %115 : vector<1x32xf32> to vector<8x32xf32>
      %137 = arith.addf %135, %136 : vector<8x32xf32>
      %c0_52 = arith.constant 0 : index
      %c0_53 = arith.constant 0 : index
      %138 = vector.load %arg43[%c0_52, %c0_53] : memref<8x32xf32, #tpu.memory_space<vmem>>, vector<8x32xf32>
      %139 = arith.truncf %137 : vector<8x32xf32> to vector<8x32xbf16>
      %c0_54 = arith.constant 0 : index
      %c0_55 = arith.constant 0 : index
      %c0_56 = arith.constant 0 : index
      %140 = vector.load %arg24[%c0_54, %c0_55, %c0_56] : memref<1x32x32xbf16, #tpu.memory_space<vmem>>, vector<1x32x32xbf16>
      %141 = vector.shape_cast %140 : vector<1x32x32xbf16> to vector<32x32xbf16>
      %cst_57 = arith.constant dense<0.000000e+00> : vector<8x32xf32>
      %142 = tpu.matmul %139, %141, %cst_57 {dimension_numbers = #tpu.dot_dimension_numbers<[1], [0], [0], [1], [0, 0, 1, 1], [], []>} : vector<8x32xbf16>, vector<32x32xbf16>, vector<8x32xf32> -> vector<8x32xf32>
      %c0_58 = arith.constant 0 : index
      %c0_59 = arith.constant 0 : index
      %c0_60 = arith.constant 0 : index
      %143 = vector.load %arg25[%c0_58, %c0_59, %c0_60] : memref<1x1x32xf32, #tpu.memory_space<vmem>>, vector<1x1x32xf32>
      %144 = vector.shape_cast %143 : vector<1x1x32xf32> to vector<1x32xf32>
      %145 = vector.broadcast %144 : vector<1x32xf32> to vector<8x32xf32>
      %146 = arith.addf %142, %145 : vector<8x32xf32>
      %147 = arith.truncf %138 : vector<8x32xf32> to vector<8x32xbf16>
      %c0_61 = arith.constant 0 : index
      %c0_62 = arith.constant 0 : index
      %c0_63 = arith.constant 0 : index
      %148 = vector.load %arg26[%c0_61, %c0_62, %c0_63] : memref<1x32x64xbf16, #tpu.memory_space<vmem>>, vector<1x32x64xbf16>
      %149 = vector.shape_cast %148 : vector<1x32x64xbf16> to vector<32x64xbf16>
      %cst_64 = arith.constant dense<0.000000e+00> : vector<8x64xf32>
      %150 = tpu.matmul %147, %149, %cst_64 {dimension_numbers = #tpu.dot_dimension_numbers<[1], [0], [0], [1], [0, 0, 1, 1], [], []>} : vector<8x32xbf16>, vector<32x64xbf16>, vector<8x64xf32> -> vector<8x64xf32>
      %c0_65 = arith.constant 0 : index
      %c0_66 = arith.constant 0 : index
      %c0_67 = arith.constant 0 : index
      %151 = vector.load %arg27[%c0_65, %c0_66, %c0_67] : memref<1x1x64xf32, #tpu.memory_space<vmem>>, vector<1x1x64xf32>
      %152 = vector.shape_cast %151 : vector<1x1x64xf32> to vector<1x64xf32>
      %153 = vector.broadcast %152 : vector<1x64xf32> to vector<8x64xf32>
      %154 = arith.addf %150, %153 : vector<8x64xf32>
      %155 = vector.extract_strided_slice %154 {offsets = [0, 0], sizes = [8, 32], strides = [1, 1]} : vector<8x64xf32> to vector<8x32xf32>
      %156 = vector.extract_strided_slice %154 {offsets = [0, 32], sizes = [8, 32], strides = [1, 1]} : vector<8x64xf32> to vector<8x32xf32>
      %c0_68 = arith.constant 0 : index
      %c0_69 = arith.constant 0 : index
      %c0_70 = arith.constant 0 : index
      %157 = vector.load %arg6[%c0_68, %c0_69, %c0_70] : memref<1x1x8xf32, #tpu.memory_space<vmem>>, vector<1x1x8xf32>
      %158 = vector.shape_cast %157 : vector<1x1x8xf32> to vector<1x8xf32>
      %c0_71 = arith.constant 0 : index
      %c0_72 = arith.constant 0 : index
      %c0_73 = arith.constant 0 : index
      %159 = vector.load %arg28[%c0_71, %c0_72, %c0_73] : memref<1x32x32xbf16, #tpu.memory_space<vmem>>, vector<1x32x32xbf16>
      %160 = vector.shape_cast %159 : vector<1x32x32xbf16> to vector<32x32xbf16>
      %c0_74 = arith.constant 0 : index
      %c0_75 = arith.constant 0 : index
      %c0_76 = arith.constant 0 : index
      %161 = vector.load %arg29[%c0_74, %c0_75, %c0_76] : memref<1x1x32xf32, #tpu.memory_space<vmem>>, vector<1x1x32xf32>
      %162 = vector.shape_cast %161 : vector<1x1x32xf32> to vector<1x32xf32>
      %cst_77 = arith.constant 0.353553385 : f32
      %163 = vector.broadcast %cst_77 : f32 to vector<8x32xf32>
      %164 = arith.mulf %146, %163 : vector<8x32xf32>
      %165 = arith.truncf %164 : vector<8x32xf32> to vector<8x32xbf16>
      %166 = tpu.transpose %155, [1, 0] : vector<8x32xf32> -> vector<32x8xf32>
      %167 = arith.truncf %166 : vector<32x8xf32> to vector<32x8xbf16>
      %168 = arith.truncf %156 : vector<8x32xf32> to vector<8x32xbf16>
      %169 = vector.extract_strided_slice %165 {offsets = [0, 0], sizes = [8, 8], strides = [1, 1]} : vector<8x32xbf16> to vector<8x8xbf16>
      %170 = vector.extract_strided_slice %167 {offsets = [0, 0], sizes = [8, 8], strides = [1, 1]} : vector<32x8xbf16> to vector<8x8xbf16>
      %cst_78 = arith.constant dense<0.000000e+00> : vector<8x8xf32>
      %171 = tpu.matmul %169, %170, %cst_78 {dimension_numbers = #tpu.dot_dimension_numbers<[1], [0], [0], [1], [0, 0, 1, 1], [], []>} : vector<8x8xbf16>, vector<8x8xbf16>, vector<8x8xf32> -> vector<8x8xf32>
      %172 = vector.broadcast %158 : vector<1x8xf32> to vector<8x8xf32>
      %173 = arith.addf %171, %172 : vector<8x8xf32>
      %cst_79 = arith.constant dense<0xFF800000> : vector<8xf32>
      %174 = vector.multi_reduction <maximumf>, %173, %cst_79 [1] : vector<8x8xf32> to vector<8xf32>
      %175 = vector.shape_cast %174 : vector<8xf32> to vector<8x1xf32>
      %176 = vector.broadcast %175 : vector<8x1xf32> to vector<8x8xf32>
      %177 = arith.subf %173, %176 : vector<8x8xf32>
      %178 = math.exp %177 : vector<8x8xf32>
      %cst_80 = arith.constant dense<0.000000e+00> : vector<8xf32>
      %179 = vector.multi_reduction <add>, %178, %cst_80 [1] : vector<8x8xf32> to vector<8xf32>
      %180 = vector.shape_cast %179 : vector<8xf32> to vector<8x1xf32>
      %181 = tpu.reciprocal %180 {approx = true} : vector<8x1xf32> -> vector<8x1xf32>
      %182 = vector.broadcast %181 : vector<8x1xf32> to vector<8x8xf32>
      %183 = arith.mulf %178, %182 : vector<8x8xf32>
      %184 = arith.truncf %183 : vector<8x8xf32> to vector<8x8xbf16>
      %185 = vector.extract_strided_slice %168 {offsets = [0, 0], sizes = [8, 8], strides = [1, 1]} : vector<8x32xbf16> to vector<8x8xbf16>
      %cst_81 = arith.constant dense<0.000000e+00> : vector<8x8xf32>
      %186 = tpu.matmul %184, %185, %cst_81 {dimension_numbers = #tpu.dot_dimension_numbers<[1], [0], [0], [1], [0, 0, 1, 1], [], []>} : vector<8x8xbf16>, vector<8x8xbf16>, vector<8x8xf32> -> vector<8x8xf32>
      %187 = vector.extract_strided_slice %165 {offsets = [0, 8], sizes = [8, 8], strides = [1, 1]} : vector<8x32xbf16> to vector<8x8xbf16>
      %188 = vector.extract_strided_slice %167 {offsets = [8, 0], sizes = [8, 8], strides = [1, 1]} : vector<32x8xbf16> to vector<8x8xbf16>
      %cst_82 = arith.constant dense<0.000000e+00> : vector<8x8xf32>
      %189 = tpu.matmul %187, %188, %cst_82 {dimension_numbers = #tpu.dot_dimension_numbers<[1], [0], [0], [1], [0, 0, 1, 1], [], []>} : vector<8x8xbf16>, vector<8x8xbf16>, vector<8x8xf32> -> vector<8x8xf32>
      %190 = vector.broadcast %158 : vector<1x8xf32> to vector<8x8xf32>
      %191 = arith.addf %189, %190 : vector<8x8xf32>
      %cst_83 = arith.constant dense<0xFF800000> : vector<8xf32>
      %192 = vector.multi_reduction <maximumf>, %191, %cst_83 [1] : vector<8x8xf32> to vector<8xf32>
      %193 = vector.shape_cast %192 : vector<8xf32> to vector<8x1xf32>
      %194 = vector.broadcast %193 : vector<8x1xf32> to vector<8x8xf32>
      %195 = arith.subf %191, %194 : vector<8x8xf32>
      %196 = math.exp %195 : vector<8x8xf32>
      %cst_84 = arith.constant dense<0.000000e+00> : vector<8xf32>
      %197 = vector.multi_reduction <add>, %196, %cst_84 [1] : vector<8x8xf32> to vector<8xf32>
      %198 = vector.shape_cast %197 : vector<8xf32> to vector<8x1xf32>
      %199 = tpu.reciprocal %198 {approx = true} : vector<8x1xf32> -> vector<8x1xf32>
      %200 = vector.broadcast %199 : vector<8x1xf32> to vector<8x8xf32>
      %201 = arith.mulf %196, %200 : vector<8x8xf32>
      %202 = arith.truncf %201 : vector<8x8xf32> to vector<8x8xbf16>
      %203 = vector.extract_strided_slice %168 {offsets = [0, 8], sizes = [8, 8], strides = [1, 1]} : vector<8x32xbf16> to vector<8x8xbf16>
      %cst_85 = arith.constant dense<0.000000e+00> : vector<8x8xf32>
      %204 = tpu.matmul %202, %203, %cst_85 {dimension_numbers = #tpu.dot_dimension_numbers<[1], [0], [0], [1], [0, 0, 1, 1], [], []>} : vector<8x8xbf16>, vector<8x8xbf16>, vector<8x8xf32> -> vector<8x8xf32>
      %205 = vector.extract_strided_slice %165 {offsets = [0, 16], sizes = [8, 8], strides = [1, 1]} : vector<8x32xbf16> to vector<8x8xbf16>
      %206 = vector.extract_strided_slice %167 {offsets = [16, 0], sizes = [8, 8], strides = [1, 1]} : vector<32x8xbf16> to vector<8x8xbf16>
      %cst_86 = arith.constant dense<0.000000e+00> : vector<8x8xf32>
      %207 = tpu.matmul %205, %206, %cst_86 {dimension_numbers = #tpu.dot_dimension_numbers<[1], [0], [0], [1], [0, 0, 1, 1], [], []>} : vector<8x8xbf16>, vector<8x8xbf16>, vector<8x8xf32> -> vector<8x8xf32>
      %208 = vector.broadcast %158 : vector<1x8xf32> to vector<8x8xf32>
      %209 = arith.addf %207, %208 : vector<8x8xf32>
      %cst_87 = arith.constant dense<0xFF800000> : vector<8xf32>
      %210 = vector.multi_reduction <maximumf>, %209, %cst_87 [1] : vector<8x8xf32> to vector<8xf32>
      %211 = vector.shape_cast %210 : vector<8xf32> to vector<8x1xf32>
      %212 = vector.broadcast %211 : vector<8x1xf32> to vector<8x8xf32>
      %213 = arith.subf %209, %212 : vector<8x8xf32>
      %214 = math.exp %213 : vector<8x8xf32>
      %cst_88 = arith.constant dense<0.000000e+00> : vector<8xf32>
      %215 = vector.multi_reduction <add>, %214, %cst_88 [1] : vector<8x8xf32> to vector<8xf32>
      %216 = vector.shape_cast %215 : vector<8xf32> to vector<8x1xf32>
      %217 = tpu.reciprocal %216 {approx = true} : vector<8x1xf32> -> vector<8x1xf32>
      %218 = vector.broadcast %217 : vector<8x1xf32> to vector<8x8xf32>
      %219 = arith.mulf %214, %218 : vector<8x8xf32>
      %220 = arith.truncf %219 : vector<8x8xf32> to vector<8x8xbf16>
      %221 = vector.extract_strided_slice %168 {offsets = [0, 16], sizes = [8, 8], strides = [1, 1]} : vector<8x32xbf16> to vector<8x8xbf16>
      %cst_89 = arith.constant dense<0.000000e+00> : vector<8x8xf32>
      %222 = tpu.matmul %220, %221, %cst_89 {dimension_numbers = #tpu.dot_dimension_numbers<[1], [0], [0], [1], [0, 0, 1, 1], [], []>} : vector<8x8xbf16>, vector<8x8xbf16>, vector<8x8xf32> -> vector<8x8xf32>
      %223 = vector.extract_strided_slice %165 {offsets = [0, 24], sizes = [8, 8], strides = [1, 1]} : vector<8x32xbf16> to vector<8x8xbf16>
      %224 = vector.extract_strided_slice %167 {offsets = [24, 0], sizes = [8, 8], strides = [1, 1]} : vector<32x8xbf16> to vector<8x8xbf16>
      %cst_90 = arith.constant dense<0.000000e+00> : vector<8x8xf32>
      %225 = tpu.matmul %223, %224, %cst_90 {dimension_numbers = #tpu.dot_dimension_numbers<[1], [0], [0], [1], [0, 0, 1, 1], [], []>} : vector<8x8xbf16>, vector<8x8xbf16>, vector<8x8xf32> -> vector<8x8xf32>
      %226 = vector.broadcast %158 : vector<1x8xf32> to vector<8x8xf32>
      %227 = arith.addf %225, %226 : vector<8x8xf32>
      %cst_91 = arith.constant dense<0xFF800000> : vector<8xf32>
      %228 = vector.multi_reduction <maximumf>, %227, %cst_91 [1] : vector<8x8xf32> to vector<8xf32>
      %229 = vector.shape_cast %228 : vector<8xf32> to vector<8x1xf32>
      %230 = vector.broadcast %229 : vector<8x1xf32> to vector<8x8xf32>
      %231 = arith.subf %227, %230 : vector<8x8xf32>
      %232 = math.exp %231 : vector<8x8xf32>
      %cst_92 = arith.constant dense<0.000000e+00> : vector<8xf32>
      %233 = vector.multi_reduction <add>, %232, %cst_92 [1] : vector<8x8xf32> to vector<8xf32>
      %234 = vector.shape_cast %233 : vector<8xf32> to vector<8x1xf32>
      %235 = tpu.reciprocal %234 {approx = true} : vector<8x1xf32> -> vector<8x1xf32>
      %236 = vector.broadcast %235 : vector<8x1xf32> to vector<8x8xf32>
      %237 = arith.mulf %232, %236 : vector<8x8xf32>
      %238 = arith.truncf %237 : vector<8x8xf32> to vector<8x8xbf16>
      %239 = vector.extract_strided_slice %168 {offsets = [0, 24], sizes = [8, 8], strides = [1, 1]} : vector<8x32xbf16> to vector<8x8xbf16>
      %cst_93 = arith.constant dense<0.000000e+00> : vector<8x8xf32>
      %240 = tpu.matmul %238, %239, %cst_93 {dimension_numbers = #tpu.dot_dimension_numbers<[1], [0], [0], [1], [0, 0, 1, 1], [], []>} : vector<8x8xbf16>, vector<8x8xbf16>, vector<8x8xf32> -> vector<8x8xf32>
      %241 = tpu.concatenate %186, %204, %222, %240 in 1 : vector<8x8xf32>, vector<8x8xf32>, vector<8x8xf32>, vector<8x8xf32> -> vector<8x32xf32>
      %242 = arith.truncf %241 : vector<8x32xf32> to vector<8x32xbf16>
      %cst_94 = arith.constant dense<0.000000e+00> : vector<8x32xf32>
      %243 = tpu.matmul %242, %160, %cst_94 {dimension_numbers = #tpu.dot_dimension_numbers<[1], [0], [0], [1], [0, 0, 1, 1], [], []>} : vector<8x32xbf16>, vector<32x32xbf16>, vector<8x32xf32> -> vector<8x32xf32>
      %244 = vector.broadcast %162 : vector<1x32xf32> to vector<8x32xf32>
      %245 = arith.addf %243, %244 : vector<8x32xf32>
      %246 = arith.addf %137, %245 : vector<8x32xf32>
      %c0_95 = arith.constant 0 : index
      %c0_96 = arith.constant 0 : index
      %c0_97 = arith.constant 0 : index
      %247 = vector.load %arg32[%c0_95, %c0_96, %c0_97] : memref<1x1x32xf32, #tpu.memory_space<vmem>>, vector<1x1x32xf32>
      %248 = vector.shape_cast %247 : vector<1x1x32xf32> to vector<1x32xf32>
      %c0_98 = arith.constant 0 : index
      %c0_99 = arith.constant 0 : index
      %c0_100 = arith.constant 0 : index
      %249 = vector.load %arg33[%c0_98, %c0_99, %c0_100] : memref<1x1x32xf32, #tpu.memory_space<vmem>>, vector<1x1x32xf32>
      %250 = vector.shape_cast %249 : vector<1x1x32xf32> to vector<1x32xf32>
      %cst_101 = arith.constant dense<0.000000e+00> : vector<8xf32>
      %251 = vector.multi_reduction <add>, %246, %cst_101 [1] : vector<8x32xf32> to vector<8xf32>
      %252 = vector.shape_cast %251 : vector<8xf32> to vector<8x1xf32>
      %cst_102 = arith.constant 3.200000e+01 : f32
      %253 = vector.broadcast %cst_102 : f32 to vector<8x1xf32>
      %254 = arith.divf %252, %253 : vector<8x1xf32>
      %255 = vector.broadcast %254 : vector<8x1xf32> to vector<8x32xf32>
      %256 = arith.subf %246, %255 : vector<8x32xf32>
      %257 = arith.mulf %256, %256 : vector<8x32xf32>
      %cst_103 = arith.constant dense<0.000000e+00> : vector<8xf32>
      %258 = vector.multi_reduction <add>, %257, %cst_103 [1] : vector<8x32xf32> to vector<8xf32>
      %259 = vector.shape_cast %258 : vector<8xf32> to vector<8x1xf32>
      %cst_104 = arith.constant 3.200000e+01 : f32
      %260 = vector.broadcast %cst_104 : f32 to vector<8x1xf32>
      %261 = arith.divf %259, %260 : vector<8x1xf32>
      %262 = vector.broadcast %254 : vector<8x1xf32> to vector<8x32xf32>
      %263 = arith.subf %246, %262 : vector<8x32xf32>
      %cst_105 = arith.constant 9.99999974E-6 : f32
      %264 = vector.broadcast %cst_105 : f32 to vector<8x1xf32>
      %265 = arith.addf %261, %264 : vector<8x1xf32>
      %266 = math.rsqrt %265 : vector<8x1xf32>
      %267 = vector.broadcast %266 : vector<8x1xf32> to vector<8x32xf32>
      %268 = arith.mulf %263, %267 : vector<8x32xf32>
      %269 = vector.broadcast %248 : vector<1x32xf32> to vector<8x32xf32>
      %270 = arith.mulf %268, %269 : vector<8x32xf32>
      %271 = vector.broadcast %250 : vector<1x32xf32> to vector<8x32xf32>
      %272 = arith.addf %270, %271 : vector<8x32xf32>
      %c0_106 = arith.constant 0 : index
      %c0_107 = arith.constant 0 : index
      %c0_108 = arith.constant 0 : index
      %273 = vector.load %arg36[%c0_106, %c0_107, %c0_108] : memref<1x32x64xbf16, #tpu.memory_space<vmem>>, vector<1x32x64xbf16>
      %274 = vector.shape_cast %273 : vector<1x32x64xbf16> to vector<32x64xbf16>
      %c0_109 = arith.constant 0 : index
      %c0_110 = arith.constant 0 : index
      %c0_111 = arith.constant 0 : index
      %275 = vector.load %arg37[%c0_109, %c0_110, %c0_111] : memref<1x1x64xf32, #tpu.memory_space<vmem>>, vector<1x1x64xf32>
      %276 = vector.shape_cast %275 : vector<1x1x64xf32> to vector<1x64xf32>
      %c0_112 = arith.constant 0 : index
      %c0_113 = arith.constant 0 : index
      %c0_114 = arith.constant 0 : index
      %277 = vector.load %arg38[%c0_112, %c0_113, %c0_114] : memref<1x64x32xbf16, #tpu.memory_space<vmem>>, vector<1x64x32xbf16>
      %278 = vector.shape_cast %277 : vector<1x64x32xbf16> to vector<64x32xbf16>
      %c0_115 = arith.constant 0 : index
      %c0_116 = arith.constant 0 : index
      %c0_117 = arith.constant 0 : index
      %279 = vector.load %arg39[%c0_115, %c0_116, %c0_117] : memref<1x1x32xf32, #tpu.memory_space<vmem>>, vector<1x1x32xf32>
      %280 = vector.shape_cast %279 : vector<1x1x32xf32> to vector<1x32xf32>
      %281 = arith.truncf %272 : vector<8x32xf32> to vector<8x32xbf16>
      %cst_118 = arith.constant dense<0.000000e+00> : vector<8x64xf32>
      %282 = tpu.matmul %281, %274, %cst_118 {dimension_numbers = #tpu.dot_dimension_numbers<[1], [0], [0], [1], [0, 0, 1, 1], [], []>} : vector<8x32xbf16>, vector<32x64xbf16>, vector<8x64xf32> -> vector<8x64xf32>
      %283 = vector.broadcast %276 : vector<1x64xf32> to vector<8x64xf32>
      %284 = arith.addf %282, %283 : vector<8x64xf32>
      %cst_119 = arith.constant 0.000000e+00 : f32
      %285 = vector.broadcast %cst_119 : f32 to vector<8x64xf32>
      %286 = arith.maximumf %284, %285 : vector<8x64xf32>
      %287 = arith.truncf %286 : vector<8x64xf32> to vector<8x64xbf16>
      %cst_120 = arith.constant dense<0.000000e+00> : vector<8x32xf32>
      %288 = tpu.matmul %287, %278, %cst_120 {dimension_numbers = #tpu.dot_dimension_numbers<[1], [0], [0], [1], [0, 0, 1, 1], [], []>} : vector<8x64xbf16>, vector<64x32xbf16>, vector<8x32xf32> -> vector<8x32xf32>
      %289 = vector.broadcast %280 : vector<1x32xf32> to vector<8x32xf32>
      %290 = arith.addf %288, %289 : vector<8x32xf32>
      %291 = arith.addf %272, %290 : vector<8x32xf32>
      %c0_121 = arith.constant 0 : index
      %c0_122 = arith.constant 0 : index
      %c0_123 = arith.constant 0 : index
      %292 = vector.load %arg34[%c0_121, %c0_122, %c0_123] : memref<1x1x32xf32, #tpu.memory_space<vmem>>, vector<1x1x32xf32>
      %293 = vector.shape_cast %292 : vector<1x1x32xf32> to vector<1x32xf32>
      %c0_124 = arith.constant 0 : index
      %c0_125 = arith.constant 0 : index
      %c0_126 = arith.constant 0 : index
      %294 = vector.load %arg35[%c0_124, %c0_125, %c0_126] : memref<1x1x32xf32, #tpu.memory_space<vmem>>, vector<1x1x32xf32>
      %295 = vector.shape_cast %294 : vector<1x1x32xf32> to vector<1x32xf32>
      %cst_127 = arith.constant dense<0.000000e+00> : vector<8xf32>
      %296 = vector.multi_reduction <add>, %291, %cst_127 [1] : vector<8x32xf32> to vector<8xf32>
      %297 = vector.shape_cast %296 : vector<8xf32> to vector<8x1xf32>
      %cst_128 = arith.constant 3.200000e+01 : f32
      %298 = vector.broadcast %cst_128 : f32 to vector<8x1xf32>
      %299 = arith.divf %297, %298 : vector<8x1xf32>
      %300 = vector.broadcast %299 : vector<8x1xf32> to vector<8x32xf32>
      %301 = arith.subf %291, %300 : vector<8x32xf32>
      %302 = arith.mulf %301, %301 : vector<8x32xf32>
      %cst_129 = arith.constant dense<0.000000e+00> : vector<8xf32>
      %303 = vector.multi_reduction <add>, %302, %cst_129 [1] : vector<8x32xf32> to vector<8xf32>
      %304 = vector.shape_cast %303 : vector<8xf32> to vector<8x1xf32>
      %cst_130 = arith.constant 3.200000e+01 : f32
      %305 = vector.broadcast %cst_130 : f32 to vector<8x1xf32>
      %306 = arith.divf %304, %305 : vector<8x1xf32>
      %307 = vector.broadcast %299 : vector<8x1xf32> to vector<8x32xf32>
      %308 = arith.subf %291, %307 : vector<8x32xf32>
      %cst_131 = arith.constant 9.99999974E-6 : f32
      %309 = vector.broadcast %cst_131 : f32 to vector<8x1xf32>
      %310 = arith.addf %306, %309 : vector<8x1xf32>
      %311 = math.rsqrt %310 : vector<8x1xf32>
      %312 = vector.broadcast %311 : vector<8x1xf32> to vector<8x32xf32>
      %313 = arith.mulf %308, %312 : vector<8x32xf32>
      %314 = vector.broadcast %293 : vector<1x32xf32> to vector<8x32xf32>
      %315 = arith.mulf %313, %314 : vector<8x32xf32>
      %316 = vector.broadcast %295 : vector<1x32xf32> to vector<8x32xf32>
      %317 = arith.addf %315, %316 : vector<8x32xf32>
      %c3_i32 = arith.constant 3 : i32
      %318 = arith.cmpi slt, %arg1, %c3_i32 : i32
      %319 = arith.extui %318 : i1 to i32
      %c0_i32_132 = arith.constant 0 : i32
      %320 = arith.cmpi ne, %319, %c0_i32_132 : i32
      scf.if %320 {
        %c0_135 = arith.constant 0 : index
        %c0_136 = arith.constant 0 : index
        %324 = vector.load %arg44[%c0_135, %c0_136] : memref<8x32xf32, #tpu.memory_space<vmem>>, vector<8x32xf32>
        tpu.vector_store %arg44[%c0_135, %c0_136], %317 {strides = array<i32>} : memref<8x32xf32, #tpu.memory_space<vmem>>, vector<8x32xf32>,
      } else {
      }
      %c3_i32_133 = arith.constant 3 : i32
      %321 = arith.cmpi eq, %arg1, %c3_i32_133 : i32
      %322 = arith.extui %321 : i1 to i32
      %c0_i32_134 = arith.constant 0 : i32
      %323 = arith.cmpi ne, %322, %c0_i32_134 : i32
      scf.if %323 {
        tpu.wait_dma2 semaphore(%arg47 : memref<!tpu.dma_semaphore, #tpu.memory_space<semaphore_mem>>) src(%arg40 : memref<32x128xbf16, #tpu.memory_space<any>>) dst(%arg46 : memref<32x128xbf16, #tpu.memory_space<vmem>>)
        %324 = arith.truncf %317 : vector<8x32xf32> to vector<8x32xbf16>
        %c0_135 = arith.constant 0 : index
        %c0_136 = arith.constant 0 : index
        %325 = vector.load %arg46[%c0_135, %c0_136] : memref<32x128xbf16, #tpu.memory_space<vmem>>, vector<32x128xbf16>
        %cst_137 = arith.constant dense<0.000000e+00> : vector<8x128xf32>
        %326 = tpu.matmul %324, %325, %cst_137 {dimension_numbers = #tpu.dot_dimension_numbers<[1], [0], [0], [1], [0, 0, 1, 1], [], []>} : vector<8x32xbf16>, vector<32x128xbf16>, vector<8x128xf32> -> vector<8x128xf32>
        %c0_138 = arith.constant 0 : index
        %c0_139 = arith.constant 0 : index
        %327 = vector.load %arg41[%c0_138, %c0_139] : memref<1x128xf32, #tpu.memory_space<vmem>>, vector<1x128xf32>
        %328 = vector.broadcast %327 : vector<1x128xf32> to vector<8x128xf32>
        %329 = arith.addf %326, %328 : vector<8x128xf32>
        %c0_140 = arith.constant 0 : index
        %c0_141 = arith.constant 0 : index
        %c0_142 = arith.constant 0 : index
        %330 = vector.load %arg42[%c0_140, %c0_141, %c0_142] : memref<1x8x128xf32, #tpu.memory_space<vmem>>, vector<1x8x128xf32>
        %331 = vector.shape_cast %330 : vector<1x8x128xf32> to vector<8x128xf32>
        %332 = vector.shape_cast %329 : vector<8x128xf32> to vector<1x8x128xf32>
        tpu.vector_store %arg42[%c0_140, %c0_141, %c0_142], %332 {strides = array<i32>} : memref<1x8x128xf32, #tpu.memory_space<vmem>>, vector<1x8x128xf32>,
      } else {
      }
    } else {
    }
    return
  }
  func.func @transform_0(%arg0: i32, %arg1: i32) -> (i32, i32, i32) {
    %c0_i32 = arith.constant 0 : i32
    %c0_i32_0 = arith.constant 0 : i32
    %c0_i32_1 = arith.constant 0 : i32
    return %arg0, %c0_i32, %c0_i32_0 : i32, i32, i32
  }
  func.func @transform_1(%arg0: i32, %arg1: i32) -> (i32, i32, i32) {
    %c0_i32 = arith.constant 0 : i32
    %c0_i32_0 = arith.constant 0 : i32
    %c0_i32_1 = arith.constant 0 : i32
    return %arg0, %c0_i32, %c0_i32_0 : i32, i32, i32
  }
  func.func @transform_2(%arg0: i32, %arg1: i32) -> (i32, i32) {
    %c0_i32 = arith.constant 0 : i32
    %c0_i32_0 = arith.constant 0 : i32
    %c0_i32_1 = arith.constant 0 : i32
    return %c0_i32, %c0_i32_0 : i32, i32
  }
  func.func @transform_3(%arg0: i32, %arg1: i32) -> (i32, i32) {
    %c0_i32 = arith.constant 0 : i32
    %c0_i32_0 = arith.constant 0 : i32
    %c0_i32_1 = arith.constant 0 : i32
    return %c0_i32, %c0_i32_0 : i32, i32
  }
  func.func @transform_4(%arg0: i32, %arg1: i32) -> (i32, i32, i32) {
    %c0_i32 = arith.constant 0 : i32
    %c0_i32_0 = arith.constant 0 : i32
    %c0_i32_1 = arith.constant 0 : i32
    return %arg0, %c0_i32, %c0_i32_0 : i32, i32, i32
  }
  func.func @transform_5(%arg0: i32, %arg1: i32) -> (i32, i32, i32) {
    %c0_i32 = arith.constant 0 : i32
    %c0_i32_0 = arith.constant 0 : i32
    %c0_i32_1 = arith.constant 0 : i32
    return %arg0, %c0_i32, %c0_i32_0 : i32, i32, i32
  }
  func.func @transform_6(%arg0: i32, %arg1: i32) -> (i32, i32, i32) {
    %c1_i32 = arith.constant 1 : i32
    %0 = arith.minsi %arg1, %c1_i32 : i32
    %c0_i32 = arith.constant 0 : i32
    %c0_i32_0 = arith.constant 0 : i32
    %c0_i32_1 = arith.constant 0 : i32
    return %0, %c0_i32, %c0_i32_0 : i32, i32, i32
  }
  func.func @transform_7(%arg0: i32, %arg1: i32) -> (i32, i32, i32) {
    %c1_i32 = arith.constant 1 : i32
    %0 = arith.minsi %arg1, %c1_i32 : i32
    %c0_i32 = arith.constant 0 : i32
    %c0_i32_0 = arith.constant 0 : i32
    %c0_i32_1 = arith.constant 0 : i32
    return %0, %c0_i32, %c0_i32_0 : i32, i32, i32
  }
  func.func @transform_8(%arg0: i32, %arg1: i32) -> (i32, i32, i32) {
    %c1_i32 = arith.constant 1 : i32
    %0 = arith.minsi %arg1, %c1_i32 : i32
    %c0_i32 = arith.constant 0 : i32
    %c0_i32_0 = arith.constant 0 : i32
    %c0_i32_1 = arith.constant 0 : i32
    return %0, %c0_i32, %c0_i32_0 : i32, i32, i32
  }
  func.func @transform_9(%arg0: i32, %arg1: i32) -> (i32, i32, i32) {
    %c1_i32 = arith.constant 1 : i32
    %0 = arith.minsi %arg1, %c1_i32 : i32
    %c0_i32 = arith.constant 0 : i32
    %c0_i32_0 = arith.constant 0 : i32
    %c0_i32_1 = arith.constant 0 : i32
    return %0, %c0_i32, %c0_i32_0 : i32, i32, i32
  }
  func.func @transform_10(%arg0: i32, %arg1: i32) -> (i32, i32, i32) {
    %c1_i32 = arith.constant 1 : i32
    %0 = arith.minsi %arg1, %c1_i32 : i32
    %c0_i32 = arith.constant 0 : i32
    %c0_i32_0 = arith.constant 0 : i32
    %c0_i32_1 = arith.constant 0 : i32
    return %0, %c0_i32, %c0_i32_0 : i32, i32, i32
  }
  func.func @transform_11(%arg0: i32, %arg1: i32) -> (i32, i32, i32) {
    %c1_i32 = arith.constant 1 : i32
    %0 = arith.minsi %arg1, %c1_i32 : i32
    %c0_i32 = arith.constant 0 : i32
    %c0_i32_0 = arith.constant 0 : i32
    %c0_i32_1 = arith.constant 0 : i32
    return %0, %c0_i32, %c0_i32_0 : i32, i32, i32
  }
  func.func @transform_12(%arg0: i32, %arg1: i32) -> (i32, i32, i32) {
    %c1_i32 = arith.constant 1 : i32
    %0 = arith.minsi %arg1, %c1_i32 : i32
    %c0_i32 = arith.constant 0 : i32
    %c0_i32_0 = arith.constant 0 : i32
    %c0_i32_1 = arith.constant 0 : i32
    return %0, %c0_i32, %c0_i32_0 : i32, i32, i32
  }
  func.func @transform_13(%arg0: i32, %arg1: i32) -> (i32, i32, i32) {
    %c1_i32 = arith.constant 1 : i32
    %0 = arith.minsi %arg1, %c1_i32 : i32
    %c0_i32 = arith.constant 0 : i32
    %c0_i32_0 = arith.constant 0 : i32
    %c0_i32_1 = arith.constant 0 : i32
    return %0, %c0_i32, %c0_i32_0 : i32, i32, i32
  }
  func.func @transform_14(%arg0: i32, %arg1: i32) -> (i32, i32, i32) {
    %c1_i32 = arith.constant 1 : i32
    %0 = arith.minsi %arg1, %c1_i32 : i32
    %c0_i32 = arith.constant 0 : i32
    %c0_i32_0 = arith.constant 0 : i32
    %c0_i32_1 = arith.constant 0 : i32
    return %0, %c0_i32, %c0_i32_0 : i32, i32, i32
  }
  func.func @transform_15(%arg0: i32, %arg1: i32) -> (i32, i32, i32) {
    %c1_i32 = arith.constant 1 : i32
    %0 = arith.minsi %arg1, %c1_i32 : i32
    %c0_i32 = arith.constant 0 : i32
    %c0_i32_0 = arith.constant 0 : i32
    %c0_i32_1 = arith.constant 0 : i32
    return %0, %c0_i32, %c0_i32_0 : i32, i32, i32
  }
  func.func @transform_16(%arg0: i32, %arg1: i32) -> (i32, i32, i32) {
    %c1_i32 = arith.constant 1 : i32
    %0 = arith.minsi %arg1, %c1_i32 : i32
    %c0_i32 = arith.constant 0 : i32
    %c0_i32_0 = arith.constant 0 : i32
    %c0_i32_1 = arith.constant 0 : i32
    return %0, %c0_i32, %c0_i32_0 : i32, i32, i32
  }
  func.func @transform_17(%arg0: i32, %arg1: i32) -> (i32, i32, i32) {
    %c1_i32 = arith.constant 1 : i32
    %0 = arith.minsi %arg1, %c1_i32 : i32
    %c0_i32 = arith.constant 0 : i32
    %c0_i32_0 = arith.constant 0 : i32
    %c0_i32_1 = arith.constant 0 : i32
    return %0, %c0_i32, %c0_i32_0 : i32, i32, i32
  }
  func.func @transform_18(%arg0: i32, %arg1: i32) -> (i32, i32, i32) {
    %c2_i32 = arith.constant 2 : i32
    %0 = arith.subi %arg1, %c2_i32 : i32
    %c0_i32 = arith.constant 0 : i32
    %1 = arith.maxsi %0, %c0_i32 : i32
    %c0_i32_0 = arith.constant 0 : i32
    %c0_i32_1 = arith.constant 0 : i32
    %c0_i32_2 = arith.constant 0 : i32
    return %1, %c0_i32_0, %c0_i32_1 : i32, i32, i32
  }
  func.func @transform_19(%arg0: i32, %arg1: i32) -> (i32, i32, i32) {
    %c2_i32 = arith.constant 2 : i32
    %0 = arith.subi %arg1, %c2_i32 : i32
    %c0_i32 = arith.constant 0 : i32
    %1 = arith.maxsi %0, %c0_i32 : i32
    %c0_i32_0 = arith.constant 0 : i32
    %c0_i32_1 = arith.constant 0 : i32
    %c0_i32_2 = arith.constant 0 : i32
    return %1, %c0_i32_0, %c0_i32_1 : i32, i32, i32
  }
  func.func @transform_20(%arg0: i32, %arg1: i32) -> (i32, i32, i32) {
    %c2_i32 = arith.constant 2 : i32
    %0 = arith.subi %arg1, %c2_i32 : i32
    %c0_i32 = arith.constant 0 : i32
    %1 = arith.maxsi %0, %c0_i32 : i32
    %c0_i32_0 = arith.constant 0 : i32
    %c0_i32_1 = arith.constant 0 : i32
    %c0_i32_2 = arith.constant 0 : i32
    return %1, %c0_i32_0, %c0_i32_1 : i32, i32, i32
  }
  func.func @transform_21(%arg0: i32, %arg1: i32) -> (i32, i32, i32) {
    %c2_i32 = arith.constant 2 : i32
    %0 = arith.subi %arg1, %c2_i32 : i32
    %c0_i32 = arith.constant 0 : i32
    %1 = arith.maxsi %0, %c0_i32 : i32
    %c0_i32_0 = arith.constant 0 : i32
    %c0_i32_1 = arith.constant 0 : i32
    %c0_i32_2 = arith.constant 0 : i32
    return %1, %c0_i32_0, %c0_i32_1 : i32, i32, i32
  }
  func.func @transform_22(%arg0: i32, %arg1: i32) -> (i32, i32, i32) {
    %c2_i32 = arith.constant 2 : i32
    %0 = arith.subi %arg1, %c2_i32 : i32
    %c0_i32 = arith.constant 0 : i32
    %1 = arith.maxsi %0, %c0_i32 : i32
    %c0_i32_0 = arith.constant 0 : i32
    %c0_i32_1 = arith.constant 0 : i32
    %c0_i32_2 = arith.constant 0 : i32
    return %1, %c0_i32_0, %c0_i32_1 : i32, i32, i32
  }
  func.func @transform_23(%arg0: i32, %arg1: i32) -> (i32, i32, i32) {
    %c2_i32 = arith.constant 2 : i32
    %0 = arith.subi %arg1, %c2_i32 : i32
    %c0_i32 = arith.constant 0 : i32
    %1 = arith.maxsi %0, %c0_i32 : i32
    %c0_i32_0 = arith.constant 0 : i32
    %c0_i32_1 = arith.constant 0 : i32
    %c0_i32_2 = arith.constant 0 : i32
    return %1, %c0_i32_0, %c0_i32_1 : i32, i32, i32
  }
  func.func @transform_24(%arg0: i32, %arg1: i32) -> (i32, i32, i32) {
    %c2_i32 = arith.constant 2 : i32
    %0 = arith.subi %arg1, %c2_i32 : i32
    %c0_i32 = arith.constant 0 : i32
    %1 = arith.maxsi %0, %c0_i32 : i32
    %c0_i32_0 = arith.constant 0 : i32
    %c0_i32_1 = arith.constant 0 : i32
    %c0_i32_2 = arith.constant 0 : i32
    return %1, %c0_i32_0, %c0_i32_1 : i32, i32, i32
  }
  func.func @transform_25(%arg0: i32, %arg1: i32) -> (i32, i32, i32) {
    %c2_i32 = arith.constant 2 : i32
    %0 = arith.subi %arg1, %c2_i32 : i32
    %c0_i32 = arith.constant 0 : i32
    %1 = arith.maxsi %0, %c0_i32 : i32
    %c0_i32_0 = arith.constant 0 : i32
    %c0_i32_1 = arith.constant 0 : i32
    %c0_i32_2 = arith.constant 0 : i32
    return %1, %c0_i32_0, %c0_i32_1 : i32, i32, i32
  }
  func.func @transform_26(%arg0: i32, %arg1: i32) -> (i32, i32, i32) {
    %c2_i32 = arith.constant 2 : i32
    %0 = arith.subi %arg1, %c2_i32 : i32
    %c0_i32 = arith.constant 0 : i32
    %1 = arith.maxsi %0, %c0_i32 : i32
    %c0_i32_0 = arith.constant 0 : i32
    %c0_i32_1 = arith.constant 0 : i32
    %c0_i32_2 = arith.constant 0 : i32
    return %1, %c0_i32_0, %c0_i32_1 : i32, i32, i32
  }
  func.func @transform_27(%arg0: i32, %arg1: i32) -> (i32, i32, i32) {
    %c2_i32 = arith.constant 2 : i32
    %0 = arith.subi %arg1, %c2_i32 : i32
    %c0_i32 = arith.constant 0 : i32
    %1 = arith.maxsi %0, %c0_i32 : i32
    %c0_i32_0 = arith.constant 0 : i32
    %c0_i32_1 = arith.constant 0 : i32
    %c0_i32_2 = arith.constant 0 : i32
    return %1, %c0_i32_0, %c0_i32_1 : i32, i32, i32
  }
  func.func @transform_28(%arg0: i32, %arg1: i32) -> (i32, i32, i32) {
    %c2_i32 = arith.constant 2 : i32
    %0 = arith.subi %arg1, %c2_i32 : i32
    %c0_i32 = arith.constant 0 : i32
    %1 = arith.maxsi %0, %c0_i32 : i32
    %c0_i32_0 = arith.constant 0 : i32
    %c0_i32_1 = arith.constant 0 : i32
    %c0_i32_2 = arith.constant 0 : i32
    return %1, %c0_i32_0, %c0_i32_1 : i32, i32, i32
  }
  func.func @transform_29(%arg0: i32, %arg1: i32) -> (i32, i32, i32) {
    %c2_i32 = arith.constant 2 : i32
    %0 = arith.subi %arg1, %c2_i32 : i32
    %c0_i32 = arith.constant 0 : i32
    %1 = arith.maxsi %0, %c0_i32 : i32
    %c0_i32_0 = arith.constant 0 : i32
    %c0_i32_1 = arith.constant 0 : i32
    %c0_i32_2 = arith.constant 0 : i32
    return %1, %c0_i32_0, %c0_i32_1 : i32, i32, i32
  }
  func.func @transform_30(%arg0: i32, %arg1: i32) -> (i32, i32, i32) {
    %c2_i32 = arith.constant 2 : i32
    %0 = arith.subi %arg1, %c2_i32 : i32
    %c0_i32 = arith.constant 0 : i32
    %1 = arith.maxsi %0, %c0_i32 : i32
    %c0_i32_0 = arith.constant 0 : i32
    %c0_i32_1 = arith.constant 0 : i32
    %c0_i32_2 = arith.constant 0 : i32
    return %1, %c0_i32_0, %c0_i32_1 : i32, i32, i32
  }
  func.func @transform_31(%arg0: i32, %arg1: i32) -> (i32, i32, i32) {
    %c2_i32 = arith.constant 2 : i32
    %0 = arith.subi %arg1, %c2_i32 : i32
    %c0_i32 = arith.constant 0 : i32
    %1 = arith.maxsi %0, %c0_i32 : i32
    %c0_i32_0 = arith.constant 0 : i32
    %c0_i32_1 = arith.constant 0 : i32
    %c0_i32_2 = arith.constant 0 : i32
    return %1, %c0_i32_0, %c0_i32_1 : i32, i32, i32
  }
  func.func @transform_32(%arg0: i32, %arg1: i32) -> (i32, i32, i32) {
    %c2_i32 = arith.constant 2 : i32
    %0 = arith.subi %arg1, %c2_i32 : i32
    %c0_i32 = arith.constant 0 : i32
    %1 = arith.maxsi %0, %c0_i32 : i32
    %c0_i32_0 = arith.constant 0 : i32
    %c0_i32_1 = arith.constant 0 : i32
    %c0_i32_2 = arith.constant 0 : i32
    return %1, %c0_i32_0, %c0_i32_1 : i32, i32, i32
  }
  func.func @transform_33(%arg0: i32, %arg1: i32) -> (i32, i32, i32) {
    %c2_i32 = arith.constant 2 : i32
    %0 = arith.subi %arg1, %c2_i32 : i32
    %c0_i32 = arith.constant 0 : i32
    %1 = arith.maxsi %0, %c0_i32 : i32
    %c0_i32_0 = arith.constant 0 : i32
    %c0_i32_1 = arith.constant 0 : i32
    %c0_i32_2 = arith.constant 0 : i32
    return %1, %c0_i32_0, %c0_i32_1 : i32, i32, i32
  }
  func.func @transform_34(%arg0: i32, %arg1: i32) -> (i32, i32, i32) {
    %c2_i32 = arith.constant 2 : i32
    %0 = arith.subi %arg1, %c2_i32 : i32
    %c0_i32 = arith.constant 0 : i32
    %1 = arith.maxsi %0, %c0_i32 : i32
    %c0_i32_0 = arith.constant 0 : i32
    %c0_i32_1 = arith.constant 0 : i32
    %c0_i32_2 = arith.constant 0 : i32
    return %1, %c0_i32_0, %c0_i32_1 : i32, i32, i32
  }
  func.func @transform_35(%arg0: i32, %arg1: i32) -> (i32, i32, i32) {
    %c2_i32 = arith.constant 2 : i32
    %0 = arith.subi %arg1, %c2_i32 : i32
    %c0_i32 = arith.constant 0 : i32
    %1 = arith.maxsi %0, %c0_i32 : i32
    %c0_i32_0 = arith.constant 0 : i32
    %c0_i32_1 = arith.constant 0 : i32
    %c0_i32_2 = arith.constant 0 : i32
    return %1, %c0_i32_0, %c0_i32_1 : i32, i32, i32
  }
  func.func @transform_36(%arg0: i32, %arg1: i32) -> (i32, i32, i32) {
    %c2_i32 = arith.constant 2 : i32
    %0 = arith.subi %arg1, %c2_i32 : i32
    %c0_i32 = arith.constant 0 : i32
    %1 = arith.maxsi %0, %c0_i32 : i32
    %c0_i32_0 = arith.constant 0 : i32
    %c0_i32_1 = arith.constant 0 : i32
    %c0_i32_2 = arith.constant 0 : i32
    return %1, %c0_i32_0, %c0_i32_1 : i32, i32, i32
  }
  func.func @transform_37(%arg0: i32, %arg1: i32) -> (i32, i32, i32) {
    %c2_i32 = arith.constant 2 : i32
    %0 = arith.subi %arg1, %c2_i32 : i32
    %c0_i32 = arith.constant 0 : i32
    %1 = arith.maxsi %0, %c0_i32 : i32
    %c0_i32_0 = arith.constant 0 : i32
    %c0_i32_1 = arith.constant 0 : i32
    %c0_i32_2 = arith.constant 0 : i32
    return %1, %c0_i32_0, %c0_i32_1 : i32, i32, i32
  }
  func.func @transform_39(%arg0: i32, %arg1: i32) -> (i32, i32) {
    %c0_i32 = arith.constant 0 : i32
    %c0_i32_0 = arith.constant 0 : i32
    %c0_i32_1 = arith.constant 0 : i32
    return %c0_i32, %c0_i32_0 : i32, i32
  }
  func.func @transform_40(%arg0: i32, %arg1: i32) -> (i32, i32, i32) {
    %c0_i32 = arith.constant 0 : i32
    %c0_i32_0 = arith.constant 0 : i32
    %c0_i32_1 = arith.constant 0 : i32
    return %arg0, %c0_i32, %c0_i32_0 : i32, i32, i32
  }
}

</mosaic_0001>

<llo_original>
// kernel: transformer_forward.1
$region0: #{transformer_forward.1}
  #allocation0 [shape = 'u32[]', space=smem, size = 0x4, offset = 0x4, fixed_abs, tag = 'smem constant byte address 0x4 - core index']
  #allocation1 [shape = 'u32[144,128]{1,0:T(1,128)}', space=vmem, size = 0x12000, scoped, tag = 'internal scratch']
  #allocation2 [shape = 'f32[8,32]{1,0:T(8,128)}', space=vmem, size = 0x1000, scoped, tag = 'scratch operand']
  #allocation3 [shape = 'f32[8,32]{1,0:T(8,128)}', space=vmem, size = 0x1000, scoped, tag = 'scratch operand']
  #allocation4 [shape = 'f32[8,8]{1,0:T(8,128)}', space=vmem, size = 0x1000, scoped, tag = 'scratch operand']
  #allocation5 [shape = 'bf16[32,128]{1,0:T(16,128)(2,1)}', space=vmem, size = 0x2000, scoped, tag = 'scratch operand']
  #allocation6 [shape = 's32[1]{0}', space=sflag, size = 0x4, scoped, tag = 'scratch operand']
  #allocation9 [shape = 's32[]', space=sflag, size = 0x4, offset = 0, fixed_abs, tag = 'sflag constant byte address 0x0 - dummy sync flag']
  %s0 = inlined_call_operand.smem [shape: u32[41], index: -1, kind: input, shape index: {}]
  %s1 = sld [smem:[%s0]]
  %s2 = scalar_lea.smem %s0, 1
  %s3 = sld [smem:[%s2]]
  %s4 = scalar_lea.smem %s0, 2
  %s5 = sld [smem:[%s4]]
  %s6 = scalar_lea.smem %s0, 3
  %s7 = sld [smem:[%s6]]
  %s8 = scalar_lea.smem %s0, 4
  %s9 = sld [smem:[%s8]]
  %s10 = scalar_lea.smem %s0, 5
  %s11 = sld [smem:[%s10]]
  %s12 = scalar_lea.smem %s0, 6
  %s13 = sld [smem:[%s12]]
  %s14 = scalar_lea.smem %s0, 7
  %s15 = sld [smem:[%s14]]
  %s16 = scalar_lea.smem %s0, 8
  %s17 = sld [smem:[%s16]]
  %s18 = scalar_lea.smem %s0, 9
  %s19 = sld [smem:[%s18]]
  %s20 = scalar_lea.smem %s0, 10
  %s21 = sld [smem:[%s20]]
  %s22 = scalar_lea.smem %s0, 11
  %s23 = sld [smem:[%s22]]
  %s24 = scalar_lea.smem %s0, 12
  %s25 = sld [smem:[%s24]]
  %s26 = scalar_lea.smem %s0, 13
  %s27 = sld [smem:[%s26]]
  %s28 = scalar_lea.smem %s0, 14
  %s29 = sld [smem:[%s28]]
  %s30 = scalar_lea.smem %s0, 15
  %s31 = sld [smem:[%s30]]
  %s32 = scalar_lea.smem %s0, 16
  %s33 = sld [smem:[%s32]]
  %s34 = scalar_lea.smem %s0, 17
  %s35 = sld [smem:[%s34]]
  %s36 = scalar_lea.smem %s0, 18
  %s37 = sld [smem:[%s36]]
  %s38 = scalar_lea.smem %s0, 19
  %s39 = sld [smem:[%s38]]
  %s40 = scalar_lea.smem %s0, 20
  %s41 = sld [smem:[%s40]]
  %s42 = scalar_lea.smem %s0, 21
  %s43 = sld [smem:[%s42]]
  %s44 = scalar_lea.smem %s0, 22
  %s45 = sld [smem:[%s44]]
  %s46 = scalar_lea.smem %s0, 23
  %s47 = sld [smem:[%s46]]
  %s48 = scalar_lea.smem %s0, 24
  %s49 = sld [smem:[%s48]]
  %s50 = scalar_lea.smem %s0, 25
  %s51 = sld [smem:[%s50]]
  %s52 = scalar_lea.smem %s0, 26
  %s53 = sld [smem:[%s52]]
  %s54 = scalar_lea.smem %s0, 27
  %s55 = sld [smem:[%s54]]
  %s56 = scalar_lea.smem %s0, 28
  %s57 = sld [smem:[%s56]]
  %s58 = scalar_lea.smem %s0, 29
  %s59 = sld [smem:[%s58]]
  %s60 = scalar_lea.smem %s0, 30
  %s61 = sld [smem:[%s60]]
  %s62 = scalar_lea.smem %s0, 31
  %s63 = sld [smem:[%s62]]
  %s64 = scalar_lea.smem %s0, 32
  %s65 = sld [smem:[%s64]]
  %s66 = scalar_lea.smem %s0, 33
  %s67 = sld [smem:[%s66]]
  %s68 = scalar_lea.smem %s0, 34
  %s69 = sld [smem:[%s68]]
  %s70 = scalar_lea.smem %s0, 35
  %s71 = sld [smem:[%s70]]
  %s72 = scalar_lea.smem %s0, 36
  %s73 = sld [smem:[%s72]]
  %s74 = scalar_lea.smem %s0, 37
  %s75 = sld [smem:[%s74]]
  %s76 = scalar_lea.smem %s0, 38
  %s77 = sld [smem:[%s76]]
  %s78 = scalar_lea.smem %s0, 39
  %s79 = sld [smem:[%s78]]
  %s80 = scalar_lea.smem %s0, 40
  %s81 = sld [smem:[%s80]]
  %s82 = sld [smem:[#allocation0]]
  $region251: #{transformer_forward.1} parent=0
    _
  %s84 = ssub.s32 1, %s82
  %s85 = scalar_select 0, %s84, %s82
  $region1: #{transformer_forward.1} parent=0
    #allocation7 [shape = 'u8[8192]{0}', space=vmem, size = 0x2000, scoped, tag = 'output window, operand 0']
    #allocation8 [shape = 's32[2]{0}', space=sflag, size = 0x8, scoped, tag = 'scoped memory for transformer_forward.1']
    %86 = vsyncpa [#allocation8], 0
    %s87 = scalar_lea.sflag [#allocation8], 1
    %88 = vsyncpa %s87, 0
    loop: start=0, step=1, limit=10
    $region2: #{transformer_forward.1} parent=1 // loop_pre_header
      _
    $region3: #{transformer_forward.1} parent=1 // loop_header
      %s90 = sphi 0, %s94
      %p91 = scmp.ge.s32.totalorder %s90, 10
      %s97 = sphi 0, %s109
      %s98 = sphi 0, %s105
      %s99 = sphi 0, %s97
      %s100 = sphi 0, %s98
      %s101 = sphi 0, %s99
      %s102 = sphi 0, %s100
      %s112 = sphi 0, %s114
      %s115 = sphi 0, %s112
      %s116 = sphi 0, %s115
      %s132 = sphi 0, %s116
      %s138 = sphi 0, %s140
      %s141 = sphi 0, %s138
      %s142 = sphi 0, %s141
      %s158 = sphi 0, %s142
      %s162 = sphi 0, %s162
      %s164 = sphi 0, %s162
      %s165 = sphi 0, %s164
      %s179 = sphi 0, %s165
      %s183 = sphi 0, %s183
      %s185 = sphi 0, %s183
      %s186 = sphi 0, %s185
      %s200 = sphi 0, %s186
      %s206 = sphi 0, %s208
      %s209 = sphi 0, %s206
      %s210 = sphi 0, %s209
      %s226 = sphi 0, %s210
      %s232 = sphi 0, %s234
      %s235 = sphi 0, %s232
      %s236 = sphi 0, %s235
      %s252 = sphi 0, %s236
      %s262 = sphi 0, %s264
      %s265 = sphi 0, %s262
      %s266 = sphi 0, %s265
      %s282 = sphi 0, %s266
      %s292 = sphi 0, %s294
      %s295 = sphi 0, %s292
      %s296 = sphi 0, %s295
      %s312 = sphi 0, %s296
      %s322 = sphi 0, %s324
      %s325 = sphi 0, %s322
      %s326 = sphi 0, %s325
      %s342 = sphi 0, %s326
      %s352 = sphi 0, %s354
      %s355 = sphi 0, %s352
      %s356 = sphi 0, %s355
      %s372 = sphi 0, %s356
      %s382 = sphi 0, %s384
      %s385 = sphi 0, %s382
      %s386 = sphi 0, %s385
      %s402 = sphi 0, %s386
      %s412 = sphi 0, %s414
      %s415 = sphi 0, %s412
      %s416 = sphi 0, %s415
      %s432 = sphi 0, %s416
      %s442 = sphi 0, %s444
      %s445 = sphi 0, %s442
      %s446 = sphi 0, %s445
      %s462 = sphi 0, %s446
      %s472 = sphi 0, %s474
      %s475 = sphi 0, %s472
      %s476 = sphi 0, %s475
      %s492 = sphi 0, %s476
      %s502 = sphi 0, %s504
      %s505 = sphi 0, %s502
      %s506 = sphi 0, %s505
      %s522 = sphi 0, %s506
      %s532 = sphi 0, %s534
      %s535 = sphi 0, %s532
      %s536 = sphi 0, %s535
      %s552 = sphi 0, %s536
      %s562 = sphi 0, %s564
      %s565 = sphi 0, %s562
      %s566 = sphi 0, %s565
      %s582 = sphi 0, %s566
      %s592 = sphi 0, %s594
      %s595 = sphi 0, %s592
      %s596 = sphi 0, %s595
      %s612 = sphi 0, %s596
      %s624 = sphi 0, %s626
      %s627 = sphi 0, %s624
      %s628 = sphi 0, %s627
      %s644 = sphi 0, %s628
      %s656 = sphi 0, %s658
      %s659 = sphi 0, %s656
      %s660 = sphi 0, %s659
      %s676 = sphi 0, %s660
      %s688 = sphi 0, %s690
      %s691 = sphi 0, %s688
      %s692 = sphi 0, %s691
      %s708 = sphi 0, %s692
      %s720 = sphi 0, %s722
      %s723 = sphi 0, %s720
      %s724 = sphi 0, %s723
      %s740 = sphi 0, %s724
      %s752 = sphi 0, %s754
      %s755 = sphi 0, %s752
      %s756 = sphi 0, %s755
      %s772 = sphi 0, %s756
      %s784 = sphi 0, %s786
      %s787 = sphi 0, %s784
      %s788 = sphi 0, %s787
      %s804 = sphi 0, %s788
      %s816 = sphi 0, %s818
      %s819 = sphi 0, %s816
      %s820 = sphi 0, %s819
      %s836 = sphi 0, %s820
      %s848 = sphi 0, %s850
      %s851 = sphi 0, %s848
      %s852 = sphi 0, %s851
      %s868 = sphi 0, %s852
      %s880 = sphi 0, %s882
      %s883 = sphi 0, %s880
      %s884 = sphi 0, %s883
      %s900 = sphi 0, %s884
      %s912 = sphi 0, %s914
      %s915 = sphi 0, %s912
      %s916 = sphi 0, %s915
      %s932 = sphi 0, %s916
      %s944 = sphi 0, %s946
      %s947 = sphi 0, %s944
      %s948 = sphi 0, %s947
      %s964 = sphi 0, %s948
      %s976 = sphi 0, %s978
      %s979 = sphi 0, %s976
      %s980 = sphi 0, %s979
      %s996 = sphi 0, %s980
      %s1008 = sphi 0, %s1010
      %s1011 = sphi 0, %s1008
      %s1012 = sphi 0, %s1011
      %s1028 = sphi 0, %s1012
      %s1040 = sphi 0, %s1042
      %s1043 = sphi 0, %s1040
      %s1044 = sphi 0, %s1043
      %s1060 = sphi 0, %s1044
      %s1072 = sphi 0, %s1074
      %s1075 = sphi 0, %s1072
      %s1076 = sphi 0, %s1075
      %s1092 = sphi 0, %s1076
      %s1104 = sphi 0, %s1106
      %s1107 = sphi 0, %s1104
      %s1108 = sphi 0, %s1107
      %s1124 = sphi 0, %s1108
      %s1136 = sphi 0, %s1138
      %s1139 = sphi 0, %s1136
      %s1140 = sphi 0, %s1139
      %s1156 = sphi 0, %s1140
      %s1168 = sphi 0, %s1170
      %s1171 = sphi 0, %s1168
      %s1172 = sphi 0, %s1171
      %s1188 = sphi 0, %s1172
      %s1200 = sphi 0, %s1202
      %s1203 = sphi 0, %s1200
      %s1204 = sphi 0, %s1203
      %s1220 = sphi 0, %s1204
      %s1232 = sphi 0, %s1234
      %s1235 = sphi 0, %s1232
      %s1236 = sphi 0, %s1235
      %s1252 = sphi 0, %s1236
      %s1256 = sphi 0, %s1256
      %s1258 = sphi 0, %s1256
      %s1259 = sphi 0, %s1258
      %s1273 = sphi 0, %s1259
      %s1279 = sphi 0, %s1281
      %s1282 = sphi 0, %s1279
      %s1283 = sphi 0, %s1282
      %s1299 = sphi 0, %s1283
    $region4: #{transformer_forward.1} parent=1 // loop_header_branch
      %93 = sbr.rel (%p91) target = $region8
    $region5: #{transformer_forward.1} parent=1 // loop_body
      %s95 = ssub.s32 %s90, 1
      %s96 = ssub.s32 %s90, 2
      %s103 = sadd.s32 1, %s98
      %p104 = scmp.ge.s32.totalorder %s103, 4
      %s105 = scalar_select %p104, 0, %s103
      %s106 = sadd.s32 1, %s97
      %s107 = scalar_select %p104, %s106, %s97
      %p108 = scmp.ge.s32.totalorder %s107, 2
      %s109 = scalar_select %p108, 0, %s107
      %s110 = ssub.s32 %s97, %s109
      %p111 = scmp.eq.s32.totalorder %s110, 0
      %s113 = sadd.s32 %s112, 1
      %s114 = scalar_select %p111, %s112, %s113
      %p117 = pneg %p111
      %p118 = scmp.eq.s32.totalorder %s90, 7
      %p119 = por %p117, %p118
      %p120 = scmp.ne.s32.totalorder %s112, %s115
      %p121 = scmp.eq.s32.totalorder %s90, 0
      %p122 = por %p120, %p121
      %p123 = scmp.ne.s32.totalorder %s112, %s115
      %p124 = scmp.eq.s32.totalorder %s95, 7
      %p125 = por %p123, %p124
      %p126 = scmp.ne.s32.totalorder %s115, %s116
      %p127 = scmp.eq.s32.totalorder %s95, 0
      %p128 = por %p126, %p127
      %p129 = scmp.ne.s32.totalorder %s115, %s116
      %p130 = scmp.eq.s32.totalorder %s96, 7
      %p131 = por %p129, %p130
      %p133 = scmp.ne.s32.totalorder %s116, %s132
      %p134 = scmp.eq.s32.totalorder %s96, 0
      %p135 = por %p133, %p134
      %s136 = ssub.s32 %s97, %s109
      %p137 = scmp.eq.s32.totalorder %s136, 0
      %s139 = sadd.s32 %s138, 1
      %s140 = scalar_select %p137, %s138, %s139
      %p143 = pneg %p137
      %p144 = scmp.eq.s32.totalorder %s90, 7
      %p145 = por %p143, %p144
      %p146 = scmp.ne.s32.totalorder %s138, %s141
      %p147 = scmp.eq.s32.totalorder %s90, 0
      %p148 = por %p146, %p147
      %p149 = scmp.ne.s32.totalorder %s138, %s141
      %p150 = scmp.eq.s32.totalorder %s95, 7
      %p151 = por %p149, %p150
      %p152 = scmp.ne.s32.totalorder %s141, %s142
      %p153 = scmp.eq.s32.totalorder %s95, 0
      %p154 = por %p152, %p153
      %p155 = scmp.ne.s32.totalorder %s141, %s142
      %p156 = scmp.eq.s32.totalorder %s96, 7
      %p157 = por %p155, %p156
      %p159 = scmp.ne.s32.totalorder %s142, %s158
      %p160 = scmp.eq.s32.totalorder %s96, 0
      %p161 = por %p159, %p160
      %s163 = sadd.s32 %s162, 1
      %p166 = scmp.eq.s32.totalorder %s90, 7
      %p167 = scmp.ne.s32.totalorder %s162, %s164
      %p168 = scmp.eq.s32.totalorder %s90, 0
      %p169 = por %p167, %p168
      %p170 = scmp.ne.s32.totalorder %s162, %s164
      %p171 = scmp.eq.s32.totalorder %s95, 7
      %p172 = por %p170, %p171
      %p173 = scmp.ne.s32.totalorder %s164, %s165
      %p174 = scmp.eq.s32.totalorder %s95, 0
      %p175 = por %p173, %p174
      %p176 = scmp.ne.s32.totalorder %s164, %s165
      %p177 = scmp.eq.s32.totalorder %s96, 7
      %p178 = por %p176, %p177
      %p180 = scmp.ne.s32.totalorder %s165, %s179
      %p181 = scmp.eq.s32.totalorder %s96, 0
      %p182 = por %p180, %p181
      %s184 = sadd.s32 %s183, 1
      %p187 = scmp.eq.s32.totalorder %s90, 7
      %p188 = scmp.ne.s32.totalorder %s183, %s185
      %p189 = scmp.eq.s32.totalorder %s90, 0
      %p190 = por %p188, %p189
      %p191 = scmp.ne.s32.totalorder %s183, %s185
      %p192 = scmp.eq.s32.totalorder %s95, 7
      %p193 = por %p191, %p192
      %p194 = scmp.ne.s32.totalorder %s185, %s186
      %p195 = scmp.eq.s32.totalorder %s95, 0
      %p196 = por %p194, %p195
      %p197 = scmp.ne.s32.totalorder %s185, %s186
      %p198 = scmp.eq.s32.totalorder %s96, 7
      %p199 = por %p197, %p198
      %p201 = scmp.ne.s32.totalorder %s186, %s200
      %p202 = scmp.eq.s32.totalorder %s96, 0
      %p203 = por %p201, %p202
      %s204 = ssub.s32 %s97, %s109
      %p205 = scmp.eq.s32.totalorder %s204, 0
      %s207 = sadd.s32 %s206, 1
      %s208 = scalar_select %p205, %s206, %s207
      %p211 = pneg %p205
      %p212 = scmp.eq.s32.totalorder %s90, 7
      %p213 = por %p211, %p212
      %p214 = scmp.ne.s32.totalorder %s206, %s209
      %p215 = scmp.eq.s32.totalorder %s90, 0
      %p216 = por %p214, %p215
      %p217 = scmp.ne.s32.totalorder %s206, %s209
      %p218 = scmp.eq.s32.totalorder %s95, 7
      %p219 = por %p217, %p218
      %p220 = scmp.ne.s32.totalorder %s209, %s210
      %p221 = scmp.eq.s32.totalorder %s95, 0
      %p222 = por %p220, %p221
      %p223 = scmp.ne.s32.totalorder %s209, %s210
      %p224 = scmp.eq.s32.totalorder %s96, 7
      %p225 = por %p223, %p224
      %p227 = scmp.ne.s32.totalorder %s210, %s226
      %p228 = scmp.eq.s32.totalorder %s96, 0
      %p229 = por %p227, %p228
      %s230 = ssub.s32 %s97, %s109
      %p231 = scmp.eq.s32.totalorder %s230, 0
      %s233 = sadd.s32 %s232, 1
      %s234 = scalar_select %p231, %s232, %s233
      %p237 = pneg %p231
      %p238 = scmp.eq.s32.totalorder %s90, 7
      %p239 = por %p237, %p238
      %p240 = scmp.ne.s32.totalorder %s232, %s235
      %p241 = scmp.eq.s32.totalorder %s90, 0
      %p242 = por %p240, %p241
      %p243 = scmp.ne.s32.totalorder %s232, %s235
      %p244 = scmp.eq.s32.totalorder %s95, 7
      %p245 = por %p243, %p244
      %p246 = scmp.ne.s32.totalorder %s235, %s236
      %p247 = scmp.eq.s32.totalorder %s95, 0
      %p248 = por %p246, %p247
      %p249 = scmp.ne.s32.totalorder %s235, %s236
      %p250 = scmp.eq.s32.totalorder %s96, 7
      %p251 = por %p249, %p250
      %p253 = scmp.ne.s32.totalorder %s236, %s252
      %p254 = scmp.eq.s32.totalorder %s96, 0
      %p255 = por %p253, %p254
      %p256 = scmp.lt.s32.totalorder %s98, 1
      %s257 = scalar_select %p256, %s98, 1
      %p258 = scmp.lt.s32.totalorder %s105, 1
      %s259 = scalar_select %p258, %s105, 1
      %s260 = ssub.s32 %s257, %s259
      %p261 = scmp.eq.s32.totalorder %s260, 0
      %s263 = sadd.s32 %s262, 1
      %s264 = scalar_select %p261, %s262, %s263
      %p267 = pneg %p261
      %p268 = scmp.eq.s32.totalorder %s90, 7
      %p269 = por %p267, %p268
      %p270 = scmp.ne.s32.totalorder %s262, %s265
      %p271 = scmp.eq.s32.totalorder %s90, 0
      %p272 = por %p270, %p271
      %p273 = scmp.ne.s32.totalorder %s262, %s265
      %p274 = scmp.eq.s32.totalorder %s95, 7
      %p275 = por %p273, %p274
      %p276 = scmp.ne.s32.totalorder %s265, %s266
      %p277 = scmp.eq.s32.totalorder %s95, 0
      %p278 = por %p276, %p277
      %p279 = scmp.ne.s32.totalorder %s265, %s266
      %p280 = scmp.eq.s32.totalorder %s96, 7
      %p281 = por %p279, %p280
      %p283 = scmp.ne.s32.totalorder %s266, %s282
      %p284 = scmp.eq.s32.totalorder %s96, 0
      %p285 = por %p283, %p284
      %p286 = scmp.lt.s32.totalorder %s98, 1
      %s287 = scalar_select %p286, %s98, 1
      %p288 = scmp.lt.s32.totalorder %s105, 1
      %s289 = scalar_select %p288, %s105, 1
      %s290 = ssub.s32 %s287, %s289
      %p291 = scmp.eq.s32.totalorder %s290, 0
      %s293 = sadd.s32 %s292, 1
      %s294 = scalar_select %p291, %s292, %s293
      %p297 = pneg %p291
      %p298 = scmp.eq.s32.totalorder %s90, 7
      %p299 = por %p297, %p298
      %p300 = scmp.ne.s32.totalorder %s292, %s295
      %p301 = scmp.eq.s32.totalorder %s90, 0
      %p302 = por %p300, %p301
      %p303 = scmp.ne.s32.totalorder %s292, %s295
      %p304 = scmp.eq.s32.totalorder %s95, 7
      %p305 = por %p303, %p304
      %p306 = scmp.ne.s32.totalorder %s295, %s296
      %p307 = scmp.eq.s32.totalorder %s95, 0
      %p308 = por %p306, %p307
      %p309 = scmp.ne.s32.totalorder %s295, %s296
      %p310 = scmp.eq.s32.totalorder %s96, 7
      %p311 = por %p309, %p310
      %p313 = scmp.ne.s32.totalorder %s296, %s312
      %p314 = scmp.eq.s32.totalorder %s96, 0
      %p315 = por %p313, %p314
      %p316 = scmp.lt.s32.totalorder %s98, 1
      %s317 = scalar_select %p316, %s98, 1
      %p318 = scmp.lt.s32.totalorder %s105, 1
      %s319 = scalar_select %p318, %s105, 1
      %s320 = ssub.s32 %s317, %s319
      %p321 = scmp.eq.s32.totalorder %s320, 0
      %s323 = sadd.s32 %s322, 1
      %s324 = scalar_select %p321, %s322, %s323
      %p327 = pneg %p321
      %p328 = scmp.eq.s32.totalorder %s90, 7
      %p329 = por %p327, %p328
      %p330 = scmp.ne.s32.totalorder %s322, %s325
      %p331 = scmp.eq.s32.totalorder %s90, 0
      %p332 = por %p330, %p331
      %p333 = scmp.ne.s32.totalorder %s322, %s325
      %p334 = scmp.eq.s32.totalorder %s95, 7
      %p335 = por %p333, %p334
      %p336 = scmp.ne.s32.totalorder %s325, %s326
      %p337 = scmp.eq.s32.totalorder %s95, 0
      %p338 = por %p336, %p337
      %p339 = scmp.ne.s32.totalorder %s325, %s326
      %p340 = scmp.eq.s32.totalorder %s96, 7
      %p341 = por %p339, %p340
      %p343 = scmp.ne.s32.totalorder %s326, %s342
      %p344 = scmp.eq.s32.totalorder %s96, 0
      %p345 = por %p343, %p344
      %p346 = scmp.lt.s32.totalorder %s98, 1
      %s347 = scalar_select %p346, %s98, 1
      %p348 = scmp.lt.s32.totalorder %s105, 1
      %s349 = scalar_select %p348, %s105, 1
      %s350 = ssub.s32 %s347, %s349
      %p351 = scmp.eq.s32.totalorder %s350, 0
      %s353 = sadd.s32 %s352, 1
      %s354 = scalar_select %p351, %s352, %s353
      %p357 = pneg %p351
      %p358 = scmp.eq.s32.totalorder %s90, 7
      %p359 = por %p357, %p358
      %p360 = scmp.ne.s32.totalorder %s352, %s355
      %p361 = scmp.eq.s32.totalorder %s90, 0
      %p362 = por %p360, %p361
      %p363 = scmp.ne.s32.totalorder %s352, %s355
      %p364 = scmp.eq.s32.totalorder %s95, 7
      %p365 = por %p363, %p364
      %p366 = scmp.ne.s32.totalorder %s355, %s356
      %p367 = scmp.eq.s32.totalorder %s95, 0
      %p368 = por %p366, %p367
      %p369 = scmp.ne.s32.totalorder %s355, %s356
      %p370 = scmp.eq.s32.totalorder %s96, 7
      %p371 = por %p369, %p370
      %p373 = scmp.ne.s32.totalorder %s356, %s372
      %p374 = scmp.eq.s32.totalorder %s96, 0
      %p375 = por %p373, %p374
      %p376 = scmp.lt.s32.totalorder %s98, 1
      %s377 = scalar_select %p376, %s98, 1
      %p378 = scmp.lt.s32.totalorder %s105, 1
      %s379 = scalar_select %p378, %s105, 1
      %s380 = ssub.s32 %s377, %s379
      %p381 = scmp.eq.s32.totalorder %s380, 0
      %s383 = sadd.s32 %s382, 1
      %s384 = scalar_select %p381, %s382, %s383
      %p387 = pneg %p381
      %p388 = scmp.eq.s32.totalorder %s90, 7
      %p389 = por %p387, %p388
      %p390 = scmp.ne.s32.totalorder %s382, %s385
      %p391 = scmp.eq.s32.totalorder %s90, 0
      %p392 = por %p390, %p391
      %p393 = scmp.ne.s32.totalorder %s382, %s385
      %p394 = scmp.eq.s32.totalorder %s95, 7
      %p395 = por %p393, %p394
      %p396 = scmp.ne.s32.totalorder %s385, %s386
      %p397 = scmp.eq.s32.totalorder %s95, 0
      %p398 = por %p396, %p397
      %p399 = scmp.ne.s32.totalorder %s385, %s386
      %p400 = scmp.eq.s32.totalorder %s96, 7
      %p401 = por %p399, %p400
      %p403 = scmp.ne.s32.totalorder %s386, %s402
      %p404 = scmp.eq.s32.totalorder %s96, 0
      %p405 = por %p403, %p404
      %p406 = scmp.lt.s32.totalorder %s98, 1
      %s407 = scalar_select %p406, %s98, 1
      %p408 = scmp.lt.s32.totalorder %s105, 1
      %s409 = scalar_select %p408, %s105, 1
      %s410 = ssub.s32 %s407, %s409
      %p411 = scmp.eq.s32.totalorder %s410, 0
      %s413 = sadd.s32 %s412, 1
      %s414 = scalar_select %p411, %s412, %s413
      %p417 = pneg %p411
      %p418 = scmp.eq.s32.totalorder %s90, 7
      %p419 = por %p417, %p418
      %p420 = scmp.ne.s32.totalorder %s412, %s415
      %p421 = scmp.eq.s32.totalorder %s90, 0
      %p422 = por %p420, %p421
      %p423 = scmp.ne.s32.totalorder %s412, %s415
      %p424 = scmp.eq.s32.totalorder %s95, 7
      %p425 = por %p423, %p424
      %p426 = scmp.ne.s32.totalorder %s415, %s416
      %p427 = scmp.eq.s32.totalorder %s95, 0
      %p428 = por %p426, %p427
      %p429 = scmp.ne.s32.totalorder %s415, %s416
      %p430 = scmp.eq.s32.totalorder %s96, 7
      %p431 = por %p429, %p430
      %p433 = scmp.ne.s32.totalorder %s416, %s432
      %p434 = scmp.eq.s32.totalorder %s96, 0
      %p435 = por %p433, %p434
      %p436 = scmp.lt.s32.totalorder %s98, 1
      %s437 = scalar_select %p436, %s98, 1
      %p438 = scmp.lt.s32.totalorder %s105, 1
      %s439 = scalar_select %p438, %s105, 1
      %s440 = ssub.s32 %s437, %s439
      %p441 = scmp.eq.s32.totalorder %s440, 0
      %s443 = sadd.s32 %s442, 1
      %s444 = scalar_select %p441, %s442, %s443
      %p447 = pneg %p441
      %p448 = scmp.eq.s32.totalorder %s90, 7
      %p449 = por %p447, %p448
      %p450 = scmp.ne.s32.totalorder %s442, %s445
      %p451 = scmp.eq.s32.totalorder %s90, 0
      %p452 = por %p450, %p451
      %p453 = scmp.ne.s32.totalorder %s442, %s445
      %p454 = scmp.eq.s32.totalorder %s95, 7
      %p455 = por %p453, %p454
      %p456 = scmp.ne.s32.totalorder %s445, %s446
      %p457 = scmp.eq.s32.totalorder %s95, 0
      %p458 = por %p456, %p457
      %p459 = scmp.ne.s32.totalorder %s445, %s446
      %p460 = scmp.eq.s32.totalorder %s96, 7
      %p461 = por %p459, %p460
      %p463 = scmp.ne.s32.totalorder %s446, %s462
      %p464 = scmp.eq.s32.totalorder %s96, 0
      %p465 = por %p463, %p464
      %p466 = scmp.lt.s32.totalorder %s98, 1
      %s467 = scalar_select %p466, %s98, 1
      %p468 = scmp.lt.s32.totalorder %s105, 1
      %s469 = scalar_select %p468, %s105, 1
      %s470 = ssub.s32 %s467, %s469
      %p471 = scmp.eq.s32.totalorder %s470, 0
      %s473 = sadd.s32 %s472, 1
      %s474 = scalar_select %p471, %s472, %s473
      %p477 = pneg %p471
      %p478 = scmp.eq.s32.totalorder %s90, 7
      %p479 = por %p477, %p478
      %p480 = scmp.ne.s32.totalorder %s472, %s475
      %p481 = scmp.eq.s32.totalorder %s90, 0
      %p482 = por %p480, %p481
      %p483 = scmp.ne.s32.totalorder %s472, %s475
      %p484 = scmp.eq.s32.totalorder %s95, 7
      %p485 = por %p483, %p484
      %p486 = scmp.ne.s32.totalorder %s475, %s476
      %p487 = scmp.eq.s32.totalorder %s95, 0
      %p488 = por %p486, %p487
      %p489 = scmp.ne.s32.totalorder %s475, %s476
      %p490 = scmp.eq.s32.totalorder %s96, 7
      %p491 = por %p489, %p490
      %p493 = scmp.ne.s32.totalorder %s476, %s492
      %p494 = scmp.eq.s32.totalorder %s96, 0
      %p495 = por %p493, %p494
      %p496 = scmp.lt.s32.totalorder %s98, 1
      %s497 = scalar_select %p496, %s98, 1
      %p498 = scmp.lt.s32.totalorder %s105, 1
      %s499 = scalar_select %p498, %s105, 1
      %s500 = ssub.s32 %s497, %s499
      %p501 = scmp.eq.s32.totalorder %s500, 0
      %s503 = sadd.s32 %s502, 1
      %s504 = scalar_select %p501, %s502, %s503
      %p507 = pneg %p501
      %p508 = scmp.eq.s32.totalorder %s90, 7
      %p509 = por %p507, %p508
      %p510 = scmp.ne.s32.totalorder %s502, %s505
      %p511 = scmp.eq.s32.totalorder %s90, 0
      %p512 = por %p510, %p511
      %p513 = scmp.ne.s32.totalorder %s502, %s505
      %p514 = scmp.eq.s32.totalorder %s95, 7
      %p515 = por %p513, %p514
      %p516 = scmp.ne.s32.totalorder %s505, %s506
      %p517 = scmp.eq.s32.totalorder %s95, 0
      %p518 = por %p516, %p517
      %p519 = scmp.ne.s32.totalorder %s505, %s506
      %p520 = scmp.eq.s32.totalorder %s96, 7
      %p521 = por %p519, %p520
      %p523 = scmp.ne.s32.totalorder %s506, %s522
      %p524 = scmp.eq.s32.totalorder %s96, 0
      %p525 = por %p523, %p524
      %p526 = scmp.lt.s32.totalorder %s98, 1
      %s527 = scalar_select %p526, %s98, 1
      %p528 = scmp.lt.s32.totalorder %s105, 1
      %s529 = scalar_select %p528, %s105, 1
      %s530 = ssub.s32 %s527, %s529
      %p531 = scmp.eq.s32.totalorder %s530, 0
      %s533 = sadd.s32 %s532, 1
      %s534 = scalar_select %p531, %s532, %s533
      %p537 = pneg %p531
      %p538 = scmp.eq.s32.totalorder %s90, 7
      %p539 = por %p537, %p538
      %p540 = scmp.ne.s32.totalorder %s532, %s535
      %p541 = scmp.eq.s32.totalorder %s90, 0
      %p542 = por %p540, %p541
      %p543 = scmp.ne.s32.totalorder %s532, %s535
      %p544 = scmp.eq.s32.totalorder %s95, 7
      %p545 = por %p543, %p544
      %p546 = scmp.ne.s32.totalorder %s535, %s536
      %p547 = scmp.eq.s32.totalorder %s95, 0
      %p548 = por %p546, %p547
      %p549 = scmp.ne.s32.totalorder %s535, %s536
      %p550 = scmp.eq.s32.totalorder %s96, 7
      %p551 = por %p549, %p550
      %p553 = scmp.ne.s32.totalorder %s536, %s552
      %p554 = scmp.eq.s32.totalorder %s96, 0
      %p555 = por %p553, %p554
      %p556 = scmp.lt.s32.totalorder %s98, 1
      %s557 = scalar_select %p556, %s98, 1
      %p558 = scmp.lt.s32.totalorder %s105, 1
      %s559 = scalar_select %p558, %s105, 1
      %s560 = ssub.s32 %s557, %s559
      %p561 = scmp.eq.s32.totalorder %s560, 0
      %s563 = sadd.s32 %s562, 1
      %s564 = scalar_select %p561, %s562, %s563
      %p567 = pneg %p561
      %p568 = scmp.eq.s32.totalorder %s90, 7
      %p569 = por %p567, %p568
      %p570 = scmp.ne.s32.totalorder %s562, %s565
      %p571 = scmp.eq.s32.totalorder %s90, 0
      %p572 = por %p570, %p571
      %p573 = scmp.ne.s32.totalorder %s562, %s565
      %p574 = scmp.eq.s32.totalorder %s95, 7
      %p575 = por %p573, %p574
      %p576 = scmp.ne.s32.totalorder %s565, %s566
      %p577 = scmp.eq.s32.totalorder %s95, 0
      %p578 = por %p576, %p577
      %p579 = scmp.ne.s32.totalorder %s565, %s566
      %p580 = scmp.eq.s32.totalorder %s96, 7
      %p581 = por %p579, %p580
      %p583 = scmp.ne.s32.totalorder %s566, %s582
      %p584 = scmp.eq.s32.totalorder %s96, 0
      %p585 = por %p583, %p584
      %p586 = scmp.lt.s32.totalorder %s98, 1
      %s587 = scalar_select %p586, %s98, 1
      %p588 = scmp.lt.s32.totalorder %s105, 1
      %s589 = scalar_select %p588, %s105, 1
      %s590 = ssub.s32 %s587, %s589
      %p591 = scmp.eq.s32.totalorder %s590, 0
      %s593 = sadd.s32 %s592, 1
      %s594 = scalar_select %p591, %s592, %s593
      %p597 = pneg %p591
      %p598 = scmp.eq.s32.totalorder %s90, 7
      %p599 = por %p597, %p598
      %p600 = scmp.ne.s32.totalorder %s592, %s595
      %p601 = scmp.eq.s32.totalorder %s90, 0
      %p602 = por %p600, %p601
      %p603 = scmp.ne.s32.totalorder %s592, %s595
      %p604 = scmp.eq.s32.totalorder %s95, 7
      %p605 = por %p603, %p604
      %p606 = scmp.ne.s32.totalorder %s595, %s596
      %p607 = scmp.eq.s32.totalorder %s95, 0
      %p608 = por %p606, %p607
      %p609 = scmp.ne.s32.totalorder %s595, %s596
      %p610 = scmp.eq.s32.totalorder %s96, 7
      %p611 = por %p609, %p610
      %p613 = scmp.ne.s32.totalorder %s596, %s612
      %p614 = scmp.eq.s32.totalorder %s96, 0
      %p615 = por %p613, %p614
      %s616 = ssub.s32 %s98, 2
      %p617 = scmp.gt.s32.totalorder %s616, 0
      %s618 = scalar_select %p617, %s616, 0
      %s619 = ssub.s32 %s105, 2
      %p620 = scmp.gt.s32.totalorder %s619, 0
      %s621 = scalar_select %p620, %s619, 0
      %s622 = ssub.s32 %s618, %s621
      %p623 = scmp.eq.s32.totalorder %s622, 0
      %s625 = sadd.s32 %s624, 1
      %s626 = scalar_select %p623, %s624, %s625
      %p629 = pneg %p623
      %p630 = scmp.eq.s32.totalorder %s90, 7
      %p631 = por %p629, %p630
      %p632 = scmp.ne.s32.totalorder %s624, %s627
      %p633 = scmp.eq.s32.totalorder %s90, 0
      %p634 = por %p632, %p633
      %p635 = scmp.ne.s32.totalorder %s624, %s627
      %p636 = scmp.eq.s32.totalorder %s95, 7
      %p637 = por %p635, %p636
      %p638 = scmp.ne.s32.totalorder %s627, %s628
      %p639 = scmp.eq.s32.totalorder %s95, 0
      %p640 = por %p638, %p639
      %p641 = scmp.ne.s32.totalorder %s627, %s628
      %p642 = scmp.eq.s32.totalorder %s96, 7
      %p643 = por %p641, %p642
      %p645 = scmp.ne.s32.totalorder %s628, %s644
      %p646 = scmp.eq.s32.totalorder %s96, 0
      %p647 = por %p645, %p646
      %s648 = ssub.s32 %s98, 2
      %p649 = scmp.gt.s32.totalorder %s648, 0
      %s650 = scalar_select %p649, %s648, 0
      %s651 = ssub.s32 %s105, 2
      %p652 = scmp.gt.s32.totalorder %s651, 0
      %s653 = scalar_select %p652, %s651, 0
      %s654 = ssub.s32 %s650, %s653
      %p655 = scmp.eq.s32.totalorder %s654, 0
      %s657 = sadd.s32 %s656, 1
      %s658 = scalar_select %p655, %s656, %s657
      %p661 = pneg %p655
      %p662 = scmp.eq.s32.totalorder %s90, 7
      %p663 = por %p661, %p662
      %p664 = scmp.ne.s32.totalorder %s656, %s659
      %p665 = scmp.eq.s32.totalorder %s90, 0
      %p666 = por %p664, %p665
      %p667 = scmp.ne.s32.totalorder %s656, %s659
      %p668 = scmp.eq.s32.totalorder %s95, 7
      %p669 = por %p667, %p668
      %p670 = scmp.ne.s32.totalorder %s659, %s660
      %p671 = scmp.eq.s32.totalorder %s95, 0
      %p672 = por %p670, %p671
      %p673 = scmp.ne.s32.totalorder %s659, %s660
      %p674 = scmp.eq.s32.totalorder %s96, 7
      %p675 = por %p673, %p674
      %p677 = scmp.ne.s32.totalorder %s660, %s676
      %p678 = scmp.eq.s32.totalorder %s96, 0
      %p679 = por %p677, %p678
      %s680 = ssub.s32 %s98, 2
      %p681 = scmp.gt.s32.totalorder %s680, 0
      %s682 = scalar_select %p681, %s680, 0
      %s683 = ssub.s32 %s105, 2
      %p684 = scmp.gt.s32.totalorder %s683, 0
      %s685 = scalar_select %p684, %s683, 0
      %s686 = ssub.s32 %s682, %s685
      %p687 = scmp.eq.s32.totalorder %s686, 0
      %s689 = sadd.s32 %s688, 1
      %s690 = scalar_select %p687, %s688, %s689
      %p693 = pneg %p687
      %p694 = scmp.eq.s32.totalorder %s90, 7
      %p695 = por %p693, %p694
      %p696 = scmp.ne.s32.totalorder %s688, %s691
      %p697 = scmp.eq.s32.totalorder %s90, 0
      %p698 = por %p696, %p697
      %p699 = scmp.ne.s32.totalorder %s688, %s691
      %p700 = scmp.eq.s32.totalorder %s95, 7
      %p701 = por %p699, %p700
      %p702 = scmp.ne.s32.totalorder %s691, %s692
      %p703 = scmp.eq.s32.totalorder %s95, 0
      %p704 = por %p702, %p703
      %p705 = scmp.ne.s32.totalorder %s691, %s692
      %p706 = scmp.eq.s32.totalorder %s96, 7
      %p707 = por %p705, %p706
      %p709 = scmp.ne.s32.totalorder %s692, %s708
      %p710 = scmp.eq.s32.totalorder %s96, 0
      %p711 = por %p709, %p710
      %s712 = ssub.s32 %s98, 2
      %p713 = scmp.gt.s32.totalorder %s712, 0
      %s714 = scalar_select %p713, %s712, 0
      %s715 = ssub.s32 %s105, 2
      %p716 = scmp.gt.s32.totalorder %s715, 0
      %s717 = scalar_select %p716, %s715, 0
      %s718 = ssub.s32 %s714, %s717
      %p719 = scmp.eq.s32.totalorder %s718, 0
      %s721 = sadd.s32 %s720, 1
      %s722 = scalar_select %p719, %s720, %s721
      %p725 = pneg %p719
      %p726 = scmp.eq.s32.totalorder %s90, 7
      %p727 = por %p725, %p726
      %p728 = scmp.ne.s32.totalorder %s720, %s723
      %p729 = scmp.eq.s32.totalorder %s90, 0
      %p730 = por %p728, %p729
      %p731 = scmp.ne.s32.totalorder %s720, %s723
      %p732 = scmp.eq.s32.totalorder %s95, 7
      %p733 = por %p731, %p732
      %p734 = scmp.ne.s32.totalorder %s723, %s724
      %p735 = scmp.eq.s32.totalorder %s95, 0
      %p736 = por %p734, %p735
      %p737 = scmp.ne.s32.totalorder %s723, %s724
      %p738 = scmp.eq.s32.totalorder %s96, 7
      %p739 = por %p737, %p738
      %p741 = scmp.ne.s32.totalorder %s724, %s740
      %p742 = scmp.eq.s32.totalorder %s96, 0
      %p743 = por %p741, %p742
      %s744 = ssub.s32 %s98, 2
      %p745 = scmp.gt.s32.totalorder %s744, 0
      %s746 = scalar_select %p745, %s744, 0
      %s747 = ssub.s32 %s105, 2
      %p748 = scmp.gt.s32.totalorder %s747, 0
      %s749 = scalar_select %p748, %s747, 0
      %s750 = ssub.s32 %s746, %s749
      %p751 = scmp.eq.s32.totalorder %s750, 0
      %s753 = sadd.s32 %s752, 1
      %s754 = scalar_select %p751, %s752, %s753
      %p757 = pneg %p751
      %p758 = scmp.eq.s32.totalorder %s90, 7
      %p759 = por %p757, %p758
      %p760 = scmp.ne.s32.totalorder %s752, %s755
      %p761 = scmp.eq.s32.totalorder %s90, 0
      %p762 = por %p760, %p761
      %p763 = scmp.ne.s32.totalorder %s752, %s755
      %p764 = scmp.eq.s32.totalorder %s95, 7
      %p765 = por %p763, %p764
      %p766 = scmp.ne.s32.totalorder %s755, %s756
      %p767 = scmp.eq.s32.totalorder %s95, 0
      %p768 = por %p766, %p767
      %p769 = scmp.ne.s32.totalorder %s755, %s756
      %p770 = scmp.eq.s32.totalorder %s96, 7
      %p771 = por %p769, %p770
      %p773 = scmp.ne.s32.totalorder %s756, %s772
      %p774 = scmp.eq.s32.totalorder %s96, 0
      %p775 = por %p773, %p774
      %s776 = ssub.s32 %s98, 2
      %p777 = scmp.gt.s32.totalorder %s776, 0
      %s778 = scalar_select %p777, %s776, 0
      %s779 = ssub.s32 %s105, 2
      %p780 = scmp.gt.s32.totalorder %s779, 0
      %s781 = scalar_select %p780, %s779, 0
      %s782 = ssub.s32 %s778, %s781
      %p783 = scmp.eq.s32.totalorder %s782, 0
      %s785 = sadd.s32 %s784, 1
      %s786 = scalar_select %p783, %s784, %s785
      %p789 = pneg %p783
      %p790 = scmp.eq.s32.totalorder %s90, 7
      %p791 = por %p789, %p790
      %p792 = scmp.ne.s32.totalorder %s784, %s787
      %p793 = scmp.eq.s32.totalorder %s90, 0
      %p794 = por %p792, %p793
      %p795 = scmp.ne.s32.totalorder %s784, %s787
      %p796 = scmp.eq.s32.totalorder %s95, 7
      %p797 = por %p795, %p796
      %p798 = scmp.ne.s32.totalorder %s787, %s788
      %p799 = scmp.eq.s32.totalorder %s95, 0
      %p800 = por %p798, %p799
      %p801 = scmp.ne.s32.totalorder %s787, %s788
      %p802 = scmp.eq.s32.totalorder %s96, 7
      %p803 = por %p801, %p802
      %p805 = scmp.ne.s32.totalorder %s788, %s804
      %p806 = scmp.eq.s32.totalorder %s96, 0
      %p807 = por %p805, %p806
      %s808 = ssub.s32 %s98, 2
      %p809 = scmp.gt.s32.totalorder %s808, 0
      %s810 = scalar_select %p809, %s808, 0
      %s811 = ssub.s32 %s105, 2
      %p812 = scmp.gt.s32.totalorder %s811, 0
      %s813 = scalar_select %p812, %s811, 0
      %s814 = ssub.s32 %s810, %s813
      %p815 = scmp.eq.s32.totalorder %s814, 0
      %s817 = sadd.s32 %s816, 1
      %s818 = scalar_select %p815, %s816, %s817
      %p821 = pneg %p815
      %p822 = scmp.eq.s32.totalorder %s90, 7
      %p823 = por %p821, %p822
      %p824 = scmp.ne.s32.totalorder %s816, %s819
      %p825 = scmp.eq.s32.totalorder %s90, 0
      %p826 = por %p824, %p825
      %p827 = scmp.ne.s32.totalorder %s816, %s819
      %p828 = scmp.eq.s32.totalorder %s95, 7
      %p829 = por %p827, %p828
      %p830 = scmp.ne.s32.totalorder %s819, %s820
      %p831 = scmp.eq.s32.totalorder %s95, 0
      %p832 = por %p830, %p831
      %p833 = scmp.ne.s32.totalorder %s819, %s820
      %p834 = scmp.eq.s32.totalorder %s96, 7
      %p835 = por %p833, %p834
      %p837 = scmp.ne.s32.totalorder %s820, %s836
      %p838 = scmp.eq.s32.totalorder %s96, 0
      %p839 = por %p837, %p838
      %s840 = ssub.s32 %s98, 2
      %p841 = scmp.gt.s32.totalorder %s840, 0
      %s842 = scalar_select %p841, %s840, 0
      %s843 = ssub.s32 %s105, 2
      %p844 = scmp.gt.s32.totalorder %s843, 0
      %s845 = scalar_select %p844, %s843, 0
      %s846 = ssub.s32 %s842, %s845
      %p847 = scmp.eq.s32.totalorder %s846, 0
      %s849 = sadd.s32 %s848, 1
      %s850 = scalar_select %p847, %s848, %s849
      %p853 = pneg %p847
      %p854 = scmp.eq.s32.totalorder %s90, 7
      %p855 = por %p853, %p854
      %p856 = scmp.ne.s32.totalorder %s848, %s851
      %p857 = scmp.eq.s32.totalorder %s90, 0
      %p858 = por %p856, %p857
      %p859 = scmp.ne.s32.totalorder %s848, %s851
      %p860 = scmp.eq.s32.totalorder %s95, 7
      %p861 = por %p859, %p860
      %p862 = scmp.ne.s32.totalorder %s851, %s852
      %p863 = scmp.eq.s32.totalorder %s95, 0
      %p864 = por %p862, %p863
      %p865 = scmp.ne.s32.totalorder %s851, %s852
      %p866 = scmp.eq.s32.totalorder %s96, 7
      %p867 = por %p865, %p866
      %p869 = scmp.ne.s32.totalorder %s852, %s868
      %p870 = scmp.eq.s32.totalorder %s96, 0
      %p871 = por %p869, %p870
      %s872 = ssub.s32 %s98, 2
      %p873 = scmp.gt.s32.totalorder %s872, 0
      %s874 = scalar_select %p873, %s872, 0
      %s875 = ssub.s32 %s105, 2
      %p876 = scmp.gt.s32.totalorder %s875, 0
      %s877 = scalar_select %p876, %s875, 0
      %s878 = ssub.s32 %s874, %s877
      %p879 = scmp.eq.s32.totalorder %s878, 0
      %s881 = sadd.s32 %s880, 1
      %s882 = scalar_select %p879, %s880, %s881
      %p885 = pneg %p879
      %p886 = scmp.eq.s32.totalorder %s90, 7
      %p887 = por %p885, %p886
      %p888 = scmp.ne.s32.totalorder %s880, %s883
      %p889 = scmp.eq.s32.totalorder %s90, 0
      %p890 = por %p888, %p889
      %p891 = scmp.ne.s32.totalorder %s880, %s883
      %p892 = scmp.eq.s32.totalorder %s95, 7
      %p893 = por %p891, %p892
      %p894 = scmp.ne.s32.totalorder %s883, %s884
      %p895 = scmp.eq.s32.totalorder %s95, 0
      %p896 = por %p894, %p895
      %p897 = scmp.ne.s32.totalorder %s883, %s884
      %p898 = scmp.eq.s32.totalorder %s96, 7
      %p899 = por %p897, %p898
      %p901 = scmp.ne.s32.totalorder %s884, %s900
      %p902 = scmp.eq.s32.totalorder %s96, 0
      %p903 = por %p901, %p902
      %s904 = ssub.s32 %s98, 2
      %p905 = scmp.gt.s32.totalorder %s904, 0
      %s906 = scalar_select %p905, %s904, 0
      %s907 = ssub.s32 %s105, 2
      %p908 = scmp.gt.s32.totalorder %s907, 0
      %s909 = scalar_select %p908, %s907, 0
      %s910 = ssub.s32 %s906, %s909
      %p911 = scmp.eq.s32.totalorder %s910, 0
      %s913 = sadd.s32 %s912, 1
      %s914 = scalar_select %p911, %s912, %s913
      %p917 = pneg %p911
      %p918 = scmp.eq.s32.totalorder %s90, 7
      %p919 = por %p917, %p918
      %p920 = scmp.ne.s32.totalorder %s912, %s915
      %p921 = scmp.eq.s32.totalorder %s90, 0
      %p922 = por %p920, %p921
      %p923 = scmp.ne.s32.totalorder %s912, %s915
      %p924 = scmp.eq.s32.totalorder %s95, 7
      %p925 = por %p923, %p924
      %p926 = scmp.ne.s32.totalorder %s915, %s916
      %p927 = scmp.eq.s32.totalorder %s95, 0
      %p928 = por %p926, %p927
      %p929 = scmp.ne.s32.totalorder %s915, %s916
      %p930 = scmp.eq.s32.totalorder %s96, 7
      %p931 = por %p929, %p930
      %p933 = scmp.ne.s32.totalorder %s916, %s932
      %p934 = scmp.eq.s32.totalorder %s96, 0
      %p935 = por %p933, %p934
      %s936 = ssub.s32 %s98, 2
      %p937 = scmp.gt.s32.totalorder %s936, 0
      %s938 = scalar_select %p937, %s936, 0
      %s939 = ssub.s32 %s105, 2
      %p940 = scmp.gt.s32.totalorder %s939, 0
      %s941 = scalar_select %p940, %s939, 0
      %s942 = ssub.s32 %s938, %s941
      %p943 = scmp.eq.s32.totalorder %s942, 0
      %s945 = sadd.s32 %s944, 1
      %s946 = scalar_select %p943, %s944, %s945
      %p949 = pneg %p943
      %p950 = scmp.eq.s32.totalorder %s90, 7
      %p951 = por %p949, %p950
      %p952 = scmp.ne.s32.totalorder %s944, %s947
      %p953 = scmp.eq.s32.totalorder %s90, 0
      %p954 = por %p952, %p953
      %p955 = scmp.ne.s32.totalorder %s944, %s947
      %p956 = scmp.eq.s32.totalorder %s95, 7
      %p957 = por %p955, %p956
      %p958 = scmp.ne.s32.totalorder %s947, %s948
      %p959 = scmp.eq.s32.totalorder %s95, 0
      %p960 = por %p958, %p959
      %p961 = scmp.ne.s32.totalorder %s947, %s948
      %p962 = scmp.eq.s32.totalorder %s96, 7
      %p963 = por %p961, %p962
      %p965 = scmp.ne.s32.totalorder %s948, %s964
      %p966 = scmp.eq.s32.totalorder %s96, 0
      %p967 = por %p965, %p966
      %s968 = ssub.s32 %s98, 2
      %p969 = scmp.gt.s32.totalorder %s968, 0
      %s970 = scalar_select %p969, %s968, 0
      %s971 = ssub.s32 %s105, 2
      %p972 = scmp.gt.s32.totalorder %s971, 0
      %s973 = scalar_select %p972, %s971, 0
      %s974 = ssub.s32 %s970, %s973
      %p975 = scmp.eq.s32.totalorder %s974, 0
      %s977 = sadd.s32 %s976, 1
      %s978 = scalar_select %p975, %s976, %s977
      %p981 = pneg %p975
      %p982 = scmp.eq.s32.totalorder %s90, 7
      %p983 = por %p981, %p982
      %p984 = scmp.ne.s32.totalorder %s976, %s979
      %p985 = scmp.eq.s32.totalorder %s90, 0
      %p986 = por %p984, %p985
      %p987 = scmp.ne.s32.totalorder %s976, %s979
      %p988 = scmp.eq.s32.totalorder %s95, 7
      %p989 = por %p987, %p988
      %p990 = scmp.ne.s32.totalorder %s979, %s980
      %p991 = scmp.eq.s32.totalorder %s95, 0
      %p992 = por %p990, %p991
      %p993 = scmp.ne.s32.totalorder %s979, %s980
      %p994 = scmp.eq.s32.totalorder %s96, 7
      %p995 = por %p993, %p994
      %p997 = scmp.ne.s32.totalorder %s980, %s996
      %p998 = scmp.eq.s32.totalorder %s96, 0
      %p999 = por %p997, %p998
      %s1000 = ssub.s32 %s98, 2
      %p1001 = scmp.gt.s32.totalorder %s1000, 0
      %s1002 = scalar_select %p1001, %s1000, 0
      %s1003 = ssub.s32 %s105, 2
      %p1004 = scmp.gt.s32.totalorder %s1003, 0
      %s1005 = scalar_select %p1004, %s1003, 0
      %s1006 = ssub.s32 %s1002, %s1005
      %p1007 = scmp.eq.s32.totalorder %s1006, 0
      %s1009 = sadd.s32 %s1008, 1
      %s1010 = scalar_select %p1007, %s1008, %s1009
      %p1013 = pneg %p1007
      %p1014 = scmp.eq.s32.totalorder %s90, 7
      %p1015 = por %p1013, %p1014
      %p1016 = scmp.ne.s32.totalorder %s1008, %s1011
      %p1017 = scmp.eq.s32.totalorder %s90, 0
      %p1018 = por %p1016, %p1017
      %p1019 = scmp.ne.s32.totalorder %s1008, %s1011
      %p1020 = scmp.eq.s32.totalorder %s95, 7
      %p1021 = por %p1019, %p1020
      %p1022 = scmp.ne.s32.totalorder %s1011, %s1012
      %p1023 = scmp.eq.s32.totalorder %s95, 0
      %p1024 = por %p1022, %p1023
      %p1025 = scmp.ne.s32.totalorder %s1011, %s1012
      %p1026 = scmp.eq.s32.totalorder %s96, 7
      %p1027 = por %p1025, %p1026
      %p1029 = scmp.ne.s32.totalorder %s1012, %s1028
      %p1030 = scmp.eq.s32.totalorder %s96, 0
      %p1031 = por %p1029, %p1030
      %s1032 = ssub.s32 %s98, 2
      %p1033 = scmp.gt.s32.totalorder %s1032, 0
      %s1034 = scalar_select %p1033, %s1032, 0
      %s1035 = ssub.s32 %s105, 2
      %p1036 = scmp.gt.s32.totalorder %s1035, 0
      %s1037 = scalar_select %p1036, %s1035, 0
      %s1038 = ssub.s32 %s1034, %s1037
      %p1039 = scmp.eq.s32.totalorder %s1038, 0
      %s1041 = sadd.s32 %s1040, 1
      %s1042 = scalar_select %p1039, %s1040, %s1041
      %p1045 = pneg %p1039
      %p1046 = scmp.eq.s32.totalorder %s90, 7
      %p1047 = por %p1045, %p1046
      %p1048 = scmp.ne.s32.totalorder %s1040, %s1043
      %p1049 = scmp.eq.s32.totalorder %s90, 0
      %p1050 = por %p1048, %p1049
      %p1051 = scmp.ne.s32.totalorder %s1040, %s1043
      %p1052 = scmp.eq.s32.totalorder %s95, 7
      %p1053 = por %p1051, %p1052
      %p1054 = scmp.ne.s32.totalorder %s1043, %s1044
      %p1055 = scmp.eq.s32.totalorder %s95, 0
      %p1056 = por %p1054, %p1055
      %p1057 = scmp.ne.s32.totalorder %s1043, %s1044
      %p1058 = scmp.eq.s32.totalorder %s96, 7
      %p1059 = por %p1057, %p1058
      %p1061 = scmp.ne.s32.totalorder %s1044, %s1060
      %p1062 = scmp.eq.s32.totalorder %s96, 0
      %p1063 = por %p1061, %p1062
      %s1064 = ssub.s32 %s98, 2
      %p1065 = scmp.gt.s32.totalorder %s1064, 0
      %s1066 = scalar_select %p1065, %s1064, 0
      %s1067 = ssub.s32 %s105, 2
      %p1068 = scmp.gt.s32.totalorder %s1067, 0
      %s1069 = scalar_select %p1068, %s1067, 0
      %s1070 = ssub.s32 %s1066, %s1069
      %p1071 = scmp.eq.s32.totalorder %s1070, 0
      %s1073 = sadd.s32 %s1072, 1
      %s1074 = scalar_select %p1071, %s1072, %s1073
      %p1077 = pneg %p1071
      %p1078 = scmp.eq.s32.totalorder %s90, 7
      %p1079 = por %p1077, %p1078
      %p1080 = scmp.ne.s32.totalorder %s1072, %s1075
      %p1081 = scmp.eq.s32.totalorder %s90, 0
      %p1082 = por %p1080, %p1081
      %p1083 = scmp.ne.s32.totalorder %s1072, %s1075
      %p1084 = scmp.eq.s32.totalorder %s95, 7
      %p1085 = por %p1083, %p1084
      %p1086 = scmp.ne.s32.totalorder %s1075, %s1076
      %p1087 = scmp.eq.s32.totalorder %s95, 0
      %p1088 = por %p1086, %p1087
      %p1089 = scmp.ne.s32.totalorder %s1075, %s1076
      %p1090 = scmp.eq.s32.totalorder %s96, 7
      %p1091 = por %p1089, %p1090
      %p1093 = scmp.ne.s32.totalorder %s1076, %s1092
      %p1094 = scmp.eq.s32.totalorder %s96, 0
      %p1095 = por %p1093, %p1094
      %s1096 = ssub.s32 %s98, 2
      %p1097 = scmp.gt.s32.totalorder %s1096, 0
      %s1098 = scalar_select %p1097, %s1096, 0
      %s1099 = ssub.s32 %s105, 2
      %p1100 = scmp.gt.s32.totalorder %s1099, 0
      %s1101 = scalar_select %p1100, %s1099, 0
      %s1102 = ssub.s32 %s1098, %s1101
      %p1103 = scmp.eq.s32.totalorder %s1102, 0
      %s1105 = sadd.s32 %s1104, 1
      %s1106 = scalar_select %p1103, %s1104, %s1105
      %p1109 = pneg %p1103
      %p1110 = scmp.eq.s32.totalorder %s90, 7
      %p1111 = por %p1109, %p1110
      %p1112 = scmp.ne.s32.totalorder %s1104, %s1107
      %p1113 = scmp.eq.s32.totalorder %s90, 0
      %p1114 = por %p1112, %p1113
      %p1115 = scmp.ne.s32.totalorder %s1104, %s1107
      %p1116 = scmp.eq.s32.totalorder %s95, 7
      %p1117 = por %p1115, %p1116
      %p1118 = scmp.ne.s32.totalorder %s1107, %s1108
      %p1119 = scmp.eq.s32.totalorder %s95, 0
      %p1120 = por %p1118, %p1119
      %p1121 = scmp.ne.s32.totalorder %s1107, %s1108
      %p1122 = scmp.eq.s32.totalorder %s96, 7
      %p1123 = por %p1121, %p1122
      %p1125 = scmp.ne.s32.totalorder %s1108, %s1124
      %p1126 = scmp.eq.s32.totalorder %s96, 0
      %p1127 = por %p1125, %p1126
      %s1128 = ssub.s32 %s98, 2
      %p1129 = scmp.gt.s32.totalorder %s1128, 0
      %s1130 = scalar_select %p1129, %s1128, 0
      %s1131 = ssub.s32 %s105, 2
      %p1132 = scmp.gt.s32.totalorder %s1131, 0
      %s1133 = scalar_select %p1132, %s1131, 0
      %s1134 = ssub.s32 %s1130, %s1133
      %p1135 = scmp.eq.s32.totalorder %s1134, 0
      %s1137 = sadd.s32 %s1136, 1
      %s1138 = scalar_select %p1135, %s1136, %s1137
      %p1141 = pneg %p1135
      %p1142 = scmp.eq.s32.totalorder %s90, 7
      %p1143 = por %p1141, %p1142
      %p1144 = scmp.ne.s32.totalorder %s1136, %s1139
      %p1145 = scmp.eq.s32.totalorder %s90, 0
      %p1146 = por %p1144, %p1145
      %p1147 = scmp.ne.s32.totalorder %s1136, %s1139
      %p1148 = scmp.eq.s32.totalorder %s95, 7
      %p1149 = por %p1147, %p1148
      %p1150 = scmp.ne.s32.totalorder %s1139, %s1140
      %p1151 = scmp.eq.s32.totalorder %s95, 0
      %p1152 = por %p1150, %p1151
      %p1153 = scmp.ne.s32.totalorder %s1139, %s1140
      %p1154 = scmp.eq.s32.totalorder %s96, 7
      %p1155 = por %p1153, %p1154
      %p1157 = scmp.ne.s32.totalorder %s1140, %s1156
      %p1158 = scmp.eq.s32.totalorder %s96, 0
      %p1159 = por %p1157, %p1158
      %s1160 = ssub.s32 %s98, 2
      %p1161 = scmp.gt.s32.totalorder %s1160, 0
      %s1162 = scalar_select %p1161, %s1160, 0
      %s1163 = ssub.s32 %s105, 2
      %p1164 = scmp.gt.s32.totalorder %s1163, 0
      %s1165 = scalar_select %p1164, %s1163, 0
      %s1166 = ssub.s32 %s1162, %s1165
      %p1167 = scmp.eq.s32.totalorder %s1166, 0
      %s1169 = sadd.s32 %s1168, 1
      %s1170 = scalar_select %p1167, %s1168, %s1169
      %p1173 = pneg %p1167
      %p1174 = scmp.eq.s32.totalorder %s90, 7
      %p1175 = por %p1173, %p1174
      %p1176 = scmp.ne.s32.totalorder %s1168, %s1171
      %p1177 = scmp.eq.s32.totalorder %s90, 0
      %p1178 = por %p1176, %p1177
      %p1179 = scmp.ne.s32.totalorder %s1168, %s1171
      %p1180 = scmp.eq.s32.totalorder %s95, 7
      %p1181 = por %p1179, %p1180
      %p1182 = scmp.ne.s32.totalorder %s1171, %s1172
      %p1183 = scmp.eq.s32.totalorder %s95, 0
      %p1184 = por %p1182, %p1183
      %p1185 = scmp.ne.s32.totalorder %s1171, %s1172
      %p1186 = scmp.eq.s32.totalorder %s96, 7
      %p1187 = por %p1185, %p1186
      %p1189 = scmp.ne.s32.totalorder %s1172, %s1188
      %p1190 = scmp.eq.s32.totalorder %s96, 0
      %p1191 = por %p1189, %p1190
      %s1192 = ssub.s32 %s98, 2
      %p1193 = scmp.gt.s32.totalorder %s1192, 0
      %s1194 = scalar_select %p1193, %s1192, 0
      %s1195 = ssub.s32 %s105, 2
      %p1196 = scmp.gt.s32.totalorder %s1195, 0
      %s1197 = scalar_select %p1196, %s1195, 0
      %s1198 = ssub.s32 %s1194, %s1197
      %p1199 = scmp.eq.s32.totalorder %s1198, 0
      %s1201 = sadd.s32 %s1200, 1
      %s1202 = scalar_select %p1199, %s1200, %s1201
      %p1205 = pneg %p1199
      %p1206 = scmp.eq.s32.totalorder %s90, 7
      %p1207 = por %p1205, %p1206
      %p1208 = scmp.ne.s32.totalorder %s1200, %s1203
      %p1209 = scmp.eq.s32.totalorder %s90, 0
      %p1210 = por %p1208, %p1209
      %p1211 = scmp.ne.s32.totalorder %s1200, %s1203
      %p1212 = scmp.eq.s32.totalorder %s95, 7
      %p1213 = por %p1211, %p1212
      %p1214 = scmp.ne.s32.totalorder %s1203, %s1204
      %p1215 = scmp.eq.s32.totalorder %s95, 0
      %p1216 = por %p1214, %p1215
      %p1217 = scmp.ne.s32.totalorder %s1203, %s1204
      %p1218 = scmp.eq.s32.totalorder %s96, 7
      %p1219 = por %p1217, %p1218
      %p1221 = scmp.ne.s32.totalorder %s1204, %s1220
      %p1222 = scmp.eq.s32.totalorder %s96, 0
      %p1223 = por %p1221, %p1222
      %s1224 = ssub.s32 %s98, 2
      %p1225 = scmp.gt.s32.totalorder %s1224, 0
      %s1226 = scalar_select %p1225, %s1224, 0
      %s1227 = ssub.s32 %s105, 2
      %p1228 = scmp.gt.s32.totalorder %s1227, 0
      %s1229 = scalar_select %p1228, %s1227, 0
      %s1230 = ssub.s32 %s1226, %s1229
      %p1231 = scmp.eq.s32.totalorder %s1230, 0
      %s1233 = sadd.s32 %s1232, 1
      %s1234 = scalar_select %p1231, %s1232, %s1233
      %p1237 = pneg %p1231
      %p1238 = scmp.eq.s32.totalorder %s90, 7
      %p1239 = por %p1237, %p1238
      %p1240 = scmp.ne.s32.totalorder %s1232, %s1235
      %p1241 = scmp.eq.s32.totalorder %s90, 0
      %p1242 = por %p1240, %p1241
      %p1243 = scmp.ne.s32.totalorder %s1232, %s1235
      %p1244 = scmp.eq.s32.totalorder %s95, 7
      %p1245 = por %p1243, %p1244
      %p1246 = scmp.ne.s32.totalorder %s1235, %s1236
      %p1247 = scmp.eq.s32.totalorder %s95, 0
      %p1248 = por %p1246, %p1247
      %p1249 = scmp.ne.s32.totalorder %s1235, %s1236
      %p1250 = scmp.eq.s32.totalorder %s96, 7
      %p1251 = por %p1249, %p1250
      %p1253 = scmp.ne.s32.totalorder %s1236, %s1252
      %p1254 = scmp.eq.s32.totalorder %s96, 0
      %p1255 = por %p1253, %p1254
      %s1257 = sadd.s32 %s1256, 1
      %p1260 = scmp.eq.s32.totalorder %s90, 7
      %p1261 = scmp.ne.s32.totalorder %s1256, %s1258
      %p1262 = scmp.eq.s32.totalorder %s90, 0
      %p1263 = por %p1261, %p1262
      %p1264 = scmp.ne.s32.totalorder %s1256, %s1258
      %p1265 = scmp.eq.s32.totalorder %s95, 7
      %p1266 = por %p1264, %p1265
      %p1267 = scmp.ne.s32.totalorder %s1258, %s1259
      %p1268 = scmp.eq.s32.totalorder %s95, 0
      %p1269 = por %p1267, %p1268
      %p1270 = scmp.ne.s32.totalorder %s1258, %s1259
      %p1271 = scmp.eq.s32.totalorder %s96, 7
      %p1272 = por %p1270, %p1271
      %p1274 = scmp.ne.s32.totalorder %s1259, %s1273
      %p1275 = scmp.eq.s32.totalorder %s96, 0
      %p1276 = por %p1274, %p1275
      %s1277 = ssub.s32 %s97, %s109
      %p1278 = scmp.eq.s32.totalorder %s1277, 0
      %s1280 = sadd.s32 %s1279, 1
      %s1281 = scalar_select %p1278, %s1279, %s1280
      %p1284 = pneg %p1278
      %p1285 = scmp.eq.s32.totalorder %s90, 7
      %p1286 = por %p1284, %p1285
      %p1287 = scmp.ne.s32.totalorder %s1279, %s1282
      %p1288 = scmp.eq.s32.totalorder %s90, 0
      %p1289 = por %p1287, %p1288
      %p1290 = scmp.ne.s32.totalorder %s1279, %s1282
      %p1291 = scmp.eq.s32.totalorder %s95, 7
      %p1292 = por %p1290, %p1291
      %p1293 = scmp.ne.s32.totalorder %s1282, %s1283
      %p1294 = scmp.eq.s32.totalorder %s95, 0
      %p1295 = por %p1293, %p1294
      %p1296 = scmp.ne.s32.totalorder %s1282, %s1283
      %p1297 = scmp.eq.s32.totalorder %s96, 7
      %p1298 = por %p1296, %p1297
      %p1300 = scmp.ne.s32.totalorder %s1283, %s1299
      %p1301 = scmp.eq.s32.totalorder %s96, 0
      %p1302 = por %p1300, %p1301
      %p1303 = scmp.le.s32.totalorder 1, %s90
      %p1304 = scmp.lt.s32.totalorder %s90, 9
      %p1305 = pnand %p1303, %p1304
      %p1306 = pneg %p1305
      // Predicated region
      $region9: #{transformer_forward.1} parent=5 // pred_check
        _
      $region10: #{transformer_forward.1} parent=5 // pred_check_branch
        %1308 = sbr.rel (%p1305) target = $region12
      $region11: #{transformer_forward.1} parent=5 // pred_region
        %s1309 = ssub.s32 %s90, 1
        // Predicated region
        $region13: #{transformer_forward.1} parent=11 // pred_check
          %p1310 = pneg %p175
        $region14: #{transformer_forward.1} parent=11 // pred_check_branch
          %1312 = sbr.rel (%p1310) target = $region16
        $region15: #{transformer_forward.1} parent=11 // pred_region
          _
        $region16: #{transformer_forward.1} parent=11 // pred_fallthru
          _
        // Predicated region
        $region17: #{transformer_forward.1} parent=11 // pred_check
          %p1313 = pneg %p196
        $region18: #{transformer_forward.1} parent=11 // pred_check_branch
          %1315 = sbr.rel (%p1313) target = $region20
        $region19: #{transformer_forward.1} parent=11 // pred_region
          _
        $region20: #{transformer_forward.1} parent=11 // pred_fallthru
          _
        // Predicated region
        $region21: #{transformer_forward.1} parent=11 // pred_check
          %p1316 = pneg %p1269
        $region22: #{transformer_forward.1} parent=11 // pred_check_branch
          %1318 = sbr.rel (%p1316) target = $region24
        $region23: #{transformer_forward.1} parent=11 // pred_region
          _
        $region24: #{transformer_forward.1} parent=11 // pred_fallthru
          _
      $region12: #{transformer_forward.1} parent=5 // pred_fallthru
        _
      %p1319 = scmp.lt.s32.totalorder %s90, 8
      // Predicated region
      $region25: #{transformer_forward.1} parent=5 // pred_check
        %p1320 = pneg %p1319
      $region26: #{transformer_forward.1} parent=5 // pred_check_branch
        %1322 = sbr.rel (%p1320) target = $region28
      $region27: #{transformer_forward.1} parent=5 // pred_region
        // Predicated region
        $region29: #{transformer_forward.1} parent=27 // pred_check
          %p1323 = pneg %p122
        $region30: #{transformer_forward.1} parent=27 // pred_check_branch
          %1325 = sbr.rel (%p1323) target = $region32
        $region31: #{transformer_forward.1} parent=27 // pred_region
          %p1326 = scmp.lt.s32.totalorder %s97, 1
          %s1327 = scalar_select %p1326, %s97, 1
          %s1328 = smul.addr %s1327, 8
          %s1329 = scalar_lea.vmem %s1, %s1328
        $region32: #{transformer_forward.1} parent=27 // pred_fallthru
          _
        // Predicated region
        $region33: #{transformer_forward.1} parent=27 // pred_check
          %p1330 = pneg %p148
        $region34: #{transformer_forward.1} parent=27 // pred_check_branch
          %1332 = sbr.rel (%p1330) target = $region36
        $region35: #{transformer_forward.1} parent=27 // pred_region
          %p1333 = scmp.lt.s32.totalorder %s97, 1
          %s1334 = scalar_select %p1333, %s97, 1
          %s1335 = smul.addr %s1334, 8
          %s1336 = scalar_lea.vmem %s3, %s1335
        $region36: #{transformer_forward.1} parent=27 // pred_fallthru
          _
        // Predicated region
        $region37: #{transformer_forward.1} parent=27 // pred_check
          %p1337 = pneg %p216
        $region38: #{transformer_forward.1} parent=27 // pred_check_branch
          %1339 = sbr.rel (%p1337) target = $region40
        $region39: #{transformer_forward.1} parent=27 // pred_region
          %p1340 = scmp.lt.s32.totalorder %s97, 1
          %s1341 = scalar_select %p1340, %s97, 1
          %s1342 = scalar_lea.vmem %s9, %s1341
        $region40: #{transformer_forward.1} parent=27 // pred_fallthru
          _
        // Predicated region
        $region41: #{transformer_forward.1} parent=27 // pred_check
          %p1343 = pneg %p242
        $region42: #{transformer_forward.1} parent=27 // pred_check_branch
          %1345 = sbr.rel (%p1343) target = $region44
        $region43: #{transformer_forward.1} parent=27 // pred_region
          %p1346 = scmp.lt.s32.totalorder %s97, 1
          %s1347 = scalar_select %p1346, %s97, 1
          %s1348 = smul.addr %s1347, 8
          %s1349 = scalar_lea.vmem %s11, %s1348
        $region44: #{transformer_forward.1} parent=27 // pred_fallthru
          _
        // Predicated region
        $region45: #{transformer_forward.1} parent=27 // pred_check
          %p1350 = pneg %p272
        $region46: #{transformer_forward.1} parent=27 // pred_check_branch
          %1352 = sbr.rel (%p1350) target = $region48
        $region47: #{transformer_forward.1} parent=27 // pred_region
          %p1353 = scmp.lt.s32.totalorder %s98, 1
          %s1354 = scalar_select %p1353, %s98, 1
          %p1355 = scmp.lt.s32.totalorder %s1354, 1
          %s1356 = scalar_select %p1355, %s1354, 1
          %s1357 = smul.addr %s1356, 4
          %s1358 = smul.addr %s1357, 4
          %s1359 = scalar_lea.vmem %s13, %s1358
          %p1360 = scmp.lt.s32.totalorder %s98, 1
          %s1361 = scalar_select %p1360, %s98, 1
        $region48: #{transformer_forward.1} parent=27 // pred_fallthru
          _
        // Predicated region
        $region49: #{transformer_forward.1} parent=27 // pred_check
          %p1362 = pneg %p302
        $region50: #{transformer_forward.1} parent=27 // pred_check_branch
          %1364 = sbr.rel (%p1362) target = $region52
        $region51: #{transformer_forward.1} parent=27 // pred_region
          %p1365 = scmp.lt.s32.totalorder %s98, 1
          %s1366 = scalar_select %p1365, %s98, 1
          %p1367 = scmp.lt.s32.totalorder %s1366, 1
          %s1368 = scalar_select %p1367, %s1366, 1
          %s1369 = scalar_lea.vmem %s15, %s1368
          %p1370 = scmp.lt.s32.totalorder %s98, 1
          %s1371 = scalar_select %p1370, %s98, 1
        $region52: #{transformer_forward.1} parent=27 // pred_fallthru
          _
        // Predicated region
        $region53: #{transformer_forward.1} parent=27 // pred_check
          %p1372 = pneg %p332
        $region54: #{transformer_forward.1} parent=27 // pred_check_branch
          %1374 = sbr.rel (%p1372) target = $region56
        $region55: #{transformer_forward.1} parent=27 // pred_region
          %p1375 = scmp.lt.s32.totalorder %s98, 1
          %s1376 = scalar_select %p1375, %s98, 1
          %p1377 = scmp.lt.s32.totalorder %s1376, 1
          %s1378 = scalar_select %p1377, %s1376, 1
          %s1379 = smul.addr %s1378, 4
          %s1380 = smul.addr %s1379, 4
          %s1381 = scalar_lea.vmem %s17, %s1380
          %p1382 = scmp.lt.s32.totalorder %s98, 1
          %s1383 = scalar_select %p1382, %s98, 1
        $region56: #{transformer_forward.1} parent=27 // pred_fallthru
          _
        // Predicated region
        $region57: #{transformer_forward.1} parent=27 // pred_check
          %p1384 = pneg %p362
        $region58: #{transformer_forward.1} parent=27 // pred_check_branch
          %1386 = sbr.rel (%p1384) target = $region60
        $region59: #{transformer_forward.1} parent=27 // pred_region
          %p1387 = scmp.lt.s32.totalorder %s98, 1
          %s1388 = scalar_select %p1387, %s98, 1
          %p1389 = scmp.lt.s32.totalorder %s1388, 1
          %s1390 = scalar_select %p1389, %s1388, 1
          %s1391 = scalar_lea.vmem %s19, %s1390
          %p1392 = scmp.lt.s32.totalorder %s98, 1
          %s1393 = scalar_select %p1392, %s98, 1
        $region60: #{transformer_forward.1} parent=27 // pred_fallthru
          _
        // Predicated region
        $region61: #{transformer_forward.1} parent=27 // pred_check
          %p1394 = pneg %p392
        $region62: #{transformer_forward.1} parent=27 // pred_check_branch
          %1396 = sbr.rel (%p1394) target = $region64
        $region63: #{transformer_forward.1} parent=27 // pred_region
          %p1397 = scmp.lt.s32.totalorder %s98, 1
          %s1398 = scalar_select %p1397, %s98, 1
          %p1399 = scmp.lt.s32.totalorder %s1398, 1
          %s1400 = scalar_select %p1399, %s1398, 1
          %s1401 = scalar_lea.vmem %s21, %s1400
          %p1402 = scmp.lt.s32.totalorder %s98, 1
          %s1403 = scalar_select %p1402, %s98, 1
        $region64: #{transformer_forward.1} parent=27 // pred_fallthru
          _
        // Predicated region
        $region65: #{transformer_forward.1} parent=27 // pred_check
          %p1404 = pneg %p422
        $region66: #{transformer_forward.1} parent=27 // pred_check_branch
          %1406 = sbr.rel (%p1404) target = $region68
        $region67: #{transformer_forward.1} parent=27 // pred_region
          %p1407 = scmp.lt.s32.totalorder %s98, 1
          %s1408 = scalar_select %p1407, %s98, 1
          %p1409 = scmp.lt.s32.totalorder %s1408, 1
          %s1410 = scalar_select %p1409, %s1408, 1
          %s1411 = scalar_lea.vmem %s23, %s1410
          %p1412 = scmp.lt.s32.totalorder %s98, 1
          %s1413 = scalar_select %p1412, %s98, 1
        $region68: #{transformer_forward.1} parent=27 // pred_fallthru
          _
        // Predicated region
        $region69: #{transformer_forward.1} parent=27 // pred_check
          %p1414 = pneg %p452
        $region70: #{transformer_forward.1} parent=27 // pred_check_branch
          %1416 = sbr.rel (%p1414) target = $region72
        $region71: #{transformer_forward.1} parent=27 // pred_region
          %p1417 = scmp.lt.s32.totalorder %s98, 1
          %s1418 = scalar_select %p1417, %s98, 1
          %p1419 = scmp.lt.s32.totalorder %s1418, 1
          %s1420 = scalar_select %p1419, %s1418, 1
          %s1421 = smul.addr %s1420, 4
          %s1422 = smul.addr %s1421, 4
          %s1423 = scalar_lea.vmem %s25, %s1422
          %p1424 = scmp.lt.s32.totalorder %s98, 1
          %s1425 = scalar_select %p1424, %s98, 1
        $region72: #{transformer_forward.1} parent=27 // pred_fallthru
          _
        // Predicated region
        $region73: #{transformer_forward.1} parent=27 // pred_check
          %p1426 = pneg %p482
        $region74: #{transformer_forward.1} parent=27 // pred_check_branch
          %1428 = sbr.rel (%p1426) target = $region76
        $region75: #{transformer_forward.1} parent=27 // pred_region
          %p1429 = scmp.lt.s32.totalorder %s98, 1
          %s1430 = scalar_select %p1429, %s98, 1
          %p1431 = scmp.lt.s32.totalorder %s1430, 1
          %s1432 = scalar_select %p1431, %s1430, 1
          %s1433 = scalar_lea.vmem %s27, %s1432
          %p1434 = scmp.lt.s32.totalorder %s98, 1
          %s1435 = scalar_select %p1434, %s98, 1
        $region76: #{transformer_forward.1} parent=27 // pred_fallthru
          _
        // Predicated region
        $region77: #{transformer_forward.1} parent=27 // pred_check
          %p1436 = pneg %p512
        $region78: #{transformer_forward.1} parent=27 // pred_check_branch
          %1438 = sbr.rel (%p1436) target = $region80
        $region79: #{transformer_forward.1} parent=27 // pred_region
          %p1439 = scmp.lt.s32.totalorder %s98, 1
          %s1440 = scalar_select %p1439, %s98, 1
          %p1441 = scmp.lt.s32.totalorder %s1440, 1
          %s1442 = scalar_select %p1441, %s1440, 1
          %s1443 = smul.addr %s1442, 8
          %s1444 = smul.addr %s1443, 4
          %s1445 = scalar_lea.vmem %s29, %s1444
          %p1446 = scmp.lt.s32.totalorder %s98, 1
          %s1447 = scalar_select %p1446, %s98, 1
        $region80: #{transformer_forward.1} parent=27 // pred_fallthru
          _
        // Predicated region
        $region81: #{transformer_forward.1} parent=27 // pred_check
          %p1448 = pneg %p542
        $region82: #{transformer_forward.1} parent=27 // pred_check_branch
          %1450 = sbr.rel (%p1448) target = $region84
        $region83: #{transformer_forward.1} parent=27 // pred_region
          %p1451 = scmp.lt.s32.totalorder %s98, 1
          %s1452 = scalar_select %p1451, %s98, 1
          %p1453 = scmp.lt.s32.totalorder %s1452, 1
          %s1454 = scalar_select %p1453, %s1452, 1
          %s1455 = scalar_lea.vmem %s31, %s1454
          %p1456 = scmp.lt.s32.totalorder %s98, 1
          %s1457 = scalar_select %p1456, %s98, 1
        $region84: #{transformer_forward.1} parent=27 // pred_fallthru
          _
        // Predicated region
        $region85: #{transformer_forward.1} parent=27 // pred_check
          %p1458 = pneg %p572
        $region86: #{transformer_forward.1} parent=27 // pred_check_branch
          %1460 = sbr.rel (%p1458) target = $region88
        $region87: #{transformer_forward.1} parent=27 // pred_region
          %p1461 = scmp.lt.s32.totalorder %s98, 1
          %s1462 = scalar_select %p1461, %s98, 1
          %p1463 = scmp.lt.s32.totalorder %s1462, 1
          %s1464 = scalar_select %p1463, %s1462, 1
          %s1465 = scalar_lea.vmem %s33, %s1464
          %p1466 = scmp.lt.s32.totalorder %s98, 1
          %s1467 = scalar_select %p1466, %s98, 1
        $region88: #{transformer_forward.1} parent=27 // pred_fallthru
          _
        // Predicated region
        $region89: #{transformer_forward.1} parent=27 // pred_check
          %p1468 = pneg %p602
        $region90: #{transformer_forward.1} parent=27 // pred_check_branch
          %1470 = sbr.rel (%p1468) target = $region92
        $region91: #{transformer_forward.1} parent=27 // pred_region
          %p1471 = scmp.lt.s32.totalorder %s98, 1
          %s1472 = scalar_select %p1471, %s98, 1
          %p1473 = scmp.lt.s32.totalorder %s1472, 1
          %s1474 = scalar_select %p1473, %s1472, 1
          %s1475 = scalar_lea.vmem %s35, %s1474
          %p1476 = scmp.lt.s32.totalorder %s98, 1
          %s1477 = scalar_select %p1476, %s98, 1
        $region92: #{transformer_forward.1} parent=27 // pred_fallthru
          _
        // Predicated region
        $region93: #{transformer_forward.1} parent=27 // pred_check
          %p1478 = pneg %p634
        $region94: #{transformer_forward.1} parent=27 // pred_check_branch
          %1480 = sbr.rel (%p1478) target = $region96
        $region95: #{transformer_forward.1} parent=27 // pred_region
          %s1481 = ssub.s32 %s98, 2
          %p1482 = scmp.gt.s32.totalorder %s1481, 0
          %s1483 = scalar_select %p1482, %s1481, 0
          %p1484 = scmp.lt.s32.totalorder %s1483, 1
          %s1485 = scalar_select %p1484, %s1483, 1
          %s1486 = smul.addr %s1485, 4
          %s1487 = smul.addr %s1486, 4
          %s1488 = scalar_lea.vmem %s37, %s1487
          %s1489 = ssub.s32 %s98, 2
          %p1490 = scmp.gt.s32.totalorder %s1489, 0
          %s1491 = scalar_select %p1490, %s1489, 0
        $region96: #{transformer_forward.1} parent=27 // pred_fallthru
          _
        // Predicated region
        $region97: #{transformer_forward.1} parent=27 // pred_check
          %p1492 = pneg %p666
        $region98: #{transformer_forward.1} parent=27 // pred_check_branch
          %1494 = sbr.rel (%p1492) target = $region100
        $region99: #{transformer_forward.1} parent=27 // pred_region
          %s1495 = ssub.s32 %s98, 2
          %p1496 = scmp.gt.s32.totalorder %s1495, 0
          %s1497 = scalar_select %p1496, %s1495, 0
          %p1498 = scmp.lt.s32.totalorder %s1497, 1
          %s1499 = scalar_select %p1498, %s1497, 1
          %s1500 = scalar_lea.vmem %s39, %s1499
          %s1501 = ssub.s32 %s98, 2
          %p1502 = scmp.gt.s32.totalorder %s1501, 0
          %s1503 = scalar_select %p1502, %s1501, 0
        $region100: #{transformer_forward.1} parent=27 // pred_fallthru
          _
        // Predicated region
        $region101: #{transformer_forward.1} parent=27 // pred_check
          %p1504 = pneg %p698
        $region102: #{transformer_forward.1} parent=27 // pred_check_branch
          %1506 = sbr.rel (%p1504) target = $region104
        $region103: #{transformer_forward.1} parent=27 // pred_region
          %s1507 = ssub.s32 %s98, 2
          %p1508 = scmp.gt.s32.totalorder %s1507, 0
          %s1509 = scalar_select %p1508, %s1507, 0
          %p1510 = scmp.lt.s32.totalorder %s1509, 1
          %s1511 = scalar_select %p1510, %s1509, 1
          %s1512 = smul.addr %s1511, 4
          %s1513 = smul.addr %s1512, 4
          %s1514 = scalar_lea.vmem %s41, %s1513
          %s1515 = ssub.s32 %s98, 2
          %p1516 = scmp.gt.s32.totalorder %s1515, 0
          %s1517 = scalar_select %p1516, %s1515, 0
        $region104: #{transformer_forward.1} parent=27 // pred_fallthru
          _
        // Predicated region
        $region105: #{transformer_forward.1} parent=27 // pred_check
          %p1518 = pneg %p730
        $region106: #{transformer_forward.1} parent=27 // pred_check_branch
          %1520 = sbr.rel (%p1518) target = $region108
        $region107: #{transformer_forward.1} parent=27 // pred_region
          %s1521 = ssub.s32 %s98, 2
          %p1522 = scmp.gt.s32.totalorder %s1521, 0
          %s1523 = scalar_select %p1522, %s1521, 0
          %p1524 = scmp.lt.s32.totalorder %s1523, 1
          %s1525 = scalar_select %p1524, %s1523, 1
          %s1526 = scalar_lea.vmem %s43, %s1525
          %s1527 = ssub.s32 %s98, 2
          %p1528 = scmp.gt.s32.totalorder %s1527, 0
          %s1529 = scalar_select %p1528, %s1527, 0
        $region108: #{transformer_forward.1} parent=27 // pred_fallthru
          _
        // Predicated region
        $region109: #{transformer_forward.1} parent=27 // pred_check
          %p1530 = pneg %p762
        $region110: #{transformer_forward.1} parent=27 // pred_check_branch
          %1532 = sbr.rel (%p1530) target = $region112
        $region111: #{transformer_forward.1} parent=27 // pred_region
          %s1533 = ssub.s32 %s98, 2
          %p1534 = scmp.gt.s32.totalorder %s1533, 0
          %s1535 = scalar_select %p1534, %s1533, 0
          %p1536 = scmp.lt.s32.totalorder %s1535, 1
          %s1537 = scalar_select %p1536, %s1535, 1
          %s1538 = smul.addr %s1537, 4
          %s1539 = smul.addr %s1538, 4
          %s1540 = scalar_lea.vmem %s45, %s1539
          %s1541 = ssub.s32 %s98, 2
          %p1542 = scmp.gt.s32.totalorder %s1541, 0
          %s1543 = scalar_select %p1542, %s1541, 0
        $region112: #{transformer_forward.1} parent=27 // pred_fallthru
          _
        // Predicated region
        $region113: #{transformer_forward.1} parent=27 // pred_check
          %p1544 = pneg %p794
        $region114: #{transformer_forward.1} parent=27 // pred_check_branch
          %1546 = sbr.rel (%p1544) target = $region116
        $region115: #{transformer_forward.1} parent=27 // pred_region
          %s1547 = ssub.s32 %s98, 2
          %p1548 = scmp.gt.s32.totalorder %s1547, 0
          %s1549 = scalar_select %p1548, %s1547, 0
          %p1550 = scmp.lt.s32.totalorder %s1549, 1
          %s1551 = scalar_select %p1550, %s1549, 1
          %s1552 = scalar_lea.vmem %s47, %s1551
          %s1553 = ssub.s32 %s98, 2
          %p1554 = scmp.gt.s32.totalorder %s1553, 0
          %s1555 = scalar_select %p1554, %s1553, 0
        $region116: #{transformer_forward.1} parent=27 // pred_fallthru
          _
        // Predicated region
        $region117: #{transformer_forward.1} parent=27 // pred_check
          %p1556 = pneg %p826
        $region118: #{transformer_forward.1} parent=27 // pred_check_branch
          %1558 = sbr.rel (%p1556) target = $region120
        $region119: #{transformer_forward.1} parent=27 // pred_region
          %s1559 = ssub.s32 %s98, 2
          %p1560 = scmp.gt.s32.totalorder %s1559, 0
          %s1561 = scalar_select %p1560, %s1559, 0
          %p1562 = scmp.lt.s32.totalorder %s1561, 1
          %s1563 = scalar_select %p1562, %s1561, 1
          %s1564 = smul.addr %s1563, 4
          %s1565 = smul.addr %s1564, 4
          %s1566 = scalar_lea.vmem %s49, %s1565
          %s1567 = ssub.s32 %s98, 2
          %p1568 = scmp.gt.s32.totalorder %s1567, 0
          %s1569 = scalar_select %p1568, %s1567, 0
        $region120: #{transformer_forward.1} parent=27 // pred_fallthru
          _
        // Predicated region
        $region121: #{transformer_forward.1} parent=27 // pred_check
          %p1570 = pneg %p858
        $region122: #{transformer_forward.1} parent=27 // pred_check_branch
          %1572 = sbr.rel (%p1570) target = $region124
        $region123: #{transformer_forward.1} parent=27 // pred_region
          %s1573 = ssub.s32 %s98, 2
          %p1574 = scmp.gt.s32.totalorder %s1573, 0
          %s1575 = scalar_select %p1574, %s1573, 0
          %p1576 = scmp.lt.s32.totalorder %s1575, 1
          %s1577 = scalar_select %p1576, %s1575, 1
          %s1578 = scalar_lea.vmem %s51, %s1577
          %s1579 = ssub.s32 %s98, 2
          %p1580 = scmp.gt.s32.totalorder %s1579, 0
          %s1581 = scalar_select %p1580, %s1579, 0
        $region124: #{transformer_forward.1} parent=27 // pred_fallthru
          _
        // Predicated region
        $region125: #{transformer_forward.1} parent=27 // pred_check
          %p1582 = pneg %p890
        $region126: #{transformer_forward.1} parent=27 // pred_check_branch
          %1584 = sbr.rel (%p1582) target = $region128
        $region127: #{transformer_forward.1} parent=27 // pred_region
          %s1585 = ssub.s32 %s98, 2
          %p1586 = scmp.gt.s32.totalorder %s1585, 0
          %s1587 = scalar_select %p1586, %s1585, 0
          %p1588 = scmp.lt.s32.totalorder %s1587, 1
          %s1589 = scalar_select %p1588, %s1587, 1
          %s1590 = smul.addr %s1589, 4
          %s1591 = smul.addr %s1590, 4
          %s1592 = scalar_lea.vmem %s53, %s1591
          %s1593 = ssub.s32 %s98, 2
          %p1594 = scmp.gt.s32.totalorder %s1593, 0
          %s1595 = scalar_select %p1594, %s1593, 0
        $region128: #{transformer_forward.1} parent=27 // pred_fallthru
          _
        // Predicated region
        $region129: #{transformer_forward.1} parent=27 // pred_check
          %p1596 = pneg %p922
        $region130: #{transformer_forward.1} parent=27 // pred_check_branch
          %1598 = sbr.rel (%p1596) target = $region132
        $region131: #{transformer_forward.1} parent=27 // pred_region
          %s1599 = ssub.s32 %s98, 2
          %p1600 = scmp.gt.s32.totalorder %s1599, 0
          %s1601 = scalar_select %p1600, %s1599, 0
          %p1602 = scmp.lt.s32.totalorder %s1601, 1
          %s1603 = scalar_select %p1602, %s1601, 1
          %s1604 = scalar_lea.vmem %s55, %s1603
          %s1605 = ssub.s32 %s98, 2
          %p1606 = scmp.gt.s32.totalorder %s1605, 0
          %s1607 = scalar_select %p1606, %s1605, 0
        $region132: #{transformer_forward.1} parent=27 // pred_fallthru
          _
        // Predicated region
        $region133: #{transformer_forward.1} parent=27 // pred_check
          %p1608 = pneg %p954
        $region134: #{transformer_forward.1} parent=27 // pred_check_branch
          %1610 = sbr.rel (%p1608) target = $region136
        $region135: #{transformer_forward.1} parent=27 // pred_region
          %s1611 = ssub.s32 %s98, 2
          %p1612 = scmp.gt.s32.totalorder %s1611, 0
          %s1613 = scalar_select %p1612, %s1611, 0
          %p1614 = scmp.lt.s32.totalorder %s1613, 1
          %s1615 = scalar_select %p1614, %s1613, 1
          %s1616 = scalar_lea.vmem %s57, %s1615
          %s1617 = ssub.s32 %s98, 2
          %p1618 = scmp.gt.s32.totalorder %s1617, 0
          %s1619 = scalar_select %p1618, %s1617, 0
        $region136: #{transformer_forward.1} parent=27 // pred_fallthru
          _
        // Predicated region
        $region137: #{transformer_forward.1} parent=27 // pred_check
          %p1620 = pneg %p986
        $region138: #{transformer_forward.1} parent=27 // pred_check_branch
          %1622 = sbr.rel (%p1620) target = $region140
        $region139: #{transformer_forward.1} parent=27 // pred_region
          %s1623 = ssub.s32 %s98, 2
          %p1624 = scmp.gt.s32.totalorder %s1623, 0
          %s1625 = scalar_select %p1624, %s1623, 0
          %p1626 = scmp.lt.s32.totalorder %s1625, 1
          %s1627 = scalar_select %p1626, %s1625, 1
          %s1628 = scalar_lea.vmem %s59, %s1627
          %s1629 = ssub.s32 %s98, 2
          %p1630 = scmp.gt.s32.totalorder %s1629, 0
          %s1631 = scalar_select %p1630, %s1629, 0
        $region140: #{transformer_forward.1} parent=27 // pred_fallthru
          _
        // Predicated region
        $region141: #{transformer_forward.1} parent=27 // pred_check
          %p1632 = pneg %p1018
        $region142: #{transformer_forward.1} parent=27 // pred_check_branch
          %1634 = sbr.rel (%p1632) target = $region144
        $region143: #{transformer_forward.1} parent=27 // pred_region
          %s1635 = ssub.s32 %s98, 2
          %p1636 = scmp.gt.s32.totalorder %s1635, 0
          %s1637 = scalar_select %p1636, %s1635, 0
          %p1638 = scmp.lt.s32.totalorder %s1637, 1
          %s1639 = scalar_select %p1638, %s1637, 1
          %s1640 = scalar_lea.vmem %s61, %s1639
          %s1641 = ssub.s32 %s98, 2
          %p1642 = scmp.gt.s32.totalorder %s1641, 0
          %s1643 = scalar_select %p1642, %s1641, 0
        $region144: #{transformer_forward.1} parent=27 // pred_fallthru
          _
        // Predicated region
        $region145: #{transformer_forward.1} parent=27 // pred_check
          %p1644 = pneg %p1050
        $region146: #{transformer_forward.1} parent=27 // pred_check_branch
          %1646 = sbr.rel (%p1644) target = $region148
        $region147: #{transformer_forward.1} parent=27 // pred_region
          %s1647 = ssub.s32 %s98, 2
          %p1648 = scmp.gt.s32.totalorder %s1647, 0
          %s1649 = scalar_select %p1648, %s1647, 0
          %p1650 = scmp.lt.s32.totalorder %s1649, 1
          %s1651 = scalar_select %p1650, %s1649, 1
          %s1652 = scalar_lea.vmem %s63, %s1651
          %s1653 = ssub.s32 %s98, 2
          %p1654 = scmp.gt.s32.totalorder %s1653, 0
          %s1655 = scalar_select %p1654, %s1653, 0
        $region148: #{transformer_forward.1} parent=27 // pred_fallthru
          _
        // Predicated region
        $region149: #{transformer_forward.1} parent=27 // pred_check
          %p1656 = pneg %p1082
        $region150: #{transformer_forward.1} parent=27 // pred_check_branch
          %1658 = sbr.rel (%p1656) target = $region152
        $region151: #{transformer_forward.1} parent=27 // pred_region
          %s1659 = ssub.s32 %s98, 2
          %p1660 = scmp.gt.s32.totalorder %s1659, 0
          %s1661 = scalar_select %p1660, %s1659, 0
          %p1662 = scmp.lt.s32.totalorder %s1661, 1
          %s1663 = scalar_select %p1662, %s1661, 1
          %s1664 = scalar_lea.vmem %s65, %s1663
          %s1665 = ssub.s32 %s98, 2
          %p1666 = scmp.gt.s32.totalorder %s1665, 0
          %s1667 = scalar_select %p1666, %s1665, 0
        $region152: #{transformer_forward.1} parent=27 // pred_fallthru
          _
        // Predicated region
        $region153: #{transformer_forward.1} parent=27 // pred_check
          %p1668 = pneg %p1114
        $region154: #{transformer_forward.1} parent=27 // pred_check_branch
          %1670 = sbr.rel (%p1668) target = $region156
        $region155: #{transformer_forward.1} parent=27 // pred_region
          %s1671 = ssub.s32 %s98, 2
          %p1672 = scmp.gt.s32.totalorder %s1671, 0
          %s1673 = scalar_select %p1672, %s1671, 0
          %p1674 = scmp.lt.s32.totalorder %s1673, 1
          %s1675 = scalar_select %p1674, %s1673, 1
          %s1676 = scalar_lea.vmem %s67, %s1675
          %s1677 = ssub.s32 %s98, 2
          %p1678 = scmp.gt.s32.totalorder %s1677, 0
          %s1679 = scalar_select %p1678, %s1677, 0
        $region156: #{transformer_forward.1} parent=27 // pred_fallthru
          _
        // Predicated region
        $region157: #{transformer_forward.1} parent=27 // pred_check
          %p1680 = pneg %p1146
        $region158: #{transformer_forward.1} parent=27 // pred_check_branch
          %1682 = sbr.rel (%p1680) target = $region160
        $region159: #{transformer_forward.1} parent=27 // pred_region
          %s1683 = ssub.s32 %s98, 2
          %p1684 = scmp.gt.s32.totalorder %s1683, 0
          %s1685 = scalar_select %p1684, %s1683, 0
          %p1686 = scmp.lt.s32.totalorder %s1685, 1
          %s1687 = scalar_select %p1686, %s1685, 1
          %s1688 = smul.addr %s1687, 4
          %s1689 = smul.addr %s1688, 4
          %s1690 = scalar_lea.vmem %s69, %s1689
          %s1691 = ssub.s32 %s98, 2
          %p1692 = scmp.gt.s32.totalorder %s1691, 0
          %s1693 = scalar_select %p1692, %s1691, 0
        $region160: #{transformer_forward.1} parent=27 // pred_fallthru
          _
        // Predicated region
        $region161: #{transformer_forward.1} parent=27 // pred_check
          %p1694 = pneg %p1178
        $region162: #{transformer_forward.1} parent=27 // pred_check_branch
          %1696 = sbr.rel (%p1694) target = $region164
        $region163: #{transformer_forward.1} parent=27 // pred_region
          %s1697 = ssub.s32 %s98, 2
          %p1698 = scmp.gt.s32.totalorder %s1697, 0
          %s1699 = scalar_select %p1698, %s1697, 0
          %p1700 = scmp.lt.s32.totalorder %s1699, 1
          %s1701 = scalar_select %p1700, %s1699, 1
          %s1702 = scalar_lea.vmem %s71, %s1701
          %s1703 = ssub.s32 %s98, 2
          %p1704 = scmp.gt.s32.totalorder %s1703, 0
          %s1705 = scalar_select %p1704, %s1703, 0
        $region164: #{transformer_forward.1} parent=27 // pred_fallthru
          _
        // Predicated region
        $region165: #{transformer_forward.1} parent=27 // pred_check
          %p1706 = pneg %p1210
        $region166: #{transformer_forward.1} parent=27 // pred_check_branch
          %1708 = sbr.rel (%p1706) target = $region168
        $region167: #{transformer_forward.1} parent=27 // pred_region
          %s1709 = ssub.s32 %s98, 2
          %p1710 = scmp.gt.s32.totalorder %s1709, 0
          %s1711 = scalar_select %p1710, %s1709, 0
          %p1712 = scmp.lt.s32.totalorder %s1711, 1
          %s1713 = scalar_select %p1712, %s1711, 1
          %s1714 = smul.addr %s1713, 8
          %s1715 = smul.addr %s1714, 4
          %s1716 = scalar_lea.vmem %s73, %s1715
          %s1717 = ssub.s32 %s98, 2
          %p1718 = scmp.gt.s32.totalorder %s1717, 0
          %s1719 = scalar_select %p1718, %s1717, 0
        $region168: #{transformer_forward.1} parent=27 // pred_fallthru
          _
        // Predicated region
        $region169: #{transformer_forward.1} parent=27 // pred_check
          %p1720 = pneg %p1242
        $region170: #{transformer_forward.1} parent=27 // pred_check_branch
          %1722 = sbr.rel (%p1720) target = $region172
        $region171: #{transformer_forward.1} parent=27 // pred_region
          %s1723 = ssub.s32 %s98, 2
          %p1724 = scmp.gt.s32.totalorder %s1723, 0
          %s1725 = scalar_select %p1724, %s1723, 0
          %p1726 = scmp.lt.s32.totalorder %s1725, 1
          %s1727 = scalar_select %p1726, %s1725, 1
          %s1728 = scalar_lea.vmem %s75, %s1727
          %s1729 = ssub.s32 %s98, 2
          %p1730 = scmp.gt.s32.totalorder %s1729, 0
          %s1731 = scalar_select %p1730, %s1729, 0
        $region172: #{transformer_forward.1} parent=27 // pred_fallthru
          _
      $region28: #{transformer_forward.1} parent=5 // pred_fallthru
        _
      %p1732 = scmp.le.s32.totalorder 1, %s90
      %p1733 = scmp.lt.s32.totalorder %s90, 9
      %p1734 = pnand %p1732, %p1733
      %p1735 = pneg %p1734
      // Predicated region
      $region173: #{transformer_forward.1} parent=5 // pred_check
        _
      $region174: #{transformer_forward.1} parent=5 // pred_check_branch
        %1737 = sbr.rel (%p1734) target = $region176
      $region175: #{transformer_forward.1} parent=5 // pred_region
        %s1738 = ssub.s32 %s90, 1
        %p1739 = scmp.lt.s32.totalorder %s99, 1
        %s1740 = scalar_select %p1739, %s99, 1
        %s1741 = smul.addr %s1740, 8
        %s1742 = scalar_lea.vmem %s1, %s1741
        %p1743 = pneg %p128
        %p1744 = pneg %p125
        %p1745 = scmp.lt.s32.totalorder %s99, 1
        %s1746 = scalar_select %p1745, %s99, 1
        %s1747 = smul.addr %s1746, 8
        %s1748 = scalar_lea.vmem %s3, %s1747
        %p1749 = pneg %p154
        %p1750 = pneg %p151
        %p1751 = pneg %p175
        %p1752 = pneg %p172
        %p1753 = pneg %p196
        %p1754 = pneg %p193
        %p1755 = scmp.lt.s32.totalorder %s99, 1
        %s1756 = scalar_select %p1755, %s99, 1
        %s1757 = scalar_lea.vmem %s9, %s1756
        %p1758 = pneg %p222
        %p1759 = pneg %p219
        %p1760 = scmp.lt.s32.totalorder %s99, 1
        %s1761 = scalar_select %p1760, %s99, 1
        %s1762 = smul.addr %s1761, 8
        %s1763 = scalar_lea.vmem %s11, %s1762
        %p1764 = pneg %p248
        %p1765 = pneg %p245
        %p1766 = scmp.lt.s32.totalorder %s100, 1
        %s1767 = scalar_select %p1766, %s100, 1
        %p1768 = scmp.lt.s32.totalorder %s1767, 1
        %s1769 = scalar_select %p1768, %s1767, 1
        %s1770 = smul.addr %s1769, 4
        %s1771 = smul.addr %s1770, 4
        %s1772 = scalar_lea.vmem %s13, %s1771
        %p1773 = pneg %p278
        %p1774 = pneg %p275
        %p1775 = scmp.lt.s32.totalorder %s100, 1
        %s1776 = scalar_select %p1775, %s100, 1
        %p1777 = scmp.lt.s32.totalorder %s1776, 1
        %s1778 = scalar_select %p1777, %s1776, 1
        %s1779 = scalar_lea.vmem %s15, %s1778
        %p1780 = pneg %p308
        %p1781 = pneg %p305
        %p1782 = scmp.lt.s32.totalorder %s100, 1
        %s1783 = scalar_select %p1782, %s100, 1
        %p1784 = scmp.lt.s32.totalorder %s1783, 1
        %s1785 = scalar_select %p1784, %s1783, 1
        %s1786 = smul.addr %s1785, 4
        %s1787 = smul.addr %s1786, 4
        %s1788 = scalar_lea.vmem %s17, %s1787
        %p1789 = pneg %p338
        %p1790 = pneg %p335
        %p1791 = scmp.lt.s32.totalorder %s100, 1
        %s1792 = scalar_select %p1791, %s100, 1
        %p1793 = scmp.lt.s32.totalorder %s1792, 1
        %s1794 = scalar_select %p1793, %s1792, 1
        %s1795 = scalar_lea.vmem %s19, %s1794
        %p1796 = pneg %p368
        %p1797 = pneg %p365
        %p1798 = scmp.lt.s32.totalorder %s100, 1
        %s1799 = scalar_select %p1798, %s100, 1
        %p1800 = scmp.lt.s32.totalorder %s1799, 1
        %s1801 = scalar_select %p1800, %s1799, 1
        %s1802 = scalar_lea.vmem %s21, %s1801
        %p1803 = pneg %p398
        %p1804 = pneg %p395
        %p1805 = scmp.lt.s32.totalorder %s100, 1
        %s1806 = scalar_select %p1805, %s100, 1
        %p1807 = scmp.lt.s32.totalorder %s1806, 1
        %s1808 = scalar_select %p1807, %s1806, 1
        %s1809 = scalar_lea.vmem %s23, %s1808
        %p1810 = pneg %p428
        %p1811 = pneg %p425
        %p1812 = scmp.lt.s32.totalorder %s100, 1
        %s1813 = scalar_select %p1812, %s100, 1
        %p1814 = scmp.lt.s32.totalorder %s1813, 1
        %s1815 = scalar_select %p1814, %s1813, 1
        %s1816 = smul.addr %s1815, 4
        %s1817 = smul.addr %s1816, 4
        %s1818 = scalar_lea.vmem %s25, %s1817
        %p1819 = pneg %p458
        %p1820 = pneg %p455
        %p1821 = scmp.lt.s32.totalorder %s100, 1
        %s1822 = scalar_select %p1821, %s100, 1
        %p1823 = scmp.lt.s32.totalorder %s1822, 1
        %s1824 = scalar_select %p1823, %s1822, 1
        %s1825 = scalar_lea.vmem %s27, %s1824
        %p1826 = pneg %p488
        %p1827 = pneg %p485
        %p1828 = scmp.lt.s32.totalorder %s100, 1
        %s1829 = scalar_select %p1828, %s100, 1
        %p1830 = scmp.lt.s32.totalorder %s1829, 1
        %s1831 = scalar_select %p1830, %s1829, 1
        %s1832 = smul.addr %s1831, 8
        %s1833 = smul.addr %s1832, 4
        %s1834 = scalar_lea.vmem %s29, %s1833
        %p1835 = pneg %p518
        %p1836 = pneg %p515
        %p1837 = scmp.lt.s32.totalorder %s100, 1
        %s1838 = scalar_select %p1837, %s100, 1
        %p1839 = scmp.lt.s32.totalorder %s1838, 1
        %s1840 = scalar_select %p1839, %s1838, 1
        %s1841 = scalar_lea.vmem %s31, %s1840
        %p1842 = pneg %p548
        %p1843 = pneg %p545
        %p1844 = scmp.lt.s32.totalorder %s100, 1
        %s1845 = scalar_select %p1844, %s100, 1
        %p1846 = scmp.lt.s32.totalorder %s1845, 1
        %s1847 = scalar_select %p1846, %s1845, 1
        %s1848 = scalar_lea.vmem %s33, %s1847
        %p1849 = pneg %p578
        %p1850 = pneg %p575
        %p1851 = scmp.lt.s32.totalorder %s100, 1
        %s1852 = scalar_select %p1851, %s100, 1
        %p1853 = scmp.lt.s32.totalorder %s1852, 1
        %s1854 = scalar_select %p1853, %s1852, 1
        %s1855 = scalar_lea.vmem %s35, %s1854
        %p1856 = pneg %p608
        %p1857 = pneg %p605
        %s1858 = ssub.s32 %s100, 2
        %p1859 = scmp.gt.s32.totalorder %s1858, 0
        %s1860 = scalar_select %p1859, %s1858, 0
        %p1861 = scmp.lt.s32.totalorder %s1860, 1
        %s1862 = scalar_select %p1861, %s1860, 1
        %s1863 = smul.addr %s1862, 4
        %s1864 = smul.addr %s1863, 4
        %s1865 = scalar_lea.vmem %s37, %s1864
        %p1866 = pneg %p640
        %p1867 = pneg %p637
        %s1868 = ssub.s32 %s100, 2
        %p1869 = scmp.gt.s32.totalorder %s1868, 0
        %s1870 = scalar_select %p1869, %s1868, 0
        %p1871 = scmp.lt.s32.totalorder %s1870, 1
        %s1872 = scalar_select %p1871, %s1870, 1
        %s1873 = scalar_lea.vmem %s39, %s1872
        %p1874 = pneg %p672
        %p1875 = pneg %p669
        %s1876 = ssub.s32 %s100, 2
        %p1877 = scmp.gt.s32.totalorder %s1876, 0
        %s1878 = scalar_select %p1877, %s1876, 0
        %p1879 = scmp.lt.s32.totalorder %s1878, 1
        %s1880 = scalar_select %p1879, %s1878, 1
        %s1881 = smul.addr %s1880, 4
        %s1882 = smul.addr %s1881, 4
        %s1883 = scalar_lea.vmem %s41, %s1882
        %p1884 = pneg %p704
        %p1885 = pneg %p701
        %s1886 = ssub.s32 %s100, 2
        %p1887 = scmp.gt.s32.totalorder %s1886, 0
        %s1888 = scalar_select %p1887, %s1886, 0
        %p1889 = scmp.lt.s32.totalorder %s1888, 1
        %s1890 = scalar_select %p1889, %s1888, 1
        %s1891 = scalar_lea.vmem %s43, %s1890
        %p1892 = pneg %p736
        %p1893 = pneg %p733
        %s1894 = ssub.s32 %s100, 2
        %p1895 = scmp.gt.s32.totalorder %s1894, 0
        %s1896 = scalar_select %p1895, %s1894, 0
        %p1897 = scmp.lt.s32.totalorder %s1896, 1
        %s1898 = scalar_select %p1897, %s1896, 1
        %s1899 = smul.addr %s1898, 4
        %s1900 = smul.addr %s1899, 4
        %s1901 = scalar_lea.vmem %s45, %s1900
        %p1902 = pneg %p768
        %p1903 = pneg %p765
        %s1904 = ssub.s32 %s100, 2
        %p1905 = scmp.gt.s32.totalorder %s1904, 0
        %s1906 = scalar_select %p1905, %s1904, 0
        %p1907 = scmp.lt.s32.totalorder %s1906, 1
        %s1908 = scalar_select %p1907, %s1906, 1
        %s1909 = scalar_lea.vmem %s47, %s1908
        %p1910 = pneg %p800
        %p1911 = pneg %p797
        %s1912 = ssub.s32 %s100, 2
        %p1913 = scmp.gt.s32.totalorder %s1912, 0
        %s1914 = scalar_select %p1913, %s1912, 0
        %p1915 = scmp.lt.s32.totalorder %s1914, 1
        %s1916 = scalar_select %p1915, %s1914, 1
        %s1917 = smul.addr %s1916, 4
        %s1918 = smul.addr %s1917, 4
        %s1919 = scalar_lea.vmem %s49, %s1918
        %p1920 = pneg %p832
        %p1921 = pneg %p829
        %s1922 = ssub.s32 %s100, 2
        %p1923 = scmp.gt.s32.totalorder %s1922, 0
        %s1924 = scalar_select %p1923, %s1922, 0
        %p1925 = scmp.lt.s32.totalorder %s1924, 1
        %s1926 = scalar_select %p1925, %s1924, 1
        %s1927 = scalar_lea.vmem %s51, %s1926
        %p1928 = pneg %p864
        %p1929 = pneg %p861
        %s1930 = ssub.s32 %s100, 2
        %p1931 = scmp.gt.s32.totalorder %s1930, 0
        %s1932 = scalar_select %p1931, %s1930, 0
        %p1933 = scmp.lt.s32.totalorder %s1932, 1
        %s1934 = scalar_select %p1933, %s1932, 1
        %s1935 = smul.addr %s1934, 4
        %s1936 = smul.addr %s1935, 4
        %s1937 = scalar_lea.vmem %s53, %s1936
        %p1938 = pneg %p896
        %p1939 = pneg %p893
        %s1940 = ssub.s32 %s100, 2
        %p1941 = scmp.gt.s32.totalorder %s1940, 0
        %s1942 = scalar_select %p1941, %s1940, 0
        %p1943 = scmp.lt.s32.totalorder %s1942, 1
        %s1944 = scalar_select %p1943, %s1942, 1
        %s1945 = scalar_lea.vmem %s55, %s1944
        %p1946 = pneg %p928
        %p1947 = pneg %p925
        %s1948 = ssub.s32 %s100, 2
        %p1949 = scmp.gt.s32.totalorder %s1948, 0
        %s1950 = scalar_select %p1949, %s1948, 0
        %p1951 = scmp.lt.s32.totalorder %s1950, 1
        %s1952 = scalar_select %p1951, %s1950, 1
        %s1953 = scalar_lea.vmem %s57, %s1952
        %p1954 = pneg %p960
        %p1955 = pneg %p957
        %s1956 = ssub.s32 %s100, 2
        %p1957 = scmp.gt.s32.totalorder %s1956, 0
        %s1958 = scalar_select %p1957, %s1956, 0
        %p1959 = scmp.lt.s32.totalorder %s1958, 1
        %s1960 = scalar_select %p1959, %s1958, 1
        %s1961 = scalar_lea.vmem %s59, %s1960
        %p1962 = pneg %p992
        %p1963 = pneg %p989
        %s1964 = ssub.s32 %s100, 2
        %p1965 = scmp.gt.s32.totalorder %s1964, 0
        %s1966 = scalar_select %p1965, %s1964, 0
        %p1967 = scmp.lt.s32.totalorder %s1966, 1
        %s1968 = scalar_select %p1967, %s1966, 1
        %s1969 = scalar_lea.vmem %s61, %s1968
        %p1970 = pneg %p1024
        %p1971 = pneg %p1021
        %s1972 = ssub.s32 %s100, 2
        %p1973 = scmp.gt.s32.totalorder %s1972, 0
        %s1974 = scalar_select %p1973, %s1972, 0
        %p1975 = scmp.lt.s32.totalorder %s1974, 1
        %s1976 = scalar_select %p1975, %s1974, 1
        %s1977 = scalar_lea.vmem %s63, %s1976
        %p1978 = pneg %p1056
        %p1979 = pneg %p1053
        %s1980 = ssub.s32 %s100, 2
        %p1981 = scmp.gt.s32.totalorder %s1980, 0
        %s1982 = scalar_select %p1981, %s1980, 0
        %p1983 = scmp.lt.s32.totalorder %s1982, 1
        %s1984 = scalar_select %p1983, %s1982, 1
        %s1985 = scalar_lea.vmem %s65, %s1984
        %p1986 = pneg %p1088
        %p1987 = pneg %p1085
        %s1988 = ssub.s32 %s100, 2
        %p1989 = scmp.gt.s32.totalorder %s1988, 0
        %s1990 = scalar_select %p1989, %s1988, 0
        %p1991 = scmp.lt.s32.totalorder %s1990, 1
        %s1992 = scalar_select %p1991, %s1990, 1
        %s1993 = scalar_lea.vmem %s67, %s1992
        %p1994 = pneg %p1120
        %p1995 = pneg %p1117
        %s1996 = ssub.s32 %s100, 2
        %p1997 = scmp.gt.s32.totalorder %s1996, 0
        %s1998 = scalar_select %p1997, %s1996, 0
        %p1999 = scmp.lt.s32.totalorder %s1998, 1
        %s2000 = scalar_select %p1999, %s1998, 1
        %s2001 = smul.addr %s2000, 4
        %s2002 = smul.addr %s2001, 4
        %s2003 = scalar_lea.vmem %s69, %s2002
        %p2004 = pneg %p1152
        %p2005 = pneg %p1149
        %s2006 = ssub.s32 %s100, 2
        %p2007 = scmp.gt.s32.totalorder %s2006, 0
        %s2008 = scalar_select %p2007, %s2006, 0
        %p2009 = scmp.lt.s32.totalorder %s2008, 1
        %s2010 = scalar_select %p2009, %s2008, 1
        %s2011 = scalar_lea.vmem %s71, %s2010
        %p2012 = pneg %p1184
        %p2013 = pneg %p1181
        %s2014 = ssub.s32 %s100, 2
        %p2015 = scmp.gt.s32.totalorder %s2014, 0
        %s2016 = scalar_select %p2015, %s2014, 0
        %p2017 = scmp.lt.s32.totalorder %s2016, 1
        %s2018 = scalar_select %p2017, %s2016, 1
        %s2019 = smul.addr %s2018, 8
        %s2020 = smul.addr %s2019, 4
        %s2021 = scalar_lea.vmem %s73, %s2020
        %p2022 = pneg %p1216
        %p2023 = pneg %p1213
        %s2024 = ssub.s32 %s100, 2
        %p2025 = scmp.gt.s32.totalorder %s2024, 0
        %s2026 = scalar_select %p2025, %s2024, 0
        %p2027 = scmp.lt.s32.totalorder %s2026, 1
        %s2028 = scalar_select %p2027, %s2026, 1
        %s2029 = scalar_lea.vmem %s75, %s2028
        %p2030 = pneg %p1248
        %p2031 = pneg %p1245
        %p2032 = pneg %p1269
        %p2033 = pneg %p1266
        %p2034 = pneg %p1295
        %p2035 = pneg %p1292
        %s2036 = sand.u32 %s1282, 1
        %s2037 = scalar_lea.sflag [#allocation8], %s2036
        %s2038 = sand.u32 %s1282, 1
        %s2039 = smul.addr %s2038, 8
        %s2040 = scalar_lea.vmem [#allocation7], %s2039
        %p2041 = scmp.lt.s32.totalorder %s99, 1
        %s2042 = scalar_select %p2041, %s99, 1
        %s2043 = smul.addr %s2042, 8
        %s2044 = scalar_lea.vmem %s1, %s2043
        %p2045 = scmp.lt.s32.totalorder %s99, 1
        %s2046 = scalar_select %p2045, %s99, 1
        %s2047 = smul.addr %s2046, 8
        %s2048 = scalar_lea.vmem %s3, %s2047
        %p2049 = scmp.lt.s32.totalorder %s99, 1
        %s2050 = scalar_select %p2049, %s99, 1
        %s2051 = scalar_lea.vmem %s9, %s2050
        %p2052 = scmp.lt.s32.totalorder %s99, 1
        %s2053 = scalar_select %p2052, %s99, 1
        %s2054 = smul.addr %s2053, 8
        %s2055 = scalar_lea.vmem %s11, %s2054
        %p2056 = scmp.lt.s32.totalorder %s100, 1
        %s2057 = scalar_select %p2056, %s100, 1
        %p2058 = scmp.lt.s32.totalorder %s2057, 1
        %s2059 = scalar_select %p2058, %s2057, 1
        %s2060 = smul.addr %s2059, 4
        %s2061 = smul.addr %s2060, 4
        %s2062 = scalar_lea.vmem %s13, %s2061
        %p2063 = scmp.lt.s32.totalorder %s100, 1
        %s2064 = scalar_select %p2063, %s100, 1
        %p2065 = scmp.lt.s32.totalorder %s100, 1
        %s2066 = scalar_select %p2065, %s100, 1
        %p2067 = scmp.lt.s32.totalorder %s2066, 1
        %s2068 = scalar_select %p2067, %s2066, 1
        %s2069 = scalar_lea.vmem %s15, %s2068
        %p2070 = scmp.lt.s32.totalorder %s100, 1
        %s2071 = scalar_select %p2070, %s100, 1
        %p2072 = scmp.lt.s32.totalorder %s100, 1
        %s2073 = scalar_select %p2072, %s100, 1
        %p2074 = scmp.lt.s32.totalorder %s2073, 1
        %s2075 = scalar_select %p2074, %s2073, 1
        %s2076 = smul.addr %s2075, 4
        %s2077 = smul.addr %s2076, 4
        %s2078 = scalar_lea.vmem %s17, %s2077
        %p2079 = scmp.lt.s32.totalorder %s100, 1
        %s2080 = scalar_select %p2079, %s100, 1
        %p2081 = scmp.lt.s32.totalorder %s100, 1
        %s2082 = scalar_select %p2081, %s100, 1
        %p2083 = scmp.lt.s32.totalorder %s2082, 1
        %s2084 = scalar_select %p2083, %s2082, 1
        %s2085 = scalar_lea.vmem %s19, %s2084
        %p2086 = scmp.lt.s32.totalorder %s100, 1
        %s2087 = scalar_select %p2086, %s100, 1
        %p2088 = scmp.lt.s32.totalorder %s100, 1
        %s2089 = scalar_select %p2088, %s100, 1
        %p2090 = scmp.lt.s32.totalorder %s2089, 1
        %s2091 = scalar_select %p2090, %s2089, 1
        %s2092 = scalar_lea.vmem %s21, %s2091
        %p2093 = scmp.lt.s32.totalorder %s100, 1
        %s2094 = scalar_select %p2093, %s100, 1
        %p2095 = scmp.lt.s32.totalorder %s100, 1
        %s2096 = scalar_select %p2095, %s100, 1
        %p2097 = scmp.lt.s32.totalorder %s2096, 1
        %s2098 = scalar_select %p2097, %s2096, 1
        %s2099 = scalar_lea.vmem %s23, %s2098
        %p2100 = scmp.lt.s32.totalorder %s100, 1
        %s2101 = scalar_select %p2100, %s100, 1
        %p2102 = scmp.lt.s32.totalorder %s100, 1
        %s2103 = scalar_select %p2102, %s100, 1
        %p2104 = scmp.lt.s32.totalorder %s2103, 1
        %s2105 = scalar_select %p2104, %s2103, 1
        %s2106 = smul.addr %s2105, 4
        %s2107 = smul.addr %s2106, 4
        %s2108 = scalar_lea.vmem %s25, %s2107
        %p2109 = scmp.lt.s32.totalorder %s100, 1
        %s2110 = scalar_select %p2109, %s100, 1
        %p2111 = scmp.lt.s32.totalorder %s100, 1
        %s2112 = scalar_select %p2111, %s100, 1
        %p2113 = scmp.lt.s32.totalorder %s2112, 1
        %s2114 = scalar_select %p2113, %s2112, 1
        %s2115 = scalar_lea.vmem %s27, %s2114
        %p2116 = scmp.lt.s32.totalorder %s100, 1
        %s2117 = scalar_select %p2116, %s100, 1
        %p2118 = scmp.lt.s32.totalorder %s100, 1
        %s2119 = scalar_select %p2118, %s100, 1
        %p2120 = scmp.lt.s32.totalorder %s2119, 1
        %s2121 = scalar_select %p2120, %s2119, 1
        %s2122 = smul.addr %s2121, 8
        %s2123 = smul.addr %s2122, 4
        %s2124 = scalar_lea.vmem %s29, %s2123
        %p2125 = scmp.lt.s32.totalorder %s100, 1
        %s2126 = scalar_select %p2125, %s100, 1
        %p2127 = scmp.lt.s32.totalorder %s100, 1
        %s2128 = scalar_select %p2127, %s100, 1
        %p2129 = scmp.lt.s32.totalorder %s2128, 1
        %s2130 = scalar_select %p2129, %s2128, 1
        %s2131 = scalar_lea.vmem %s31, %s2130
        %p2132 = scmp.lt.s32.totalorder %s100, 1
        %s2133 = scalar_select %p2132, %s100, 1
        %p2134 = scmp.lt.s32.totalorder %s100, 1
        %s2135 = scalar_select %p2134, %s100, 1
        %p2136 = scmp.lt.s32.totalorder %s2135, 1
        %s2137 = scalar_select %p2136, %s2135, 1
        %s2138 = scalar_lea.vmem %s33, %s2137
        %p2139 = scmp.lt.s32.totalorder %s100, 1
        %s2140 = scalar_select %p2139, %s100, 1
        %p2141 = scmp.lt.s32.totalorder %s100, 1
        %s2142 = scalar_select %p2141, %s100, 1
        %p2143 = scmp.lt.s32.totalorder %s2142, 1
        %s2144 = scalar_select %p2143, %s2142, 1
        %s2145 = scalar_lea.vmem %s35, %s2144
        %p2146 = scmp.lt.s32.totalorder %s100, 1
        %s2147 = scalar_select %p2146, %s100, 1
        %s2148 = ssub.s32 %s100, 2
        %p2149 = scmp.gt.s32.totalorder %s2148, 0
        %s2150 = scalar_select %p2149, %s2148, 0
        %p2151 = scmp.lt.s32.totalorder %s2150, 1
        %s2152 = scalar_select %p2151, %s2150, 1
        %s2153 = smul.addr %s2152, 4
        %s2154 = smul.addr %s2153, 4
        %s2155 = scalar_lea.vmem %s37, %s2154
        %s2156 = ssub.s32 %s100, 2
        %p2157 = scmp.gt.s32.totalorder %s2156, 0
        %s2158 = scalar_select %p2157, %s2156, 0
        %s2159 = ssub.s32 %s100, 2
        %p2160 = scmp.gt.s32.totalorder %s2159, 0
        %s2161 = scalar_select %p2160, %s2159, 0
        %p2162 = scmp.lt.s32.totalorder %s2161, 1
        %s2163 = scalar_select %p2162, %s2161, 1
        %s2164 = scalar_lea.vmem %s39, %s2163
        %s2165 = ssub.s32 %s100, 2
        %p2166 = scmp.gt.s32.totalorder %s2165, 0
        %s2167 = scalar_select %p2166, %s2165, 0
        %s2168 = ssub.s32 %s100, 2
        %p2169 = scmp.gt.s32.totalorder %s2168, 0
        %s2170 = scalar_select %p2169, %s2168, 0
        %p2171 = scmp.lt.s32.totalorder %s2170, 1
        %s2172 = scalar_select %p2171, %s2170, 1
        %s2173 = smul.addr %s2172, 4
        %s2174 = smul.addr %s2173, 4
        %s2175 = scalar_lea.vmem %s41, %s2174
        %s2176 = ssub.s32 %s100, 2
        %p2177 = scmp.gt.s32.totalorder %s2176, 0
        %s2178 = scalar_select %p2177, %s2176, 0
        %s2179 = ssub.s32 %s100, 2
        %p2180 = scmp.gt.s32.totalorder %s2179, 0
        %s2181 = scalar_select %p2180, %s2179, 0
        %p2182 = scmp.lt.s32.totalorder %s2181, 1
        %s2183 = scalar_select %p2182, %s2181, 1
        %s2184 = scalar_lea.vmem %s43, %s2183
        %s2185 = ssub.s32 %s100, 2
        %p2186 = scmp.gt.s32.totalorder %s2185, 0
        %s2187 = scalar_select %p2186, %s2185, 0
        %s2188 = ssub.s32 %s100, 2
        %p2189 = scmp.gt.s32.totalorder %s2188, 0
        %s2190 = scalar_select %p2189, %s2188, 0
        %p2191 = scmp.lt.s32.totalorder %s2190, 1
        %s2192 = scalar_select %p2191, %s2190, 1
        %s2193 = smul.addr %s2192, 4
        %s2194 = smul.addr %s2193, 4
        %s2195 = scalar_lea.vmem %s45, %s2194
        %s2196 = ssub.s32 %s100, 2
        %p2197 = scmp.gt.s32.totalorder %s2196, 0
        %s2198 = scalar_select %p2197, %s2196, 0
        %s2199 = ssub.s32 %s100, 2
        %p2200 = scmp.gt.s32.totalorder %s2199, 0
        %s2201 = scalar_select %p2200, %s2199, 0
        %p2202 = scmp.lt.s32.totalorder %s2201, 1
        %s2203 = scalar_select %p2202, %s2201, 1
        %s2204 = scalar_lea.vmem %s47, %s2203
        %s2205 = ssub.s32 %s100, 2
        %p2206 = scmp.gt.s32.totalorder %s2205, 0
        %s2207 = scalar_select %p2206, %s2205, 0
        %s2208 = ssub.s32 %s100, 2
        %p2209 = scmp.gt.s32.totalorder %s2208, 0
        %s2210 = scalar_select %p2209, %s2208, 0
        %p2211 = scmp.lt.s32.totalorder %s2210, 1
        %s2212 = scalar_select %p2211, %s2210, 1
        %s2213 = smul.addr %s2212, 4
        %s2214 = smul.addr %s2213, 4
        %s2215 = scalar_lea.vmem %s49, %s2214
        %s2216 = ssub.s32 %s100, 2
        %p2217 = scmp.gt.s32.totalorder %s2216, 0
        %s2218 = scalar_select %p2217, %s2216, 0
        %s2219 = ssub.s32 %s100, 2
        %p2220 = scmp.gt.s32.totalorder %s2219, 0
        %s2221 = scalar_select %p2220, %s2219, 0
        %p2222 = scmp.lt.s32.totalorder %s2221, 1
        %s2223 = scalar_select %p2222, %s2221, 1
        %s2224 = scalar_lea.vmem %s51, %s2223
        %s2225 = ssub.s32 %s100, 2
        %p2226 = scmp.gt.s32.totalorder %s2225, 0
        %s2227 = scalar_select %p2226, %s2225, 0
        %s2228 = ssub.s32 %s100, 2
        %p2229 = scmp.gt.s32.totalorder %s2228, 0
        %s2230 = scalar_select %p2229, %s2228, 0
        %p2231 = scmp.lt.s32.totalorder %s2230, 1
        %s2232 = scalar_select %p2231, %s2230, 1
        %s2233 = smul.addr %s2232, 4
        %s2234 = smul.addr %s2233, 4
        %s2235 = scalar_lea.vmem %s53, %s2234
        %s2236 = ssub.s32 %s100, 2
        %p2237 = scmp.gt.s32.totalorder %s2236, 0
        %s2238 = scalar_select %p2237, %s2236, 0
        %s2239 = ssub.s32 %s100, 2
        %p2240 = scmp.gt.s32.totalorder %s2239, 0
        %s2241 = scalar_select %p2240, %s2239, 0
        %p2242 = scmp.lt.s32.totalorder %s2241, 1
        %s2243 = scalar_select %p2242, %s2241, 1
        %s2244 = scalar_lea.vmem %s55, %s2243
        %s2245 = ssub.s32 %s100, 2
        %p2246 = scmp.gt.s32.totalorder %s2245, 0
        %s2247 = scalar_select %p2246, %s2245, 0
        %s2248 = ssub.s32 %s100, 2
        %p2249 = scmp.gt.s32.totalorder %s2248, 0
        %s2250 = scalar_select %p2249, %s2248, 0
        %p2251 = scmp.lt.s32.totalorder %s2250, 1
        %s2252 = scalar_select %p2251, %s2250, 1
        %s2253 = scalar_lea.vmem %s57, %s2252
        %s2254 = ssub.s32 %s100, 2
        %p2255 = scmp.gt.s32.totalorder %s2254, 0
        %s2256 = scalar_select %p2255, %s2254, 0
        %s2257 = ssub.s32 %s100, 2
        %p2258 = scmp.gt.s32.totalorder %s2257, 0
        %s2259 = scalar_select %p2258, %s2257, 0
        %p2260 = scmp.lt.s32.totalorder %s2259, 1
        %s2261 = scalar_select %p2260, %s2259, 1
        %s2262 = scalar_lea.vmem %s59, %s2261
        %s2263 = ssub.s32 %s100, 2
        %p2264 = scmp.gt.s32.totalorder %s2263, 0
        %s2265 = scalar_select %p2264, %s2263, 0
        %s2266 = ssub.s32 %s100, 2
        %p2267 = scmp.gt.s32.totalorder %s2266, 0
        %s2268 = scalar_select %p2267, %s2266, 0
        %p2269 = scmp.lt.s32.totalorder %s2268, 1
        %s2270 = scalar_select %p2269, %s2268, 1
        %s2271 = scalar_lea.vmem %s61, %s2270
        %s2272 = ssub.s32 %s100, 2
        %p2273 = scmp.gt.s32.totalorder %s2272, 0
        %s2274 = scalar_select %p2273, %s2272, 0
        %s2275 = ssub.s32 %s100, 2
        %p2276 = scmp.gt.s32.totalorder %s2275, 0
        %s2277 = scalar_select %p2276, %s2275, 0
        %p2278 = scmp.lt.s32.totalorder %s2277, 1
        %s2279 = scalar_select %p2278, %s2277, 1
        %s2280 = scalar_lea.vmem %s63, %s2279
        %s2281 = ssub.s32 %s100, 2
        %p2282 = scmp.gt.s32.totalorder %s2281, 0
        %s2283 = scalar_select %p2282, %s2281, 0
        %s2284 = ssub.s32 %s100, 2
        %p2285 = scmp.gt.s32.totalorder %s2284, 0
        %s2286 = scalar_select %p2285, %s2284, 0
        %p2287 = scmp.lt.s32.totalorder %s2286, 1
        %s2288 = scalar_select %p2287, %s2286, 1
        %s2289 = scalar_lea.vmem %s65, %s2288
        %s2290 = ssub.s32 %s100, 2
        %p2291 = scmp.gt.s32.totalorder %s2290, 0
        %s2292 = scalar_select %p2291, %s2290, 0
        %s2293 = ssub.s32 %s100, 2
        %p2294 = scmp.gt.s32.totalorder %s2293, 0
        %s2295 = scalar_select %p2294, %s2293, 0
        %p2296 = scmp.lt.s32.totalorder %s2295, 1
        %s2297 = scalar_select %p2296, %s2295, 1
        %s2298 = scalar_lea.vmem %s67, %s2297
        %s2299 = ssub.s32 %s100, 2
        %p2300 = scmp.gt.s32.totalorder %s2299, 0
        %s2301 = scalar_select %p2300, %s2299, 0
        %s2302 = ssub.s32 %s100, 2
        %p2303 = scmp.gt.s32.totalorder %s2302, 0
        %s2304 = scalar_select %p2303, %s2302, 0
        %p2305 = scmp.lt.s32.totalorder %s2304, 1
        %s2306 = scalar_select %p2305, %s2304, 1
        %s2307 = smul.addr %s2306, 4
        %s2308 = smul.addr %s2307, 4
        %s2309 = scalar_lea.vmem %s69, %s2308
        %s2310 = ssub.s32 %s100, 2
        %p2311 = scmp.gt.s32.totalorder %s2310, 0
        %s2312 = scalar_select %p2311, %s2310, 0
        %s2313 = ssub.s32 %s100, 2
        %p2314 = scmp.gt.s32.totalorder %s2313, 0
        %s2315 = scalar_select %p2314, %s2313, 0
        %p2316 = scmp.lt.s32.totalorder %s2315, 1
        %s2317 = scalar_select %p2316, %s2315, 1
        %s2318 = scalar_lea.vmem %s71, %s2317
        %s2319 = ssub.s32 %s100, 2
        %p2320 = scmp.gt.s32.totalorder %s2319, 0
        %s2321 = scalar_select %p2320, %s2319, 0
        %s2322 = ssub.s32 %s100, 2
        %p2323 = scmp.gt.s32.totalorder %s2322, 0
        %s2324 = scalar_select %p2323, %s2322, 0
        %p2325 = scmp.lt.s32.totalorder %s2324, 1
        %s2326 = scalar_select %p2325, %s2324, 1
        %s2327 = smul.addr %s2326, 8
        %s2328 = smul.addr %s2327, 4
        %s2329 = scalar_lea.vmem %s73, %s2328
        %s2330 = ssub.s32 %s100, 2
        %p2331 = scmp.gt.s32.totalorder %s2330, 0
        %s2332 = scalar_select %p2331, %s2330, 0
        %s2333 = ssub.s32 %s100, 2
        %p2334 = scmp.gt.s32.totalorder %s2333, 0
        %s2335 = scalar_select %p2334, %s2333, 0
        %p2336 = scmp.lt.s32.totalorder %s2335, 1
        %s2337 = scalar_select %p2336, %s2335, 1
        %s2338 = scalar_lea.vmem %s75, %s2337
        %s2339 = ssub.s32 %s100, 2
        %p2340 = scmp.gt.s32.totalorder %s2339, 0
        %s2341 = scalar_select %p2340, %s2339, 0
        %p2343 = scmp.eq.s32.totalorder %s100, 0
        // Predicated region
        $region177: #{transformer_forward.1} parent=175 // pred_check
          %p2344 = pneg %p2343
        $region178: #{transformer_forward.1} parent=175 // pred_check_branch
          %2346 = sbr.rel (%p2344) target = $region180
        $region179: #{transformer_forward.1} parent=175 // pred_region
          %v2347 = vld [vmem:[%s2048] sm:$0xff]
          %v2348 = vld [vmem:[%s5] sm:$0xf]
          %v2349 = vld [vmem:[%s7] sm:$0x1]
          %v2351 = vlaneseq
          %v2352 = vshrl.u32 %v2351, 7
          %v2353 = vsub.s32 0, %v2352
          %v2354 = vrot.slane %v2349, %v2353
          %vm2356 = vcmask 31744
          %v2358 = vsel %vm2356, %v2347, 0
          %vm2360 = vcmask 1043456
          %v2362 = vsel %vm2360, %v2348, 0
          %2364 = vmatprep.subr.mxu0 0.0
          %2365 = vmatpush1.msra.mxu0 %v2362
          %2366 = vmatprep.subr.mxu0 0.0
          %2367 = vmatpush1.msra.mxu0 0.0
          %2368 = vmatprep.subr.mxu0 0.0
          %2369 = vmatpush1.msra.mxu0 0.0
          %2370 = vmatprep.subr.mxu0 0.0
          %2371 = vmatpush1.msra.mxu0 0.0
          %2372 = vmatprep.subr.mxu0 0.0
          %2373 = vmatpush1.msra.mxu0 0.0
          %2374 = vmatprep.subr.mxu0 0.0
          %2375 = vmatpush1.msra.mxu0 0.0
          %2376 = vmatprep.subr.mxu0 0.0
          %2377 = vmatpush1.msra.mxu0 0.0
          %2378 = vmatprep.subr.mxu0 0.0
          %2379 = vmatpush1.msra.mxu0 0.0
          %2380 = vmatprep.subr.mxu0 0.0
          %2381 = vmatpush1.msra.mxu0 0.0
          %2382 = vmatprep.subr.mxu0 0.0
          %2383 = vmatpush1.msra.mxu0 0.0
          %2384 = vmatprep.subr.mxu0 0.0
          %2385 = vmatpush1.msra.mxu0 0.0
          %2386 = vmatprep.subr.mxu0 0.0
          %2387 = vmatpush1.msra.mxu0 0.0
          %2388 = vmatprep.subr.mxu0 0.0
          %2389 = vmatpush1.msra.mxu0 0.0
          %2390 = vmatprep.subr.mxu0 0.0
          %2391 = vmatpush1.msra.mxu0 0.0
          %2392 = vmatprep.subr.mxu0 0.0
          %2393 = vmatpush1.msra.mxu0 0.0
          %2394 = vmatprep.subr.mxu0 0.0
          %2395 = vmatpush1.msra.mxu0 0.0
          %2396 = vmatprep.subr.mxu0 0.0
          %2397 = vmatpush1.msra.mxu0 0.0
          %2398 = vmatprep.subr.mxu0 0.0
          %2399 = vmatpush1.msra.mxu0 0.0
          %2400 = vmatprep.subr.mxu0 0.0
          %2401 = vmatpush1.msra.mxu0 0.0
          %2402 = vmatprep.subr.mxu0 0.0
          %2403 = vmatpush1.msra.mxu0 0.0
          %2404 = vmatprep.subr.mxu0 0.0
          %2405 = vmatpush1.msra.mxu0 0.0
          %2406 = vmatprep.subr.mxu0 0.0
          %2407 = vmatpush1.msra.mxu0 0.0
          %2408 = vmatprep.subr.mxu0 0.0
          %2409 = vmatpush1.msra.mxu0 0.0
          %2410 = vmatprep.subr.mxu0 0.0
          %2411 = vmatpush1.msra.mxu0 0.0
          %2412 = vmatprep.subr.mxu0 0.0
          %2413 = vmatpush1.msra.mxu0 0.0
          %2414 = vmatprep.subr.mxu0 0.0
          %2415 = vmatpush1.msra.mxu0 0.0
          %2416 = vmatprep.subr.mxu0 0.0
          %2417 = vmatpush1.msra.mxu0 0.0
          %2418 = vmatprep.subr.mxu0 0.0
          %2419 = vmatpush1.msra.mxu0 0.0
          %2420 = vmatprep.subr.mxu0 0.0
          %2421 = vmatpush1.msra.mxu0 0.0
          %2422 = vmatprep.subr.mxu0 0.0
          %2423 = vmatpush1.msra.mxu0 0.0
          %2424 = vmatprep.subr.mxu0 0.0
          %2425 = vmatpush1.msra.mxu0 0.0
          %2426 = vmatprep.subr.mxu0 0.0
          %2427 = vmatpush1.msra.mxu0 0.0
          %2428 = vmatprep.mubr.f32.mxu0 0.0
          %2429 = vmatmul.mubr.f32.gmra.mrb[0].mxu0 %v2358
          %v2430 = vpop.f32.mrb[0].mxu0
          %v2431 = vadd.f32 %v2354, %v2430
          %v2432 = vpop.f32.mrb[0].mxu0
          %2433 = vdwg.mxu0
          %v2434 = vld [vmem:[%s2044] sm:$0xff]
          %v2435 = vadd.f32 %v2434, %v2431
          %vm2436 = vcmask 261120
          %2437 = vst.msk [vmem:[#allocation2] sm:$0xff] %vm2436, %v2435
          %v2438 = vlaneseq
          %v2439 = vshrl.u32 %v2438, 7
          %v2440 = vlaneseq
          %v2441 = vand.u32 %v2440, 127
          %vm2442 = vcmp.gt.s32.totalorder %v2441, %v2439
          %v2443 = vsel %vm2442, -1e+30, 0.0
          %vm2444 = vcmask 64512
          %2445 = vst.msk [vmem:[#allocation4] sm:$0xff] %vm2444, %v2443
        $region180: #{transformer_forward.1} parent=175 // pred_fallthru
          _
        %p2446 = scmp.eq.s32.totalorder %s100, 2
        // Predicated region
        $region181: #{transformer_forward.1} parent=175 // pred_check
          %p2447 = pneg %p2446
        $region182: #{transformer_forward.1} parent=175 // pred_check_branch
          %2449 = sbr.rel (%p2447) target = $region184
        $region183: #{transformer_forward.1} parent=175 // pred_region
          %p2451 = scmp.lt.u32.totalorder 16, 8
          %p2452 = pneg %p2451
          // Predicated region
          $region185: #{transformer_forward.1} parent=183 // pred_check
            _
          $region186: #{transformer_forward.1} parent=183 // pred_check_branch
            %2454 = sbr.rel (%p2451) target = $region188
          $region187: #{transformer_forward.1} parent=183 // pred_region
            %s2469 = sand.u32 16, 7
            %p2470 = scmp.eq.s32.totalorder %s2469, 0
            // Predicated region
            $region200: #{transformer_forward.1} parent=187 // pred_check
              %p2471 = pneg %p2470
            $region201: #{transformer_forward.1} parent=187 // pred_check_branch
              %2473 = sbr.rel (%p2471) target = $region203
            $region202: #{transformer_forward.1} parent=187 // pred_region
              loop: start=0, step=1, limit=1
              $region204: #{transformer_forward.1} parent=202 // loop_pre_header
                _
              $region205: #{transformer_forward.1} parent=202 // loop_header
                %s2475 = sphi 0, %s2479
                %p2476 = scmp.ge.s32.totalorder %s2475, 1
                %s2480 = sphi %s77, %s77
                %s2481 = sphi [#allocation5], [#allocation5]
              $region206: #{transformer_forward.1} parent=202 // loop_header_branch
                %2478 = sbr.rel (%p2476) target = $region210
              $region207: #{transformer_forward.1} parent=202 // loop_body
                %v2482 = vld [vmem:[%s2480] sm:$0xff]
                %2483 = vst [vmem:[%s2481] sm:$0xff] %v2482
                %v2484 = vld [vmem:[%s2480 + $0x8] sm:$0xff]
                %2485 = vst [vmem:[%s2481 + $0x8] sm:$0xff] %v2484
              $region208: #{transformer_forward.1} parent=202 // loop_footer
                %s2479 = sadd.s32 1, %s2475
              $region209: #{transformer_forward.1} parent=202 // loop_footer_branch
                %2474 = sbr.rel target = $region205
              $region210: #{transformer_forward.1} parent=202 // loop_exit
                _
            $region203: #{transformer_forward.1} parent=187 // pred_fallthru
              _
            %p2486 = pneg %p2470
            // Predicated region
            $region211: #{transformer_forward.1} parent=187 // pred_check
              _
            $region212: #{transformer_forward.1} parent=187 // pred_check_branch
              %2488 = sbr.rel (%p2470) target = $region214
            $region213: #{transformer_forward.1} parent=187 // pred_region
              %s2489 = sand.u32 16, 7
            $region214: #{transformer_forward.1} parent=187 // pred_fallthru
              _
          $region188: #{transformer_forward.1} parent=183 // pred_fallthru
            _
          // Predicated region
          $region189: #{transformer_forward.1} parent=183 // pred_check
            %p2455 = pneg %p2451
          $region190: #{transformer_forward.1} parent=183 // pred_check_branch
            %2457 = sbr.rel (%p2455) target = $region192
          $region191: #{transformer_forward.1} parent=183 // pred_region
            %s2458 = sshllo.u32 0, 16
            loop: start=0, step=1, limit=1
            $region193: #{transformer_forward.1} parent=191 // loop_pre_header
              _
            $region194: #{transformer_forward.1} parent=191 // loop_header
              %s2460 = sphi 0, %s2464
              %p2461 = scmp.ge.s32.totalorder %s2460, 1
              %s2465 = sphi %s77, %s77
              %s2466 = sphi [#allocation5], [#allocation5]
            $region195: #{transformer_forward.1} parent=191 // loop_header_branch
              %2463 = sbr.rel (%p2461) target = $region199
            $region196: #{transformer_forward.1} parent=191 // loop_body
              %v2467 = vld [vmem:[%s2465] sm:%s2458]
              %2468 = vst [vmem:[%s2466] sm:%s2458] %v2467
            $region197: #{transformer_forward.1} parent=191 // loop_footer
              %s2464 = sadd.s32 1, %s2460
            $region198: #{transformer_forward.1} parent=191 // loop_footer_branch
              %2459 = sbr.rel target = $region194
            $region199: #{transformer_forward.1} parent=191 // loop_exit
              _
          $region192: #{transformer_forward.1} parent=183 // pred_fallthru
            _
          // Predicated region
          $region215: #{transformer_forward.1} parent=183 // pred_check
            _
          $region216: #{transformer_forward.1} parent=183 // pred_check_branch
            %2492 = sbr.rel (0) target = $region218
          $region217: #{transformer_forward.1} parent=183 // pred_region
            %2493 = vsyncadd [#allocation6], 256
          $region218: #{transformer_forward.1} parent=183 // pred_fallthru
            _
        $region184: #{transformer_forward.1} parent=175 // pred_fallthru
          _
        %p2494 = scmp.lt.s32.totalorder %s100, 2
        // Predicated region
        $region219: #{transformer_forward.1} parent=175 // pred_check
          %p2495 = pneg %p2494
        $region220: #{transformer_forward.1} parent=175 // pred_check_branch
          %2497 = sbr.rel (%p2495) target = $region222
        $region221: #{transformer_forward.1} parent=175 // pred_region
          %v2498 = vld [vmem:[#allocation2] sm:$0xff]
          %v2499 = vpack.c.bf16 %v2498, %v2498
          %v2500 = vld [vmem:[%s2062] sm:$0xf]
          %v2501 = vld [vmem:[%s2062 + $0x4] sm:$0xf]
          %v2502 = vld [vmem:[%s2062 + $0x8] sm:$0xf]
          %v2503 = vld [vmem:[%s2062 + $0xc] sm:$0xf]
          %v2504 = vld [vmem:[%s2069] sm:$0x1]
          %v2506 = vlaneseq
          %v2507 = vshrl.u32 %v2506, 7
          %v2508 = vsub.s32 0, %v2507
          %v2509 = vrot.slane %v2504, %v2508
          %v2515 = vunpack.c.l.b16 %v2500
          %v2516 = vunpack.c.l.b16 %v2501
          %v2517 = vunpack.c.l.b16 %v2502
          %v2518 = vunpack.c.l.b16 %v2503
          %v2519 = vpack.c.b16 %v2516, %v2515
          %v2520 = vpack.c.b16 %v2518, %v2517
          %vm2523 = vcmask 261120
          %v2525 = vsel %vm2523, %v2499, 0
          %2527 = vmatprep.subr.bf16.mxu0 0
          %2528 = vmatpush1.bf16.msra.mxu0 %v2519
          %2529 = vmatprep.subr.bf16.mxu0 0
          %2530 = vmatpush1.bf16.msra.mxu0 %v2520
          %2531 = vmatprep.subr.bf16.mxu0 0
          %2532 = vmatpush1.bf16.msra.mxu0 0
          %2533 = vmatprep.subr.bf16.mxu0 0
          %2534 = vmatpush1.bf16.msra.mxu0 0
          %2535 = vmatprep.subr.bf16.mxu0 0
          %2536 = vmatpush1.bf16.msra.mxu0 0
          %2537 = vmatprep.subr.bf16.mxu0 0
          %2538 = vmatpush1.bf16.msra.mxu0 0
          %2539 = vmatprep.subr.bf16.mxu0 0
          %2540 = vmatpush1.bf16.msra.mxu0 0
          %2541 = vmatprep.subr.bf16.mxu0 0
          %2542 = vmatpush1.bf16.msra.mxu0 0
          %2543 = vmatprep.subr.bf16.mxu0 0
          %2544 = vmatpush1.bf16.msra.mxu0 0
          %2545 = vmatprep.subr.bf16.mxu0 0
          %2546 = vmatpush1.bf16.msra.mxu0 0
          %2547 = vmatprep.subr.bf16.mxu0 0
          %2548 = vmatpush1.bf16.msra.mxu0 0
          %2549 = vmatprep.subr.bf16.mxu0 0
          %2550 = vmatpush1.bf16.msra.mxu0 0
          %2551 = vmatprep.subr.bf16.mxu0 0
          %2552 = vmatpush1.bf16.msra.mxu0 0
          %2553 = vmatprep.subr.bf16.mxu0 0
          %2554 = vmatpush1.bf16.msra.mxu0 0
          %2555 = vmatprep.subr.bf16.mxu0 0
          %2556 = vmatpush1.bf16.msra.mxu0 0
          %2557 = vmatprep.subr.bf16.mxu0 0
          %2558 = vmatpush1.bf16.msra.mxu0 0
          %2559 = vmatprep.mubr.bf16.mxu0 0
          %2560 = vmatmul.mubr.bf16.gmra.mrb[0].mxu0 %v2525
          %v2561 = vpop.f32.mrb[0].mxu0
          %v2562 = vadd.f32 %v2509, %v2561
          %v2563 = vpop.f32.mrb[0].mxu0
          %v2564 = vpop.f32.mrb[0].mxu0
          %v2565 = vpop.f32.mrb[0].mxu0
          %2566 = vdwg.mxu0
          %v2567 = vld [vmem:[%s2051] sm:$0x1]
          %v2568 = vld [vmem:[%s2078] sm:$0xf]
          %v2569 = vld [vmem:[%s2078 + $0x4] sm:$0xf]
          %v2570 = vld [vmem:[%s2078 + $0x8] sm:$0xf]
          %v2571 = vld [vmem:[%s2078 + $0xc] sm:$0xf]
          %v2572 = vld [vmem:[%s2085] sm:$0x1]
          %v2573 = vmul.f32 %v2562, 0.35355338
          %v2574 = vpack.c.bf16 %v2573, %v2573
          %2576 = vrot.lane.b32.xlu0 %v2562, 96
          %v2577 = vpop.permute.xlu0 %2576
          %2579 = vxpose.xlu0.b32.start [1/16] %v2577, 128
          %2580 = vxpose.xlu0.b32.cont [2/16] 0.0, 128
          %2581 = vxpose.xlu0.b32.cont [3/16] 0.0, 128
          %2582 = vxpose.xlu0.b32.cont [4/16] 0.0, 128
          %2583 = vxpose.xlu0.b32.cont [5/16] 0.0, 128
          %2584 = vxpose.xlu0.b32.cont [6/16] 0.0, 128
          %2585 = vxpose.xlu0.b32.cont [7/16] 0.0, 128
          %2586 = vxpose.xlu0.b32.cont [8/16] 0.0, 128
          %2587 = vxpose.xlu0.b32.cont [9/16] 0.0, 128
          %2588 = vxpose.xlu0.b32.cont [10/16] 0.0, 128
          %2589 = vxpose.xlu0.b32.cont [11/16] 0.0, 128
          %2590 = vxpose.xlu0.b32.cont [12/16] 0.0, 128
          %2591 = vxpose.xlu0.b32.cont [13/16] 0.0, 128
          %2592 = vxpose.xlu0.b32.cont [14/16] 0.0, 128
          %2593 = vxpose.xlu0.b32.cont [15/16] 0.0, 128
          %2594 = vxpose.xlu0.b32.end [16/16] 0.0, 128
          %v2595 = vpop.trf.xlu0
          %v2596 = vpop.trf.xlu0
          %v2597 = vpop.trf.xlu0
          %v2598 = vpop.trf.xlu0
          %v2599 = vpop.trf.xlu0
          %v2600 = vpop.trf.xlu0
          %v2601 = vpop.trf.xlu0
          %v2602 = vpop.trf.xlu0
          %v2603 = vpop.trf.xlu0
          %v2604 = vpop.trf.xlu0
          %v2605 = vpop.trf.xlu0
          %v2606 = vpop.trf.xlu0
          %v2607 = vpop.trf.xlu0
          %v2608 = vpop.trf.xlu0
          %v2609 = vpop.trf.xlu0
          %v2610 = vpop.trf.xlu0
          %v2611 = vpack.c.bf16 %v2596, %v2595
          %v2612 = vpack.c.bf16 %v2598, %v2597
          %v2613 = vpack.c.bf16 %v2562, %v2562
          %v2615 = vlaneseq
          %v2616 = vshrl.u32 %v2615, 7
          %v2617 = vsub.s32 0, %v2616
          %v2618 = vrot.slane %v2567, %v2617
          %vm2620 = vcmask 64512
          %v2622 = vsel %vm2620, %v2574, 0
          %vm2624 = vcmask 1043456
          %v2626 = vsel %vm2624, %v2611, 0
          %2628 = vmatprep.subr.bf16.mxu0 0
          %2629 = vmatpush1.bf16.msra.mxu0 %v2626
          %2630 = vmatprep.subr.bf16.mxu0 0
          %2631 = vmatpush1.bf16.msra.mxu0 0
          %2632 = vmatprep.subr.bf16.mxu0 0
          %2633 = vmatpush1.bf16.msra.mxu0 0
          %2634 = vmatprep.subr.bf16.mxu0 0
          %2635 = vmatpush1.bf16.msra.mxu0 0
          %2636 = vmatprep.subr.bf16.mxu0 0
          %2637 = vmatpush1.bf16.msra.mxu0 0
          %2638 = vmatprep.subr.bf16.mxu0 0
          %2639 = vmatpush1.bf16.msra.mxu0 0
          %2640 = vmatprep.subr.bf16.mxu0 0
          %2641 = vmatpush1.bf16.msra.mxu0 0
          %2642 = vmatprep.subr.bf16.mxu0 0
          %2643 = vmatpush1.bf16.msra.mxu0 0
          %2644 = vmatprep.subr.bf16.mxu0 0
          %2645 = vmatpush1.bf16.msra.mxu0 0
          %2646 = vmatprep.subr.bf16.mxu0 0
          %2647 = vmatpush1.bf16.msra.mxu0 0
          %2648 = vmatprep.subr.bf16.mxu0 0
          %2649 = vmatpush1.bf16.msra.mxu0 0
          %2650 = vmatprep.subr.bf16.mxu0 0
          %2651 = vmatpush1.bf16.msra.mxu0 0
          %2652 = vmatprep.subr.bf16.mxu0 0
          %2653 = vmatpush1.bf16.msra.mxu0 0
          %2654 = vmatprep.subr.bf16.mxu0 0
          %2655 = vmatpush1.bf16.msra.mxu0 0
          %2656 = vmatprep.subr.bf16.mxu0 0
          %2657 = vmatpush1.bf16.msra.mxu0 0
          %2658 = vmatprep.subr.bf16.mxu0 0
          %2659 = vmatpush1.bf16.msra.mxu0 0
          %2660 = vmatprep.mubr.bf16.mxu0 0
          %2661 = vmatmul.mubr.bf16.gmra.mrb[0].mxu0 %v2622
          %v2662 = vpop.f32.mrb[0].mxu0
          %v2663 = vadd.f32 %v2618, %v2662
          %v2664 = vpop.f32.mrb[0].mxu0
          %v2665 = vpop.f32.mrb[0].mxu0
          %v2666 = vpop.f32.mrb[0].mxu0
          %2667 = vdwg.mxu0
          %v2668 = vsel %vm2620, %v2663, -inf
          %2669 = vmax.xlane.f32.xlu0 %v2668
          %v2670 = vpop.xlane.xlu0 %2669
          %v2671 = vsub.f32 %v2663, %v2670
          %v2672 = vmul.f32 %v2671, 1.442695
          %v2673 = vpow.pop %v2672
          %v2674 = vsel %vm2620, %v2673, 0.0
          %2675 = vadd.xlane.f32.xlu0 %v2674
          %v2676 = vpop.xlane.xlu0 %2675
          %v2677 = vrcp.pop %v2676
          %v2678 = vmul.f32 %v2673, %v2677
          %v2679 = vpack.c.bf16 %v2678, %v2678
          %2681 = vrot.lane.b32.xlu0 %v2613, 64
          %v2682 = vpop.permute.xlu0 %2681
          %v2684 = vsel %vm2620, %v2679, 0
          %v2687 = vsel %vm2624, %v2682, 0
          %2689 = vmatprep.subr.bf16.mxu0 0
          %2690 = vmatpush1.bf16.msra.mxu0 %v2687
          %2691 = vmatprep.subr.bf16.mxu0 0
          %2692 = vmatpush1.bf16.msra.mxu0 0
          %2693 = vmatprep.subr.bf16.mxu0 0
          %2694 = vmatpush1.bf16.msra.mxu0 0
          %2695 = vmatprep.subr.bf16.mxu0 0
          %2696 = vmatpush1.bf16.msra.mxu0 0
          %2697 = vmatprep.subr.bf16.mxu0 0
          %2698 = vmatpush1.bf16.msra.mxu0 0
          %2699 = vmatprep.subr.bf16.mxu0 0
          %2700 = vmatpush1.bf16.msra.mxu0 0
          %2701 = vmatprep.subr.bf16.mxu0 0
          %2702 = vmatpush1.bf16.msra.mxu0 0
          %2703 = vmatprep.subr.bf16.mxu0 0
          %2704 = vmatpush1.bf16.msra.mxu0 0
          %2705 = vmatprep.subr.bf16.mxu0 0
          %2706 = vmatpush1.bf16.msra.mxu0 0
          %2707 = vmatprep.subr.bf16.mxu0 0
          %2708 = vmatpush1.bf16.msra.mxu0 0
          %2709 = vmatprep.subr.bf16.mxu0 0
          %2710 = vmatpush1.bf16.msra.mxu0 0
          %2711 = vmatprep.subr.bf16.mxu0 0
          %2712 = vmatpush1.bf16.msra.mxu0 0
          %2713 = vmatprep.subr.bf16.mxu0 0
          %2714 = vmatpush1.bf16.msra.mxu0 0
          %2715 = vmatprep.subr.bf16.mxu0 0
          %2716 = vmatpush1.bf16.msra.mxu0 0
          %2717 = vmatprep.subr.bf16.mxu0 0
          %2718 = vmatpush1.bf16.msra.mxu0 0
          %2719 = vmatprep.subr.bf16.mxu0 0
          %2720 = vmatpush1.bf16.msra.mxu0 0
          %2721 = vmatprep.mubr.bf16.mxu0 0
          %2722 = vmatmul.mubr.bf16.gmra.mrb[0].mxu0 %v2684
          %v2723 = vpop.f32.mrb[0].mxu0
          %v2724 = vadd.f32 0.0, %v2723
          %v2725 = vpop.f32.mrb[0].mxu0
          %v2726 = vpop.f32.mrb[0].mxu0
          %v2727 = vpop.f32.mrb[0].mxu0
          %2728 = vdwg.mxu0
          %2730 = vrot.lane.b32.xlu0 %v2574, 120
          %v2731 = vpop.permute.xlu0 %2730
          %v2733 = vrot.slane %v2611, 4
          %v2735 = vsel %vm2620, %v2731, 0
          %v2738 = vsel %vm2624, %v2733, 0
          %2740 = vmatprep.subr.bf16.mxu0 0
          %2741 = vmatpush1.bf16.msra.mxu0 %v2738
          %2742 = vmatprep.subr.bf16.mxu0 0
          %2743 = vmatpush1.bf16.msra.mxu0 0
          %2744 = vmatprep.subr.bf16.mxu0 0
          %2745 = vmatpush1.bf16.msra.mxu0 0
          %2746 = vmatprep.subr.bf16.mxu0 0
          %2747 = vmatpush1.bf16.msra.mxu0 0
          %2748 = vmatprep.subr.bf16.mxu0 0
          %2749 = vmatpush1.bf16.msra.mxu0 0
          %2750 = vmatprep.subr.bf16.mxu0 0
          %2751 = vmatpush1.bf16.msra.mxu0 0
          %2752 = vmatprep.subr.bf16.mxu0 0
          %2753 = vmatpush1.bf16.msra.mxu0 0
          %2754 = vmatprep.subr.bf16.mxu0 0
          %2755 = vmatpush1.bf16.msra.mxu0 0
          %2756 = vmatprep.subr.bf16.mxu0 0
          %2757 = vmatpush1.bf16.msra.mxu0 0
          %2758 = vmatprep.subr.bf16.mxu0 0
          %2759 = vmatpush1.bf16.msra.mxu0 0
          %2760 = vmatprep.subr.bf16.mxu0 0
          %2761 = vmatpush1.bf16.msra.mxu0 0
          %2762 = vmatprep.subr.bf16.mxu0 0
          %2763 = vmatpush1.bf16.msra.mxu0 0
          %2764 = vmatprep.subr.bf16.mxu0 0
          %2765 = vmatpush1.bf16.msra.mxu0 0
          %2766 = vmatprep.subr.bf16.mxu0 0
          %2767 = vmatpush1.bf16.msra.mxu0 0
          %2768 = vmatprep.subr.bf16.mxu0 0
          %2769 = vmatpush1.bf16.msra.mxu0 0
          %2770 = vmatprep.subr.bf16.mxu0 0
          %2771 = vmatpush1.bf16.msra.mxu0 0
          %2772 = vmatprep.mubr.bf16.mxu0 0
          %2773 = vmatmul.mubr.bf16.gmra.mrb[0].mxu0 %v2735
          %v2774 = vpop.f32.mrb[0].mxu0
          %v2775 = vadd.f32 %v2618, %v2774
          %v2776 = vpop.f32.mrb[0].mxu0
          %v2777 = vpop.f32.mrb[0].mxu0
          %v2778 = vpop.f32.mrb[0].mxu0
          %2779 = vdwg.mxu0
          %v2780 = vsel %vm2620, %v2775, -inf
          %2781 = vmax.xlane.f32.xlu0 %v2780
          %v2782 = vpop.xlane.xlu0 %2781
          %v2783 = vsub.f32 %v2775, %v2782
          %v2784 = vmul.f32 %v2783, 1.442695
          %v2785 = vpow.pop %v2784
          %v2786 = vsel %vm2620, %v2785, 0.0
          %2787 = vadd.xlane.f32.xlu0 %v2786
          %v2788 = vpop.xlane.xlu0 %2787
          %v2789 = vrcp.pop %v2788
          %v2790 = vmul.f32 %v2785, %v2789
          %v2791 = vpack.c.bf16 %v2790, %v2790
          %2792 = vrot.lane.b32.xlu0 %v2613, 56
          %v2793 = vpop.permute.xlu0 %2792
          %v2795 = vsel %vm2620, %v2791, 0
          %v2798 = vsel %vm2624, %v2793, 0
          %2800 = vmatprep.subr.bf16.mxu0 0
          %2801 = vmatpush1.bf16.msra.mxu0 %v2798
          %2802 = vmatprep.subr.bf16.mxu0 0
          %2803 = vmatpush1.bf16.msra.mxu0 0
          %2804 = vmatprep.subr.bf16.mxu0 0
          %2805 = vmatpush1.bf16.msra.mxu0 0
          %2806 = vmatprep.subr.bf16.mxu0 0
          %2807 = vmatpush1.bf16.msra.mxu0 0
          %2808 = vmatprep.subr.bf16.mxu0 0
          %2809 = vmatpush1.bf16.msra.mxu0 0
          %2810 = vmatprep.subr.bf16.mxu0 0
          %2811 = vmatpush1.bf16.msra.mxu0 0
          %2812 = vmatprep.subr.bf16.mxu0 0
          %2813 = vmatpush1.bf16.msra.mxu0 0
          %2814 = vmatprep.subr.bf16.mxu0 0
          %2815 = vmatpush1.bf16.msra.mxu0 0
          %2816 = vmatprep.subr.bf16.mxu0 0
          %2817 = vmatpush1.bf16.msra.mxu0 0
          %2818 = vmatprep.subr.bf16.mxu0 0
          %2819 = vmatpush1.bf16.msra.mxu0 0
          %2820 = vmatprep.subr.bf16.mxu0 0
          %2821 = vmatpush1.bf16.msra.mxu0 0
          %2822 = vmatprep.subr.bf16.mxu0 0
          %2823 = vmatpush1.bf16.msra.mxu0 0
          %2824 = vmatprep.subr.bf16.mxu0 0
          %2825 = vmatpush1.bf16.msra.mxu0 0
          %2826 = vmatprep.subr.bf16.mxu0 0
          %2827 = vmatpush1.bf16.msra.mxu0 0
          %2828 = vmatprep.subr.bf16.mxu0 0
          %2829 = vmatpush1.bf16.msra.mxu0 0
          %2830 = vmatprep.subr.bf16.mxu0 0
          %2831 = vmatpush1.bf16.msra.mxu0 0
          %2832 = vmatprep.mubr.bf16.mxu0 0
          %2833 = vmatmul.mubr.bf16.gmra.mrb[0].mxu0 %v2795
          %v2834 = vpop.f32.mrb[0].mxu0
          %v2835 = vadd.f32 0.0, %v2834
          %v2836 = vpop.f32.mrb[0].mxu0
          %v2837 = vpop.f32.mrb[0].mxu0
          %v2838 = vpop.f32.mrb[0].mxu0
          %2839 = vdwg.mxu0
          %2840 = vrot.lane.b32.xlu0 %v2574, 112
          %v2841 = vpop.permute.xlu0 %2840
          %v2843 = vsel %vm2620, %v2841, 0
          %v2846 = vsel %vm2624, %v2612, 0
          %2848 = vmatprep.subr.bf16.mxu0 0
          %2849 = vmatpush1.bf16.msra.mxu0 %v2846
          %2850 = vmatprep.subr.bf16.mxu0 0
          %2851 = vmatpush1.bf16.msra.mxu0 0
          %2852 = vmatprep.subr.bf16.mxu0 0
          %2853 = vmatpush1.bf16.msra.mxu0 0
          %2854 = vmatprep.subr.bf16.mxu0 0
          %2855 = vmatpush1.bf16.msra.mxu0 0
          %2856 = vmatprep.subr.bf16.mxu0 0
          %2857 = vmatpush1.bf16.msra.mxu0 0
          %2858 = vmatprep.subr.bf16.mxu0 0
          %2859 = vmatpush1.bf16.msra.mxu0 0
          %2860 = vmatprep.subr.bf16.mxu0 0
          %2861 = vmatpush1.bf16.msra.mxu0 0
          %2862 = vmatprep.subr.bf16.mxu0 0
          %2863 = vmatpush1.bf16.msra.mxu0 0
          %2864 = vmatprep.subr.bf16.mxu0 0
          %2865 = vmatpush1.bf16.msra.mxu0 0
          %2866 = vmatprep.subr.bf16.mxu0 0
          %2867 = vmatpush1.bf16.msra.mxu0 0
          %2868 = vmatprep.subr.bf16.mxu0 0
          %2869 = vmatpush1.bf16.msra.mxu0 0
          %2870 = vmatprep.subr.bf16.mxu0 0
          %2871 = vmatpush1.bf16.msra.mxu0 0
          %2872 = vmatprep.subr.bf16.mxu0 0
          %2873 = vmatpush1.bf16.msra.mxu0 0
          %2874 = vmatprep.subr.bf16.mxu0 0
          %2875 = vmatpush1.bf16.msra.mxu0 0
          %2876 = vmatprep.subr.bf16.mxu0 0
          %2877 = vmatpush1.bf16.msra.mxu0 0
          %2878 = vmatprep.subr.bf16.mxu0 0
          %2879 = vmatpush1.bf16.msra.mxu0 0
          %2880 = vmatprep.mubr.bf16.mxu0 0
          %2881 = vmatmul.mubr.bf16.gmra.mrb[0].mxu0 %v2843
          %v2882 = vpop.f32.mrb[0].mxu0
          %v2883 = vadd.f32 %v2618, %v2882
          %v2884 = vpop.f32.mrb[0].mxu0
          %v2885 = vpop.f32.mrb[0].mxu0
          %v2886 = vpop.f32.mrb[0].mxu0
          %2887 = vdwg.mxu0
          %v2888 = vsel %vm2620, %v2883, -inf
          %2889 = vmax.xlane.f32.xlu0 %v2888
          %v2890 = vpop.xlane.xlu0 %2889
          %v2891 = vsub.f32 %v2883, %v2890
          %v2892 = vmul.f32 %v2891, 1.442695
          %v2893 = vpow.pop %v2892
          %v2894 = vsel %vm2620, %v2893, 0.0
          %2895 = vadd.xlane.f32.xlu0 %v2894
          %v2896 = vpop.xlane.xlu0 %2895
          %v2897 = vrcp.pop %v2896
          %v2898 = vmul.f32 %v2893, %v2897
          %v2899 = vpack.c.bf16 %v2898, %v2898
          %2900 = vrot.lane.b32.xlu0 %v2613, 48
          %v2901 = vpop.permute.xlu0 %2900
          %v2903 = vsel %vm2620, %v2899, 0
          %v2906 = vsel %vm2624, %v2901, 0
          %2908 = vmatprep.subr.bf16.mxu0 0
          %2909 = vmatpush1.bf16.msra.mxu0 %v2906
          %2910 = vmatprep.subr.bf16.mxu0 0
          %2911 = vmatpush1.bf16.msra.mxu0 0
          %2912 = vmatprep.subr.bf16.mxu0 0
          %2913 = vmatpush1.bf16.msra.mxu0 0
          %2914 = vmatprep.subr.bf16.mxu0 0
          %2915 = vmatpush1.bf16.msra.mxu0 0
          %2916 = vmatprep.subr.bf16.mxu0 0
          %2917 = vmatpush1.bf16.msra.mxu0 0
          %2918 = vmatprep.subr.bf16.mxu0 0
          %2919 = vmatpush1.bf16.msra.mxu0 0
          %2920 = vmatprep.subr.bf16.mxu0 0
          %2921 = vmatpush1.bf16.msra.mxu0 0
          %2922 = vmatprep.subr.bf16.mxu0 0
          %2923 = vmatpush1.bf16.msra.mxu0 0
          %2924 = vmatprep.subr.bf16.mxu0 0
          %2925 = vmatpush1.bf16.msra.mxu0 0
          %2926 = vmatprep.subr.bf16.mxu0 0
          %2927 = vmatpush1.bf16.msra.mxu0 0
          %2928 = vmatprep.subr.bf16.mxu0 0
          %2929 = vmatpush1.bf16.msra.mxu0 0
          %2930 = vmatprep.subr.bf16.mxu0 0
          %2931 = vmatpush1.bf16.msra.mxu0 0
          %2932 = vmatprep.subr.bf16.mxu0 0
          %2933 = vmatpush1.bf16.msra.mxu0 0
          %2934 = vmatprep.subr.bf16.mxu0 0
          %2935 = vmatpush1.bf16.msra.mxu0 0
          %2936 = vmatprep.subr.bf16.mxu0 0
          %2937 = vmatpush1.bf16.msra.mxu0 0
          %2938 = vmatprep.subr.bf16.mxu0 0
          %2939 = vmatpush1.bf16.msra.mxu0 0
          %2940 = vmatprep.mubr.bf16.mxu0 0
          %2941 = vmatmul.mubr.bf16.gmra.mrb[0].mxu0 %v2903
          %v2942 = vpop.f32.mrb[0].mxu0
          %v2943 = vadd.f32 0.0, %v2942
          %v2944 = vpop.f32.mrb[0].mxu0
          %v2945 = vpop.f32.mrb[0].mxu0
          %v2946 = vpop.f32.mrb[0].mxu0
          %2947 = vdwg.mxu0
          %2948 = vrot.lane.b32.xlu0 %v2574, 104
          %v2949 = vpop.permute.xlu0 %2948
          %v2951 = vrot.slane %v2612, 4
          %v2953 = vsel %vm2620, %v2949, 0
          %v2956 = vsel %vm2624, %v2951, 0
          %2958 = vmatprep.subr.bf16.mxu0 0
          %2959 = vmatpush1.bf16.msra.mxu0 %v2956
          %2960 = vmatprep.subr.bf16.mxu0 0
          %2961 = vmatpush1.bf16.msra.mxu0 0
          %2962 = vmatprep.subr.bf16.mxu0 0
          %2963 = vmatpush1.bf16.msra.mxu0 0
          %2964 = vmatprep.subr.bf16.mxu0 0
          %2965 = vmatpush1.bf16.msra.mxu0 0
          %2966 = vmatprep.subr.bf16.mxu0 0
          %2967 = vmatpush1.bf16.msra.mxu0 0
          %2968 = vmatprep.subr.bf16.mxu0 0
          %2969 = vmatpush1.bf16.msra.mxu0 0
          %2970 = vmatprep.subr.bf16.mxu0 0
          %2971 = vmatpush1.bf16.msra.mxu0 0
          %2972 = vmatprep.subr.bf16.mxu0 0
          %2973 = vmatpush1.bf16.msra.mxu0 0
          %2974 = vmatprep.subr.bf16.mxu0 0
          %2975 = vmatpush1.bf16.msra.mxu0 0
          %2976 = vmatprep.subr.bf16.mxu0 0
          %2977 = vmatpush1.bf16.msra.mxu0 0
          %2978 = vmatprep.subr.bf16.mxu0 0
          %2979 = vmatpush1.bf16.msra.mxu0 0
          %2980 = vmatprep.subr.bf16.mxu0 0
          %2981 = vmatpush1.bf16.msra.mxu0 0
          %2982 = vmatprep.subr.bf16.mxu0 0
          %2983 = vmatpush1.bf16.msra.mxu0 0
          %2984 = vmatprep.subr.bf16.mxu0 0
          %2985 = vmatpush1.bf16.msra.mxu0 0
          %2986 = vmatprep.subr.bf16.mxu0 0
          %2987 = vmatpush1.bf16.msra.mxu0 0
          %2988 = vmatprep.subr.bf16.mxu0 0
          %2989 = vmatpush1.bf16.msra.mxu0 0
          %2990 = vmatprep.mubr.bf16.mxu0 0
          %2991 = vmatmul.mubr.bf16.gmra.mrb[0].mxu0 %v2953
          %v2992 = vpop.f32.mrb[0].mxu0
          %v2993 = vadd.f32 %v2618, %v2992
          %v2994 = vpop.f32.mrb[0].mxu0
          %v2995 = vpop.f32.mrb[0].mxu0
          %v2996 = vpop.f32.mrb[0].mxu0
          %2997 = vdwg.mxu0
          %v2998 = vsel %vm2620, %v2993, -inf
          %2999 = vmax.xlane.f32.xlu0 %v2998
          %v3000 = vpop.xlane.xlu0 %2999
          %v3001 = vsub.f32 %v2993, %v3000
          %v3002 = vmul.f32 %v3001, 1.442695
          %v3003 = vpow.pop %v3002
          %v3004 = vsel %vm2620, %v3003, 0.0
          %3005 = vadd.xlane.f32.xlu0 %v3004
          %v3006 = vpop.xlane.xlu0 %3005
          %v3007 = vrcp.pop %v3006
          %v3008 = vmul.f32 %v3003, %v3007
          %v3009 = vpack.c.bf16 %v3008, %v3008
          %3010 = vrot.lane.b32.xlu0 %v2613, 40
          %v3011 = vpop.permute.xlu0 %3010
          %v3013 = vsel %vm2620, %v3009, 0
          %v3016 = vsel %vm2624, %v3011, 0
          %3018 = vmatprep.subr.bf16.mxu0 0
          %3019 = vmatpush1.bf16.msra.mxu0 %v3016
          %3020 = vmatprep.subr.bf16.mxu0 0
          %3021 = vmatpush1.bf16.msra.mxu0 0
          %3022 = vmatprep.subr.bf16.mxu0 0
          %3023 = vmatpush1.bf16.msra.mxu0 0
          %3024 = vmatprep.subr.bf16.mxu0 0
          %3025 = vmatpush1.bf16.msra.mxu0 0
          %3026 = vmatprep.subr.bf16.mxu0 0
          %3027 = vmatpush1.bf16.msra.mxu0 0
          %3028 = vmatprep.subr.bf16.mxu0 0
          %3029 = vmatpush1.bf16.msra.mxu0 0
          %3030 = vmatprep.subr.bf16.mxu0 0
          %3031 = vmatpush1.bf16.msra.mxu0 0
          %3032 = vmatprep.subr.bf16.mxu0 0
          %3033 = vmatpush1.bf16.msra.mxu0 0
          %3034 = vmatprep.subr.bf16.mxu0 0
          %3035 = vmatpush1.bf16.msra.mxu0 0
          %3036 = vmatprep.subr.bf16.mxu0 0
          %3037 = vmatpush1.bf16.msra.mxu0 0
          %3038 = vmatprep.subr.bf16.mxu0 0
          %3039 = vmatpush1.bf16.msra.mxu0 0
          %3040 = vmatprep.subr.bf16.mxu0 0
          %3041 = vmatpush1.bf16.msra.mxu0 0
          %3042 = vmatprep.subr.bf16.mxu0 0
          %3043 = vmatpush1.bf16.msra.mxu0 0
          %3044 = vmatprep.subr.bf16.mxu0 0
          %3045 = vmatpush1.bf16.msra.mxu0 0
          %3046 = vmatprep.subr.bf16.mxu0 0
          %3047 = vmatpush1.bf16.msra.mxu0 0
          %3048 = vmatprep.subr.bf16.mxu0 0
          %3049 = vmatpush1.bf16.msra.mxu0 0
          %3050 = vmatprep.mubr.bf16.mxu0 0
          %3051 = vmatmul.mubr.bf16.gmra.mrb[0].mxu0 %v3013
          %v3052 = vpop.f32.mrb[0].mxu0
          %v3053 = vadd.f32 0.0, %v3052
          %v3054 = vpop.f32.mrb[0].mxu0
          %v3055 = vpop.f32.mrb[0].mxu0
          %v3056 = vpop.f32.mrb[0].mxu0
          %3057 = vdwg.mxu0
          %3059 = vrot.lane.b32.xlu0 %v2835, 8
          %v3060 = vpop.permute.xlu0 %3059
          %3063 = vrot.lane.b32.xlu0 %v2943, 16
          %v3064 = vpop.permute.xlu0 %3063
          %3067 = vrot.lane.b32.xlu0 %v3053, 24
          %v3068 = vpop.permute.xlu0 %3067
          %v3070 = vsel %vm2620, %v2724, %v3060
          %vm3071 = vcmask 130048
          %v3072 = vsel %vm3071, %v3070, %v3064
          %vm3073 = vcmask 195584
          %v3074 = vsel %vm3073, %v3072, %v3068
          %v3075 = vpack.c.bf16 %v3074, %v3074
          %v3077 = vlaneseq
          %v3078 = vshrl.u32 %v3077, 7
          %v3079 = vsub.s32 0, %v3078
          %v3080 = vrot.slane %v2572, %v3079
          %v3086 = vunpack.c.l.b16 %v2568
          %v3087 = vunpack.c.l.b16 %v2569
          %v3088 = vunpack.c.l.b16 %v2570
          %v3089 = vunpack.c.l.b16 %v2571
          %v3090 = vpack.c.b16 %v3087, %v3086
          %v3091 = vpack.c.b16 %v3089, %v3088
          %v3095 = vsel %vm2523, %v3075, 0
          %3097 = vmatprep.subr.bf16.mxu0 0
          %3098 = vmatpush1.bf16.msra.mxu0 %v3090
          %3099 = vmatprep.subr.bf16.mxu0 0
          %3100 = vmatpush1.bf16.msra.mxu0 %v3091
          %3101 = vmatprep.subr.bf16.mxu0 0
          %3102 = vmatpush1.bf16.msra.mxu0 0
          %3103 = vmatprep.subr.bf16.mxu0 0
          %3104 = vmatpush1.bf16.msra.mxu0 0
          %3105 = vmatprep.subr.bf16.mxu0 0
          %3106 = vmatpush1.bf16.msra.mxu0 0
          %3107 = vmatprep.subr.bf16.mxu0 0
          %3108 = vmatpush1.bf16.msra.mxu0 0
          %3109 = vmatprep.subr.bf16.mxu0 0
          %3110 = vmatpush1.bf16.msra.mxu0 0
          %3111 = vmatprep.subr.bf16.mxu0 0
          %3112 = vmatpush1.bf16.msra.mxu0 0
          %3113 = vmatprep.subr.bf16.mxu0 0
          %3114 = vmatpush1.bf16.msra.mxu0 0
          %3115 = vmatprep.subr.bf16.mxu0 0
          %3116 = vmatpush1.bf16.msra.mxu0 0
          %3117 = vmatprep.subr.bf16.mxu0 0
          %3118 = vmatpush1.bf16.msra.mxu0 0
          %3119 = vmatprep.subr.bf16.mxu0 0
          %3120 = vmatpush1.bf16.msra.mxu0 0
          %3121 = vmatprep.subr.bf16.mxu0 0
          %3122 = vmatpush1.bf16.msra.mxu0 0
          %3123 = vmatprep.subr.bf16.mxu0 0
          %3124 = vmatpush1.bf16.msra.mxu0 0
          %3125 = vmatprep.subr.bf16.mxu0 0
          %3126 = vmatpush1.bf16.msra.mxu0 0
          %3127 = vmatprep.subr.bf16.mxu0 0
          %3128 = vmatpush1.bf16.msra.mxu0 0
          %3129 = vmatprep.mubr.bf16.mxu0 0
          %3130 = vmatmul.mubr.bf16.gmra.mrb[0].mxu0 %v3095
          %v3131 = vpop.f32.mrb[0].mxu0
          %v3132 = vadd.f32 %v3080, %v3131
          %v3133 = vpop.f32.mrb[0].mxu0
          %v3134 = vpop.f32.mrb[0].mxu0
          %v3135 = vpop.f32.mrb[0].mxu0
          %3136 = vdwg.mxu0
          %v3137 = vadd.f32 %v2498, %v3132
          %v3138 = vld [vmem:[%s2092] sm:$0x1]
          %v3139 = vld [vmem:[%s2099] sm:$0x1]
          %v3140 = vsel %vm2523, %v3137, 0.0
          %3141 = vadd.xlane.f32.xlu0 %v3140
          %v3142 = vpop.xlane.xlu0 %3141
          %v3143 = vrcp.pop 32.0
          %v3144 = vmul.f32 %v3142, %v3143
          %v3145 = vsub.f32 %v3137, %v3144
          %v3146 = vmul.f32 %v3145, %v3145
          %v3147 = vsel %vm2523, %v3146, 0.0
          %3148 = vadd.xlane.f32.xlu0 %v3147
          %v3149 = vpop.xlane.xlu0 %3148
          %v3150 = vmul.f32 %v3149, %v3143
          %v3151 = vadd.f32 %v3150, 1e-05
          %v3152 = vrsqrt.pop %v3151
          %v3153 = vmul.f32 %v3145, %v3152
          %v3155 = vlaneseq
          %v3156 = vshrl.u32 %v3155, 7
          %v3157 = vsub.s32 0, %v3156
          %v3158 = vrot.slane %v3138, %v3157
          %v3160 = vmul.f32 %v3153, %v3158
          %v3162 = vlaneseq
          %v3163 = vshrl.u32 %v3162, 7
          %v3164 = vsub.s32 0, %v3163
          %v3165 = vrot.slane %v3139, %v3164
          %v3167 = vadd.f32 %v3160, %v3165
          %v3168 = vld [vmem:[%s2108] sm:$0xf]
          %v3169 = vld [vmem:[%s2108 + $0x4] sm:$0xf]
          %v3170 = vld [vmem:[%s2108 + $0x8] sm:$0xf]
          %v3171 = vld [vmem:[%s2108 + $0xc] sm:$0xf]
          %v3172 = vld [vmem:[%s2115] sm:$0x1]
          %v3173 = vld [vmem:[%s2124] sm:$0xf]
          %v3174 = vld [vmem:[%s2124 + $0x4] sm:$0xf]
          %v3175 = vld [vmem:[%s2124 + $0x8] sm:$0xf]
          %v3176 = vld [vmem:[%s2124 + $0xc] sm:$0xf]
          %v3177 = vld [vmem:[%s2124 + $0x10] sm:$0xf]
          %v3178 = vld [vmem:[%s2124 + $0x14] sm:$0xf]
          %v3179 = vld [vmem:[%s2124 + $0x18] sm:$0xf]
          %v3180 = vld [vmem:[%s2124 + $0x1c] sm:$0xf]
          %v3181 = vld [vmem:[%s2131] sm:$0x1]
          %v3182 = vpack.c.bf16 %v3167, %v3167
          %v3184 = vlaneseq
          %v3185 = vshrl.u32 %v3184, 7
          %v3186 = vsub.s32 0, %v3185
          %v3187 = vrot.slane %v3172, %v3186
          %v3193 = vunpack.c.l.b16 %v3168
          %v3194 = vunpack.c.l.b16 %v3169
          %v3195 = vunpack.c.l.b16 %v3170
          %v3196 = vunpack.c.l.b16 %v3171
          %v3197 = vpack.c.b16 %v3194, %v3193
          %v3198 = vpack.c.b16 %v3196, %v3195
          %v3202 = vsel %vm2523, %v3182, 0
          %3204 = vmatprep.subr.bf16.mxu0 0
          %3205 = vmatpush1.bf16.msra.mxu0 %v3197
          %3206 = vmatprep.subr.bf16.mxu0 0
          %3207 = vmatpush1.bf16.msra.mxu0 %v3198
          %3208 = vmatprep.subr.bf16.mxu0 0
          %3209 = vmatpush1.bf16.msra.mxu0 0
          %3210 = vmatprep.subr.bf16.mxu0 0
          %3211 = vmatpush1.bf16.msra.mxu0 0
          %3212 = vmatprep.subr.bf16.mxu0 0
          %3213 = vmatpush1.bf16.msra.mxu0 0
          %3214 = vmatprep.subr.bf16.mxu0 0
          %3215 = vmatpush1.bf16.msra.mxu0 0
          %3216 = vmatprep.subr.bf16.mxu0 0
          %3217 = vmatpush1.bf16.msra.mxu0 0
          %3218 = vmatprep.subr.bf16.mxu0 0
          %3219 = vmatpush1.bf16.msra.mxu0 0
          %3220 = vmatprep.subr.bf16.mxu0 0
          %3221 = vmatpush1.bf16.msra.mxu0 0
          %3222 = vmatprep.subr.bf16.mxu0 0
          %3223 = vmatpush1.bf16.msra.mxu0 0
          %3224 = vmatprep.subr.bf16.mxu0 0
          %3225 = vmatpush1.bf16.msra.mxu0 0
          %3226 = vmatprep.subr.bf16.mxu0 0
          %3227 = vmatpush1.bf16.msra.mxu0 0
          %3228 = vmatprep.subr.bf16.mxu0 0
          %3229 = vmatpush1.bf16.msra.mxu0 0
          %3230 = vmatprep.subr.bf16.mxu0 0
          %3231 = vmatpush1.bf16.msra.mxu0 0
          %3232 = vmatprep.subr.bf16.mxu0 0
          %3233 = vmatpush1.bf16.msra.mxu0 0
          %3234 = vmatprep.subr.bf16.mxu0 0
          %3235 = vmatpush1.bf16.msra.mxu0 0
          %3236 = vmatprep.mubr.bf16.mxu0 0
          %3237 = vmatmul.mubr.bf16.gmra.mrb[0].mxu0 %v3202
          %v3238 = vpop.f32.mrb[0].mxu0
          %v3239 = vadd.f32 %v3187, %v3238
          %v3240 = vpop.f32.mrb[0].mxu0
          %v3241 = vpop.f32.mrb[0].mxu0
          %v3242 = vpop.f32.mrb[0].mxu0
          %3243 = vdwg.mxu0
          %v3244 = vmax.f32 %v3239, 0.0
          %v3245 = vpack.c.bf16 %v3244, %v3244
          %v3247 = vlaneseq
          %v3248 = vshrl.u32 %v3247, 7
          %v3249 = vsub.s32 0, %v3248
          %v3250 = vrot.slane %v3181, %v3249
          %v3260 = vunpack.c.l.b16 %v3173
          %v3261 = vunpack.c.l.b16 %v3174
          %v3262 = vunpack.c.l.b16 %v3175
          %v3263 = vunpack.c.l.b16 %v3176
          %v3264 = vunpack.c.l.b16 %v3177
          %v3265 = vunpack.c.l.b16 %v3178
          %v3266 = vunpack.c.l.b16 %v3179
          %v3267 = vunpack.c.l.b16 %v3180
          %v3268 = vpack.c.b16 %v3261, %v3260
          %v3269 = vpack.c.b16 %v3263, %v3262
          %v3270 = vpack.c.b16 %v3265, %v3264
          %v3271 = vpack.c.b16 %v3267, %v3266
          %vm3276 = vcmask 523264
          %v3278 = vsel %vm3276, %v3245, 0
          %3280 = vmatprep.subr.bf16.mxu0 0
          %3281 = vmatpush1.bf16.msra.mxu0 %v3268
          %3282 = vmatprep.subr.bf16.mxu0 0
          %3283 = vmatpush1.bf16.msra.mxu0 %v3269
          %3284 = vmatprep.subr.bf16.mxu0 0
          %3285 = vmatpush1.bf16.msra.mxu0 %v3270
          %3286 = vmatprep.subr.bf16.mxu0 0
          %3287 = vmatpush1.bf16.msra.mxu0 %v3271
          %3288 = vmatprep.subr.bf16.mxu0 0
          %3289 = vmatpush1.bf16.msra.mxu0 0
          %3290 = vmatprep.subr.bf16.mxu0 0
          %3291 = vmatpush1.bf16.msra.mxu0 0
          %3292 = vmatprep.subr.bf16.mxu0 0
          %3293 = vmatpush1.bf16.msra.mxu0 0
          %3294 = vmatprep.subr.bf16.mxu0 0
          %3295 = vmatpush1.bf16.msra.mxu0 0
          %3296 = vmatprep.subr.bf16.mxu0 0
          %3297 = vmatpush1.bf16.msra.mxu0 0
          %3298 = vmatprep.subr.bf16.mxu0 0
          %3299 = vmatpush1.bf16.msra.mxu0 0
          %3300 = vmatprep.subr.bf16.mxu0 0
          %3301 = vmatpush1.bf16.msra.mxu0 0
          %3302 = vmatprep.subr.bf16.mxu0 0
          %3303 = vmatpush1.bf16.msra.mxu0 0
          %3304 = vmatprep.subr.bf16.mxu0 0
          %3305 = vmatpush1.bf16.msra.mxu0 0
          %3306 = vmatprep.subr.bf16.mxu0 0
          %3307 = vmatpush1.bf16.msra.mxu0 0
          %3308 = vmatprep.subr.bf16.mxu0 0
          %3309 = vmatpush1.bf16.msra.mxu0 0
          %3310 = vmatprep.subr.bf16.mxu0 0
          %3311 = vmatpush1.bf16.msra.mxu0 0
          %3312 = vmatprep.mubr.bf16.mxu0 0
          %3313 = vmatmul.mubr.bf16.gmra.mrb[0].mxu0 %v3278
          %v3314 = vpop.f32.mrb[0].mxu0
          %v3315 = vadd.f32 %v3250, %v3314
          %v3316 = vpop.f32.mrb[0].mxu0
          %v3317 = vpop.f32.mrb[0].mxu0
          %v3318 = vpop.f32.mrb[0].mxu0
          %3319 = vdwg.mxu0
          %v3320 = vadd.f32 %v3167, %v3315
          %v3321 = vld [vmem:[%s2138] sm:$0x1]
          %v3322 = vld [vmem:[%s2145] sm:$0x1]
          %v3323 = vsel %vm2523, %v3320, 0.0
          %3324 = vadd.xlane.f32.xlu0 %v3323
          %v3325 = vpop.xlane.xlu0 %3324
          %v3326 = vmul.f32 %v3325, %v3143
          %v3327 = vsub.f32 %v3320, %v3326
          %v3328 = vmul.f32 %v3327, %v3327
          %v3329 = vsel %vm2523, %v3328, 0.0
          %3330 = vadd.xlane.f32.xlu0 %v3329
          %v3331 = vpop.xlane.xlu0 %3330
          %v3332 = vmul.f32 %v3331, %v3143
          %v3333 = vadd.f32 %v3332, 1e-05
          %v3334 = vrsqrt.pop %v3333
          %v3335 = vmul.f32 %v3327, %v3334
          %v3337 = vlaneseq
          %v3338 = vshrl.u32 %v3337, 7
          %v3339 = vsub.s32 0, %v3338
          %v3340 = vrot.slane %v3321, %v3339
          %v3342 = vmul.f32 %v3335, %v3340
          %v3344 = vlaneseq
          %v3345 = vshrl.u32 %v3344, 7
          %v3346 = vsub.s32 0, %v3345
          %v3347 = vrot.slane %v3322, %v3346
          %v3349 = vadd.f32 %v3342, %v3347
          %3350 = vst.msk [vmem:[#allocation2] sm:$0xff] %vm2523, %v3349
        $region222: #{transformer_forward.1} parent=175 // pred_fallthru
          _
        // Predicated region
        $region223: #{transformer_forward.1} parent=175 // pred_check
          %p3351 = pneg %p2446
        $region224: #{transformer_forward.1} parent=175 // pred_check_branch
          %3353 = sbr.rel (%p3351) target = $region226
        $region225: #{transformer_forward.1} parent=175 // pred_region
          %v3354 = vld [vmem:[%s2055] sm:$0xff]
          %vm3355 = vcmask 261120
          %3356 = vst.msk [vmem:[#allocation3] sm:$0xff] %vm3355, %v3354
        $region226: #{transformer_forward.1} parent=175 // pred_fallthru
          _
        %p3357 = scmp.ge.s32.totalorder %s100, 2
        // Predicated region
        $region227: #{transformer_forward.1} parent=175 // pred_check
          %p3358 = pneg %p3357
        $region228: #{transformer_forward.1} parent=175 // pred_check_branch
          %3360 = sbr.rel (%p3358) target = $region230
        $region229: #{transformer_forward.1} parent=175 // pred_region
          %v3361 = vld [vmem:[#allocation3] sm:$0xff]
          %v3362 = vpack.c.bf16 %v3361, %v3361
          %v3363 = vld [vmem:[%s2155] sm:$0xf]
          %v3364 = vld [vmem:[%s2155 + $0x4] sm:$0xf]
          %v3365 = vld [vmem:[%s2155 + $0x8] sm:$0xf]
          %v3366 = vld [vmem:[%s2155 + $0xc] sm:$0xf]
          %v3367 = vld [vmem:[%s2164] sm:$0x1]
          %v3369 = vlaneseq
          %v3370 = vshrl.u32 %v3369, 7
          %v3371 = vsub.s32 0, %v3370
          %v3372 = vrot.slane %v3367, %v3371
          %v3378 = vunpack.c.l.b16 %v3363
          %v3379 = vunpack.c.l.b16 %v3364
          %v3380 = vunpack.c.l.b16 %v3365
          %v3381 = vunpack.c.l.b16 %v3366
          %v3382 = vpack.c.b16 %v3379, %v3378
          %v3383 = vpack.c.b16 %v3381, %v3380
          %vm3386 = vcmask 261120
          %v3388 = vsel %vm3386, %v3362, 0
          %3390 = vmatprep.subr.bf16.mxu0 0
          %3391 = vmatpush1.bf16.msra.mxu0 %v3382
          %3392 = vmatprep.subr.bf16.mxu0 0
          %3393 = vmatpush1.bf16.msra.mxu0 %v3383
          %3394 = vmatprep.subr.bf16.mxu0 0
          %3395 = vmatpush1.bf16.msra.mxu0 0
          %3396 = vmatprep.subr.bf16.mxu0 0
          %3397 = vmatpush1.bf16.msra.mxu0 0
          %3398 = vmatprep.subr.bf16.mxu0 0
          %3399 = vmatpush1.bf16.msra.mxu0 0
          %3400 = vmatprep.subr.bf16.mxu0 0
          %3401 = vmatpush1.bf16.msra.mxu0 0
          %3402 = vmatprep.subr.bf16.mxu0 0
          %3403 = vmatpush1.bf16.msra.mxu0 0
          %3404 = vmatprep.subr.bf16.mxu0 0
          %3405 = vmatpush1.bf16.msra.mxu0 0
          %3406 = vmatprep.subr.bf16.mxu0 0
          %3407 = vmatpush1.bf16.msra.mxu0 0
          %3408 = vmatprep.subr.bf16.mxu0 0
          %3409 = vmatpush1.bf16.msra.mxu0 0
          %3410 = vmatprep.subr.bf16.mxu0 0
          %3411 = vmatpush1.bf16.msra.mxu0 0
          %3412 = vmatprep.subr.bf16.mxu0 0
          %3413 = vmatpush1.bf16.msra.mxu0 0
          %3414 = vmatprep.subr.bf16.mxu0 0
          %3415 = vmatpush1.bf16.msra.mxu0 0
          %3416 = vmatprep.subr.bf16.mxu0 0
          %3417 = vmatpush1.bf16.msra.mxu0 0
          %3418 = vmatprep.subr.bf16.mxu0 0
          %3419 = vmatpush1.bf16.msra.mxu0 0
          %3420 = vmatprep.subr.bf16.mxu0 0
          %3421 = vmatpush1.bf16.msra.mxu0 0
          %3422 = vmatprep.mubr.bf16.mxu0 0
          %3423 = vmatmul.mubr.bf16.gmra.mrb[0].mxu0 %v3388
          %v3424 = vpop.f32.mrb[0].mxu0
          %v3425 = vadd.f32 %v3372, %v3424
          %v3426 = vpop.f32.mrb[0].mxu0
          %v3427 = vpop.f32.mrb[0].mxu0
          %v3428 = vpop.f32.mrb[0].mxu0
          %3429 = vdwg.mxu0
          %v3430 = vld [vmem:[#allocation4] sm:$0xff]
          %v3431 = vld [vmem:[%s2175] sm:$0xf]
          %v3432 = vld [vmem:[%s2175 + $0x4] sm:$0xf]
          %v3433 = vld [vmem:[%s2175 + $0x8] sm:$0xf]
          %v3434 = vld [vmem:[%s2175 + $0xc] sm:$0xf]
          %v3435 = vld [vmem:[%s2184] sm:$0x1]
          %v3436 = vmul.f32 %v3425, 0.35355338
          %v3437 = vpack.c.bf16 %v3436, %v3436
          %3439 = vrot.lane.b32.xlu0 %v3425, 96
          %v3440 = vpop.permute.xlu0 %3439
          %3442 = vxpose.xlu0.b32.start [1/16] %v3440, 128
          %3443 = vxpose.xlu0.b32.cont [2/16] 0.0, 128
          %3444 = vxpose.xlu0.b32.cont [3/16] 0.0, 128
          %3445 = vxpose.xlu0.b32.cont [4/16] 0.0, 128
          %3446 = vxpose.xlu0.b32.cont [5/16] 0.0, 128
          %3447 = vxpose.xlu0.b32.cont [6/16] 0.0, 128
          %3448 = vxpose.xlu0.b32.cont [7/16] 0.0, 128
          %3449 = vxpose.xlu0.b32.cont [8/16] 0.0, 128
          %3450 = vxpose.xlu0.b32.cont [9/16] 0.0, 128
          %3451 = vxpose.xlu0.b32.cont [10/16] 0.0, 128
          %3452 = vxpose.xlu0.b32.cont [11/16] 0.0, 128
          %3453 = vxpose.xlu0.b32.cont [12/16] 0.0, 128
          %3454 = vxpose.xlu0.b32.cont [13/16] 0.0, 128
          %3455 = vxpose.xlu0.b32.cont [14/16] 0.0, 128
          %3456 = vxpose.xlu0.b32.cont [15/16] 0.0, 128
          %3457 = vxpose.xlu0.b32.end [16/16] 0.0, 128
          %v3458 = vpop.trf.xlu0
          %v3459 = vpop.trf.xlu0
          %v3460 = vpop.trf.xlu0
          %v3461 = vpop.trf.xlu0
          %v3462 = vpop.trf.xlu0
          %v3463 = vpop.trf.xlu0
          %v3464 = vpop.trf.xlu0
          %v3465 = vpop.trf.xlu0
          %v3466 = vpop.trf.xlu0
          %v3467 = vpop.trf.xlu0
          %v3468 = vpop.trf.xlu0
          %v3469 = vpop.trf.xlu0
          %v3470 = vpop.trf.xlu0
          %v3471 = vpop.trf.xlu0
          %v3472 = vpop.trf.xlu0
          %v3473 = vpop.trf.xlu0
          %v3474 = vpack.c.bf16 %v3459, %v3458
          %v3475 = vpack.c.bf16 %v3461, %v3460
          %v3476 = vpack.c.bf16 %v3425, %v3425
          %vm3477 = vcmask 64512
          %v3479 = vsel %vm3477, %v3437, 0
          %vm3481 = vcmask 1043456
          %v3483 = vsel %vm3481, %v3474, 0
          %3485 = vmatprep.subr.bf16.mxu0 0
          %3486 = vmatpush1.bf16.msra.mxu0 %v3483
          %3487 = vmatprep.subr.bf16.mxu0 0
          %3488 = vmatpush1.bf16.msra.mxu0 0
          %3489 = vmatprep.subr.bf16.mxu0 0
          %3490 = vmatpush1.bf16.msra.mxu0 0
          %3491 = vmatprep.subr.bf16.mxu0 0
          %3492 = vmatpush1.bf16.msra.mxu0 0
          %3493 = vmatprep.subr.bf16.mxu0 0
          %3494 = vmatpush1.bf16.msra.mxu0 0
          %3495 = vmatprep.subr.bf16.mxu0 0
          %3496 = vmatpush1.bf16.msra.mxu0 0
          %3497 = vmatprep.subr.bf16.mxu0 0
          %3498 = vmatpush1.bf16.msra.mxu0 0
          %3499 = vmatprep.subr.bf16.mxu0 0
          %3500 = vmatpush1.bf16.msra.mxu0 0
          %3501 = vmatprep.subr.bf16.mxu0 0
          %3502 = vmatpush1.bf16.msra.mxu0 0
          %3503 = vmatprep.subr.bf16.mxu0 0
          %3504 = vmatpush1.bf16.msra.mxu0 0
          %3505 = vmatprep.subr.bf16.mxu0 0
          %3506 = vmatpush1.bf16.msra.mxu0 0
          %3507 = vmatprep.subr.bf16.mxu0 0
          %3508 = vmatpush1.bf16.msra.mxu0 0
          %3509 = vmatprep.subr.bf16.mxu0 0
          %3510 = vmatpush1.bf16.msra.mxu0 0
          %3511 = vmatprep.subr.bf16.mxu0 0
          %3512 = vmatpush1.bf16.msra.mxu0 0
          %3513 = vmatprep.subr.bf16.mxu0 0
          %3514 = vmatpush1.bf16.msra.mxu0 0
          %3515 = vmatprep.subr.bf16.mxu0 0
          %3516 = vmatpush1.bf16.msra.mxu0 0
          %3517 = vmatprep.mubr.bf16.mxu0 0
          %3518 = vmatmul.mubr.bf16.gmra.mrb[0].mxu0 %v3479
          %v3519 = vpop.f32.mrb[0].mxu0
          %v3520 = vadd.f32 %v3430, %v3519
          %v3521 = vpop.f32.mrb[0].mxu0
          %v3522 = vpop.f32.mrb[0].mxu0
          %v3523 = vpop.f32.mrb[0].mxu0
          %3524 = vdwg.mxu0
          %v3525 = vsel %vm3477, %v3520, -inf
          %3526 = vmax.xlane.f32.xlu0 %v3525
          %v3527 = vpop.xlane.xlu0 %3526
          %v3528 = vsub.f32 %v3520, %v3527
          %v3529 = vmul.f32 %v3528, 1.442695
          %v3530 = vpow.pop %v3529
          %v3531 = vsel %vm3477, %v3530, 0.0
          %3532 = vadd.xlane.f32.xlu0 %v3531
          %v3533 = vpop.xlane.xlu0 %3532
          %v3534 = vrcp.pop %v3533
          %v3535 = vmul.f32 %v3530, %v3534
          %v3536 = vpack.c.bf16 %v3535, %v3535
          %3538 = vrot.lane.b32.xlu0 %v3476, 64
          %v3539 = vpop.permute.xlu0 %3538
          %v3541 = vsel %vm3477, %v3536, 0
          %v3544 = vsel %vm3481, %v3539, 0
          %3546 = vmatprep.subr.bf16.mxu0 0
          %3547 = vmatpush1.bf16.msra.mxu0 %v3544
          %3548 = vmatprep.subr.bf16.mxu0 0
          %3549 = vmatpush1.bf16.msra.mxu0 0
          %3550 = vmatprep.subr.bf16.mxu0 0
          %3551 = vmatpush1.bf16.msra.mxu0 0
          %3552 = vmatprep.subr.bf16.mxu0 0
          %3553 = vmatpush1.bf16.msra.mxu0 0
          %3554 = vmatprep.subr.bf16.mxu0 0
          %3555 = vmatpush1.bf16.msra.mxu0 0
          %3556 = vmatprep.subr.bf16.mxu0 0
          %3557 = vmatpush1.bf16.msra.mxu0 0
          %3558 = vmatprep.subr.bf16.mxu0 0
          %3559 = vmatpush1.bf16.msra.mxu0 0
          %3560 = vmatprep.subr.bf16.mxu0 0
          %3561 = vmatpush1.bf16.msra.mxu0 0
          %3562 = vmatprep.subr.bf16.mxu0 0
          %3563 = vmatpush1.bf16.msra.mxu0 0
          %3564 = vmatprep.subr.bf16.mxu0 0
          %3565 = vmatpush1.bf16.msra.mxu0 0
          %3566 = vmatprep.subr.bf16.mxu0 0
          %3567 = vmatpush1.bf16.msra.mxu0 0
          %3568 = vmatprep.subr.bf16.mxu0 0
          %3569 = vmatpush1.bf16.msra.mxu0 0
          %3570 = vmatprep.subr.bf16.mxu0 0
          %3571 = vmatpush1.bf16.msra.mxu0 0
          %3572 = vmatprep.subr.bf16.mxu0 0
          %3573 = vmatpush1.bf16.msra.mxu0 0
          %3574 = vmatprep.subr.bf16.mxu0 0
          %3575 = vmatpush1.bf16.msra.mxu0 0
          %3576 = vmatprep.subr.bf16.mxu0 0
          %3577 = vmatpush1.bf16.msra.mxu0 0
          %3578 = vmatprep.mubr.bf16.mxu0 0
          %3579 = vmatmul.mubr.bf16.gmra.mrb[0].mxu0 %v3541
          %v3580 = vpop.f32.mrb[0].mxu0
          %v3581 = vadd.f32 0.0, %v3580
          %v3582 = vpop.f32.mrb[0].mxu0
          %v3583 = vpop.f32.mrb[0].mxu0
          %v3584 = vpop.f32.mrb[0].mxu0
          %3585 = vdwg.mxu0
          %3587 = vrot.lane.b32.xlu0 %v3437, 120
          %v3588 = vpop.permute.xlu0 %3587
          %v3590 = vrot.slane %v3474, 4
          %v3592 = vsel %vm3477, %v3588, 0
          %v3595 = vsel %vm3481, %v3590, 0
          %3597 = vmatprep.subr.bf16.mxu0 0
          %3598 = vmatpush1.bf16.msra.mxu0 %v3595
          %3599 = vmatprep.subr.bf16.mxu0 0
          %3600 = vmatpush1.bf16.msra.mxu0 0
          %3601 = vmatprep.subr.bf16.mxu0 0
          %3602 = vmatpush1.bf16.msra.mxu0 0
          %3603 = vmatprep.subr.bf16.mxu0 0
          %3604 = vmatpush1.bf16.msra.mxu0 0
          %3605 = vmatprep.subr.bf16.mxu0 0
          %3606 = vmatpush1.bf16.msra.mxu0 0
          %3607 = vmatprep.subr.bf16.mxu0 0
          %3608 = vmatpush1.bf16.msra.mxu0 0
          %3609 = vmatprep.subr.bf16.mxu0 0
          %3610 = vmatpush1.bf16.msra.mxu0 0
          %3611 = vmatprep.subr.bf16.mxu0 0
          %3612 = vmatpush1.bf16.msra.mxu0 0
          %3613 = vmatprep.subr.bf16.mxu0 0
          %3614 = vmatpush1.bf16.msra.mxu0 0
          %3615 = vmatprep.subr.bf16.mxu0 0
          %3616 = vmatpush1.bf16.msra.mxu0 0
          %3617 = vmatprep.subr.bf16.mxu0 0
          %3618 = vmatpush1.bf16.msra.mxu0 0
          %3619 = vmatprep.subr.bf16.mxu0 0
          %3620 = vmatpush1.bf16.msra.mxu0 0
          %3621 = vmatprep.subr.bf16.mxu0 0
          %3622 = vmatpush1.bf16.msra.mxu0 0
          %3623 = vmatprep.subr.bf16.mxu0 0
          %3624 = vmatpush1.bf16.msra.mxu0 0
          %3625 = vmatprep.subr.bf16.mxu0 0
          %3626 = vmatpush1.bf16.msra.mxu0 0
          %3627 = vmatprep.subr.bf16.mxu0 0
          %3628 = vmatpush1.bf16.msra.mxu0 0
          %3629 = vmatprep.mubr.bf16.mxu0 0
          %3630 = vmatmul.mubr.bf16.gmra.mrb[0].mxu0 %v3592
          %v3631 = vpop.f32.mrb[0].mxu0
          %v3632 = vadd.f32 %v3430, %v3631
          %v3633 = vpop.f32.mrb[0].mxu0
          %v3634 = vpop.f32.mrb[0].mxu0
          %v3635 = vpop.f32.mrb[0].mxu0
          %3636 = vdwg.mxu0
          %v3637 = vsel %vm3477, %v3632, -inf
          %3638 = vmax.xlane.f32.xlu0 %v3637
          %v3639 = vpop.xlane.xlu0 %3638
          %v3640 = vsub.f32 %v3632, %v3639
          %v3641 = vmul.f32 %v3640, 1.442695
          %v3642 = vpow.pop %v3641
          %v3643 = vsel %vm3477, %v3642, 0.0
          %3644 = vadd.xlane.f32.xlu0 %v3643
          %v3645 = vpop.xlane.xlu0 %3644
          %v3646 = vrcp.pop %v3645
          %v3647 = vmul.f32 %v3642, %v3646
          %v3648 = vpack.c.bf16 %v3647, %v3647
          %3649 = vrot.lane.b32.xlu0 %v3476, 56
          %v3650 = vpop.permute.xlu0 %3649
          %v3652 = vsel %vm3477, %v3648, 0
          %v3655 = vsel %vm3481, %v3650, 0
          %3657 = vmatprep.subr.bf16.mxu0 0
          %3658 = vmatpush1.bf16.msra.mxu0 %v3655
          %3659 = vmatprep.subr.bf16.mxu0 0
          %3660 = vmatpush1.bf16.msra.mxu0 0
          %3661 = vmatprep.subr.bf16.mxu0 0
          %3662 = vmatpush1.bf16.msra.mxu0 0
          %3663 = vmatprep.subr.bf16.mxu0 0
          %3664 = vmatpush1.bf16.msra.mxu0 0
          %3665 = vmatprep.subr.bf16.mxu0 0
          %3666 = vmatpush1.bf16.msra.mxu0 0
          %3667 = vmatprep.subr.bf16.mxu0 0
          %3668 = vmatpush1.bf16.msra.mxu0 0
          %3669 = vmatprep.subr.bf16.mxu0 0
          %3670 = vmatpush1.bf16.msra.mxu0 0
          %3671 = vmatprep.subr.bf16.mxu0 0
          %3672 = vmatpush1.bf16.msra.mxu0 0
          %3673 = vmatprep.subr.bf16.mxu0 0
          %3674 = vmatpush1.bf16.msra.mxu0 0
          %3675 = vmatprep.subr.bf16.mxu0 0
          %3676 = vmatpush1.bf16.msra.mxu0 0
          %3677 = vmatprep.subr.bf16.mxu0 0
          %3678 = vmatpush1.bf16.msra.mxu0 0
          %3679 = vmatprep.subr.bf16.mxu0 0
          %3680 = vmatpush1.bf16.msra.mxu0 0
          %3681 = vmatprep.subr.bf16.mxu0 0
          %3682 = vmatpush1.bf16.msra.mxu0 0
          %3683 = vmatprep.subr.bf16.mxu0 0
          %3684 = vmatpush1.bf16.msra.mxu0 0
          %3685 = vmatprep.subr.bf16.mxu0 0
          %3686 = vmatpush1.bf16.msra.mxu0 0
          %3687 = vmatprep.subr.bf16.mxu0 0
          %3688 = vmatpush1.bf16.msra.mxu0 0
          %3689 = vmatprep.mubr.bf16.mxu0 0
          %3690 = vmatmul.mubr.bf16.gmra.mrb[0].mxu0 %v3652
          %v3691 = vpop.f32.mrb[0].mxu0
          %v3692 = vadd.f32 0.0, %v3691
          %v3693 = vpop.f32.mrb[0].mxu0
          %v3694 = vpop.f32.mrb[0].mxu0
          %v3695 = vpop.f32.mrb[0].mxu0
          %3696 = vdwg.mxu0
          %3697 = vrot.lane.b32.xlu0 %v3437, 112
          %v3698 = vpop.permute.xlu0 %3697
          %v3700 = vsel %vm3477, %v3698, 0
          %v3703 = vsel %vm3481, %v3475, 0
          %3705 = vmatprep.subr.bf16.mxu0 0
          %3706 = vmatpush1.bf16.msra.mxu0 %v3703
          %3707 = vmatprep.subr.bf16.mxu0 0
          %3708 = vmatpush1.bf16.msra.mxu0 0
          %3709 = vmatprep.subr.bf16.mxu0 0
          %3710 = vmatpush1.bf16.msra.mxu0 0
          %3711 = vmatprep.subr.bf16.mxu0 0
          %3712 = vmatpush1.bf16.msra.mxu0 0
          %3713 = vmatprep.subr.bf16.mxu0 0
          %3714 = vmatpush1.bf16.msra.mxu0 0
          %3715 = vmatprep.subr.bf16.mxu0 0
          %3716 = vmatpush1.bf16.msra.mxu0 0
          %3717 = vmatprep.subr.bf16.mxu0 0
          %3718 = vmatpush1.bf16.msra.mxu0 0
          %3719 = vmatprep.subr.bf16.mxu0 0
          %3720 = vmatpush1.bf16.msra.mxu0 0
          %3721 = vmatprep.subr.bf16.mxu0 0
          %3722 = vmatpush1.bf16.msra.mxu0 0
          %3723 = vmatprep.subr.bf16.mxu0 0
          %3724 = vmatpush1.bf16.msra.mxu0 0
          %3725 = vmatprep.subr.bf16.mxu0 0
          %3726 = vmatpush1.bf16.msra.mxu0 0
          %3727 = vmatprep.subr.bf16.mxu0 0
          %3728 = vmatpush1.bf16.msra.mxu0 0
          %3729 = vmatprep.subr.bf16.mxu0 0
          %3730 = vmatpush1.bf16.msra.mxu0 0
          %3731 = vmatprep.subr.bf16.mxu0 0
          %3732 = vmatpush1.bf16.msra.mxu0 0
          %3733 = vmatprep.subr.bf16.mxu0 0
          %3734 = vmatpush1.bf16.msra.mxu0 0
          %3735 = vmatprep.subr.bf16.mxu0 0
          %3736 = vmatpush1.bf16.msra.mxu0 0
          %3737 = vmatprep.mubr.bf16.mxu0 0
          %3738 = vmatmul.mubr.bf16.gmra.mrb[0].mxu0 %v3700
          %v3739 = vpop.f32.mrb[0].mxu0
          %v3740 = vadd.f32 %v3430, %v3739
          %v3741 = vpop.f32.mrb[0].mxu0
          %v3742 = vpop.f32.mrb[0].mxu0
          %v3743 = vpop.f32.mrb[0].mxu0
          %3744 = vdwg.mxu0
          %v3745 = vsel %vm3477, %v3740, -inf
          %3746 = vmax.xlane.f32.xlu0 %v3745
          %v3747 = vpop.xlane.xlu0 %3746
          %v3748 = vsub.f32 %v3740, %v3747
          %v3749 = vmul.f32 %v3748, 1.442695
          %v3750 = vpow.pop %v3749
          %v3751 = vsel %vm3477, %v3750, 0.0
          %3752 = vadd.xlane.f32.xlu0 %v3751
          %v3753 = vpop.xlane.xlu0 %3752
          %v3754 = vrcp.pop %v3753
          %v3755 = vmul.f32 %v3750, %v3754
          %v3756 = vpack.c.bf16 %v3755, %v3755
          %3757 = vrot.lane.b32.xlu0 %v3476, 48
          %v3758 = vpop.permute.xlu0 %3757
          %v3760 = vsel %vm3477, %v3756, 0
          %v3763 = vsel %vm3481, %v3758, 0
          %3765 = vmatprep.subr.bf16.mxu0 0
          %3766 = vmatpush1.bf16.msra.mxu0 %v3763
          %3767 = vmatprep.subr.bf16.mxu0 0
          %3768 = vmatpush1.bf16.msra.mxu0 0
          %3769 = vmatprep.subr.bf16.mxu0 0
          %3770 = vmatpush1.bf16.msra.mxu0 0
          %3771 = vmatprep.subr.bf16.mxu0 0
          %3772 = vmatpush1.bf16.msra.mxu0 0
          %3773 = vmatprep.subr.bf16.mxu0 0
          %3774 = vmatpush1.bf16.msra.mxu0 0
          %3775 = vmatprep.subr.bf16.mxu0 0
          %3776 = vmatpush1.bf16.msra.mxu0 0
          %3777 = vmatprep.subr.bf16.mxu0 0
          %3778 = vmatpush1.bf16.msra.mxu0 0
          %3779 = vmatprep.subr.bf16.mxu0 0
          %3780 = vmatpush1.bf16.msra.mxu0 0
          %3781 = vmatprep.subr.bf16.mxu0 0
          %3782 = vmatpush1.bf16.msra.mxu0 0
          %3783 = vmatprep.subr.bf16.mxu0 0
          %3784 = vmatpush1.bf16.msra.mxu0 0
          %3785 = vmatprep.subr.bf16.mxu0 0
          %3786 = vmatpush1.bf16.msra.mxu0 0
          %3787 = vmatprep.subr.bf16.mxu0 0
          %3788 = vmatpush1.bf16.msra.mxu0 0
          %3789 = vmatprep.subr.bf16.mxu0 0
          %3790 = vmatpush1.bf16.msra.mxu0 0
          %3791 = vmatprep.subr.bf16.mxu0 0
          %3792 = vmatpush1.bf16.msra.mxu0 0
          %3793 = vmatprep.subr.bf16.mxu0 0
          %3794 = vmatpush1.bf16.msra.mxu0 0
          %3795 = vmatprep.subr.bf16.mxu0 0
          %3796 = vmatpush1.bf16.msra.mxu0 0
          %3797 = vmatprep.mubr.bf16.mxu0 0
          %3798 = vmatmul.mubr.bf16.gmra.mrb[0].mxu0 %v3760
          %v3799 = vpop.f32.mrb[0].mxu0
          %v3800 = vadd.f32 0.0, %v3799
          %v3801 = vpop.f32.mrb[0].mxu0
          %v3802 = vpop.f32.mrb[0].mxu0
          %v3803 = vpop.f32.mrb[0].mxu0
          %3804 = vdwg.mxu0
          %3805 = vrot.lane.b32.xlu0 %v3437, 104
          %v3806 = vpop.permute.xlu0 %3805
          %v3808 = vrot.slane %v3475, 4
          %v3810 = vsel %vm3477, %v3806, 0
          %v3813 = vsel %vm3481, %v3808, 0
          %3815 = vmatprep.subr.bf16.mxu0 0
          %3816 = vmatpush1.bf16.msra.mxu0 %v3813
          %3817 = vmatprep.subr.bf16.mxu0 0
          %3818 = vmatpush1.bf16.msra.mxu0 0
          %3819 = vmatprep.subr.bf16.mxu0 0
          %3820 = vmatpush1.bf16.msra.mxu0 0
          %3821 = vmatprep.subr.bf16.mxu0 0
          %3822 = vmatpush1.bf16.msra.mxu0 0
          %3823 = vmatprep.subr.bf16.mxu0 0
          %3824 = vmatpush1.bf16.msra.mxu0 0
          %3825 = vmatprep.subr.bf16.mxu0 0
          %3826 = vmatpush1.bf16.msra.mxu0 0
          %3827 = vmatprep.subr.bf16.mxu0 0
          %3828 = vmatpush1.bf16.msra.mxu0 0
          %3829 = vmatprep.subr.bf16.mxu0 0
          %3830 = vmatpush1.bf16.msra.mxu0 0
          %3831 = vmatprep.subr.bf16.mxu0 0
          %3832 = vmatpush1.bf16.msra.mxu0 0
          %3833 = vmatprep.subr.bf16.mxu0 0
          %3834 = vmatpush1.bf16.msra.mxu0 0
          %3835 = vmatprep.subr.bf16.mxu0 0
          %3836 = vmatpush1.bf16.msra.mxu0 0
          %3837 = vmatprep.subr.bf16.mxu0 0
          %3838 = vmatpush1.bf16.msra.mxu0 0
          %3839 = vmatprep.subr.bf16.mxu0 0
          %3840 = vmatpush1.bf16.msra.mxu0 0
          %3841 = vmatprep.subr.bf16.mxu0 0
          %3842 = vmatpush1.bf16.msra.mxu0 0
          %3843 = vmatprep.subr.bf16.mxu0 0
          %3844 = vmatpush1.bf16.msra.mxu0 0
          %3845 = vmatprep.subr.bf16.mxu0 0
          %3846 = vmatpush1.bf16.msra.mxu0 0
          %3847 = vmatprep.mubr.bf16.mxu0 0
          %3848 = vmatmul.mubr.bf16.gmra.mrb[0].mxu0 %v3810
          %v3849 = vpop.f32.mrb[0].mxu0
          %v3850 = vadd.f32 %v3430, %v3849
          %v3851 = vpop.f32.mrb[0].mxu0
          %v3852 = vpop.f32.mrb[0].mxu0
          %v3853 = vpop.f32.mrb[0].mxu0
          %3854 = vdwg.mxu0
          %v3855 = vsel %vm3477, %v3850, -inf
          %3856 = vmax.xlane.f32.xlu0 %v3855
          %v3857 = vpop.xlane.xlu0 %3856
          %v3858 = vsub.f32 %v3850, %v3857
          %v3859 = vmul.f32 %v3858, 1.442695
          %v3860 = vpow.pop %v3859
          %v3861 = vsel %vm3477, %v3860, 0.0
          %3862 = vadd.xlane.f32.xlu0 %v3861
          %v3863 = vpop.xlane.xlu0 %3862
          %v3864 = vrcp.pop %v3863
          %v3865 = vmul.f32 %v3860, %v3864
          %v3866 = vpack.c.bf16 %v3865, %v3865
          %3867 = vrot.lane.b32.xlu0 %v3476, 40
          %v3868 = vpop.permute.xlu0 %3867
          %v3870 = vsel %vm3477, %v3866, 0
          %v3873 = vsel %vm3481, %v3868, 0
          %3875 = vmatprep.subr.bf16.mxu0 0
          %3876 = vmatpush1.bf16.msra.mxu0 %v3873
          %3877 = vmatprep.subr.bf16.mxu0 0
          %3878 = vmatpush1.bf16.msra.mxu0 0
          %3879 = vmatprep.subr.bf16.mxu0 0
          %3880 = vmatpush1.bf16.msra.mxu0 0
          %3881 = vmatprep.subr.bf16.mxu0 0
          %3882 = vmatpush1.bf16.msra.mxu0 0
          %3883 = vmatprep.subr.bf16.mxu0 0
          %3884 = vmatpush1.bf16.msra.mxu0 0
          %3885 = vmatprep.subr.bf16.mxu0 0
          %3886 = vmatpush1.bf16.msra.mxu0 0
          %3887 = vmatprep.subr.bf16.mxu0 0
          %3888 = vmatpush1.bf16.msra.mxu0 0
          %3889 = vmatprep.subr.bf16.mxu0 0
          %3890 = vmatpush1.bf16.msra.mxu0 0
          %3891 = vmatprep.subr.bf16.mxu0 0
          %3892 = vmatpush1.bf16.msra.mxu0 0
          %3893 = vmatprep.subr.bf16.mxu0 0
          %3894 = vmatpush1.bf16.msra.mxu0 0
          %3895 = vmatprep.subr.bf16.mxu0 0
          %3896 = vmatpush1.bf16.msra.mxu0 0
          %3897 = vmatprep.subr.bf16.mxu0 0
          %3898 = vmatpush1.bf16.msra.mxu0 0
          %3899 = vmatprep.subr.bf16.mxu0 0
          %3900 = vmatpush1.bf16.msra.mxu0 0
          %3901 = vmatprep.subr.bf16.mxu0 0
          %3902 = vmatpush1.bf16.msra.mxu0 0
          %3903 = vmatprep.subr.bf16.mxu0 0
          %3904 = vmatpush1.bf16.msra.mxu0 0
          %3905 = vmatprep.subr.bf16.mxu0 0
          %3906 = vmatpush1.bf16.msra.mxu0 0
          %3907 = vmatprep.mubr.bf16.mxu0 0
          %3908 = vmatmul.mubr.bf16.gmra.mrb[0].mxu0 %v3870
          %v3909 = vpop.f32.mrb[0].mxu0
          %v3910 = vadd.f32 0.0, %v3909
          %v3911 = vpop.f32.mrb[0].mxu0
          %v3912 = vpop.f32.mrb[0].mxu0
          %v3913 = vpop.f32.mrb[0].mxu0
          %3914 = vdwg.mxu0
          %3916 = vrot.lane.b32.xlu0 %v3692, 8
          %v3917 = vpop.permute.xlu0 %3916
          %3920 = vrot.lane.b32.xlu0 %v3800, 16
          %v3921 = vpop.permute.xlu0 %3920
          %3924 = vrot.lane.b32.xlu0 %v3910, 24
          %v3925 = vpop.permute.xlu0 %3924
          %v3927 = vsel %vm3477, %v3581, %v3917
          %vm3928 = vcmask 130048
          %v3929 = vsel %vm3928, %v3927, %v3921
          %vm3930 = vcmask 195584
          %v3931 = vsel %vm3930, %v3929, %v3925
          %v3932 = vpack.c.bf16 %v3931, %v3931
          %v3934 = vlaneseq
          %v3935 = vshrl.u32 %v3934, 7
          %v3936 = vsub.s32 0, %v3935
          %v3937 = vrot.slane %v3435, %v3936
          %v3943 = vunpack.c.l.b16 %v3431
          %v3944 = vunpack.c.l.b16 %v3432
          %v3945 = vunpack.c.l.b16 %v3433
          %v3946 = vunpack.c.l.b16 %v3434
          %v3947 = vpack.c.b16 %v3944, %v3943
          %v3948 = vpack.c.b16 %v3946, %v3945
          %v3952 = vsel %vm3386, %v3932, 0
          %3954 = vmatprep.subr.bf16.mxu0 0
          %3955 = vmatpush1.bf16.msra.mxu0 %v3947
          %3956 = vmatprep.subr.bf16.mxu0 0
          %3957 = vmatpush1.bf16.msra.mxu0 %v3948
          %3958 = vmatprep.subr.bf16.mxu0 0
          %3959 = vmatpush1.bf16.msra.mxu0 0
          %3960 = vmatprep.subr.bf16.mxu0 0
          %3961 = vmatpush1.bf16.msra.mxu0 0
          %3962 = vmatprep.subr.bf16.mxu0 0
          %3963 = vmatpush1.bf16.msra.mxu0 0
          %3964 = vmatprep.subr.bf16.mxu0 0
          %3965 = vmatpush1.bf16.msra.mxu0 0
          %3966 = vmatprep.subr.bf16.mxu0 0
          %3967 = vmatpush1.bf16.msra.mxu0 0
          %3968 = vmatprep.subr.bf16.mxu0 0
          %3969 = vmatpush1.bf16.msra.mxu0 0
          %3970 = vmatprep.subr.bf16.mxu0 0
          %3971 = vmatpush1.bf16.msra.mxu0 0
          %3972 = vmatprep.subr.bf16.mxu0 0
          %3973 = vmatpush1.bf16.msra.mxu0 0
          %3974 = vmatprep.subr.bf16.mxu0 0
          %3975 = vmatpush1.bf16.msra.mxu0 0
          %3976 = vmatprep.subr.bf16.mxu0 0
          %3977 = vmatpush1.bf16.msra.mxu0 0
          %3978 = vmatprep.subr.bf16.mxu0 0
          %3979 = vmatpush1.bf16.msra.mxu0 0
          %3980 = vmatprep.subr.bf16.mxu0 0
          %3981 = vmatpush1.bf16.msra.mxu0 0
          %3982 = vmatprep.subr.bf16.mxu0 0
          %3983 = vmatpush1.bf16.msra.mxu0 0
          %3984 = vmatprep.subr.bf16.mxu0 0
          %3985 = vmatpush1.bf16.msra.mxu0 0
          %3986 = vmatprep.mubr.bf16.mxu0 0
          %3987 = vmatmul.mubr.bf16.gmra.mrb[0].mxu0 %v3952
          %v3988 = vpop.f32.mrb[0].mxu0
          %v3989 = vadd.f32 %v3937, %v3988
          %v3990 = vpop.f32.mrb[0].mxu0
          %v3991 = vpop.f32.mrb[0].mxu0
          %v3992 = vpop.f32.mrb[0].mxu0
          %3993 = vdwg.mxu0
          %v3994 = vadd.f32 %v3361, %v3989
          %v3995 = vld [vmem:[%s2253] sm:$0x1]
          %v3996 = vld [vmem:[%s2262] sm:$0x1]
          %v3997 = vsel %vm3386, %v3994, 0.0
          %3998 = vadd.xlane.f32.xlu0 %v3997
          %v3999 = vpop.xlane.xlu0 %3998
          %v4000 = vrcp.pop 32.0
          %v4001 = vmul.f32 %v3999, %v4000
          %v4002 = vsub.f32 %v3994, %v4001
          %v4003 = vmul.f32 %v4002, %v4002
          %v4004 = vsel %vm3386, %v4003, 0.0
          %4005 = vadd.xlane.f32.xlu0 %v4004
          %v4006 = vpop.xlane.xlu0 %4005
          %v4007 = vmul.f32 %v4006, %v4000
          %v4008 = vadd.f32 %v4007, 1e-05
          %v4009 = vrsqrt.pop %v4008
          %v4010 = vmul.f32 %v4002, %v4009
          %v4012 = vlaneseq
          %v4013 = vshrl.u32 %v4012, 7
          %v4014 = vsub.s32 0, %v4013
          %v4015 = vrot.slane %v3995, %v4014
          %v4017 = vmul.f32 %v4010, %v4015
          %v4019 = vlaneseq
          %v4020 = vshrl.u32 %v4019, 7
          %v4021 = vsub.s32 0, %v4020
          %v4022 = vrot.slane %v3996, %v4021
          %v4024 = vadd.f32 %v4017, %v4022
          %v4025 = vld [vmem:[#allocation2] sm:$0xff]
          %v4026 = vpack.c.bf16 %v4024, %v4024
          %v4027 = vld [vmem:[%s2195] sm:$0xf]
          %v4028 = vld [vmem:[%s2195 + $0x4] sm:$0xf]
          %v4029 = vld [vmem:[%s2195 + $0x8] sm:$0xf]
          %v4030 = vld [vmem:[%s2195 + $0xc] sm:$0xf]
          %v4031 = vld [vmem:[%s2204] sm:$0x1]
          %v4033 = vlaneseq
          %v4034 = vshrl.u32 %v4033, 7
          %v4035 = vsub.s32 0, %v4034
          %v4036 = vrot.slane %v4031, %v4035
          %v4042 = vunpack.c.l.b16 %v4027
          %v4043 = vunpack.c.l.b16 %v4028
          %v4044 = vunpack.c.l.b16 %v4029
          %v4045 = vunpack.c.l.b16 %v4030
          %v4046 = vpack.c.b16 %v4043, %v4042
          %v4047 = vpack.c.b16 %v4045, %v4044
          %v4051 = vsel %vm3386, %v4026, 0
          %4053 = vmatprep.subr.bf16.mxu0 0
          %4054 = vmatpush1.bf16.msra.mxu0 %v4046
          %4055 = vmatprep.subr.bf16.mxu0 0
          %4056 = vmatpush1.bf16.msra.mxu0 %v4047
          %4057 = vmatprep.subr.bf16.mxu0 0
          %4058 = vmatpush1.bf16.msra.mxu0 0
          %4059 = vmatprep.subr.bf16.mxu0 0
          %4060 = vmatpush1.bf16.msra.mxu0 0
          %4061 = vmatprep.subr.bf16.mxu0 0
          %4062 = vmatpush1.bf16.msra.mxu0 0
          %4063 = vmatprep.subr.bf16.mxu0 0
          %4064 = vmatpush1.bf16.msra.mxu0 0
          %4065 = vmatprep.subr.bf16.mxu0 0
          %4066 = vmatpush1.bf16.msra.mxu0 0
          %4067 = vmatprep.subr.bf16.mxu0 0
          %4068 = vmatpush1.bf16.msra.mxu0 0
          %4069 = vmatprep.subr.bf16.mxu0 0
          %4070 = vmatpush1.bf16.msra.mxu0 0
          %4071 = vmatprep.subr.bf16.mxu0 0
          %4072 = vmatpush1.bf16.msra.mxu0 0
          %4073 = vmatprep.subr.bf16.mxu0 0
          %4074 = vmatpush1.bf16.msra.mxu0 0
          %4075 = vmatprep.subr.bf16.mxu0 0
          %4076 = vmatpush1.bf16.msra.mxu0 0
          %4077 = vmatprep.subr.bf16.mxu0 0
          %4078 = vmatpush1.bf16.msra.mxu0 0
          %4079 = vmatprep.subr.bf16.mxu0 0
          %4080 = vmatpush1.bf16.msra.mxu0 0
          %4081 = vmatprep.subr.bf16.mxu0 0
          %4082 = vmatpush1.bf16.msra.mxu0 0
          %4083 = vmatprep.subr.bf16.mxu0 0
          %4084 = vmatpush1.bf16.msra.mxu0 0
          %4085 = vmatprep.mubr.bf16.mxu0 0
          %4086 = vmatmul.mubr.bf16.gmra.mrb[0].mxu0 %v4051
          %v4087 = vpop.f32.mrb[0].mxu0
          %v4088 = vadd.f32 %v4036, %v4087
          %v4089 = vpop.f32.mrb[0].mxu0
          %v4090 = vpop.f32.mrb[0].mxu0
          %v4091 = vpop.f32.mrb[0].mxu0
          %4092 = vdwg.mxu0
          %v4093 = vpack.c.bf16 %v4025, %v4025
          %v4094 = vld [vmem:[%s2215] sm:$0xf]
          %v4095 = vld [vmem:[%s2215 + $0x4] sm:$0xf]
          %v4096 = vld [vmem:[%s2215 + $0x8] sm:$0xf]
          %v4097 = vld [vmem:[%s2215 + $0xc] sm:$0xf]
          %v4098 = vld [vmem:[%s2224] sm:$0x1]
          %v4100 = vlaneseq
          %v4101 = vshrl.u32 %v4100, 7
          %v4102 = vsub.s32 0, %v4101
          %v4103 = vrot.slane %v4098, %v4102
          %v4109 = vunpack.c.l.b16 %v4094
          %v4110 = vunpack.c.l.b16 %v4095
          %v4111 = vunpack.c.l.b16 %v4096
          %v4112 = vunpack.c.l.b16 %v4097
          %v4113 = vpack.c.b16 %v4110, %v4109
          %v4114 = vpack.c.b16 %v4112, %v4111
          %v4118 = vsel %vm3386, %v4093, 0
          %4120 = vmatprep.subr.bf16.mxu0 0
          %4121 = vmatpush1.bf16.msra.mxu0 %v4113
          %4122 = vmatprep.subr.bf16.mxu0 0
          %4123 = vmatpush1.bf16.msra.mxu0 %v4114
          %4124 = vmatprep.subr.bf16.mxu0 0
          %4125 = vmatpush1.bf16.msra.mxu0 0
          %4126 = vmatprep.subr.bf16.mxu0 0
          %4127 = vmatpush1.bf16.msra.mxu0 0
          %4128 = vmatprep.subr.bf16.mxu0 0
          %4129 = vmatpush1.bf16.msra.mxu0 0
          %4130 = vmatprep.subr.bf16.mxu0 0
          %4131 = vmatpush1.bf16.msra.mxu0 0
          %4132 = vmatprep.subr.bf16.mxu0 0
          %4133 = vmatpush1.bf16.msra.mxu0 0
          %4134 = vmatprep.subr.bf16.mxu0 0
          %4135 = vmatpush1.bf16.msra.mxu0 0
          %4136 = vmatprep.subr.bf16.mxu0 0
          %4137 = vmatpush1.bf16.msra.mxu0 0
          %4138 = vmatprep.subr.bf16.mxu0 0
          %4139 = vmatpush1.bf16.msra.mxu0 0
          %4140 = vmatprep.subr.bf16.mxu0 0
          %4141 = vmatpush1.bf16.msra.mxu0 0
          %4142 = vmatprep.subr.bf16.mxu0 0
          %4143 = vmatpush1.bf16.msra.mxu0 0
          %4144 = vmatprep.subr.bf16.mxu0 0
          %4145 = vmatpush1.bf16.msra.mxu0 0
          %4146 = vmatprep.subr.bf16.mxu0 0
          %4147 = vmatpush1.bf16.msra.mxu0 0
          %4148 = vmatprep.subr.bf16.mxu0 0
          %4149 = vmatpush1.bf16.msra.mxu0 0
          %4150 = vmatprep.subr.bf16.mxu0 0
          %4151 = vmatpush1.bf16.msra.mxu0 0
          %4152 = vmatprep.mubr.bf16.mxu0 0
          %4153 = vmatmul.mubr.bf16.gmra.mrb[0].mxu0 %v4118
          %v4154 = vpop.f32.mrb[0].mxu0
          %v4155 = vadd.f32 %v4103, %v4154
          %v4156 = vpop.f32.mrb[0].mxu0
          %v4157 = vpop.f32.mrb[0].mxu0
          %v4158 = vpop.f32.mrb[0].mxu0
          %4159 = vdwg.mxu0
          %v4160 = vld [vmem:[%s2051] sm:$0x1]
          %v4161 = vld [vmem:[%s2235] sm:$0xf]
          %v4162 = vld [vmem:[%s2235 + $0x4] sm:$0xf]
          %v4163 = vld [vmem:[%s2235 + $0x8] sm:$0xf]
          %v4164 = vld [vmem:[%s2235 + $0xc] sm:$0xf]
          %v4165 = vld [vmem:[%s2244] sm:$0x1]
          %v4166 = vmul.f32 %v4088, 0.35355338
          %v4167 = vpack.c.bf16 %v4166, %v4166
          %4168 = vxpose.xlu0.b32.start [1/16] %v4155, 128
          %4169 = vxpose.xlu0.b32.cont [2/16] 0.0, 128
          %4170 = vxpose.xlu0.b32.cont [3/16] 0.0, 128
          %4171 = vxpose.xlu0.b32.cont [4/16] 0.0, 128
          %4172 = vxpose.xlu0.b32.cont [5/16] 0.0, 128
          %4173 = vxpose.xlu0.b32.cont [6/16] 0.0, 128
          %4174 = vxpose.xlu0.b32.cont [7/16] 0.0, 128
          %4175 = vxpose.xlu0.b32.cont [8/16] 0.0, 128
          %4176 = vxpose.xlu0.b32.cont [9/16] 0.0, 128
          %4177 = vxpose.xlu0.b32.cont [10/16] 0.0, 128
          %4178 = vxpose.xlu0.b32.cont [11/16] 0.0, 128
          %4179 = vxpose.xlu0.b32.cont [12/16] 0.0, 128
          %4180 = vxpose.xlu0.b32.cont [13/16] 0.0, 128
          %4181 = vxpose.xlu0.b32.cont [14/16] 0.0, 128
          %4182 = vxpose.xlu0.b32.cont [15/16] 0.0, 128
          %4183 = vxpose.xlu0.b32.end [16/16] 0.0, 128
          %v4184 = vpop.trf.xlu0
          %v4185 = vpop.trf.xlu0
          %v4186 = vpop.trf.xlu0
          %v4187 = vpop.trf.xlu0
          %v4188 = vpop.trf.xlu0
          %v4189 = vpop.trf.xlu0
          %v4190 = vpop.trf.xlu0
          %v4191 = vpop.trf.xlu0
          %v4192 = vpop.trf.xlu0
          %v4193 = vpop.trf.xlu0
          %v4194 = vpop.trf.xlu0
          %v4195 = vpop.trf.xlu0
          %v4196 = vpop.trf.xlu0
          %v4197 = vpop.trf.xlu0
          %v4198 = vpop.trf.xlu0
          %v4199 = vpop.trf.xlu0
          %v4200 = vpack.c.bf16 %v4185, %v4184
          %v4201 = vpack.c.bf16 %v4187, %v4186
          %v4202 = vpack.c.bf16 %v4155, %v4155
          %v4204 = vlaneseq
          %v4205 = vshrl.u32 %v4204, 7
          %v4206 = vsub.s32 0, %v4205
          %v4207 = vrot.slane %v4160, %v4206
          %v4210 = vsel %vm3477, %v4167, 0
          %v4213 = vsel %vm3481, %v4200, 0
          %4215 = vmatprep.subr.bf16.mxu0 0
          %4216 = vmatpush1.bf16.msra.mxu0 %v4213
          %4217 = vmatprep.subr.bf16.mxu0 0
          %4218 = vmatpush1.bf16.msra.mxu0 0
          %4219 = vmatprep.subr.bf16.mxu0 0
          %4220 = vmatpush1.bf16.msra.mxu0 0
          %4221 = vmatprep.subr.bf16.mxu0 0
          %4222 = vmatpush1.bf16.msra.mxu0 0
          %4223 = vmatprep.subr.bf16.mxu0 0
          %4224 = vmatpush1.bf16.msra.mxu0 0
          %4225 = vmatprep.subr.bf16.mxu0 0
          %4226 = vmatpush1.bf16.msra.mxu0 0
          %4227 = vmatprep.subr.bf16.mxu0 0
          %4228 = vmatpush1.bf16.msra.mxu0 0
          %4229 = vmatprep.subr.bf16.mxu0 0
          %4230 = vmatpush1.bf16.msra.mxu0 0
          %4231 = vmatprep.subr.bf16.mxu0 0
          %4232 = vmatpush1.bf16.msra.mxu0 0
          %4233 = vmatprep.subr.bf16.mxu0 0
          %4234 = vmatpush1.bf16.msra.mxu0 0
          %4235 = vmatprep.subr.bf16.mxu0 0
          %4236 = vmatpush1.bf16.msra.mxu0 0
          %4237 = vmatprep.subr.bf16.mxu0 0
          %4238 = vmatpush1.bf16.msra.mxu0 0
          %4239 = vmatprep.subr.bf16.mxu0 0
          %4240 = vmatpush1.bf16.msra.mxu0 0
          %4241 = vmatprep.subr.bf16.mxu0 0
          %4242 = vmatpush1.bf16.msra.mxu0 0
          %4243 = vmatprep.subr.bf16.mxu0 0
          %4244 = vmatpush1.bf16.msra.mxu0 0
          %4245 = vmatprep.subr.bf16.mxu0 0
          %4246 = vmatpush1.bf16.msra.mxu0 0
          %4247 = vmatprep.mubr.bf16.mxu0 0
          %4248 = vmatmul.mubr.bf16.gmra.mrb[0].mxu0 %v4210
          %v4249 = vpop.f32.mrb[0].mxu0
          %v4250 = vadd.f32 %v4207, %v4249
          %v4251 = vpop.f32.mrb[0].mxu0
          %v4252 = vpop.f32.mrb[0].mxu0
          %v4253 = vpop.f32.mrb[0].mxu0
          %4254 = vdwg.mxu0
          %v4255 = vsel %vm3477, %v4250, -inf
          %4256 = vmax.xlane.f32.xlu0 %v4255
          %v4257 = vpop.xlane.xlu0 %4256
          %v4258 = vsub.f32 %v4250, %v4257
          %v4259 = vmul.f32 %v4258, 1.442695
          %v4260 = vpow.pop %v4259
          %v4261 = vsel %vm3477, %v4260, 0.0
          %4262 = vadd.xlane.f32.xlu0 %v4261
          %v4263 = vpop.xlane.xlu0 %4262
          %v4264 = vrcp.pop %v4263
          %v4265 = vmul.f32 %v4260, %v4264
          %v4266 = vpack.c.bf16 %v4265, %v4265
          %4268 = vrot.lane.b32.xlu0 %v4202, 96
          %v4269 = vpop.permute.xlu0 %4268
          %v4271 = vsel %vm3477, %v4266, 0
          %v4274 = vsel %vm3481, %v4269, 0
          %4276 = vmatprep.subr.bf16.mxu0 0
          %4277 = vmatpush1.bf16.msra.mxu0 %v4274
          %4278 = vmatprep.subr.bf16.mxu0 0
          %4279 = vmatpush1.bf16.msra.mxu0 0
          %4280 = vmatprep.subr.bf16.mxu0 0
          %4281 = vmatpush1.bf16.msra.mxu0 0
          %4282 = vmatprep.subr.bf16.mxu0 0
          %4283 = vmatpush1.bf16.msra.mxu0 0
          %4284 = vmatprep.subr.bf16.mxu0 0
          %4285 = vmatpush1.bf16.msra.mxu0 0
          %4286 = vmatprep.subr.bf16.mxu0 0
          %4287 = vmatpush1.bf16.msra.mxu0 0
          %4288 = vmatprep.subr.bf16.mxu0 0
          %4289 = vmatpush1.bf16.msra.mxu0 0
          %4290 = vmatprep.subr.bf16.mxu0 0
          %4291 = vmatpush1.bf16.msra.mxu0 0
          %4292 = vmatprep.subr.bf16.mxu0 0
          %4293 = vmatpush1.bf16.msra.mxu0 0
          %4294 = vmatprep.subr.bf16.mxu0 0
          %4295 = vmatpush1.bf16.msra.mxu0 0
          %4296 = vmatprep.subr.bf16.mxu0 0
          %4297 = vmatpush1.bf16.msra.mxu0 0
          %4298 = vmatprep.subr.bf16.mxu0 0
          %4299 = vmatpush1.bf16.msra.mxu0 0
          %4300 = vmatprep.subr.bf16.mxu0 0
          %4301 = vmatpush1.bf16.msra.mxu0 0
          %4302 = vmatprep.subr.bf16.mxu0 0
          %4303 = vmatpush1.bf16.msra.mxu0 0
          %4304 = vmatprep.subr.bf16.mxu0 0
          %4305 = vmatpush1.bf16.msra.mxu0 0
          %4306 = vmatprep.subr.bf16.mxu0 0
          %4307 = vmatpush1.bf16.msra.mxu0 0
          %4308 = vmatprep.mubr.bf16.mxu0 0
          %4309 = vmatmul.mubr.bf16.gmra.mrb[0].mxu0 %v4271
          %v4310 = vpop.f32.mrb[0].mxu0
          %v4311 = vadd.f32 0.0, %v4310
          %v4312 = vpop.f32.mrb[0].mxu0
          %v4313 = vpop.f32.mrb[0].mxu0
          %v4314 = vpop.f32.mrb[0].mxu0
          %4315 = vdwg.mxu0
          %4317 = vrot.lane.b32.xlu0 %v4167, 120
          %v4318 = vpop.permute.xlu0 %4317
          %v4320 = vrot.slane %v4200, 4
          %v4322 = vsel %vm3477, %v4318, 0
          %v4325 = vsel %vm3481, %v4320, 0
          %4327 = vmatprep.subr.bf16.mxu0 0
          %4328 = vmatpush1.bf16.msra.mxu0 %v4325
          %4329 = vmatprep.subr.bf16.mxu0 0
          %4330 = vmatpush1.bf16.msra.mxu0 0
          %4331 = vmatprep.subr.bf16.mxu0 0
          %4332 = vmatpush1.bf16.msra.mxu0 0
          %4333 = vmatprep.subr.bf16.mxu0 0
          %4334 = vmatpush1.bf16.msra.mxu0 0
          %4335 = vmatprep.subr.bf16.mxu0 0
          %4336 = vmatpush1.bf16.msra.mxu0 0
          %4337 = vmatprep.subr.bf16.mxu0 0
          %4338 = vmatpush1.bf16.msra.mxu0 0
          %4339 = vmatprep.subr.bf16.mxu0 0
          %4340 = vmatpush1.bf16.msra.mxu0 0
          %4341 = vmatprep.subr.bf16.mxu0 0
          %4342 = vmatpush1.bf16.msra.mxu0 0
          %4343 = vmatprep.subr.bf16.mxu0 0
          %4344 = vmatpush1.bf16.msra.mxu0 0
          %4345 = vmatprep.subr.bf16.mxu0 0
          %4346 = vmatpush1.bf16.msra.mxu0 0
          %4347 = vmatprep.subr.bf16.mxu0 0
          %4348 = vmatpush1.bf16.msra.mxu0 0
          %4349 = vmatprep.subr.bf16.mxu0 0
          %4350 = vmatpush1.bf16.msra.mxu0 0
          %4351 = vmatprep.subr.bf16.mxu0 0
          %4352 = vmatpush1.bf16.msra.mxu0 0
          %4353 = vmatprep.subr.bf16.mxu0 0
          %4354 = vmatpush1.bf16.msra.mxu0 0
          %4355 = vmatprep.subr.bf16.mxu0 0
          %4356 = vmatpush1.bf16.msra.mxu0 0
          %4357 = vmatprep.subr.bf16.mxu0 0
          %4358 = vmatpush1.bf16.msra.mxu0 0
          %4359 = vmatprep.mubr.bf16.mxu0 0
          %4360 = vmatmul.mubr.bf16.gmra.mrb[0].mxu0 %v4322
          %v4361 = vpop.f32.mrb[0].mxu0
          %v4362 = vadd.f32 %v4207, %v4361
          %v4363 = vpop.f32.mrb[0].mxu0
          %v4364 = vpop.f32.mrb[0].mxu0
          %v4365 = vpop.f32.mrb[0].mxu0
          %4366 = vdwg.mxu0
          %v4367 = vsel %vm3477, %v4362, -inf
          %4368 = vmax.xlane.f32.xlu0 %v4367
          %v4369 = vpop.xlane.xlu0 %4368
          %v4370 = vsub.f32 %v4362, %v4369
          %v4371 = vmul.f32 %v4370, 1.442695
          %v4372 = vpow.pop %v4371
          %v4373 = vsel %vm3477, %v4372, 0.0
          %4374 = vadd.xlane.f32.xlu0 %v4373
          %v4375 = vpop.xlane.xlu0 %4374
          %v4376 = vrcp.pop %v4375
          %v4377 = vmul.f32 %v4372, %v4376
          %v4378 = vpack.c.bf16 %v4377, %v4377
          %4379 = vrot.lane.b32.xlu0 %v4202, 88
          %v4380 = vpop.permute.xlu0 %4379
          %v4382 = vsel %vm3477, %v4378, 0
          %v4385 = vsel %vm3481, %v4380, 0
          %4387 = vmatprep.subr.bf16.mxu0 0
          %4388 = vmatpush1.bf16.msra.mxu0 %v4385
          %4389 = vmatprep.subr.bf16.mxu0 0
          %4390 = vmatpush1.bf16.msra.mxu0 0
          %4391 = vmatprep.subr.bf16.mxu0 0
          %4392 = vmatpush1.bf16.msra.mxu0 0
          %4393 = vmatprep.subr.bf16.mxu0 0
          %4394 = vmatpush1.bf16.msra.mxu0 0
          %4395 = vmatprep.subr.bf16.mxu0 0
          %4396 = vmatpush1.bf16.msra.mxu0 0
          %4397 = vmatprep.subr.bf16.mxu0 0
          %4398 = vmatpush1.bf16.msra.mxu0 0
          %4399 = vmatprep.subr.bf16.mxu0 0
          %4400 = vmatpush1.bf16.msra.mxu0 0
          %4401 = vmatprep.subr.bf16.mxu0 0
          %4402 = vmatpush1.bf16.msra.mxu0 0
          %4403 = vmatprep.subr.bf16.mxu0 0
          %4404 = vmatpush1.bf16.msra.mxu0 0
          %4405 = vmatprep.subr.bf16.mxu0 0
          %4406 = vmatpush1.bf16.msra.mxu0 0
          %4407 = vmatprep.subr.bf16.mxu0 0
          %4408 = vmatpush1.bf16.msra.mxu0 0
          %4409 = vmatprep.subr.bf16.mxu0 0
          %4410 = vmatpush1.bf16.msra.mxu0 0
          %4411 = vmatprep.subr.bf16.mxu0 0
          %4412 = vmatpush1.bf16.msra.mxu0 0
          %4413 = vmatprep.subr.bf16.mxu0 0
          %4414 = vmatpush1.bf16.msra.mxu0 0
          %4415 = vmatprep.subr.bf16.mxu0 0
          %4416 = vmatpush1.bf16.msra.mxu0 0
          %4417 = vmatprep.subr.bf16.mxu0 0
          %4418 = vmatpush1.bf16.msra.mxu0 0
          %4419 = vmatprep.mubr.bf16.mxu0 0
          %4420 = vmatmul.mubr.bf16.gmra.mrb[0].mxu0 %v4382
          %v4421 = vpop.f32.mrb[0].mxu0
          %v4422 = vadd.f32 0.0, %v4421
          %v4423 = vpop.f32.mrb[0].mxu0
          %v4424 = vpop.f32.mrb[0].mxu0
          %v4425 = vpop.f32.mrb[0].mxu0
          %4426 = vdwg.mxu0
          %4427 = vrot.lane.b32.xlu0 %v4167, 112
          %v4428 = vpop.permute.xlu0 %4427
          %v4430 = vsel %vm3477, %v4428, 0
          %v4433 = vsel %vm3481, %v4201, 0
          %4435 = vmatprep.subr.bf16.mxu0 0
          %4436 = vmatpush1.bf16.msra.mxu0 %v4433
          %4437 = vmatprep.subr.bf16.mxu0 0
          %4438 = vmatpush1.bf16.msra.mxu0 0
          %4439 = vmatprep.subr.bf16.mxu0 0
          %4440 = vmatpush1.bf16.msra.mxu0 0
          %4441 = vmatprep.subr.bf16.mxu0 0
          %4442 = vmatpush1.bf16.msra.mxu0 0
          %4443 = vmatprep.subr.bf16.mxu0 0
          %4444 = vmatpush1.bf16.msra.mxu0 0
          %4445 = vmatprep.subr.bf16.mxu0 0
          %4446 = vmatpush1.bf16.msra.mxu0 0
          %4447 = vmatprep.subr.bf16.mxu0 0
          %4448 = vmatpush1.bf16.msra.mxu0 0
          %4449 = vmatprep.subr.bf16.mxu0 0
          %4450 = vmatpush1.bf16.msra.mxu0 0
          %4451 = vmatprep.subr.bf16.mxu0 0
          %4452 = vmatpush1.bf16.msra.mxu0 0
          %4453 = vmatprep.subr.bf16.mxu0 0
          %4454 = vmatpush1.bf16.msra.mxu0 0
          %4455 = vmatprep.subr.bf16.mxu0 0
          %4456 = vmatpush1.bf16.msra.mxu0 0
          %4457 = vmatprep.subr.bf16.mxu0 0
          %4458 = vmatpush1.bf16.msra.mxu0 0
          %4459 = vmatprep.subr.bf16.mxu0 0
          %4460 = vmatpush1.bf16.msra.mxu0 0
          %4461 = vmatprep.subr.bf16.mxu0 0
          %4462 = vmatpush1.bf16.msra.mxu0 0
          %4463 = vmatprep.subr.bf16.mxu0 0
          %4464 = vmatpush1.bf16.msra.mxu0 0
          %4465 = vmatprep.subr.bf16.mxu0 0
          %4466 = vmatpush1.bf16.msra.mxu0 0
          %4467 = vmatprep.mubr.bf16.mxu0 0
          %4468 = vmatmul.mubr.bf16.gmra.mrb[0].mxu0 %v4430
          %v4469 = vpop.f32.mrb[0].mxu0
          %v4470 = vadd.f32 %v4207, %v4469
          %v4471 = vpop.f32.mrb[0].mxu0
          %v4472 = vpop.f32.mrb[0].mxu0
          %v4473 = vpop.f32.mrb[0].mxu0
          %4474 = vdwg.mxu0
          %v4475 = vsel %vm3477, %v4470, -inf
          %4476 = vmax.xlane.f32.xlu0 %v4475
          %v4477 = vpop.xlane.xlu0 %4476
          %v4478 = vsub.f32 %v4470, %v4477
          %v4479 = vmul.f32 %v4478, 1.442695
          %v4480 = vpow.pop %v4479
          %v4481 = vsel %vm3477, %v4480, 0.0
          %4482 = vadd.xlane.f32.xlu0 %v4481
          %v4483 = vpop.xlane.xlu0 %4482
          %v4484 = vrcp.pop %v4483
          %v4485 = vmul.f32 %v4480, %v4484
          %v4486 = vpack.c.bf16 %v4485, %v4485
          %4487 = vrot.lane.b32.xlu0 %v4202, 80
          %v4488 = vpop.permute.xlu0 %4487
          %v4490 = vsel %vm3477, %v4486, 0
          %v4493 = vsel %vm3481, %v4488, 0
          %4495 = vmatprep.subr.bf16.mxu0 0
          %4496 = vmatpush1.bf16.msra.mxu0 %v4493
          %4497 = vmatprep.subr.bf16.mxu0 0
          %4498 = vmatpush1.bf16.msra.mxu0 0
          %4499 = vmatprep.subr.bf16.mxu0 0
          %4500 = vmatpush1.bf16.msra.mxu0 0
          %4501 = vmatprep.subr.bf16.mxu0 0
          %4502 = vmatpush1.bf16.msra.mxu0 0
          %4503 = vmatprep.subr.bf16.mxu0 0
          %4504 = vmatpush1.bf16.msra.mxu0 0
          %4505 = vmatprep.subr.bf16.mxu0 0
          %4506 = vmatpush1.bf16.msra.mxu0 0
          %4507 = vmatprep.subr.bf16.mxu0 0
          %4508 = vmatpush1.bf16.msra.mxu0 0
          %4509 = vmatprep.subr.bf16.mxu0 0
          %4510 = vmatpush1.bf16.msra.mxu0 0
          %4511 = vmatprep.subr.bf16.mxu0 0
          %4512 = vmatpush1.bf16.msra.mxu0 0
          %4513 = vmatprep.subr.bf16.mxu0 0
          %4514 = vmatpush1.bf16.msra.mxu0 0
          %4515 = vmatprep.subr.bf16.mxu0 0
          %4516 = vmatpush1.bf16.msra.mxu0 0
          %4517 = vmatprep.subr.bf16.mxu0 0
          %4518 = vmatpush1.bf16.msra.mxu0 0
          %4519 = vmatprep.subr.bf16.mxu0 0
          %4520 = vmatpush1.bf16.msra.mxu0 0
          %4521 = vmatprep.subr.bf16.mxu0 0
          %4522 = vmatpush1.bf16.msra.mxu0 0
          %4523 = vmatprep.subr.bf16.mxu0 0
          %4524 = vmatpush1.bf16.msra.mxu0 0
          %4525 = vmatprep.subr.bf16.mxu0 0
          %4526 = vmatpush1.bf16.msra.mxu0 0
          %4527 = vmatprep.mubr.bf16.mxu0 0
          %4528 = vmatmul.mubr.bf16.gmra.mrb[0].mxu0 %v4490
          %v4529 = vpop.f32.mrb[0].mxu0
          %v4530 = vadd.f32 0.0, %v4529
          %v4531 = vpop.f32.mrb[0].mxu0
          %v4532 = vpop.f32.mrb[0].mxu0
          %v4533 = vpop.f32.mrb[0].mxu0
          %4534 = vdwg.mxu0
          %4535 = vrot.lane.b32.xlu0 %v4167, 104
          %v4536 = vpop.permute.xlu0 %4535
          %v4538 = vrot.slane %v4201, 4
          %v4540 = vsel %vm3477, %v4536, 0
          %v4543 = vsel %vm3481, %v4538, 0
          %4545 = vmatprep.subr.bf16.mxu0 0
          %4546 = vmatpush1.bf16.msra.mxu0 %v4543
          %4547 = vmatprep.subr.bf16.mxu0 0
          %4548 = vmatpush1.bf16.msra.mxu0 0
          %4549 = vmatprep.subr.bf16.mxu0 0
          %4550 = vmatpush1.bf16.msra.mxu0 0
          %4551 = vmatprep.subr.bf16.mxu0 0
          %4552 = vmatpush1.bf16.msra.mxu0 0
          %4553 = vmatprep.subr.bf16.mxu0 0
          %4554 = vmatpush1.bf16.msra.mxu0 0
          %4555 = vmatprep.subr.bf16.mxu0 0
          %4556 = vmatpush1.bf16.msra.mxu0 0
          %4557 = vmatprep.subr.bf16.mxu0 0
          %4558 = vmatpush1.bf16.msra.mxu0 0
          %4559 = vmatprep.subr.bf16.mxu0 0
          %4560 = vmatpush1.bf16.msra.mxu0 0
          %4561 = vmatprep.subr.bf16.mxu0 0
          %4562 = vmatpush1.bf16.msra.mxu0 0
          %4563 = vmatprep.subr.bf16.mxu0 0
          %4564 = vmatpush1.bf16.msra.mxu0 0
          %4565 = vmatprep.subr.bf16.mxu0 0
          %4566 = vmatpush1.bf16.msra.mxu0 0
          %4567 = vmatprep.subr.bf16.mxu0 0
          %4568 = vmatpush1.bf16.msra.mxu0 0
          %4569 = vmatprep.subr.bf16.mxu0 0
          %4570 = vmatpush1.bf16.msra.mxu0 0
          %4571 = vmatprep.subr.bf16.mxu0 0
          %4572 = vmatpush1.bf16.msra.mxu0 0
          %4573 = vmatprep.subr.bf16.mxu0 0
          %4574 = vmatpush1.bf16.msra.mxu0 0
          %4575 = vmatprep.subr.bf16.mxu0 0
          %4576 = vmatpush1.bf16.msra.mxu0 0
          %4577 = vmatprep.mubr.bf16.mxu0 0
          %4578 = vmatmul.mubr.bf16.gmra.mrb[0].mxu0 %v4540
          %v4579 = vpop.f32.mrb[0].mxu0
          %v4580 = vadd.f32 %v4207, %v4579
          %v4581 = vpop.f32.mrb[0].mxu0
          %v4582 = vpop.f32.mrb[0].mxu0
          %v4583 = vpop.f32.mrb[0].mxu0
          %4584 = vdwg.mxu0
          %v4585 = vsel %vm3477, %v4580, -inf
          %4586 = vmax.xlane.f32.xlu0 %v4585
          %v4587 = vpop.xlane.xlu0 %4586
          %v4588 = vsub.f32 %v4580, %v4587
          %v4589 = vmul.f32 %v4588, 1.442695
          %v4590 = vpow.pop %v4589
          %v4591 = vsel %vm3477, %v4590, 0.0
          %4592 = vadd.xlane.f32.xlu0 %v4591
          %v4593 = vpop.xlane.xlu0 %4592
          %v4594 = vrcp.pop %v4593
          %v4595 = vmul.f32 %v4590, %v4594
          %v4596 = vpack.c.bf16 %v4595, %v4595
          %4597 = vrot.lane.b32.xlu0 %v4202, 72
          %v4598 = vpop.permute.xlu0 %4597
          %v4600 = vsel %vm3477, %v4596, 0
          %v4603 = vsel %vm3481, %v4598, 0
          %4605 = vmatprep.subr.bf16.mxu0 0
          %4606 = vmatpush1.bf16.msra.mxu0 %v4603
          %4607 = vmatprep.subr.bf16.mxu0 0
          %4608 = vmatpush1.bf16.msra.mxu0 0
          %4609 = vmatprep.subr.bf16.mxu0 0
          %4610 = vmatpush1.bf16.msra.mxu0 0
          %4611 = vmatprep.subr.bf16.mxu0 0
          %4612 = vmatpush1.bf16.msra.mxu0 0
          %4613 = vmatprep.subr.bf16.mxu0 0
          %4614 = vmatpush1.bf16.msra.mxu0 0
          %4615 = vmatprep.subr.bf16.mxu0 0
          %4616 = vmatpush1.bf16.msra.mxu0 0
          %4617 = vmatprep.subr.bf16.mxu0 0
          %4618 = vmatpush1.bf16.msra.mxu0 0
          %4619 = vmatprep.subr.bf16.mxu0 0
          %4620 = vmatpush1.bf16.msra.mxu0 0
          %4621 = vmatprep.subr.bf16.mxu0 0
          %4622 = vmatpush1.bf16.msra.mxu0 0
          %4623 = vmatprep.subr.bf16.mxu0 0
          %4624 = vmatpush1.bf16.msra.mxu0 0
          %4625 = vmatprep.subr.bf16.mxu0 0
          %4626 = vmatpush1.bf16.msra.mxu0 0
          %4627 = vmatprep.subr.bf16.mxu0 0
          %4628 = vmatpush1.bf16.msra.mxu0 0
          %4629 = vmatprep.subr.bf16.mxu0 0
          %4630 = vmatpush1.bf16.msra.mxu0 0
          %4631 = vmatprep.subr.bf16.mxu0 0
          %4632 = vmatpush1.bf16.msra.mxu0 0
          %4633 = vmatprep.subr.bf16.mxu0 0
          %4634 = vmatpush1.bf16.msra.mxu0 0
          %4635 = vmatprep.subr.bf16.mxu0 0
          %4636 = vmatpush1.bf16.msra.mxu0 0
          %4637 = vmatprep.mubr.bf16.mxu0 0
          %4638 = vmatmul.mubr.bf16.gmra.mrb[0].mxu0 %v4600
          %v4639 = vpop.f32.mrb[0].mxu0
          %v4640 = vadd.f32 0.0, %v4639
          %v4641 = vpop.f32.mrb[0].mxu0
          %v4642 = vpop.f32.mrb[0].mxu0
          %v4643 = vpop.f32.mrb[0].mxu0
          %4644 = vdwg.mxu0
          %4646 = vrot.lane.b32.xlu0 %v4422, 8
          %v4647 = vpop.permute.xlu0 %4646
          %4650 = vrot.lane.b32.xlu0 %v4530, 16
          %v4651 = vpop.permute.xlu0 %4650
          %4654 = vrot.lane.b32.xlu0 %v4640, 24
          %v4655 = vpop.permute.xlu0 %4654
          %v4657 = vsel %vm3477, %v4311, %v4647
          %v4658 = vsel %vm3928, %v4657, %v4651
          %v4659 = vsel %vm3930, %v4658, %v4655
          %v4660 = vpack.c.bf16 %v4659, %v4659
          %v4662 = vlaneseq
          %v4663 = vshrl.u32 %v4662, 7
          %v4664 = vsub.s32 0, %v4663
          %v4665 = vrot.slane %v4165, %v4664
          %v4671 = vunpack.c.l.b16 %v4161
          %v4672 = vunpack.c.l.b16 %v4162
          %v4673 = vunpack.c.l.b16 %v4163
          %v4674 = vunpack.c.l.b16 %v4164
          %v4675 = vpack.c.b16 %v4672, %v4671
          %v4676 = vpack.c.b16 %v4674, %v4673
          %v4680 = vsel %vm3386, %v4660, 0
          %4682 = vmatprep.subr.bf16.mxu0 0
          %4683 = vmatpush1.bf16.msra.mxu0 %v4675
          %4684 = vmatprep.subr.bf16.mxu0 0
          %4685 = vmatpush1.bf16.msra.mxu0 %v4676
          %4686 = vmatprep.subr.bf16.mxu0 0
          %4687 = vmatpush1.bf16.msra.mxu0 0
          %4688 = vmatprep.subr.bf16.mxu0 0
          %4689 = vmatpush1.bf16.msra.mxu0 0
          %4690 = vmatprep.subr.bf16.mxu0 0
          %4691 = vmatpush1.bf16.msra.mxu0 0
          %4692 = vmatprep.subr.bf16.mxu0 0
          %4693 = vmatpush1.bf16.msra.mxu0 0
          %4694 = vmatprep.subr.bf16.mxu0 0
          %4695 = vmatpush1.bf16.msra.mxu0 0
          %4696 = vmatprep.subr.bf16.mxu0 0
          %4697 = vmatpush1.bf16.msra.mxu0 0
          %4698 = vmatprep.subr.bf16.mxu0 0
          %4699 = vmatpush1.bf16.msra.mxu0 0
          %4700 = vmatprep.subr.bf16.mxu0 0
          %4701 = vmatpush1.bf16.msra.mxu0 0
          %4702 = vmatprep.subr.bf16.mxu0 0
          %4703 = vmatpush1.bf16.msra.mxu0 0
          %4704 = vmatprep.subr.bf16.mxu0 0
          %4705 = vmatpush1.bf16.msra.mxu0 0
          %4706 = vmatprep.subr.bf16.mxu0 0
          %4707 = vmatpush1.bf16.msra.mxu0 0
          %4708 = vmatprep.subr.bf16.mxu0 0
          %4709 = vmatpush1.bf16.msra.mxu0 0
          %4710 = vmatprep.subr.bf16.mxu0 0
          %4711 = vmatpush1.bf16.msra.mxu0 0
          %4712 = vmatprep.subr.bf16.mxu0 0
          %4713 = vmatpush1.bf16.msra.mxu0 0
          %4714 = vmatprep.mubr.bf16.mxu0 0
          %4715 = vmatmul.mubr.bf16.gmra.mrb[0].mxu0 %v4680
          %v4716 = vpop.f32.mrb[0].mxu0
          %v4717 = vadd.f32 %v4665, %v4716
          %v4718 = vpop.f32.mrb[0].mxu0
          %v4719 = vpop.f32.mrb[0].mxu0
          %v4720 = vpop.f32.mrb[0].mxu0
          %4721 = vdwg.mxu0
          %v4722 = vadd.f32 %v4024, %v4717
          %v4723 = vld [vmem:[%s2271] sm:$0x1]
          %v4724 = vld [vmem:[%s2280] sm:$0x1]
          %v4725 = vsel %vm3386, %v4722, 0.0
          %4726 = vadd.xlane.f32.xlu0 %v4725
          %v4727 = vpop.xlane.xlu0 %4726
          %v4728 = vmul.f32 %v4727, %v4000
          %v4729 = vsub.f32 %v4722, %v4728
          %v4730 = vmul.f32 %v4729, %v4729
          %v4731 = vsel %vm3386, %v4730, 0.0
          %4732 = vadd.xlane.f32.xlu0 %v4731
          %v4733 = vpop.xlane.xlu0 %4732
          %v4734 = vmul.f32 %v4733, %v4000
          %v4735 = vadd.f32 %v4734, 1e-05
          %v4736 = vrsqrt.pop %v4735
          %v4737 = vmul.f32 %v4729, %v4736
          %v4739 = vlaneseq
          %v4740 = vshrl.u32 %v4739, 7
          %v4741 = vsub.s32 0, %v4740
          %v4742 = vrot.slane %v4723, %v4741
          %v4744 = vmul.f32 %v4737, %v4742
          %v4746 = vlaneseq
          %v4747 = vshrl.u32 %v4746, 7
          %v4748 = vsub.s32 0, %v4747
          %v4749 = vrot.slane %v4724, %v4748
          %v4751 = vadd.f32 %v4744, %v4749
          %v4752 = vld [vmem:[%s2309] sm:$0xf]
          %v4753 = vld [vmem:[%s2309 + $0x4] sm:$0xf]
          %v4754 = vld [vmem:[%s2309 + $0x8] sm:$0xf]
          %v4755 = vld [vmem:[%s2309 + $0xc] sm:$0xf]
          %v4756 = vld [vmem:[%s2318] sm:$0x1]
          %v4757 = vld [vmem:[%s2329] sm:$0xf]
          %v4758 = vld [vmem:[%s2329 + $0x4] sm:$0xf]
          %v4759 = vld [vmem:[%s2329 + $0x8] sm:$0xf]
          %v4760 = vld [vmem:[%s2329 + $0xc] sm:$0xf]
          %v4761 = vld [vmem:[%s2329 + $0x10] sm:$0xf]
          %v4762 = vld [vmem:[%s2329 + $0x14] sm:$0xf]
          %v4763 = vld [vmem:[%s2329 + $0x18] sm:$0xf]
          %v4764 = vld [vmem:[%s2329 + $0x1c] sm:$0xf]
          %v4765 = vld [vmem:[%s2338] sm:$0x1]
          %v4766 = vpack.c.bf16 %v4751, %v4751
          %v4768 = vlaneseq
          %v4769 = vshrl.u32 %v4768, 7
          %v4770 = vsub.s32 0, %v4769
          %v4771 = vrot.slane %v4756, %v4770
          %v4777 = vunpack.c.l.b16 %v4752
          %v4778 = vunpack.c.l.b16 %v4753
          %v4779 = vunpack.c.l.b16 %v4754
          %v4780 = vunpack.c.l.b16 %v4755
          %v4781 = vpack.c.b16 %v4778, %v4777
          %v4782 = vpack.c.b16 %v4780, %v4779
          %v4786 = vsel %vm3386, %v4766, 0
          %4788 = vmatprep.subr.bf16.mxu0 0
          %4789 = vmatpush1.bf16.msra.mxu0 %v4781
          %4790 = vmatprep.subr.bf16.mxu0 0
          %4791 = vmatpush1.bf16.msra.mxu0 %v4782
          %4792 = vmatprep.subr.bf16.mxu0 0
          %4793 = vmatpush1.bf16.msra.mxu0 0
          %4794 = vmatprep.subr.bf16.mxu0 0
          %4795 = vmatpush1.bf16.msra.mxu0 0
          %4796 = vmatprep.subr.bf16.mxu0 0
          %4797 = vmatpush1.bf16.msra.mxu0 0
          %4798 = vmatprep.subr.bf16.mxu0 0
          %4799 = vmatpush1.bf16.msra.mxu0 0
          %4800 = vmatprep.subr.bf16.mxu0 0
          %4801 = vmatpush1.bf16.msra.mxu0 0
          %4802 = vmatprep.subr.bf16.mxu0 0
          %4803 = vmatpush1.bf16.msra.mxu0 0
          %4804 = vmatprep.subr.bf16.mxu0 0
          %4805 = vmatpush1.bf16.msra.mxu0 0
          %4806 = vmatprep.subr.bf16.mxu0 0
          %4807 = vmatpush1.bf16.msra.mxu0 0
          %4808 = vmatprep.subr.bf16.mxu0 0
          %4809 = vmatpush1.bf16.msra.mxu0 0
          %4810 = vmatprep.subr.bf16.mxu0 0
          %4811 = vmatpush1.bf16.msra.mxu0 0
          %4812 = vmatprep.subr.bf16.mxu0 0
          %4813 = vmatpush1.bf16.msra.mxu0 0
          %4814 = vmatprep.subr.bf16.mxu0 0
          %4815 = vmatpush1.bf16.msra.mxu0 0
          %4816 = vmatprep.subr.bf16.mxu0 0
          %4817 = vmatpush1.bf16.msra.mxu0 0
          %4818 = vmatprep.subr.bf16.mxu0 0
          %4819 = vmatpush1.bf16.msra.mxu0 0
          %4820 = vmatprep.mubr.bf16.mxu0 0
          %4821 = vmatmul.mubr.bf16.gmra.mrb[0].mxu0 %v4786
          %v4822 = vpop.f32.mrb[0].mxu0
          %v4823 = vadd.f32 %v4771, %v4822
          %v4824 = vpop.f32.mrb[0].mxu0
          %v4825 = vpop.f32.mrb[0].mxu0
          %v4826 = vpop.f32.mrb[0].mxu0
          %4827 = vdwg.mxu0
          %v4828 = vmax.f32 %v4823, 0.0
          %v4829 = vpack.c.bf16 %v4828, %v4828
          %v4831 = vlaneseq
          %v4832 = vshrl.u32 %v4831, 7
          %v4833 = vsub.s32 0, %v4832
          %v4834 = vrot.slane %v4765, %v4833
          %v4844 = vunpack.c.l.b16 %v4757
          %v4845 = vunpack.c.l.b16 %v4758
          %v4846 = vunpack.c.l.b16 %v4759
          %v4847 = vunpack.c.l.b16 %v4760
          %v4848 = vunpack.c.l.b16 %v4761
          %v4849 = vunpack.c.l.b16 %v4762
          %v4850 = vunpack.c.l.b16 %v4763
          %v4851 = vunpack.c.l.b16 %v4764
          %v4852 = vpack.c.b16 %v4845, %v4844
          %v4853 = vpack.c.b16 %v4847, %v4846
          %v4854 = vpack.c.b16 %v4849, %v4848
          %v4855 = vpack.c.b16 %v4851, %v4850
          %vm4860 = vcmask 523264
          %v4862 = vsel %vm4860, %v4829, 0
          %4864 = vmatprep.subr.bf16.mxu0 0
          %4865 = vmatpush1.bf16.msra.mxu0 %v4852
          %4866 = vmatprep.subr.bf16.mxu0 0
          %4867 = vmatpush1.bf16.msra.mxu0 %v4853
          %4868 = vmatprep.subr.bf16.mxu0 0
          %4869 = vmatpush1.bf16.msra.mxu0 %v4854
          %4870 = vmatprep.subr.bf16.mxu0 0
          %4871 = vmatpush1.bf16.msra.mxu0 %v4855
          %4872 = vmatprep.subr.bf16.mxu0 0
          %4873 = vmatpush1.bf16.msra.mxu0 0
          %4874 = vmatprep.subr.bf16.mxu0 0
          %4875 = vmatpush1.bf16.msra.mxu0 0
          %4876 = vmatprep.subr.bf16.mxu0 0
          %4877 = vmatpush1.bf16.msra.mxu0 0
          %4878 = vmatprep.subr.bf16.mxu0 0
          %4879 = vmatpush1.bf16.msra.mxu0 0
          %4880 = vmatprep.subr.bf16.mxu0 0
          %4881 = vmatpush1.bf16.msra.mxu0 0
          %4882 = vmatprep.subr.bf16.mxu0 0
          %4883 = vmatpush1.bf16.msra.mxu0 0
          %4884 = vmatprep.subr.bf16.mxu0 0
          %4885 = vmatpush1.bf16.msra.mxu0 0
          %4886 = vmatprep.subr.bf16.mxu0 0
          %4887 = vmatpush1.bf16.msra.mxu0 0
          %4888 = vmatprep.subr.bf16.mxu0 0
          %4889 = vmatpush1.bf16.msra.mxu0 0
          %4890 = vmatprep.subr.bf16.mxu0 0
          %4891 = vmatpush1.bf16.msra.mxu0 0
          %4892 = vmatprep.subr.bf16.mxu0 0
          %4893 = vmatpush1.bf16.msra.mxu0 0
          %4894 = vmatprep.subr.bf16.mxu0 0
          %4895 = vmatpush1.bf16.msra.mxu0 0
          %4896 = vmatprep.mubr.bf16.mxu0 0
          %4897 = vmatmul.mubr.bf16.gmra.mrb[0].mxu0 %v4862
          %v4898 = vpop.f32.mrb[0].mxu0
          %v4899 = vadd.f32 %v4834, %v4898
          %v4900 = vpop.f32.mrb[0].mxu0
          %v4901 = vpop.f32.mrb[0].mxu0
          %v4902 = vpop.f32.mrb[0].mxu0
          %4903 = vdwg.mxu0
          %v4904 = vadd.f32 %v4751, %v4899
          %v4905 = vld [vmem:[%s2289] sm:$0x1]
          %v4906 = vld [vmem:[%s2298] sm:$0x1]
          %v4907 = vsel %vm3386, %v4904, 0.0
          %4908 = vadd.xlane.f32.xlu0 %v4907
          %v4909 = vpop.xlane.xlu0 %4908
          %v4910 = vmul.f32 %v4909, %v4000
          %v4911 = vsub.f32 %v4904, %v4910
          %v4912 = vmul.f32 %v4911, %v4911
          %v4913 = vsel %vm3386, %v4912, 0.0
          %4914 = vadd.xlane.f32.xlu0 %v4913
          %v4915 = vpop.xlane.xlu0 %4914
          %v4916 = vmul.f32 %v4915, %v4000
          %v4917 = vadd.f32 %v4916, 1e-05
          %v4918 = vrsqrt.pop %v4917
          %v4919 = vmul.f32 %v4911, %v4918
          %v4921 = vlaneseq
          %v4922 = vshrl.u32 %v4921, 7
          %v4923 = vsub.s32 0, %v4922
          %v4924 = vrot.slane %v4905, %v4923
          %v4926 = vmul.f32 %v4919, %v4924
          %v4928 = vlaneseq
          %v4929 = vshrl.u32 %v4928, 7
          %v4930 = vsub.s32 0, %v4929
          %v4931 = vrot.slane %v4906, %v4930
          %v4933 = vadd.f32 %v4926, %v4931
          %p4934 = scmp.lt.s32.totalorder %s100, 3
          // Predicated region
          $region231: #{transformer_forward.1} parent=229 // pred_check
            %p4935 = pneg %p4934
          $region232: #{transformer_forward.1} parent=229 // pred_check_branch
            %4937 = sbr.rel (%p4935) target = $region234
          $region233: #{transformer_forward.1} parent=229 // pred_region
            %4938 = vst.msk [vmem:[#allocation3] sm:$0xff] %vm3386, %v4933
          $region234: #{transformer_forward.1} parent=229 // pred_fallthru
            _
          %p4939 = scmp.eq.s32.totalorder %s100, 3
          // Predicated region
          $region235: #{transformer_forward.1} parent=229 // pred_check
            %p4940 = pneg %p4939
          $region236: #{transformer_forward.1} parent=229 // pred_check_branch
            %4942 = sbr.rel (%p4940) target = $region238
          $region237: #{transformer_forward.1} parent=229 // pred_region
            %s4943 = smul.u32 4, 4
            %s4944 = smul.u32 %s4943, 1
            %s4945 = sshll.u32 %s4944, 4
            %4946 = dma.done [#allocation6], %s4945
            %v4947 = vpack.c.bf16 %v4933, %v4933
            %v4948 = vld [vmem:[#allocation5] sm:$0xff]
            %v4949 = vld [vmem:[#allocation5 + $0x8] sm:$0xff]
            %v4950 = vld [vmem:[%s79] sm:$0x1]
            %v4952 = vlaneseq
            %v4953 = vshrl.u32 %v4952, 7
            %v4954 = vsub.s32 0, %v4953
            %v4955 = vrot.slane %v4950, %v4954
            %v4958 = vsel %vm3386, %v4947, 0
            %4960 = vmatprep.subr.bf16.mxu0 0
            %4961 = vmatpush1.bf16.msra.mxu0 %v4948
            %4962 = vmatprep.subr.bf16.mxu0 0
            %4963 = vmatpush1.bf16.msra.mxu0 %v4949
            %4964 = vmatprep.subr.bf16.mxu0 0
            %4965 = vmatpush1.bf16.msra.mxu0 0
            %4966 = vmatprep.subr.bf16.mxu0 0
            %4967 = vmatpush1.bf16.msra.mxu0 0
            %4968 = vmatprep.subr.bf16.mxu0 0
            %4969 = vmatpush1.bf16.msra.mxu0 0
            %4970 = vmatprep.subr.bf16.mxu0 0
            %4971 = vmatpush1.bf16.msra.mxu0 0
            %4972 = vmatprep.subr.bf16.mxu0 0
            %4973 = vmatpush1.bf16.msra.mxu0 0
            %4974 = vmatprep.subr.bf16.mxu0 0
            %4975 = vmatpush1.bf16.msra.mxu0 0
            %4976 = vmatprep.subr.bf16.mxu0 0
            %4977 = vmatpush1.bf16.msra.mxu0 0
            %4978 = vmatprep.subr.bf16.mxu0 0
            %4979 = vmatpush1.bf16.msra.mxu0 0
            %4980 = vmatprep.subr.bf16.mxu0 0
            %4981 = vmatpush1.bf16.msra.mxu0 0
            %4982 = vmatprep.subr.bf16.mxu0 0
            %4983 = vmatpush1.bf16.msra.mxu0 0
            %4984 = vmatprep.subr.bf16.mxu0 0
            %4985 = vmatpush1.bf16.msra.mxu0 0
            %4986 = vmatprep.subr.bf16.mxu0 0
            %4987 = vmatpush1.bf16.msra.mxu0 0
            %4988 = vmatprep.subr.bf16.mxu0 0
            %4989 = vmatpush1.bf16.msra.mxu0 0
            %4990 = vmatprep.subr.bf16.mxu0 0
            %4991 = vmatpush1.bf16.msra.mxu0 0
            %4992 = vmatprep.mubr.bf16.mxu0 0
            %4993 = vmatmul.mubr.bf16.gmra.mrb[0].mxu0 %v4958
            %v4994 = vpop.f32.mrb[0].mxu0
            %v4995 = vadd.f32 %v4955, %v4994
            %v4996 = vpop.f32.mrb[0].mxu0
            %v4997 = vpop.f32.mrb[0].mxu0
            %v4998 = vpop.f32.mrb[0].mxu0
            %4999 = vdwg.mxu0
            %5000 = vst [vmem:[%s2040] sm:$0xff] %v4995
          $region238: #{transformer_forward.1} parent=229 // pred_fallthru
            _
        $region230: #{transformer_forward.1} parent=175 // pred_fallthru
          _
        %s5001 = sand.u32 %s1282, 1
        %s5002 = scalar_lea.sflag [#allocation8], %s5001
        %s5003 = sand.u32 %s1282, 1
        %s5004 = smul.addr %s5003, 8
        %s5005 = scalar_lea.vmem [#allocation7], %s5004
        // Predicated region
        $region239: #{transformer_forward.1} parent=175 // pred_check
          %p5006 = pneg %p1292
        $region240: #{transformer_forward.1} parent=175 // pred_check_branch
          %5008 = sbr.rel (%p5006) target = $region242
        $region241: #{transformer_forward.1} parent=175 // pred_region
          %s5010 = ssub.s32 128, 128
          %5011 = vsyncadd %s5002, %s5010
          %s5012 = smul.addr %s99, 128
          %s5013 = scalar_lea.hbm %s81, %s5012
          %s5015 = sshll.u32 %s5005, 4
          %s5016 = int_to_ptr.vmem [resolvable:$true] %s5015
          %5018 = dma.vmem_to_hbm [thread:$0]  %s5016, 128, %s5013, %s5002
        $region242: #{transformer_forward.1} parent=175 // pred_fallthru
          _
      $region176: #{transformer_forward.1} parent=5 // pred_fallthru
        _
      %p5019 = scmp.le.s32.totalorder 2, %s90
      // Predicated region
      $region243: #{transformer_forward.1} parent=5 // pred_check
        %p5020 = pneg %p5019
      $region244: #{transformer_forward.1} parent=5 // pred_check_branch
        %5022 = sbr.rel (%p5020) target = $region246
      $region245: #{transformer_forward.1} parent=5 // pred_region
        %s5023 = ssub.s32 %s90, 2
        // Predicated region
        $region247: #{transformer_forward.1} parent=245 // pred_check
          %p5024 = pneg %p1298
        $region248: #{transformer_forward.1} parent=245 // pred_check_branch
          %5026 = sbr.rel (%p5024) target = $region250
        $region249: #{transformer_forward.1} parent=245 // pred_region
          %s5027 = sand.u32 %s1283, 1
          %s5028 = scalar_lea.sflag [#allocation8], %s5027
          %s5029 = sand.u32 %s1283, 1
          %s5030 = smul.addr %s5029, 8
          %s5031 = scalar_lea.vmem [#allocation7], %s5030
          %5032 = dma.done %s5028, 128
        $region250: #{transformer_forward.1} parent=245 // pred_fallthru
          _
      $region246: #{transformer_forward.1} parent=5 // pred_fallthru
        _
    $region6: #{transformer_forward.1} parent=1 // loop_footer
      %s94 = sadd.s32 1, %s90
    $region7: #{transformer_forward.1} parent=1 // loop_footer_branch
      %89 = sbr.rel target = $region3
    $region8: #{transformer_forward.1} parent=1 // loop_exit
      _
    %5033 = vsyncpa [#allocation8], 1
    %s5034 = scalar_lea.sflag [#allocation8], 1
    %5035 = vsyncpa %s5034, 1
  %5036 = vsyncmov [#allocation6]
  %s5037 = vpop.sfrf %5036
  %p5038 = scmp.eq.s32.totalorder %s5037, 0
  %p5039 = pneg %p5038
  %5041 = shalt.err (%p5039)

</llo_original>
